<compile_context>
chip_gen: v7x
topology: tpu7x:2x2x1
jax: 0.10.0
libtpu: 0.0.40
codegen_flags: <defaults>
</compile_context>

<pallas_src>
import numpy as np
import jax
import jax.numpy as jnp
from jax.experimental import pallas as pl
from jax.experimental.pallas import tpu as pltpu

RESIZE = 448
PAD = 96
OUT = RESIZE + 2 * PAD  # 640


def _bilinear_matrix(out_size: int, in_size: int) -> np.ndarray:
    """Row-interpolation matrix M (out_size, in_size): out = M @ in.

    Matches torch bilinear resize with align_corners=False (half-pixel
    centers, clamped to the valid range)."""
    scale = in_size / out_size
    i = np.arange(out_size, dtype=np.float64)
    src = (i + 0.5) * scale - 0.5
    src = np.clip(src, 0.0, in_size - 1)
    i0 = np.floor(src).astype(np.int64)
    i1 = np.minimum(i0 + 1, in_size - 1)
    w1 = src - i0
    w0 = 1.0 - w1
    m = np.zeros((out_size, in_size), dtype=np.float32)
    m[np.arange(out_size), i0] += w0.astype(np.float32)
    m[np.arange(out_size), i1] += w1.astype(np.float32)
    return m


def _interp_matrices(h_in: int, w_in: int):
    """Constant interpolation matrices.

    ay : (RESIZE, h_in) row-interp matrix (interior output rows only -- the
         96-row zero border is never computed or written by the kernel).
    axt: (w_in, OUT) transposed col-interp matrix with zero pad columns, so
         the 96-column zero border falls out of the matmul for free.
    """
    ay = _bilinear_matrix(RESIZE, h_in)                       # (448, h_in)
    axt = np.zeros((w_in, OUT), dtype=np.float32)
    axt[:, PAD:PAD + RESIZE] = _bilinear_matrix(RESIZE, w_in).T
    return jnp.asarray(ay), jnp.asarray(axt)


def _vmem_limit_bytes(h: int, w: int, out_itemsize: int) -> int:
    """Shape-derived scoped-VMEM limit, clamped to the chip's physical VMEM."""
    f32 = 4
    need = (
        2 * 4 * h * w * f32                   # double-buffered (3 color + 1 depth) input planes
        + 2 * (RESIZE * h + w * OUT) * f32    # double-buffered constant interp matrices
        + 4 * RESIZE * OUT * out_itemsize     # 3 color + 1 depth output scratch planes
        + (4 << 20)                           # compiler / DMA-descriptor slack
    )
    try:
        cap = int(getattr(pltpu.get_tpu_info(), "vmem_capacity_bytes", 128 << 20))
    except Exception:  # interpret mode / unusual backends
        cap = 128 << 20
    return int(min(max(need, 24 << 20), 0.75 * cap))


def _preprocess_kernel(ay_ref, axt_ref, col_ref, dep_ref,
                       cbuf_hbm, dbuf_hbm, cout_hbm, dout_hbm,
                       cscratch, dscratch, sems):
    # ay_ref : (RESIZE, H_in)      interior-row interp matrix
    # axt_ref: (W_in, OUT)         padded col-interp matrix (transposed, dense)
    # col_ref: (1, 3, H_in, W_in)  current color image (all channels)
    # dep_ref: (1, 1, H_in, W_in)  current depth image (single channel)
    # cbuf_hbm/dbuf_hbm: pre-zeroed HBM buffers aliased to the outputs (unused
    #                    here; the alias is what keeps the border zero without
    #                    the kernel ever writing it)
    # cout_hbm/dout_hbm: (N, 3, OUT, OUT) raw HBM output refs
    # cscratch: VMEM (3, RESIZE, OUT); dscratch: VMEM (RESIZE, OUT)
    del cbuf_hbm, dbuf_hbm
    b = pl.program_id(0)
    ay = ay_ref[...]
    axt = axt_ref[...]

    def resize_plane(img):  # (H_in, W_in) -> (RESIZE, OUT), interior rows only
        # NOTE: batching the 4 planes into two bigger matmuls (better MXU fill)
        # was considered but skipped: compute is fully hidden under the output
        # DMA on all generations.
        tmp = jnp.dot(img, axt, preferred_element_type=jnp.float32)  # (H, OUT)
        return jnp.dot(ay, tmp, preferred_element_type=jnp.float32)  # (RESIZE, OUT)

    copies = []

    # Depth: resize once, DMA-replicate into the 3 output channels (rows
    # [PAD, PAD+RESIZE) only -- the border stays untouched / zero).
    dscratch[...] = resize_plane(dep_ref[0, 0]).astype(dscratch.dtype)
    for c in range(3):
        cp = pltpu.make_async_copy(
            dscratch,
            dout_hbm.at[b, c, pl.ds(PAD, RESIZE), :],
            sems.at[c])
        cp.start()
        copies.append(cp)

    # Color: BGR swap folded into static reversed channel indexing.
    for c in range(3):
        cscratch[c] = resize_plane(col_ref[0, 2 - c]).astype(cscratch.dtype)
        cp = pltpu.make_async_copy(
            cscratch.at[c],
            cout_hbm.at[b, c, pl.ds(PAD, RESIZE), :],
            sems.at[3 + c])
        cp.start()
        copies.append(cp)

    # All scratch->HBM copies must finish before the next grid step reuses the
    # scratch planes.
    for cp in copies:
        cp.wait()


def preprocess(color: jax.Array, depth: jax.Array, *,
               out_dtype=None, color_out=None, depth_out=None):
    """Pallas equivalent of PreProcess.forward.

    color: (N, 3, H, W) float32, depth: (N, 1, H, W) float32
    returns (color_pad, depth_pad), each (N, 3, 640, 640).

    out_dtype: output dtype; default = color.dtype (matches PyTorch).  Passing
      jnp.bfloat16 halves HBM writeback (the kernel's bottleneck).
    color_out / depth_out: optional pre-zeroed (N,3,640,640) buffers; passing
      persistent buffers amortizes the border memset across calls (the kernel
      only ever writes the 448 interior rows).
    """
    n, c, h, w = color.shape
    assert c == 3 and depth.shape == (n, 1, h, w)
    out_dtype = jnp.dtype(out_dtype if out_dtype is not None else color.dtype)
    ay, axt = _interp_matrices(h, w)

    if color_out is None:
        color_out = jnp.zeros((n, 3, OUT, OUT), out_dtype)
    if depth_out is None:
        depth_out = jnp.zeros((n, 3, OUT, OUT), out_dtype)
    assert color_out.shape == (n, 3, OUT, OUT) and color_out.dtype == out_dtype
    assert depth_out.shape == (n, 3, OUT, OUT) and depth_out.dtype == out_dtype

    out_shape = (jax.ShapeDtypeStruct((n, 3, OUT, OUT), out_dtype),
                 jax.ShapeDtypeStruct((n, 3, OUT, OUT), out_dtype))

    flops = n * 4 * 2 * (h * w * OUT + RESIZE * h * OUT)
    bytes_accessed = (n * 4 * h * w * 4                       # image reads
                      + (RESIZE * h + w * OUT) * 4            # constant matrices
                      + 2 * n * 3 * RESIZE * OUT * out_dtype.itemsize)  # writes
    cost = pl.CostEstimate(flops=flops, transcendentals=0,
                           bytes_accessed=bytes_accessed)

    color_pad, depth_pad = pl.pallas_call(
        _preprocess_kernel,
        out_shape=out_shape,
        grid_spec=pltpu.PrefetchScalarGridSpec(
            num_scalar_prefetch=0,
            grid=(n,),
            in_specs=[
                pl.BlockSpec((RESIZE, h), lambda i: (0, 0)),
                pl.BlockSpec((w, OUT), lambda i: (0, 0)),
                pl.BlockSpec((1, 3, h, w), lambda i: (i, 0, 0, 0)),
                pl.BlockSpec((1, 1, h, w), lambda i: (i, 0, 0, 0)),
                pl.BlockSpec(memory_space=pl.ANY),   # pre-zeroed color buffer
                pl.BlockSpec(memory_space=pl.ANY),   # pre-zeroed depth buffer
            ],
            out_specs=[
                pl.BlockSpec(memory_space=pl.ANY),   # written via manual DMA
                pl.BlockSpec(memory_space=pl.ANY),
            ],
            scratch_shapes=[
                pltpu.VMEM((3, RESIZE, OUT), out_dtype),
                pltpu.VMEM((RESIZE, OUT), out_dtype),
                pltpu.SemaphoreType.DMA((6,)),
            ],
        ),
        input_output_aliases={4: 0, 5: 1},
        compiler_params=pltpu.CompilerParams(
            dimension_semantics=("parallel",),
            vmem_limit_bytes=_vmem_limit_bytes(h, w, out_dtype.itemsize),
        ),
        cost_estimate=cost,
    )(ay, axt, color, depth, color_out, depth_out)
    # TODO(synk): for very large camera inputs (>=720p) the double-buffered
    # whole-image input block should be row-tiled to stay under v7x's 64 MiB
    # VMEM; not needed at typical RGBD resolutions.
    return color_pad, depth_pad


if __name__ == "__main__":
    key = jax.random.PRNGKey(0)
    kc, kd = jax.random.split(key)
    N, H, W = 2, 16, 16
    color = jax.random.uniform(kc, (N, 3, H, W), dtype=jnp.float32)
    depth = jax.random.uniform(kd, (N, 1, H, W), dtype=jnp.float32)

    color_pad, depth_pad = preprocess(color, depth)
    jax.block_until_ready((color_pad, depth_pad))

    # --- correctness checks against a plain-JAX reference (interior rows) ---
    ay, axt = _interp_matrices(H, W)
    ref_c = jnp.einsum("rh,nchw,wq->ncrq", ay, color[:, ::-1, :, :], axt)
    ref_d = jnp.einsum("rh,nhw,wq->nrq", ay, depth[:, 0], axt)
    interior = slice(PAD, PAD + RESIZE)

    assert color_pad.shape == (N, 3, OUT, OUT) and color_pad.dtype == jnp.float32
    assert depth_pad.shape == (N, 3, OUT, OUT)
    assert float(jnp.max(jnp.abs(color_pad[:, :, interior, :] - ref_c))) < 1e-3
    for ch in range(3):
        assert float(jnp.max(jnp.abs(depth_pad[:, ch, interior, :] - ref_d))) < 1e-3
    # padding border must be exactly zero (rows come from the pre-zeroed
    # aliased buffer; columns from the zero pad columns of axt)
    assert float(jnp.max(jnp.abs(color_pad[:, :, :PAD, :]))) == 0.0
    assert float(jnp.max(jnp.abs(color_pad[:, :, PAD + RESIZE:, :]))) == 0.0
    assert float(jnp.max(jnp.abs(color_pad[:, :, :, :PAD]))) == 0.0
    assert float(jnp.max(jnp.abs(color_pad[:, :, :, PAD + RESIZE:]))) == 0.0
    assert float(jnp.max(jnp.abs(depth_pad[:, :, :PAD, :]))) == 0.0
    assert float(jnp.max(jnp.abs(depth_pad[:, :, :, PAD + RESIZE:]))) == 0.0
    # depth channels must be identical replicas (same scratch plane DMA'd 3x)
    assert float(jnp.max(jnp.abs(depth_pad[:, 0] - depth_pad[:, 2]))) == 0.0

    # --- bf16 output variant: halves HBM writeback (the binding resource) ---
    cbf, dbf = preprocess(color, depth, out_dtype=jnp.bfloat16)
    jax.block_until_ready((cbf, dbf))
    assert cbf.dtype == jnp.bfloat16 and dbf.shape == (N, 3, OUT, OUT)
    err = jnp.max(jnp.abs(cbf[:, :, interior, :].astype(jnp.float32) - ref_c))
    assert float(err) < 2e-2
    assert float(jnp.max(jnp.abs(cbf[:, :, :PAD, :].astype(jnp.float32)))) == 0.0

    print("KERNEL_OK")
</pallas_src>

<mosaic_0001>
module attributes {stable_mosaic.version = 11 : i64} {
  func.func @_preprocess_kernel(%arg0: i32, %arg1: memref<448x16xf32, #tpu.memory_space<vmem>>, %arg2: memref<16x640xf32, #tpu.memory_space<vmem>>, %arg3: memref<1x3x16x16xf32, #tpu.memory_space<vmem>>, %arg4: memref<1x1x16x16xf32, #tpu.memory_space<vmem>>, %arg5: memref<2x3x640x640xf32, #tpu.memory_space<any>>, %arg6: memref<2x3x640x640xf32, #tpu.memory_space<any>>, %arg7: memref<2x3x640x640xf32, #tpu.memory_space<any>>, %arg8: memref<2x3x640x640xf32, #tpu.memory_space<any>>, %arg9: memref<3x448x640xf32, #tpu.memory_space<vmem>>, %arg10: memref<448x640xf32, #tpu.memory_space<vmem>>, %arg11: memref<6x!tpu.dma_semaphore, #tpu.memory_space<semaphore_mem>>) attributes {dimension_semantics = [#tpu.dimension_semantics<parallel>], iteration_bounds = array<i64: 2>, scalar_prefetch = 0 : i64, scratch_operands = 3 : i64, tpu.core_type = #tpu.core_type<tc>, window_params = [{pipeline_mode = #tpu.pipeline_mode<synchronous>, transform_indices = @transform_0, window_bounds = array<i64: 448, 16>}, {pipeline_mode = #tpu.pipeline_mode<synchronous>, transform_indices = @transform_1, window_bounds = array<i64: 16, 640>}, {transform_indices = @transform_2, window_bounds = array<i64: 1, 3, 16, 16>}, {transform_indices = @transform_3, window_bounds = array<i64: 1, 1, 16, 16>}, {}, {}, {}, {}]} {
    %c0 = arith.constant 0 : index
    %c0_0 = arith.constant 0 : index
    %0 = vector.load %arg1[%c0, %c0_0] : memref<448x16xf32, #tpu.memory_space<vmem>>, vector<448x16xf32>
    %c0_1 = arith.constant 0 : index
    %c0_2 = arith.constant 0 : index
    %1 = vector.load %arg2[%c0_1, %c0_2] : memref<16x640xf32, #tpu.memory_space<vmem>>, vector<16x640xf32>
    %c0_3 = arith.constant 0 : index
    %c0_4 = arith.constant 0 : index
    %c0_5 = arith.constant 0 : index
    %c0_6 = arith.constant 0 : index
    %2 = vector.load %arg4[%c0_3, %c0_4, %c0_5, %c0_6] : memref<1x1x16x16xf32, #tpu.memory_space<vmem>>, vector<1x1x16x16xf32>
    %3 = vector.shape_cast %2 : vector<1x1x16x16xf32> to vector<16x16xf32>
    %cst = arith.constant dense<0.000000e+00> : vector<16x640xf32>
    %4 = tpu.matmul %3, %1, %cst {dimension_numbers = #tpu.dot_dimension_numbers<[1], [0], [0], [1], [0, 0, 1, 1], [], []>} : vector<16x16xf32>, vector<16x640xf32>, vector<16x640xf32> -> vector<16x640xf32>
    %cst_7 = arith.constant dense<0.000000e+00> : vector<448x640xf32>
    %5 = tpu.matmul %0, %4, %cst_7 {dimension_numbers = #tpu.dot_dimension_numbers<[1], [0], [0], [1], [0, 0, 1, 1], [], []>} : vector<448x16xf32>, vector<16x640xf32>, vector<448x640xf32> -> vector<448x640xf32>
    %c0_8 = arith.constant 0 : index
    %c0_9 = arith.constant 0 : index
    %6 = vector.load %arg10[%c0_8, %c0_9] : memref<448x640xf32, #tpu.memory_space<vmem>>, vector<448x640xf32>
    tpu.vector_store %arg10[%c0_8, %c0_9], %5 {strides = array<i32>} : memref<448x640xf32, #tpu.memory_space<vmem>>, vector<448x640xf32>,
    %c0_i32 = arith.constant 0 : i32
    %c0_i32_10 = arith.constant 0 : i32
    %c96_i32 = arith.constant 96 : i32
    %c0_i32_11 = arith.constant 0 : i32
    %7 = tpu.memref_slice %arg8[%arg0, %c0_i32, %c96_i32, %c0_i32_11] : memref<2x3x640x640xf32, #tpu.memory_space<any>> -> memref<1x1x448x640xf32, #tpu.memory_space<any>>
    %8 = tpu.memref_squeeze %7 : memref<1x1x448x640xf32, #tpu.memory_space<any>> -> memref<448x640xf32, #tpu.memory_space<any>>
    %9 = tpu.memref_slice %arg11[%c0_i32_10] : memref<6x!tpu.dma_semaphore, #tpu.memory_space<semaphore_mem>> -> memref<1x!tpu.dma_semaphore, #tpu.memory_space<semaphore_mem>>
    %10 = tpu.memref_squeeze %9 : memref<1x!tpu.dma_semaphore, #tpu.memory_space<semaphore_mem>> -> memref<!tpu.dma_semaphore, #tpu.memory_space<semaphore_mem>>
    tpu.enqueue_dma source(%arg10 : memref<448x640xf32, #tpu.memory_space<vmem>>) target(%8 : memref<448x640xf32, #tpu.memory_space<any>>) target_semaphore(%10 : memref<!tpu.dma_semaphore, #tpu.memory_space<semaphore_mem>>)
    %c1_i32 = arith.constant 1 : i32
    %c1_i32_12 = arith.constant 1 : i32
    %c96_i32_13 = arith.constant 96 : i32
    %c0_i32_14 = arith.constant 0 : i32
    %11 = tpu.memref_slice %arg8[%arg0, %c1_i32, %c96_i32_13, %c0_i32_14] : memref<2x3x640x640xf32, #tpu.memory_space<any>> -> memref<1x1x448x640xf32, #tpu.memory_space<any>>
    %12 = tpu.memref_squeeze %11 : memref<1x1x448x640xf32, #tpu.memory_space<any>> -> memref<448x640xf32, #tpu.memory_space<any>>
    %13 = tpu.memref_slice %arg11[%c1_i32_12] : memref<6x!tpu.dma_semaphore, #tpu.memory_space<semaphore_mem>> -> memref<1x!tpu.dma_semaphore, #tpu.memory_space<semaphore_mem>>
    %14 = tpu.memref_squeeze %13 : memref<1x!tpu.dma_semaphore, #tpu.memory_space<semaphore_mem>> -> memref<!tpu.dma_semaphore, #tpu.memory_space<semaphore_mem>>
    tpu.enqueue_dma source(%arg10 : memref<448x640xf32, #tpu.memory_space<vmem>>) target(%12 : memref<448x640xf32, #tpu.memory_space<any>>) target_semaphore(%14 : memref<!tpu.dma_semaphore, #tpu.memory_space<semaphore_mem>>)
    %c2_i32 = arith.constant 2 : i32
    %c2_i32_15 = arith.constant 2 : i32
    %c96_i32_16 = arith.constant 96 : i32
    %c0_i32_17 = arith.constant 0 : i32
    %15 = tpu.memref_slice %arg8[%arg0, %c2_i32, %c96_i32_16, %c0_i32_17] : memref<2x3x640x640xf32, #tpu.memory_space<any>> -> memref<1x1x448x640xf32, #tpu.memory_space<any>>
    %16 = tpu.memref_squeeze %15 : memref<1x1x448x640xf32, #tpu.memory_space<any>> -> memref<448x640xf32, #tpu.memory_space<any>>
    %17 = tpu.memref_slice %arg11[%c2_i32_15] : memref<6x!tpu.dma_semaphore, #tpu.memory_space<semaphore_mem>> -> memref<1x!tpu.dma_semaphore, #tpu.memory_space<semaphore_mem>>
    %18 = tpu.memref_squeeze %17 : memref<1x!tpu.dma_semaphore, #tpu.memory_space<semaphore_mem>> -> memref<!tpu.dma_semaphore, #tpu.memory_space<semaphore_mem>>
    tpu.enqueue_dma source(%arg10 : memref<448x640xf32, #tpu.memory_space<vmem>>) target(%16 : memref<448x640xf32, #tpu.memory_space<any>>) target_semaphore(%18 : memref<!tpu.dma_semaphore, #tpu.memory_space<semaphore_mem>>)
    %c0_18 = arith.constant 0 : index
    %c2 = arith.constant 2 : index
    %c0_19 = arith.constant 0 : index
    %c0_20 = arith.constant 0 : index
    %19 = vector.load %arg3[%c0_18, %c2, %c0_19, %c0_20] : memref<1x3x16x16xf32, #tpu.memory_space<vmem>>, vector<1x1x16x16xf32>
    %20 = vector.shape_cast %19 : vector<1x1x16x16xf32> to vector<16x16xf32>
    %cst_21 = arith.constant dense<0.000000e+00> : vector<16x640xf32>
    %21 = tpu.matmul %20, %1, %cst_21 {dimension_numbers = #tpu.dot_dimension_numbers<[1], [0], [0], [1], [0, 0, 1, 1], [], []>} : vector<16x16xf32>, vector<16x640xf32>, vector<16x640xf32> -> vector<16x640xf32>
    %cst_22 = arith.constant dense<0.000000e+00> : vector<448x640xf32>
    %22 = tpu.matmul %0, %21, %cst_22 {dimension_numbers = #tpu.dot_dimension_numbers<[1], [0], [0], [1], [0, 0, 1, 1], [], []>} : vector<448x16xf32>, vector<16x640xf32>, vector<448x640xf32> -> vector<448x640xf32>
    %c0_23 = arith.constant 0 : index
    %c0_24 = arith.constant 0 : index
    %c0_25 = arith.constant 0 : index
    %23 = vector.load %arg9[%c0_23, %c0_24, %c0_25] : memref<3x448x640xf32, #tpu.memory_space<vmem>>, vector<1x448x640xf32>
    %24 = vector.shape_cast %23 : vector<1x448x640xf32> to vector<448x640xf32>
    %25 = vector.shape_cast %22 : vector<448x640xf32> to vector<1x448x640xf32>
    tpu.vector_store %arg9[%c0_23, %c0_24, %c0_25], %25 {strides = array<i32>} : memref<3x448x640xf32, #tpu.memory_space<vmem>>, vector<1x448x640xf32>,
    %c0_i32_26 = arith.constant 0 : i32
    %c0_i32_27 = arith.constant 0 : i32
    %c3_i32 = arith.constant 3 : i32
    %c0_i32_28 = arith.constant 0 : i32
    %c0_i32_29 = arith.constant 0 : i32
    %26 = tpu.memref_slice %arg9[%c0_i32_26, %c0_i32_28, %c0_i32_29] : memref<3x448x640xf32, #tpu.memory_space<vmem>> -> memref<1x448x640xf32, #tpu.memory_space<vmem>>
    %27 = tpu.memref_squeeze %26 : memref<1x448x640xf32, #tpu.memory_space<vmem>> -> memref<448x640xf32, #tpu.memory_space<vmem>>
    %c96_i32_30 = arith.constant 96 : i32
    %c0_i32_31 = arith.constant 0 : i32
    %28 = tpu.memref_slice %arg7[%arg0, %c0_i32_27, %c96_i32_30, %c0_i32_31] : memref<2x3x640x640xf32, #tpu.memory_space<any>> -> memref<1x1x448x640xf32, #tpu.memory_space<any>>
    %29 = tpu.memref_squeeze %28 : memref<1x1x448x640xf32, #tpu.memory_space<any>> -> memref<448x640xf32, #tpu.memory_space<any>>
    %30 = tpu.memref_slice %arg11[%c3_i32] : memref<6x!tpu.dma_semaphore, #tpu.memory_space<semaphore_mem>> -> memref<1x!tpu.dma_semaphore, #tpu.memory_space<semaphore_mem>>
    %31 = tpu.memref_squeeze %30 : memref<1x!tpu.dma_semaphore, #tpu.memory_space<semaphore_mem>> -> memref<!tpu.dma_semaphore, #tpu.memory_space<semaphore_mem>>
    tpu.enqueue_dma source(%27 : memref<448x640xf32, #tpu.memory_space<vmem>>) target(%29 : memref<448x640xf32, #tpu.memory_space<any>>) target_semaphore(%31 : memref<!tpu.dma_semaphore, #tpu.memory_space<semaphore_mem>>)
    %c0_32 = arith.constant 0 : index
    %c1 = arith.constant 1 : index
    %c0_33 = arith.constant 0 : index
    %c0_34 = arith.constant 0 : index
    %32 = vector.load %arg3[%c0_32, %c1, %c0_33, %c0_34] : memref<1x3x16x16xf32, #tpu.memory_space<vmem>>, vector<1x1x16x16xf32>
    %33 = vector.shape_cast %32 : vector<1x1x16x16xf32> to vector<16x16xf32>
    %cst_35 = arith.constant dense<0.000000e+00> : vector<16x640xf32>
    %34 = tpu.matmul %33, %1, %cst_35 {dimension_numbers = #tpu.dot_dimension_numbers<[1], [0], [0], [1], [0, 0, 1, 1], [], []>} : vector<16x16xf32>, vector<16x640xf32>, vector<16x640xf32> -> vector<16x640xf32>
    %cst_36 = arith.constant dense<0.000000e+00> : vector<448x640xf32>
    %35 = tpu.matmul %0, %34, %cst_36 {dimension_numbers = #tpu.dot_dimension_numbers<[1], [0], [0], [1], [0, 0, 1, 1], [], []>} : vector<448x16xf32>, vector<16x640xf32>, vector<448x640xf32> -> vector<448x640xf32>
    %c1_37 = arith.constant 1 : index
    %c0_38 = arith.constant 0 : index
    %c0_39 = arith.constant 0 : index
    %36 = vector.load %arg9[%c1_37, %c0_38, %c0_39] : memref<3x448x640xf32, #tpu.memory_space<vmem>>, vector<1x448x640xf32>
    %37 = vector.shape_cast %36 : vector<1x448x640xf32> to vector<448x640xf32>
    %38 = vector.shape_cast %35 : vector<448x640xf32> to vector<1x448x640xf32>
    tpu.vector_store %arg9[%c1_37, %c0_38, %c0_39], %38 {strides = array<i32>} : memref<3x448x640xf32, #tpu.memory_space<vmem>>, vector<1x448x640xf32>,
    %c1_i32_40 = arith.constant 1 : i32
    %c1_i32_41 = arith.constant 1 : i32
    %c4_i32 = arith.constant 4 : i32
    %c0_i32_42 = arith.constant 0 : i32
    %c0_i32_43 = arith.constant 0 : i32
    %39 = tpu.memref_slice %arg9[%c1_i32_40, %c0_i32_42, %c0_i32_43] : memref<3x448x640xf32, #tpu.memory_space<vmem>> -> memref<1x448x640xf32, #tpu.memory_space<vmem>>
    %40 = tpu.memref_squeeze %39 : memref<1x448x640xf32, #tpu.memory_space<vmem>> -> memref<448x640xf32, #tpu.memory_space<vmem>>
    %c96_i32_44 = arith.constant 96 : i32
    %c0_i32_45 = arith.constant 0 : i32
    %41 = tpu.memref_slice %arg7[%arg0, %c1_i32_41, %c96_i32_44, %c0_i32_45] : memref<2x3x640x640xf32, #tpu.memory_space<any>> -> memref<1x1x448x640xf32, #tpu.memory_space<any>>
    %42 = tpu.memref_squeeze %41 : memref<1x1x448x640xf32, #tpu.memory_space<any>> -> memref<448x640xf32, #tpu.memory_space<any>>
    %43 = tpu.memref_slice %arg11[%c4_i32] : memref<6x!tpu.dma_semaphore, #tpu.memory_space<semaphore_mem>> -> memref<1x!tpu.dma_semaphore, #tpu.memory_space<semaphore_mem>>
    %44 = tpu.memref_squeeze %43 : memref<1x!tpu.dma_semaphore, #tpu.memory_space<semaphore_mem>> -> memref<!tpu.dma_semaphore, #tpu.memory_space<semaphore_mem>>
    tpu.enqueue_dma source(%40 : memref<448x640xf32, #tpu.memory_space<vmem>>) target(%42 : memref<448x640xf32, #tpu.memory_space<any>>) target_semaphore(%44 : memref<!tpu.dma_semaphore, #tpu.memory_space<semaphore_mem>>)
    %c0_46 = arith.constant 0 : index
    %c0_47 = arith.constant 0 : index
    %c0_48 = arith.constant 0 : index
    %c0_49 = arith.constant 0 : index
    %45 = vector.load %arg3[%c0_46, %c0_47, %c0_48, %c0_49] : memref<1x3x16x16xf32, #tpu.memory_space<vmem>>, vector<1x1x16x16xf32>
    %46 = vector.shape_cast %45 : vector<1x1x16x16xf32> to vector<16x16xf32>
    %cst_50 = arith.constant dense<0.000000e+00> : vector<16x640xf32>
    %47 = tpu.matmul %46, %1, %cst_50 {dimension_numbers = #tpu.dot_dimension_numbers<[1], [0], [0], [1], [0, 0, 1, 1], [], []>} : vector<16x16xf32>, vector<16x640xf32>, vector<16x640xf32> -> vector<16x640xf32>
    %cst_51 = arith.constant dense<0.000000e+00> : vector<448x640xf32>
    %48 = tpu.matmul %0, %47, %cst_51 {dimension_numbers = #tpu.dot_dimension_numbers<[1], [0], [0], [1], [0, 0, 1, 1], [], []>} : vector<448x16xf32>, vector<16x640xf32>, vector<448x640xf32> -> vector<448x640xf32>
    %c2_52 = arith.constant 2 : index
    %c0_53 = arith.constant 0 : index
    %c0_54 = arith.constant 0 : index
    %49 = vector.load %arg9[%c2_52, %c0_53, %c0_54] : memref<3x448x640xf32, #tpu.memory_space<vmem>>, vector<1x448x640xf32>
    %50 = vector.shape_cast %49 : vector<1x448x640xf32> to vector<448x640xf32>
    %51 = vector.shape_cast %48 : vector<448x640xf32> to vector<1x448x640xf32>
    tpu.vector_store %arg9[%c2_52, %c0_53, %c0_54], %51 {strides = array<i32>} : memref<3x448x640xf32, #tpu.memory_space<vmem>>, vector<1x448x640xf32>,
    %c2_i32_55 = arith.constant 2 : i32
    %c2_i32_56 = arith.constant 2 : i32
    %c5_i32 = arith.constant 5 : i32
    %c0_i32_57 = arith.constant 0 : i32
    %c0_i32_58 = arith.constant 0 : i32
    %52 = tpu.memref_slice %arg9[%c2_i32_55, %c0_i32_57, %c0_i32_58] : memref<3x448x640xf32, #tpu.memory_space<vmem>> -> memref<1x448x640xf32, #tpu.memory_space<vmem>>
    %53 = tpu.memref_squeeze %52 : memref<1x448x640xf32, #tpu.memory_space<vmem>> -> memref<448x640xf32, #tpu.memory_space<vmem>>
    %c96_i32_59 = arith.constant 96 : i32
    %c0_i32_60 = arith.constant 0 : i32
    %54 = tpu.memref_slice %arg7[%arg0, %c2_i32_56, %c96_i32_59, %c0_i32_60] : memref<2x3x640x640xf32, #tpu.memory_space<any>> -> memref<1x1x448x640xf32, #tpu.memory_space<any>>
    %55 = tpu.memref_squeeze %54 : memref<1x1x448x640xf32, #tpu.memory_space<any>> -> memref<448x640xf32, #tpu.memory_space<any>>
    %56 = tpu.memref_slice %arg11[%c5_i32] : memref<6x!tpu.dma_semaphore, #tpu.memory_space<semaphore_mem>> -> memref<1x!tpu.dma_semaphore, #tpu.memory_space<semaphore_mem>>
    %57 = tpu.memref_squeeze %56 : memref<1x!tpu.dma_semaphore, #tpu.memory_space<semaphore_mem>> -> memref<!tpu.dma_semaphore, #tpu.memory_space<semaphore_mem>>
    tpu.enqueue_dma source(%53 : memref<448x640xf32, #tpu.memory_space<vmem>>) target(%55 : memref<448x640xf32, #tpu.memory_space<any>>) target_semaphore(%57 : memref<!tpu.dma_semaphore, #tpu.memory_space<semaphore_mem>>)
    %c0_i32_61 = arith.constant 0 : i32
    %c0_i32_62 = arith.constant 0 : i32
    %c96_i32_63 = arith.constant 96 : i32
    %c0_i32_64 = arith.constant 0 : i32
    %58 = tpu.memref_slice %arg8[%arg0, %c0_i32_61, %c96_i32_63, %c0_i32_64] : memref<2x3x640x640xf32, #tpu.memory_space<any>> -> memref<1x1x448x640xf32, #tpu.memory_space<any>>
    %59 = tpu.memref_squeeze %58 : memref<1x1x448x640xf32, #tpu.memory_space<any>> -> memref<448x640xf32, #tpu.memory_space<any>>
    %60 = tpu.memref_slice %arg11[%c0_i32_62] : memref<6x!tpu.dma_semaphore, #tpu.memory_space<semaphore_mem>> -> memref<1x!tpu.dma_semaphore, #tpu.memory_space<semaphore_mem>>
    %61 = tpu.memref_squeeze %60 : memref<1x!tpu.dma_semaphore, #tpu.memory_space<semaphore_mem>> -> memref<!tpu.dma_semaphore, #tpu.memory_space<semaphore_mem>>
    tpu.wait_dma2 semaphore(%61 : memref<!tpu.dma_semaphore, #tpu.memory_space<semaphore_mem>>) src(%arg10 : memref<448x640xf32, #tpu.memory_space<vmem>>) dst(%59 : memref<448x640xf32, #tpu.memory_space<any>>)
    %c1_i32_65 = arith.constant 1 : i32
    %c1_i32_66 = arith.constant 1 : i32
    %c96_i32_67 = arith.constant 96 : i32
    %c0_i32_68 = arith.constant 0 : i32
    %62 = tpu.memref_slice %arg8[%arg0, %c1_i32_65, %c96_i32_67, %c0_i32_68] : memref<2x3x640x640xf32, #tpu.memory_space<any>> -> memref<1x1x448x640xf32, #tpu.memory_space<any>>
    %63 = tpu.memref_squeeze %62 : memref<1x1x448x640xf32, #tpu.memory_space<any>> -> memref<448x640xf32, #tpu.memory_space<any>>
    %64 = tpu.memref_slice %arg11[%c1_i32_66] : memref<6x!tpu.dma_semaphore, #tpu.memory_space<semaphore_mem>> -> memref<1x!tpu.dma_semaphore, #tpu.memory_space<semaphore_mem>>
    %65 = tpu.memref_squeeze %64 : memref<1x!tpu.dma_semaphore, #tpu.memory_space<semaphore_mem>> -> memref<!tpu.dma_semaphore, #tpu.memory_space<semaphore_mem>>
    tpu.wait_dma2 semaphore(%65 : memref<!tpu.dma_semaphore, #tpu.memory_space<semaphore_mem>>) src(%arg10 : memref<448x640xf32, #tpu.memory_space<vmem>>) dst(%63 : memref<448x640xf32, #tpu.memory_space<any>>)
    %c2_i32_69 = arith.constant 2 : i32
    %c2_i32_70 = arith.constant 2 : i32
    %c96_i32_71 = arith.constant 96 : i32
    %c0_i32_72 = arith.constant 0 : i32
    %66 = tpu.memref_slice %arg8[%arg0, %c2_i32_69, %c96_i32_71, %c0_i32_72] : memref<2x3x640x640xf32, #tpu.memory_space<any>> -> memref<1x1x448x640xf32, #tpu.memory_space<any>>
    %67 = tpu.memref_squeeze %66 : memref<1x1x448x640xf32, #tpu.memory_space<any>> -> memref<448x640xf32, #tpu.memory_space<any>>
    %68 = tpu.memref_slice %arg11[%c2_i32_70] : memref<6x!tpu.dma_semaphore, #tpu.memory_space<semaphore_mem>> -> memref<1x!tpu.dma_semaphore, #tpu.memory_space<semaphore_mem>>
    %69 = tpu.memref_squeeze %68 : memref<1x!tpu.dma_semaphore, #tpu.memory_space<semaphore_mem>> -> memref<!tpu.dma_semaphore, #tpu.memory_space<semaphore_mem>>
    tpu.wait_dma2 semaphore(%69 : memref<!tpu.dma_semaphore, #tpu.memory_space<semaphore_mem>>) src(%arg10 : memref<448x640xf32, #tpu.memory_space<vmem>>) dst(%67 : memref<448x640xf32, #tpu.memory_space<any>>)
    %c0_i32_73 = arith.constant 0 : i32
    %c0_i32_74 = arith.constant 0 : i32
    %c3_i32_75 = arith.constant 3 : i32
    %c0_i32_76 = arith.constant 0 : i32
    %c0_i32_77 = arith.constant 0 : i32
    %70 = tpu.memref_slice %arg9[%c0_i32_73, %c0_i32_76, %c0_i32_77] : memref<3x448x640xf32, #tpu.memory_space<vmem>> -> memref<1x448x640xf32, #tpu.memory_space<vmem>>
    %71 = tpu.memref_squeeze %70 : memref<1x448x640xf32, #tpu.memory_space<vmem>> -> memref<448x640xf32, #tpu.memory_space<vmem>>
    %c96_i32_78 = arith.constant 96 : i32
    %c0_i32_79 = arith.constant 0 : i32
    %72 = tpu.memref_slice %arg7[%arg0, %c0_i32_74, %c96_i32_78, %c0_i32_79] : memref<2x3x640x640xf32, #tpu.memory_space<any>> -> memref<1x1x448x640xf32, #tpu.memory_space<any>>
    %73 = tpu.memref_squeeze %72 : memref<1x1x448x640xf32, #tpu.memory_space<any>> -> memref<448x640xf32, #tpu.memory_space<any>>
    %74 = tpu.memref_slice %arg11[%c3_i32_75] : memref<6x!tpu.dma_semaphore, #tpu.memory_space<semaphore_mem>> -> memref<1x!tpu.dma_semaphore, #tpu.memory_space<semaphore_mem>>
    %75 = tpu.memref_squeeze %74 : memref<1x!tpu.dma_semaphore, #tpu.memory_space<semaphore_mem>> -> memref<!tpu.dma_semaphore, #tpu.memory_space<semaphore_mem>>
    tpu.wait_dma2 semaphore(%75 : memref<!tpu.dma_semaphore, #tpu.memory_space<semaphore_mem>>) src(%71 : memref<448x640xf32, #tpu.memory_space<vmem>>) dst(%73 : memref<448x640xf32, #tpu.memory_space<any>>)
    %c1_i32_80 = arith.constant 1 : i32
    %c1_i32_81 = arith.constant 1 : i32
    %c4_i32_82 = arith.constant 4 : i32
    %c0_i32_83 = arith.constant 0 : i32
    %c0_i32_84 = arith.constant 0 : i32
    %76 = tpu.memref_slice %arg9[%c1_i32_80, %c0_i32_83, %c0_i32_84] : memref<3x448x640xf32, #tpu.memory_space<vmem>> -> memref<1x448x640xf32, #tpu.memory_space<vmem>>
    %77 = tpu.memref_squeeze %76 : memref<1x448x640xf32, #tpu.memory_space<vmem>> -> memref<448x640xf32, #tpu.memory_space<vmem>>
    %c96_i32_85 = arith.constant 96 : i32
    %c0_i32_86 = arith.constant 0 : i32
    %78 = tpu.memref_slice %arg7[%arg0, %c1_i32_81, %c96_i32_85, %c0_i32_86] : memref<2x3x640x640xf32, #tpu.memory_space<any>> -> memref<1x1x448x640xf32, #tpu.memory_space<any>>
    %79 = tpu.memref_squeeze %78 : memref<1x1x448x640xf32, #tpu.memory_space<any>> -> memref<448x640xf32, #tpu.memory_space<any>>
    %80 = tpu.memref_slice %arg11[%c4_i32_82] : memref<6x!tpu.dma_semaphore, #tpu.memory_space<semaphore_mem>> -> memref<1x!tpu.dma_semaphore, #tpu.memory_space<semaphore_mem>>
    %81 = tpu.memref_squeeze %80 : memref<1x!tpu.dma_semaphore, #tpu.memory_space<semaphore_mem>> -> memref<!tpu.dma_semaphore, #tpu.memory_space<semaphore_mem>>
    tpu.wait_dma2 semaphore(%81 : memref<!tpu.dma_semaphore, #tpu.memory_space<semaphore_mem>>) src(%77 : memref<448x640xf32, #tpu.memory_space<vmem>>) dst(%79 : memref<448x640xf32, #tpu.memory_space<any>>)
    %c2_i32_87 = arith.constant 2 : i32
    %c2_i32_88 = arith.constant 2 : i32
    %c5_i32_89 = arith.constant 5 : i32
    %c0_i32_90 = arith.constant 0 : i32
    %c0_i32_91 = arith.constant 0 : i32
    %82 = tpu.memref_slice %arg9[%c2_i32_87, %c0_i32_90, %c0_i32_91] : memref<3x448x640xf32, #tpu.memory_space<vmem>> -> memref<1x448x640xf32, #tpu.memory_space<vmem>>
    %83 = tpu.memref_squeeze %82 : memref<1x448x640xf32, #tpu.memory_space<vmem>> -> memref<448x640xf32, #tpu.memory_space<vmem>>
    %c96_i32_92 = arith.constant 96 : i32
    %c0_i32_93 = arith.constant 0 : i32
    %84 = tpu.memref_slice %arg7[%arg0, %c2_i32_88, %c96_i32_92, %c0_i32_93] : memref<2x3x640x640xf32, #tpu.memory_space<any>> -> memref<1x1x448x640xf32, #tpu.memory_space<any>>
    %85 = tpu.memref_squeeze %84 : memref<1x1x448x640xf32, #tpu.memory_space<any>> -> memref<448x640xf32, #tpu.memory_space<any>>
    %86 = tpu.memref_slice %arg11[%c5_i32_89] : memref<6x!tpu.dma_semaphore, #tpu.memory_space<semaphore_mem>> -> memref<1x!tpu.dma_semaphore, #tpu.memory_space<semaphore_mem>>
    %87 = tpu.memref_squeeze %86 : memref<1x!tpu.dma_semaphore, #tpu.memory_space<semaphore_mem>> -> memref<!tpu.dma_semaphore, #tpu.memory_space<semaphore_mem>>
    tpu.wait_dma2 semaphore(%87 : memref<!tpu.dma_semaphore, #tpu.memory_space<semaphore_mem>>) src(%83 : memref<448x640xf32, #tpu.memory_space<vmem>>) dst(%85 : memref<448x640xf32, #tpu.memory_space<any>>)
    return
  }
  func.func @transform_0(%arg0: i32) -> (i32, i32) {
    %c0_i32 = arith.constant 0 : i32
    %c0_i32_0 = arith.constant 0 : i32
    %c0_i32_1 = arith.constant 0 : i32
    return %c0_i32, %c0_i32_0 : i32, i32
  }
  func.func @transform_1(%arg0: i32) -> (i32, i32) {
    %c0_i32 = arith.constant 0 : i32
    %c0_i32_0 = arith.constant 0 : i32
    %c0_i32_1 = arith.constant 0 : i32
    return %c0_i32, %c0_i32_0 : i32, i32
  }
  func.func @transform_2(%arg0: i32) -> (i32, i32, i32, i32) {
    %c0_i32 = arith.constant 0 : i32
    %c0_i32_0 = arith.constant 0 : i32
    %c0_i32_1 = arith.constant 0 : i32
    %c0_i32_2 = arith.constant 0 : i32
    return %arg0, %c0_i32, %c0_i32_0, %c0_i32_1 : i32, i32, i32, i32
  }
  func.func @transform_3(%arg0: i32) -> (i32, i32, i32, i32) {
    %c0_i32 = arith.constant 0 : i32
    %c0_i32_0 = arith.constant 0 : i32
    %c0_i32_1 = arith.constant 0 : i32
    %c0_i32_2 = arith.constant 0 : i32
    return %arg0, %c0_i32, %c0_i32_0, %c0_i32_1 : i32, i32, i32, i32
  }
}

</mosaic_0001>

<llo_original>
// kernel: tpu_custom_call.1
$region0: #{tpu_custom_call.1}
  #allocation0 [shape = 'u32[]', space=smem, size = 0x4, offset = 0x4, fixed_abs, tag = 'smem constant byte address 0x4 - core index']
  #allocation1 [shape = 'u32[144,128]{1,0:T(1,128)}', space=vmem, size = 0x12000, scoped, tag = 'internal scratch']
  #allocation2 [shape = 'f32[3,448,640]{2,1,0:T(8,128)}', space=vmem, size = 0x348000, scoped, tag = 'scratch operand']
  #allocation3 [shape = 'f32[448,640]{1,0:T(8,128)}', space=vmem, size = 0x118000, scoped, tag = 'scratch operand']
  #allocation4 [shape = 's32[6]{0}', space=sflag, size = 0x18, scoped, tag = 'scratch operand']
  #allocation5 [shape = 's32[]', space=sflag, size = 0x4, offset = 0, fixed_abs, tag = 'sflag constant byte address 0x0 - dummy sync flag']
  #allocation6 [shape = 's32[]', space=sflag, size = 0x4, offset = 0, fixed_abs, tag = 'sflag constant byte address 0x0 - dummy sync flag']
  #allocation7 [shape = 'u32[]', space=smem, size = 0x4, offset = 0x44, fixed_abs, tag = 'smem constant byte address 0x44 - assertion arg 0']
  #allocation8 [shape = 'u32[]', space=smem, size = 0x4, offset = 0x48, fixed_abs, tag = 'smem constant byte address 0x48 - assertion arg 1']
  #allocation9 [shape = 's32[]', space=sflag, size = 0x4, offset = 0, fixed_abs, tag = 'sflag constant byte address 0x0 - dummy sync flag']
  #allocation10 [shape = 's32[]', space=sflag, size = 0x4, offset = 0, fixed_abs, tag = 'sflag constant byte address 0x0 - dummy sync flag']
  #allocation11 [shape = 's32[]', space=sflag, size = 0x4, offset = 0, fixed_abs, tag = 'sflag constant byte address 0x0 - dummy sync flag']
  #allocation12 [shape = 's32[]', space=sflag, size = 0x4, offset = 0, fixed_abs, tag = 'sflag constant byte address 0x0 - dummy sync flag']
  #allocation13 [shape = 's32[]', space=sflag, size = 0x4, offset = 0, fixed_abs, tag = 'sflag constant byte address 0x0 - dummy sync flag']
  #allocation14 [shape = 's32[]', space=sflag, size = 0x4, offset = 0, fixed_abs, tag = 'sflag constant byte address 0x0 - dummy sync flag']
  #allocation15 [shape = 's32[]', space=sflag, size = 0x4, offset = 0, fixed_abs, tag = 'sflag constant byte address 0x0 - dummy sync flag']
  #allocation16 [shape = 's32[]', space=sflag, size = 0x4, offset = 0, fixed_abs, tag = 'sflag constant byte address 0x0 - dummy sync flag']
  #allocation17 [shape = 's32[]', space=sflag, size = 0x4, offset = 0, fixed_abs, tag = 'sflag constant byte address 0x0 - dummy sync flag']
  #allocation18 [shape = 's32[]', space=sflag, size = 0x4, offset = 0, fixed_abs, tag = 'sflag constant byte address 0x0 - dummy sync flag']
  %s0 = inlined_call_operand.vmem [shape: f32[448,16], index: 0, kind: input, shape index: {}]
  %s1 = inlined_call_operand.vmem [shape: f32[16,640], index: 1, kind: input, shape index: {}]
  %s2 = inlined_call_operand.vmem [shape: f32[2,3,16,16], index: 2, kind: input, shape index: {}]
  %s3 = inlined_call_operand.vmem [shape: f32[2,1,16,16], index: 3, kind: input, shape index: {}]
  %s4 = inlined_call_operand.hbm [shape: f32[2,3,640,640], index: 4, kind: input, shape index: {}, may-alias: {4,6}]
  %s5 = inlined_call_operand.hbm [shape: f32[2,3,640,640], index: 5, kind: input, shape index: {}, may-alias: {5,7}]
  %s6 = inlined_call_operand.hbm [shape: f32[2,3,640,640], index: 6, kind: output, shape index: {0}, may-alias: {4,6}]
  %s7 = inlined_call_operand.hbm [shape: f32[2,3,640,640], index: 7, kind: output, shape index: {1}, may-alias: {5,7}]
  %8 = xla_tuple %s6, %s7
  %s9 = sld [smem:[#allocation0]]
  $region61: #{tpu_custom_call.1} parent=0
    _
  %s11 = ssub.s32 1, %s9
  %s12 = scalar_select 0, %s11, %s9
  loop: start=0, step=1, limit=3
  $region2: #{tpu_custom_call.1} parent=0 // loop_pre_header
    _
  $region3: #{tpu_custom_call.1} parent=0 // loop_header
    %s14 = sphi 0, %s18
    %p15 = scmp.ge.s32.totalorder %s14, 3
    %s21 = sphi 0, %s21
    %s23 = sphi 0, %s21
    %s31 = sphi 0, %s23
    %s35 = sphi 0, %s35
    %s37 = sphi 0, %s35
    %s45 = sphi 0, %s37
    %s51 = sphi 0, %s53
    %s54 = sphi 0, %s51
    %s64 = sphi 0, %s54
    %s70 = sphi 0, %s72
    %s73 = sphi 0, %s70
    %s83 = sphi 0, %s73
  $region4: #{tpu_custom_call.1} parent=0 // loop_header_branch
    %17 = sbr.rel (%p15) target = $region8
  $region5: #{tpu_custom_call.1} parent=0 // loop_body
    %s19 = ssub.s32 %s14, 1
    %s20 = sadd.s32 %s14, 1
    %s22 = sadd.s32 %s21, 1
    %p24 = scmp.eq.s32.totalorder %s14, 1
    %p25 = scmp.ne.s32.totalorder %s21, %s23
    %p26 = scmp.eq.s32.totalorder %s14, 0
    %p27 = por %p25, %p26
    %p28 = scmp.ne.s32.totalorder %s21, %s23
    %p29 = scmp.eq.s32.totalorder %s19, 1
    %p30 = por %p28, %p29
    %p32 = scmp.ne.s32.totalorder %s23, %s31
    %p33 = scmp.eq.s32.totalorder %s19, 0
    %p34 = por %p32, %p33
    %s36 = sadd.s32 %s35, 1
    %p38 = scmp.eq.s32.totalorder %s14, 1
    %p39 = scmp.ne.s32.totalorder %s35, %s37
    %p40 = scmp.eq.s32.totalorder %s14, 0
    %p41 = por %p39, %p40
    %p42 = scmp.ne.s32.totalorder %s35, %s37
    %p43 = scmp.eq.s32.totalorder %s19, 1
    %p44 = por %p42, %p43
    %p46 = scmp.ne.s32.totalorder %s37, %s45
    %p47 = scmp.eq.s32.totalorder %s19, 0
    %p48 = por %p46, %p47
    %s49 = ssub.s32 %s14, %s20
    %p50 = scmp.eq.s32.totalorder %s49, 0
    %s52 = sadd.s32 %s51, 1
    %s53 = scalar_select %p50, %s51, %s52
    %p55 = pneg %p50
    %p56 = scmp.eq.s32.totalorder %s14, 1
    %p57 = por %p55, %p56
    %p58 = scmp.ne.s32.totalorder %s51, %s54
    %p59 = scmp.eq.s32.totalorder %s14, 0
    %p60 = por %p58, %p59
    %p61 = scmp.ne.s32.totalorder %s51, %s54
    %p62 = scmp.eq.s32.totalorder %s19, 1
    %p63 = por %p61, %p62
    %p65 = scmp.ne.s32.totalorder %s54, %s64
    %p66 = scmp.eq.s32.totalorder %s19, 0
    %p67 = por %p65, %p66
    %s68 = ssub.s32 %s14, %s20
    %p69 = scmp.eq.s32.totalorder %s68, 0
    %s71 = sadd.s32 %s70, 1
    %s72 = scalar_select %p69, %s70, %s71
    %p74 = pneg %p69
    %p75 = scmp.eq.s32.totalorder %s14, 1
    %p76 = por %p74, %p75
    %p77 = scmp.ne.s32.totalorder %s70, %s73
    %p78 = scmp.eq.s32.totalorder %s14, 0
    %p79 = por %p77, %p78
    %p80 = scmp.ne.s32.totalorder %s70, %s73
    %p81 = scmp.eq.s32.totalorder %s19, 1
    %p82 = por %p80, %p81
    %p84 = scmp.ne.s32.totalorder %s73, %s83
    %p85 = scmp.eq.s32.totalorder %s19, 0
    %p86 = por %p84, %p85
    %p87 = scmp.le.s32.totalorder 1, %s14
    // Predicated region
    $region9: #{tpu_custom_call.1} parent=5 // pred_check
      %p88 = pneg %p87
    $region10: #{tpu_custom_call.1} parent=5 // pred_check_branch
      %90 = sbr.rel (%p88) target = $region12
    $region11: #{tpu_custom_call.1} parent=5 // pred_region
      %s91 = ssub.s32 %s14, 1
      // Predicated region
      $region13: #{tpu_custom_call.1} parent=11 // pred_check
        %p92 = pneg %p34
      $region14: #{tpu_custom_call.1} parent=11 // pred_check_branch
        %94 = sbr.rel (%p92) target = $region16
      $region15: #{tpu_custom_call.1} parent=11 // pred_region
        _
      $region16: #{tpu_custom_call.1} parent=11 // pred_fallthru
        _
      // Predicated region
      $region17: #{tpu_custom_call.1} parent=11 // pred_check
        %p95 = pneg %p48
      $region18: #{tpu_custom_call.1} parent=11 // pred_check_branch
        %97 = sbr.rel (%p95) target = $region20
      $region19: #{tpu_custom_call.1} parent=11 // pred_region
        _
      $region20: #{tpu_custom_call.1} parent=11 // pred_fallthru
        _
    $region12: #{tpu_custom_call.1} parent=5 // pred_fallthru
      _
    %p98 = scmp.lt.s32.totalorder %s14, 2
    // Predicated region
    $region21: #{tpu_custom_call.1} parent=5 // pred_check
      %p99 = pneg %p98
    $region22: #{tpu_custom_call.1} parent=5 // pred_check_branch
      %101 = sbr.rel (%p99) target = $region24
    $region23: #{tpu_custom_call.1} parent=5 // pred_region
      // Predicated region
      $region25: #{tpu_custom_call.1} parent=23 // pred_check
        %p102 = pneg %p60
      $region26: #{tpu_custom_call.1} parent=23 // pred_check_branch
        %104 = sbr.rel (%p102) target = $region28
      $region27: #{tpu_custom_call.1} parent=23 // pred_region
        %p105 = scmp.lt.s32.totalorder %s14, 1
        %s106 = scalar_select %p105, %s14, 1
        %s107 = smul.addr %s106, 6
        %s108 = smul.addr %s107, 8
        %s109 = scalar_lea.vmem %s2, %s108
      $region28: #{tpu_custom_call.1} parent=23 // pred_fallthru
        _
      // Predicated region
      $region29: #{tpu_custom_call.1} parent=23 // pred_check
        %p110 = pneg %p79
      $region30: #{tpu_custom_call.1} parent=23 // pred_check_branch
        %112 = sbr.rel (%p110) target = $region32
      $region31: #{tpu_custom_call.1} parent=23 // pred_region
        %p113 = scmp.lt.s32.totalorder %s14, 1
        %s114 = scalar_select %p113, %s14, 1
        %s115 = smul.addr %s114, 2
        %s116 = smul.addr %s115, 8
        %s117 = scalar_lea.vmem %s3, %s116
      $region32: #{tpu_custom_call.1} parent=23 // pred_fallthru
        _
    $region24: #{tpu_custom_call.1} parent=5 // pred_fallthru
      _
    %p118 = scmp.le.s32.totalorder 1, %s14
    // Predicated region
    $region33: #{tpu_custom_call.1} parent=5 // pred_check
      %p119 = pneg %p118
    $region34: #{tpu_custom_call.1} parent=5 // pred_check_branch
      %121 = sbr.rel (%p119) target = $region36
    $region35: #{tpu_custom_call.1} parent=5 // pred_region
      %s122 = ssub.s32 %s14, 1
      %p123 = pneg %p34
      %p124 = pneg %p30
      %p125 = pneg %p48
      %p126 = pneg %p44
      %p127 = scmp.lt.s32.totalorder %s19, 1
      %s128 = scalar_select %p127, %s19, 1
      %s129 = smul.addr %s128, 6
      %s130 = smul.addr %s129, 8
      %s131 = scalar_lea.vmem %s2, %s130
      %p132 = pneg %p67
      %p133 = pneg %p63
      %p134 = scmp.lt.s32.totalorder %s19, 1
      %s135 = scalar_select %p134, %s19, 1
      %s136 = smul.addr %s135, 2
      %s137 = smul.addr %s136, 8
      %s138 = scalar_lea.vmem %s3, %s137
      %p139 = pneg %p86
      %p140 = pneg %p82
      %p141 = scmp.lt.s32.totalorder %s19, 1
      %s142 = scalar_select %p141, %s19, 1
      %s143 = smul.addr %s142, 6
      %s144 = smul.addr %s143, 8
      %s145 = scalar_lea.vmem %s2, %s144
      %p146 = scmp.lt.s32.totalorder %s19, 1
      %s147 = scalar_select %p146, %s19, 1
      %s148 = smul.addr %s147, 2
      %s149 = smul.addr %s148, 8
      %s150 = scalar_lea.vmem %s3, %s149
      %v151 = vld [vmem:[%s0] sm:$0xff]
      %v152 = vld [vmem:[%s0 + $0x8] sm:$0xff]
      %v153 = vld [vmem:[%s0 + $0x10] sm:$0xff]
      %v154 = vld [vmem:[%s0 + $0x18] sm:$0xff]
      %v155 = vld [vmem:[%s0 + $0x20] sm:$0xff]
      %v156 = vld [vmem:[%s0 + $0x28] sm:$0xff]
      %v157 = vld [vmem:[%s0 + $0x30] sm:$0xff]
      %v158 = vld [vmem:[%s0 + $0x38] sm:$0xff]
      %v159 = vld [vmem:[%s0 + $0x40] sm:$0xff]
      %v160 = vld [vmem:[%s0 + $0x48] sm:$0xff]
      %v161 = vld [vmem:[%s0 + $0x50] sm:$0xff]
      %v162 = vld [vmem:[%s0 + $0x58] sm:$0xff]
      %v163 = vld [vmem:[%s0 + $0x60] sm:$0xff]
      %v164 = vld [vmem:[%s0 + $0x68] sm:$0xff]
      %v165 = vld [vmem:[%s0 + $0x70] sm:$0xff]
      %v166 = vld [vmem:[%s0 + $0x78] sm:$0xff]
      %v167 = vld [vmem:[%s0 + $0x80] sm:$0xff]
      %v168 = vld [vmem:[%s0 + $0x88] sm:$0xff]
      %v169 = vld [vmem:[%s0 + $0x90] sm:$0xff]
      %v170 = vld [vmem:[%s0 + $0x98] sm:$0xff]
      %v171 = vld [vmem:[%s0 + $0xa0] sm:$0xff]
      %v172 = vld [vmem:[%s0 + $0xa8] sm:$0xff]
      %v173 = vld [vmem:[%s0 + $0xb0] sm:$0xff]
      %v174 = vld [vmem:[%s0 + $0xb8] sm:$0xff]
      %v175 = vld [vmem:[%s0 + $0xc0] sm:$0xff]
      %v176 = vld [vmem:[%s0 + $0xc8] sm:$0xff]
      %v177 = vld [vmem:[%s0 + $0xd0] sm:$0xff]
      %v178 = vld [vmem:[%s0 + $0xd8] sm:$0xff]
      %v179 = vld [vmem:[%s0 + $0xe0] sm:$0xff]
      %v180 = vld [vmem:[%s0 + $0xe8] sm:$0xff]
      %v181 = vld [vmem:[%s0 + $0xf0] sm:$0xff]
      %v182 = vld [vmem:[%s0 + $0xf8] sm:$0xff]
      %v183 = vld [vmem:[%s0 + $0x100] sm:$0xff]
      %v184 = vld [vmem:[%s0 + $0x108] sm:$0xff]
      %v185 = vld [vmem:[%s0 + $0x110] sm:$0xff]
      %v186 = vld [vmem:[%s0 + $0x118] sm:$0xff]
      %v187 = vld [vmem:[%s0 + $0x120] sm:$0xff]
      %v188 = vld [vmem:[%s0 + $0x128] sm:$0xff]
      %v189 = vld [vmem:[%s0 + $0x130] sm:$0xff]
      %v190 = vld [vmem:[%s0 + $0x138] sm:$0xff]
      %v191 = vld [vmem:[%s0 + $0x140] sm:$0xff]
      %v192 = vld [vmem:[%s0 + $0x148] sm:$0xff]
      %v193 = vld [vmem:[%s0 + $0x150] sm:$0xff]
      %v194 = vld [vmem:[%s0 + $0x158] sm:$0xff]
      %v195 = vld [vmem:[%s0 + $0x160] sm:$0xff]
      %v196 = vld [vmem:[%s0 + $0x168] sm:$0xff]
      %v197 = vld [vmem:[%s0 + $0x170] sm:$0xff]
      %v198 = vld [vmem:[%s0 + $0x178] sm:$0xff]
      %v199 = vld [vmem:[%s0 + $0x180] sm:$0xff]
      %v200 = vld [vmem:[%s0 + $0x188] sm:$0xff]
      %v201 = vld [vmem:[%s0 + $0x190] sm:$0xff]
      %v202 = vld [vmem:[%s0 + $0x198] sm:$0xff]
      %v203 = vld [vmem:[%s0 + $0x1a0] sm:$0xff]
      %v204 = vld [vmem:[%s0 + $0x1a8] sm:$0xff]
      %v205 = vld [vmem:[%s0 + $0x1b0] sm:$0xff]
      %v206 = vld [vmem:[%s0 + $0x1b8] sm:$0xff]
      %v207 = vld [vmem:[%s1] sm:$0xff]
      %v208 = vld [vmem:[%s1 + $0x8] sm:$0xff]
      %v209 = vld [vmem:[%s1 + $0x10] sm:$0xff]
      %v210 = vld [vmem:[%s1 + $0x18] sm:$0xff]
      %v211 = vld [vmem:[%s1 + $0x20] sm:$0xff]
      %v212 = vld [vmem:[%s1 + $0x28] sm:$0xff]
      %v213 = vld [vmem:[%s1 + $0x30] sm:$0xff]
      %v214 = vld [vmem:[%s1 + $0x38] sm:$0xff]
      %v215 = vld [vmem:[%s1 + $0x40] sm:$0xff]
      %v216 = vld [vmem:[%s1 + $0x48] sm:$0xff]
      %v217 = vld [vmem:[%s150] sm:$0xff]
      %v218 = vld [vmem:[%s150 + $0x8] sm:$0xff]
      %vm219 = vcmask 130048
      %v221 = vsel %vm219, %v217, 0
      %v224 = vsel %vm219, %v218, 0
      %226 = vmatprep.subr.mxu0 %v208
      %227 = vmatpush1.msra.mxu0 %v207
      %228 = vmatprep.subr.mxu0 %v213
      %229 = vmatpush1.msra.mxu0 %v212
      %230 = vmatprep.subr.mxu0 0.0
      %231 = vmatpush1.msra.mxu0 0.0
      %232 = vmatprep.subr.mxu0 0.0
      %233 = vmatpush1.msra.mxu0 0.0
      %234 = vmatprep.subr.mxu0 0.0
      %235 = vmatpush1.msra.mxu0 0.0
      %236 = vmatprep.subr.mxu0 0.0
      %237 = vmatpush1.msra.mxu0 0.0
      %238 = vmatprep.subr.mxu0 0.0
      %239 = vmatpush1.msra.mxu0 0.0
      %240 = vmatprep.subr.mxu0 0.0
      %241 = vmatpush1.msra.mxu0 0.0
      %242 = vmatprep.subr.mxu0 0.0
      %243 = vmatpush1.msra.mxu0 0.0
      %244 = vmatprep.subr.mxu0 0.0
      %245 = vmatpush1.msra.mxu0 0.0
      %246 = vmatprep.subr.mxu0 0.0
      %247 = vmatpush1.msra.mxu0 0.0
      %248 = vmatprep.subr.mxu0 0.0
      %249 = vmatpush1.msra.mxu0 0.0
      %250 = vmatprep.subr.mxu0 0.0
      %251 = vmatpush1.msra.mxu0 0.0
      %252 = vmatprep.subr.mxu0 0.0
      %253 = vmatpush1.msra.mxu0 0.0
      %254 = vmatprep.subr.mxu0 0.0
      %255 = vmatpush1.msra.mxu0 0.0
      %256 = vmatprep.subr.mxu0 0.0
      %257 = vmatpush1.msra.mxu0 0.0
      %258 = vmatprep.subr.mxu0 0.0
      %259 = vmatpush1.msra.mxu0 0.0
      %260 = vmatprep.subr.mxu0 0.0
      %261 = vmatpush1.msra.mxu0 0.0
      %262 = vmatprep.subr.mxu0 0.0
      %263 = vmatpush1.msra.mxu0 0.0
      %264 = vmatprep.subr.mxu0 0.0
      %265 = vmatpush1.msra.mxu0 0.0
      %266 = vmatprep.subr.mxu0 0.0
      %267 = vmatpush1.msra.mxu0 0.0
      %268 = vmatprep.subr.mxu0 0.0
      %269 = vmatpush1.msra.mxu0 0.0
      %270 = vmatprep.subr.mxu0 0.0
      %271 = vmatpush1.msra.mxu0 0.0
      %272 = vmatprep.subr.mxu0 0.0
      %273 = vmatpush1.msra.mxu0 0.0
      %274 = vmatprep.subr.mxu0 0.0
      %275 = vmatpush1.msra.mxu0 0.0
      %276 = vmatprep.subr.mxu0 0.0
      %277 = vmatpush1.msra.mxu0 0.0
      %278 = vmatprep.subr.mxu0 0.0
      %279 = vmatpush1.msra.mxu0 0.0
      %280 = vmatprep.subr.mxu0 0.0
      %281 = vmatpush1.msra.mxu0 0.0
      %282 = vmatprep.subr.mxu0 0.0
      %283 = vmatpush1.msra.mxu0 0.0
      %284 = vmatprep.subr.mxu0 0.0
      %285 = vmatpush1.msra.mxu0 0.0
      %286 = vmatprep.subr.mxu0 0.0
      %287 = vmatpush1.msra.mxu0 0.0
      %288 = vmatprep.subr.mxu0 0.0
      %289 = vmatpush1.msra.mxu0 0.0
      %290 = vmatprep.mubr.f32.mxu0 0.0
      %291 = vmatmul.mubr.f32.gmra.mrb[0].mxu0 %v221
      %v292 = vpop.f32.mrb[0].mxu0
      %v293 = vadd.f32 0.0, %v292
      %v294 = vpop.f32.mrb[0].mxu0
      %v295 = vadd.f32 0.0, %v294
      %296 = vmatprep.mubr.f32.mxu0 0.0
      %297 = vmatmul.mubr.f32.gmra.mrb[0].mxu0 %v224
      %v298 = vpop.f32.mrb[0].mxu0
      %v299 = vadd.f32 0.0, %v298
      %v300 = vpop.f32.mrb[0].mxu0
      %v301 = vadd.f32 0.0, %v300
      %302 = vdwg.mxu0
      %303 = vmatprep.subr.mxu0 %v210
      %304 = vmatpush1.msra.mxu0 %v209
      %305 = vmatprep.subr.mxu0 %v215
      %306 = vmatpush1.msra.mxu0 %v214
      %307 = vmatprep.subr.mxu0 0.0
      %308 = vmatpush1.msra.mxu0 0.0
      %309 = vmatprep.subr.mxu0 0.0
      %310 = vmatpush1.msra.mxu0 0.0
      %311 = vmatprep.subr.mxu0 0.0
      %312 = vmatpush1.msra.mxu0 0.0
      %313 = vmatprep.subr.mxu0 0.0
      %314 = vmatpush1.msra.mxu0 0.0
      %315 = vmatprep.subr.mxu0 0.0
      %316 = vmatpush1.msra.mxu0 0.0
      %317 = vmatprep.subr.mxu0 0.0
      %318 = vmatpush1.msra.mxu0 0.0
      %319 = vmatprep.subr.mxu0 0.0
      %320 = vmatpush1.msra.mxu0 0.0
      %321 = vmatprep.subr.mxu0 0.0
      %322 = vmatpush1.msra.mxu0 0.0
      %323 = vmatprep.subr.mxu0 0.0
      %324 = vmatpush1.msra.mxu0 0.0
      %325 = vmatprep.subr.mxu0 0.0
      %326 = vmatpush1.msra.mxu0 0.0
      %327 = vmatprep.subr.mxu0 0.0
      %328 = vmatpush1.msra.mxu0 0.0
      %329 = vmatprep.subr.mxu0 0.0
      %330 = vmatpush1.msra.mxu0 0.0
      %331 = vmatprep.subr.mxu0 0.0
      %332 = vmatpush1.msra.mxu0 0.0
      %333 = vmatprep.subr.mxu0 0.0
      %334 = vmatpush1.msra.mxu0 0.0
      %335 = vmatprep.subr.mxu0 0.0
      %336 = vmatpush1.msra.mxu0 0.0
      %337 = vmatprep.subr.mxu0 0.0
      %338 = vmatpush1.msra.mxu0 0.0
      %339 = vmatprep.subr.mxu0 0.0
      %340 = vmatpush1.msra.mxu0 0.0
      %341 = vmatprep.subr.mxu0 0.0
      %342 = vmatpush1.msra.mxu0 0.0
      %343 = vmatprep.subr.mxu0 0.0
      %344 = vmatpush1.msra.mxu0 0.0
      %345 = vmatprep.subr.mxu0 0.0
      %346 = vmatpush1.msra.mxu0 0.0
      %347 = vmatprep.subr.mxu0 0.0
      %348 = vmatpush1.msra.mxu0 0.0
      %349 = vmatprep.subr.mxu0 0.0
      %350 = vmatpush1.msra.mxu0 0.0
      %351 = vmatprep.subr.mxu0 0.0
      %352 = vmatpush1.msra.mxu0 0.0
      %353 = vmatprep.subr.mxu0 0.0
      %354 = vmatpush1.msra.mxu0 0.0
      %355 = vmatprep.subr.mxu0 0.0
      %356 = vmatpush1.msra.mxu0 0.0
      %357 = vmatprep.subr.mxu0 0.0
      %358 = vmatpush1.msra.mxu0 0.0
      %359 = vmatprep.subr.mxu0 0.0
      %360 = vmatpush1.msra.mxu0 0.0
      %361 = vmatprep.subr.mxu0 0.0
      %362 = vmatpush1.msra.mxu0 0.0
      %363 = vmatprep.subr.mxu0 0.0
      %364 = vmatpush1.msra.mxu0 0.0
      %365 = vmatprep.subr.mxu0 0.0
      %366 = vmatpush1.msra.mxu0 0.0
      %367 = vmatprep.mubr.f32.mxu0 0.0
      %368 = vmatmul.mubr.f32.gmra.mrb[0].mxu0 %v221
      %v369 = vpop.f32.mrb[0].mxu0
      %v370 = vadd.f32 0.0, %v369
      %v371 = vpop.f32.mrb[0].mxu0
      %v372 = vadd.f32 0.0, %v371
      %373 = vmatprep.mubr.f32.mxu0 0.0
      %374 = vmatmul.mubr.f32.gmra.mrb[0].mxu0 %v224
      %v375 = vpop.f32.mrb[0].mxu0
      %v376 = vadd.f32 0.0, %v375
      %v377 = vpop.f32.mrb[0].mxu0
      %v378 = vadd.f32 0.0, %v377
      %379 = vdwg.mxu0
      %380 = vmatprep.subr.mxu0 0.0
      %381 = vmatpush1.msra.mxu0 %v211
      %382 = vmatprep.subr.mxu0 0.0
      %383 = vmatpush1.msra.mxu0 %v216
      %384 = vmatprep.subr.mxu0 0.0
      %385 = vmatpush1.msra.mxu0 0.0
      %386 = vmatprep.subr.mxu0 0.0
      %387 = vmatpush1.msra.mxu0 0.0
      %388 = vmatprep.subr.mxu0 0.0
      %389 = vmatpush1.msra.mxu0 0.0
      %390 = vmatprep.subr.mxu0 0.0
      %391 = vmatpush1.msra.mxu0 0.0
      %392 = vmatprep.subr.mxu0 0.0
      %393 = vmatpush1.msra.mxu0 0.0
      %394 = vmatprep.subr.mxu0 0.0
      %395 = vmatpush1.msra.mxu0 0.0
      %396 = vmatprep.subr.mxu0 0.0
      %397 = vmatpush1.msra.mxu0 0.0
      %398 = vmatprep.subr.mxu0 0.0
      %399 = vmatpush1.msra.mxu0 0.0
      %400 = vmatprep.subr.mxu0 0.0
      %401 = vmatpush1.msra.mxu0 0.0
      %402 = vmatprep.subr.mxu0 0.0
      %403 = vmatpush1.msra.mxu0 0.0
      %404 = vmatprep.subr.mxu0 0.0
      %405 = vmatpush1.msra.mxu0 0.0
      %406 = vmatprep.subr.mxu0 0.0
      %407 = vmatpush1.msra.mxu0 0.0
      %408 = vmatprep.subr.mxu0 0.0
      %409 = vmatpush1.msra.mxu0 0.0
      %410 = vmatprep.subr.mxu0 0.0
      %411 = vmatpush1.msra.mxu0 0.0
      %412 = vmatprep.subr.mxu0 0.0
      %413 = vmatpush1.msra.mxu0 0.0
      %414 = vmatprep.subr.mxu0 0.0
      %415 = vmatpush1.msra.mxu0 0.0
      %416 = vmatprep.subr.mxu0 0.0
      %417 = vmatpush1.msra.mxu0 0.0
      %418 = vmatprep.subr.mxu0 0.0
      %419 = vmatpush1.msra.mxu0 0.0
      %420 = vmatprep.subr.mxu0 0.0
      %421 = vmatpush1.msra.mxu0 0.0
      %422 = vmatprep.subr.mxu0 0.0
      %423 = vmatpush1.msra.mxu0 0.0
      %424 = vmatprep.subr.mxu0 0.0
      %425 = vmatpush1.msra.mxu0 0.0
      %426 = vmatprep.subr.mxu0 0.0
      %427 = vmatpush1.msra.mxu0 0.0
      %428 = vmatprep.subr.mxu0 0.0
      %429 = vmatpush1.msra.mxu0 0.0
      %430 = vmatprep.subr.mxu0 0.0
      %431 = vmatpush1.msra.mxu0 0.0
      %432 = vmatprep.subr.mxu0 0.0
      %433 = vmatpush1.msra.mxu0 0.0
      %434 = vmatprep.subr.mxu0 0.0
      %435 = vmatpush1.msra.mxu0 0.0
      %436 = vmatprep.subr.mxu0 0.0
      %437 = vmatpush1.msra.mxu0 0.0
      %438 = vmatprep.subr.mxu0 0.0
      %439 = vmatpush1.msra.mxu0 0.0
      %440 = vmatprep.subr.mxu0 0.0
      %441 = vmatpush1.msra.mxu0 0.0
      %442 = vmatprep.subr.mxu0 0.0
      %443 = vmatpush1.msra.mxu0 0.0
      %444 = vmatprep.mubr.f32.mxu0 0.0
      %445 = vmatmul.mubr.f32.gmra.mrb[0].mxu0 %v221
      %v446 = vpop.f32.mrb[0].mxu0
      %v447 = vadd.f32 0.0, %v446
      %v448 = vpop.f32.mrb[0].mxu0
      %449 = vmatprep.mubr.f32.mxu0 0.0
      %450 = vmatmul.mubr.f32.gmra.mrb[0].mxu0 %v224
      %v451 = vpop.f32.mrb[0].mxu0
      %v452 = vadd.f32 0.0, %v451
      %v453 = vpop.f32.mrb[0].mxu0
      %454 = vdwg.mxu0
      %v456 = vsel %vm219, %v151, 0
      %v459 = vsel %vm219, %v152, 0
      %v462 = vsel %vm219, %v153, 0
      %v465 = vsel %vm219, %v154, 0
      %v468 = vsel %vm219, %v155, 0
      %v471 = vsel %vm219, %v156, 0
      %v474 = vsel %vm219, %v157, 0
      %v477 = vsel %vm219, %v158, 0
      %v480 = vsel %vm219, %v159, 0
      %v483 = vsel %vm219, %v160, 0
      %v486 = vsel %vm219, %v161, 0
      %v489 = vsel %vm219, %v162, 0
      %v492 = vsel %vm219, %v163, 0
      %v495 = vsel %vm219, %v164, 0
      %v498 = vsel %vm219, %v165, 0
      %v501 = vsel %vm219, %v166, 0
      %v504 = vsel %vm219, %v167, 0
      %v507 = vsel %vm219, %v168, 0
      %v510 = vsel %vm219, %v169, 0
      %v513 = vsel %vm219, %v170, 0
      %v516 = vsel %vm219, %v171, 0
      %v519 = vsel %vm219, %v172, 0
      %v522 = vsel %vm219, %v173, 0
      %v525 = vsel %vm219, %v174, 0
      %v528 = vsel %vm219, %v175, 0
      %v531 = vsel %vm219, %v176, 0
      %v534 = vsel %vm219, %v177, 0
      %v537 = vsel %vm219, %v178, 0
      %v540 = vsel %vm219, %v179, 0
      %v543 = vsel %vm219, %v180, 0
      %v546 = vsel %vm219, %v181, 0
      %v549 = vsel %vm219, %v182, 0
      %v552 = vsel %vm219, %v183, 0
      %v555 = vsel %vm219, %v184, 0
      %v558 = vsel %vm219, %v185, 0
      %v561 = vsel %vm219, %v186, 0
      %v564 = vsel %vm219, %v187, 0
      %v567 = vsel %vm219, %v188, 0
      %v570 = vsel %vm219, %v189, 0
      %v573 = vsel %vm219, %v190, 0
      %v576 = vsel %vm219, %v191, 0
      %v579 = vsel %vm219, %v192, 0
      %v582 = vsel %vm219, %v193, 0
      %v585 = vsel %vm219, %v194, 0
      %v588 = vsel %vm219, %v195, 0
      %v591 = vsel %vm219, %v196, 0
      %v594 = vsel %vm219, %v197, 0
      %v597 = vsel %vm219, %v198, 0
      %v600 = vsel %vm219, %v199, 0
      %v603 = vsel %vm219, %v200, 0
      %v606 = vsel %vm219, %v201, 0
      %v609 = vsel %vm219, %v202, 0
      %v612 = vsel %vm219, %v203, 0
      %v615 = vsel %vm219, %v204, 0
      %v618 = vsel %vm219, %v205, 0
      %v621 = vsel %vm219, %v206, 0
      %623 = vmatprep.subr.mxu0 %v295
      %624 = vmatpush1.msra.mxu0 %v293
      %625 = vmatprep.subr.mxu0 %v301
      %626 = vmatpush1.msra.mxu0 %v299
      %627 = vmatprep.subr.mxu0 0.0
      %628 = vmatpush1.msra.mxu0 0.0
      %629 = vmatprep.subr.mxu0 0.0
      %630 = vmatpush1.msra.mxu0 0.0
      %631 = vmatprep.subr.mxu0 0.0
      %632 = vmatpush1.msra.mxu0 0.0
      %633 = vmatprep.subr.mxu0 0.0
      %634 = vmatpush1.msra.mxu0 0.0
      %635 = vmatprep.subr.mxu0 0.0
      %636 = vmatpush1.msra.mxu0 0.0
      %637 = vmatprep.subr.mxu0 0.0
      %638 = vmatpush1.msra.mxu0 0.0
      %639 = vmatprep.subr.mxu0 0.0
      %640 = vmatpush1.msra.mxu0 0.0
      %641 = vmatprep.subr.mxu0 0.0
      %642 = vmatpush1.msra.mxu0 0.0
      %643 = vmatprep.subr.mxu0 0.0
      %644 = vmatpush1.msra.mxu0 0.0
      %645 = vmatprep.subr.mxu0 0.0
      %646 = vmatpush1.msra.mxu0 0.0
      %647 = vmatprep.subr.mxu0 0.0
      %648 = vmatpush1.msra.mxu0 0.0
      %649 = vmatprep.subr.mxu0 0.0
      %650 = vmatpush1.msra.mxu0 0.0
      %651 = vmatprep.subr.mxu0 0.0
      %652 = vmatpush1.msra.mxu0 0.0
      %653 = vmatprep.subr.mxu0 0.0
      %654 = vmatpush1.msra.mxu0 0.0
      %655 = vmatprep.subr.mxu0 0.0
      %656 = vmatpush1.msra.mxu0 0.0
      %657 = vmatprep.subr.mxu0 0.0
      %658 = vmatpush1.msra.mxu0 0.0
      %659 = vmatprep.subr.mxu0 0.0
      %660 = vmatpush1.msra.mxu0 0.0
      %661 = vmatprep.subr.mxu0 0.0
      %662 = vmatpush1.msra.mxu0 0.0
      %663 = vmatprep.subr.mxu0 0.0
      %664 = vmatpush1.msra.mxu0 0.0
      %665 = vmatprep.subr.mxu0 0.0
      %666 = vmatpush1.msra.mxu0 0.0
      %667 = vmatprep.subr.mxu0 0.0
      %668 = vmatpush1.msra.mxu0 0.0
      %669 = vmatprep.subr.mxu0 0.0
      %670 = vmatpush1.msra.mxu0 0.0
      %671 = vmatprep.subr.mxu0 0.0
      %672 = vmatpush1.msra.mxu0 0.0
      %673 = vmatprep.subr.mxu0 0.0
      %674 = vmatpush1.msra.mxu0 0.0
      %675 = vmatprep.subr.mxu0 0.0
      %676 = vmatpush1.msra.mxu0 0.0
      %677 = vmatprep.subr.mxu0 0.0
      %678 = vmatpush1.msra.mxu0 0.0
      %679 = vmatprep.subr.mxu0 0.0
      %680 = vmatpush1.msra.mxu0 0.0
      %681 = vmatprep.subr.mxu0 0.0
      %682 = vmatpush1.msra.mxu0 0.0
      %683 = vmatprep.subr.mxu0 0.0
      %684 = vmatpush1.msra.mxu0 0.0
      %685 = vmatprep.subr.mxu0 0.0
      %686 = vmatpush1.msra.mxu0 0.0
      %687 = vmatprep.mubr.f32.mxu0 0.0
      %688 = vmatmul.mubr.f32.gmra.mrb[0].mxu0 %v456
      %v689 = vpop.f32.mrb[0].mxu0
      %v690 = vadd.f32 0.0, %v689
      %v691 = vpop.f32.mrb[0].mxu0
      %v692 = vadd.f32 0.0, %v691
      %693 = vmatprep.mubr.f32.mxu0 0.0
      %694 = vmatmul.mubr.f32.gmra.mrb[0].mxu0 %v459
      %v695 = vpop.f32.mrb[0].mxu0
      %v696 = vadd.f32 0.0, %v695
      %v697 = vpop.f32.mrb[0].mxu0
      %v698 = vadd.f32 0.0, %v697
      %699 = vmatprep.mubr.f32.mxu0 0.0
      %700 = vmatmul.mubr.f32.gmra.mrb[0].mxu0 %v462
      %v701 = vpop.f32.mrb[0].mxu0
      %v702 = vadd.f32 0.0, %v701
      %v703 = vpop.f32.mrb[0].mxu0
      %v704 = vadd.f32 0.0, %v703
      %705 = vmatprep.mubr.f32.mxu0 0.0
      %706 = vmatmul.mubr.f32.gmra.mrb[0].mxu0 %v465
      %v707 = vpop.f32.mrb[0].mxu0
      %v708 = vadd.f32 0.0, %v707
      %v709 = vpop.f32.mrb[0].mxu0
      %v710 = vadd.f32 0.0, %v709
      %711 = vmatprep.mubr.f32.mxu0 0.0
      %712 = vmatmul.mubr.f32.gmra.mrb[0].mxu0 %v468
      %v713 = vpop.f32.mrb[0].mxu0
      %v714 = vadd.f32 0.0, %v713
      %v715 = vpop.f32.mrb[0].mxu0
      %v716 = vadd.f32 0.0, %v715
      %717 = vmatprep.mubr.f32.mxu0 0.0
      %718 = vmatmul.mubr.f32.gmra.mrb[0].mxu0 %v471
      %v719 = vpop.f32.mrb[0].mxu0
      %v720 = vadd.f32 0.0, %v719
      %v721 = vpop.f32.mrb[0].mxu0
      %v722 = vadd.f32 0.0, %v721
      %723 = vmatprep.mubr.f32.mxu0 0.0
      %724 = vmatmul.mubr.f32.gmra.mrb[0].mxu0 %v474
      %v725 = vpop.f32.mrb[0].mxu0
      %v726 = vadd.f32 0.0, %v725
      %v727 = vpop.f32.mrb[0].mxu0
      %v728 = vadd.f32 0.0, %v727
      %729 = vmatprep.mubr.f32.mxu0 0.0
      %730 = vmatmul.mubr.f32.gmra.mrb[0].mxu0 %v477
      %v731 = vpop.f32.mrb[0].mxu0
      %v732 = vadd.f32 0.0, %v731
      %v733 = vpop.f32.mrb[0].mxu0
      %v734 = vadd.f32 0.0, %v733
      %735 = vmatprep.mubr.f32.mxu0 0.0
      %736 = vmatmul.mubr.f32.gmra.mrb[0].mxu0 %v480
      %v737 = vpop.f32.mrb[0].mxu0
      %v738 = vadd.f32 0.0, %v737
      %v739 = vpop.f32.mrb[0].mxu0
      %v740 = vadd.f32 0.0, %v739
      %741 = vmatprep.mubr.f32.mxu0 0.0
      %742 = vmatmul.mubr.f32.gmra.mrb[0].mxu0 %v483
      %v743 = vpop.f32.mrb[0].mxu0
      %v744 = vadd.f32 0.0, %v743
      %v745 = vpop.f32.mrb[0].mxu0
      %v746 = vadd.f32 0.0, %v745
      %747 = vmatprep.mubr.f32.mxu0 0.0
      %748 = vmatmul.mubr.f32.gmra.mrb[0].mxu0 %v486
      %v749 = vpop.f32.mrb[0].mxu0
      %v750 = vadd.f32 0.0, %v749
      %v751 = vpop.f32.mrb[0].mxu0
      %v752 = vadd.f32 0.0, %v751
      %753 = vmatprep.mubr.f32.mxu0 0.0
      %754 = vmatmul.mubr.f32.gmra.mrb[0].mxu0 %v489
      %v755 = vpop.f32.mrb[0].mxu0
      %v756 = vadd.f32 0.0, %v755
      %v757 = vpop.f32.mrb[0].mxu0
      %v758 = vadd.f32 0.0, %v757
      %759 = vmatprep.mubr.f32.mxu0 0.0
      %760 = vmatmul.mubr.f32.gmra.mrb[0].mxu0 %v492
      %v761 = vpop.f32.mrb[0].mxu0
      %v762 = vadd.f32 0.0, %v761
      %v763 = vpop.f32.mrb[0].mxu0
      %v764 = vadd.f32 0.0, %v763
      %765 = vmatprep.mubr.f32.mxu0 0.0
      %766 = vmatmul.mubr.f32.gmra.mrb[0].mxu0 %v495
      %v767 = vpop.f32.mrb[0].mxu0
      %v768 = vadd.f32 0.0, %v767
      %v769 = vpop.f32.mrb[0].mxu0
      %v770 = vadd.f32 0.0, %v769
      %771 = vmatprep.mubr.f32.mxu0 0.0
      %772 = vmatmul.mubr.f32.gmra.mrb[0].mxu0 %v498
      %v773 = vpop.f32.mrb[0].mxu0
      %v774 = vadd.f32 0.0, %v773
      %v775 = vpop.f32.mrb[0].mxu0
      %v776 = vadd.f32 0.0, %v775
      %777 = vmatprep.mubr.f32.mxu0 0.0
      %778 = vmatmul.mubr.f32.gmra.mrb[0].mxu0 %v501
      %v779 = vpop.f32.mrb[0].mxu0
      %v780 = vadd.f32 0.0, %v779
      %v781 = vpop.f32.mrb[0].mxu0
      %v782 = vadd.f32 0.0, %v781
      %783 = vmatprep.mubr.f32.mxu0 0.0
      %784 = vmatmul.mubr.f32.gmra.mrb[0].mxu0 %v504
      %v785 = vpop.f32.mrb[0].mxu0
      %v786 = vadd.f32 0.0, %v785
      %v787 = vpop.f32.mrb[0].mxu0
      %v788 = vadd.f32 0.0, %v787
      %789 = vmatprep.mubr.f32.mxu0 0.0
      %790 = vmatmul.mubr.f32.gmra.mrb[0].mxu0 %v507
      %v791 = vpop.f32.mrb[0].mxu0
      %v792 = vadd.f32 0.0, %v791
      %v793 = vpop.f32.mrb[0].mxu0
      %v794 = vadd.f32 0.0, %v793
      %795 = vmatprep.mubr.f32.mxu0 0.0
      %796 = vmatmul.mubr.f32.gmra.mrb[0].mxu0 %v510
      %v797 = vpop.f32.mrb[0].mxu0
      %v798 = vadd.f32 0.0, %v797
      %v799 = vpop.f32.mrb[0].mxu0
      %v800 = vadd.f32 0.0, %v799
      %801 = vmatprep.mubr.f32.mxu0 0.0
      %802 = vmatmul.mubr.f32.gmra.mrb[0].mxu0 %v513
      %v803 = vpop.f32.mrb[0].mxu0
      %v804 = vadd.f32 0.0, %v803
      %v805 = vpop.f32.mrb[0].mxu0
      %v806 = vadd.f32 0.0, %v805
      %807 = vmatprep.mubr.f32.mxu0 0.0
      %808 = vmatmul.mubr.f32.gmra.mrb[0].mxu0 %v516
      %v809 = vpop.f32.mrb[0].mxu0
      %v810 = vadd.f32 0.0, %v809
      %v811 = vpop.f32.mrb[0].mxu0
      %v812 = vadd.f32 0.0, %v811
      %813 = vmatprep.mubr.f32.mxu0 0.0
      %814 = vmatmul.mubr.f32.gmra.mrb[0].mxu0 %v519
      %v815 = vpop.f32.mrb[0].mxu0
      %v816 = vadd.f32 0.0, %v815
      %v817 = vpop.f32.mrb[0].mxu0
      %v818 = vadd.f32 0.0, %v817
      %819 = vmatprep.mubr.f32.mxu0 0.0
      %820 = vmatmul.mubr.f32.gmra.mrb[0].mxu0 %v522
      %v821 = vpop.f32.mrb[0].mxu0
      %v822 = vadd.f32 0.0, %v821
      %v823 = vpop.f32.mrb[0].mxu0
      %v824 = vadd.f32 0.0, %v823
      %825 = vmatprep.mubr.f32.mxu0 0.0
      %826 = vmatmul.mubr.f32.gmra.mrb[0].mxu0 %v525
      %v827 = vpop.f32.mrb[0].mxu0
      %v828 = vadd.f32 0.0, %v827
      %v829 = vpop.f32.mrb[0].mxu0
      %v830 = vadd.f32 0.0, %v829
      %831 = vmatprep.mubr.f32.mxu0 0.0
      %832 = vmatmul.mubr.f32.gmra.mrb[0].mxu0 %v528
      %v833 = vpop.f32.mrb[0].mxu0
      %v834 = vadd.f32 0.0, %v833
      %v835 = vpop.f32.mrb[0].mxu0
      %v836 = vadd.f32 0.0, %v835
      %837 = vmatprep.mubr.f32.mxu0 0.0
      %838 = vmatmul.mubr.f32.gmra.mrb[0].mxu0 %v531
      %v839 = vpop.f32.mrb[0].mxu0
      %v840 = vadd.f32 0.0, %v839
      %v841 = vpop.f32.mrb[0].mxu0
      %v842 = vadd.f32 0.0, %v841
      %843 = vmatprep.mubr.f32.mxu0 0.0
      %844 = vmatmul.mubr.f32.gmra.mrb[0].mxu0 %v534
      %v845 = vpop.f32.mrb[0].mxu0
      %v846 = vadd.f32 0.0, %v845
      %v847 = vpop.f32.mrb[0].mxu0
      %v848 = vadd.f32 0.0, %v847
      %849 = vmatprep.mubr.f32.mxu0 0.0
      %850 = vmatmul.mubr.f32.gmra.mrb[0].mxu0 %v537
      %v851 = vpop.f32.mrb[0].mxu0
      %v852 = vadd.f32 0.0, %v851
      %v853 = vpop.f32.mrb[0].mxu0
      %v854 = vadd.f32 0.0, %v853
      %855 = vmatprep.mubr.f32.mxu0 0.0
      %856 = vmatmul.mubr.f32.gmra.mrb[0].mxu0 %v540
      %v857 = vpop.f32.mrb[0].mxu0
      %v858 = vadd.f32 0.0, %v857
      %v859 = vpop.f32.mrb[0].mxu0
      %v860 = vadd.f32 0.0, %v859
      %861 = vmatprep.mubr.f32.mxu0 0.0
      %862 = vmatmul.mubr.f32.gmra.mrb[0].mxu0 %v543
      %v863 = vpop.f32.mrb[0].mxu0
      %v864 = vadd.f32 0.0, %v863
      %v865 = vpop.f32.mrb[0].mxu0
      %v866 = vadd.f32 0.0, %v865
      %867 = vmatprep.mubr.f32.mxu0 0.0
      %868 = vmatmul.mubr.f32.gmra.mrb[0].mxu0 %v546
      %v869 = vpop.f32.mrb[0].mxu0
      %v870 = vadd.f32 0.0, %v869
      %v871 = vpop.f32.mrb[0].mxu0
      %v872 = vadd.f32 0.0, %v871
      %873 = vmatprep.mubr.f32.mxu0 0.0
      %874 = vmatmul.mubr.f32.gmra.mrb[0].mxu0 %v549
      %v875 = vpop.f32.mrb[0].mxu0
      %v876 = vadd.f32 0.0, %v875
      %v877 = vpop.f32.mrb[0].mxu0
      %v878 = vadd.f32 0.0, %v877
      %879 = vmatprep.mubr.f32.mxu0 0.0
      %880 = vmatmul.mubr.f32.gmra.mrb[0].mxu0 %v552
      %v881 = vpop.f32.mrb[0].mxu0
      %v882 = vadd.f32 0.0, %v881
      %v883 = vpop.f32.mrb[0].mxu0
      %v884 = vadd.f32 0.0, %v883
      %885 = vmatprep.mubr.f32.mxu0 0.0
      %886 = vmatmul.mubr.f32.gmra.mrb[0].mxu0 %v555
      %v887 = vpop.f32.mrb[0].mxu0
      %v888 = vadd.f32 0.0, %v887
      %v889 = vpop.f32.mrb[0].mxu0
      %v890 = vadd.f32 0.0, %v889
      %891 = vmatprep.mubr.f32.mxu0 0.0
      %892 = vmatmul.mubr.f32.gmra.mrb[0].mxu0 %v558
      %v893 = vpop.f32.mrb[0].mxu0
      %v894 = vadd.f32 0.0, %v893
      %v895 = vpop.f32.mrb[0].mxu0
      %v896 = vadd.f32 0.0, %v895
      %897 = vmatprep.mubr.f32.mxu0 0.0
      %898 = vmatmul.mubr.f32.gmra.mrb[0].mxu0 %v561
      %v899 = vpop.f32.mrb[0].mxu0
      %v900 = vadd.f32 0.0, %v899
      %v901 = vpop.f32.mrb[0].mxu0
      %v902 = vadd.f32 0.0, %v901
      %903 = vmatprep.mubr.f32.mxu0 0.0
      %904 = vmatmul.mubr.f32.gmra.mrb[0].mxu0 %v564
      %v905 = vpop.f32.mrb[0].mxu0
      %v906 = vadd.f32 0.0, %v905
      %v907 = vpop.f32.mrb[0].mxu0
      %v908 = vadd.f32 0.0, %v907
      %909 = vmatprep.mubr.f32.mxu0 0.0
      %910 = vmatmul.mubr.f32.gmra.mrb[0].mxu0 %v567
      %v911 = vpop.f32.mrb[0].mxu0
      %v912 = vadd.f32 0.0, %v911
      %v913 = vpop.f32.mrb[0].mxu0
      %v914 = vadd.f32 0.0, %v913
      %915 = vmatprep.mubr.f32.mxu0 0.0
      %916 = vmatmul.mubr.f32.gmra.mrb[0].mxu0 %v570
      %v917 = vpop.f32.mrb[0].mxu0
      %v918 = vadd.f32 0.0, %v917
      %v919 = vpop.f32.mrb[0].mxu0
      %v920 = vadd.f32 0.0, %v919
      %921 = vmatprep.mubr.f32.mxu0 0.0
      %922 = vmatmul.mubr.f32.gmra.mrb[0].mxu0 %v573
      %v923 = vpop.f32.mrb[0].mxu0
      %v924 = vadd.f32 0.0, %v923
      %v925 = vpop.f32.mrb[0].mxu0
      %v926 = vadd.f32 0.0, %v925
      %927 = vmatprep.mubr.f32.mxu0 0.0
      %928 = vmatmul.mubr.f32.gmra.mrb[0].mxu0 %v576
      %v929 = vpop.f32.mrb[0].mxu0
      %v930 = vadd.f32 0.0, %v929
      %v931 = vpop.f32.mrb[0].mxu0
      %v932 = vadd.f32 0.0, %v931
      %933 = vmatprep.mubr.f32.mxu0 0.0
      %934 = vmatmul.mubr.f32.gmra.mrb[0].mxu0 %v579
      %v935 = vpop.f32.mrb[0].mxu0
      %v936 = vadd.f32 0.0, %v935
      %v937 = vpop.f32.mrb[0].mxu0
      %v938 = vadd.f32 0.0, %v937
      %939 = vmatprep.mubr.f32.mxu0 0.0
      %940 = vmatmul.mubr.f32.gmra.mrb[0].mxu0 %v582
      %v941 = vpop.f32.mrb[0].mxu0
      %v942 = vadd.f32 0.0, %v941
      %v943 = vpop.f32.mrb[0].mxu0
      %v944 = vadd.f32 0.0, %v943
      %945 = vmatprep.mubr.f32.mxu0 0.0
      %946 = vmatmul.mubr.f32.gmra.mrb[0].mxu0 %v585
      %v947 = vpop.f32.mrb[0].mxu0
      %v948 = vadd.f32 0.0, %v947
      %v949 = vpop.f32.mrb[0].mxu0
      %v950 = vadd.f32 0.0, %v949
      %951 = vmatprep.mubr.f32.mxu0 0.0
      %952 = vmatmul.mubr.f32.gmra.mrb[0].mxu0 %v588
      %v953 = vpop.f32.mrb[0].mxu0
      %v954 = vadd.f32 0.0, %v953
      %v955 = vpop.f32.mrb[0].mxu0
      %v956 = vadd.f32 0.0, %v955
      %957 = vmatprep.mubr.f32.mxu0 0.0
      %958 = vmatmul.mubr.f32.gmra.mrb[0].mxu0 %v591
      %v959 = vpop.f32.mrb[0].mxu0
      %v960 = vadd.f32 0.0, %v959
      %v961 = vpop.f32.mrb[0].mxu0
      %v962 = vadd.f32 0.0, %v961
      %963 = vmatprep.mubr.f32.mxu0 0.0
      %964 = vmatmul.mubr.f32.gmra.mrb[0].mxu0 %v594
      %v965 = vpop.f32.mrb[0].mxu0
      %v966 = vadd.f32 0.0, %v965
      %v967 = vpop.f32.mrb[0].mxu0
      %v968 = vadd.f32 0.0, %v967
      %969 = vmatprep.mubr.f32.mxu0 0.0
      %970 = vmatmul.mubr.f32.gmra.mrb[0].mxu0 %v597
      %v971 = vpop.f32.mrb[0].mxu0
      %v972 = vadd.f32 0.0, %v971
      %v973 = vpop.f32.mrb[0].mxu0
      %v974 = vadd.f32 0.0, %v973
      %975 = vmatprep.mubr.f32.mxu0 0.0
      %976 = vmatmul.mubr.f32.gmra.mrb[0].mxu0 %v600
      %v977 = vpop.f32.mrb[0].mxu0
      %v978 = vadd.f32 0.0, %v977
      %v979 = vpop.f32.mrb[0].mxu0
      %v980 = vadd.f32 0.0, %v979
      %981 = vmatprep.mubr.f32.mxu0 0.0
      %982 = vmatmul.mubr.f32.gmra.mrb[0].mxu0 %v603
      %v983 = vpop.f32.mrb[0].mxu0
      %v984 = vadd.f32 0.0, %v983
      %v985 = vpop.f32.mrb[0].mxu0
      %v986 = vadd.f32 0.0, %v985
      %987 = vmatprep.mubr.f32.mxu0 0.0
      %988 = vmatmul.mubr.f32.gmra.mrb[0].mxu0 %v606
      %v989 = vpop.f32.mrb[0].mxu0
      %v990 = vadd.f32 0.0, %v989
      %v991 = vpop.f32.mrb[0].mxu0
      %v992 = vadd.f32 0.0, %v991
      %993 = vmatprep.mubr.f32.mxu0 0.0
      %994 = vmatmul.mubr.f32.gmra.mrb[0].mxu0 %v609
      %v995 = vpop.f32.mrb[0].mxu0
      %v996 = vadd.f32 0.0, %v995
      %v997 = vpop.f32.mrb[0].mxu0
      %v998 = vadd.f32 0.0, %v997
      %999 = vmatprep.mubr.f32.mxu0 0.0
      %1000 = vmatmul.mubr.f32.gmra.mrb[0].mxu0 %v612
      %v1001 = vpop.f32.mrb[0].mxu0
      %v1002 = vadd.f32 0.0, %v1001
      %v1003 = vpop.f32.mrb[0].mxu0
      %v1004 = vadd.f32 0.0, %v1003
      %1005 = vmatprep.mubr.f32.mxu0 0.0
      %1006 = vmatmul.mubr.f32.gmra.mrb[0].mxu0 %v615
      %v1007 = vpop.f32.mrb[0].mxu0
      %v1008 = vadd.f32 0.0, %v1007
      %v1009 = vpop.f32.mrb[0].mxu0
      %v1010 = vadd.f32 0.0, %v1009
      %1011 = vmatprep.mubr.f32.mxu0 0.0
      %1012 = vmatmul.mubr.f32.gmra.mrb[0].mxu0 %v618
      %v1013 = vpop.f32.mrb[0].mxu0
      %v1014 = vadd.f32 0.0, %v1013
      %v1015 = vpop.f32.mrb[0].mxu0
      %v1016 = vadd.f32 0.0, %v1015
      %1017 = vmatprep.mubr.f32.mxu0 0.0
      %1018 = vmatmul.mubr.f32.gmra.mrb[0].mxu0 %v621
      %v1019 = vpop.f32.mrb[0].mxu0
      %v1020 = vadd.f32 0.0, %v1019
      %v1021 = vpop.f32.mrb[0].mxu0
      %v1022 = vadd.f32 0.0, %v1021
      %1023 = vdwg.mxu0
      %1024 = vmatprep.subr.mxu0 %v372
      %1025 = vmatpush1.msra.mxu0 %v370
      %1026 = vmatprep.subr.mxu0 %v378
      %1027 = vmatpush1.msra.mxu0 %v376
      %1028 = vmatprep.subr.mxu0 0.0
      %1029 = vmatpush1.msra.mxu0 0.0
      %1030 = vmatprep.subr.mxu0 0.0
      %1031 = vmatpush1.msra.mxu0 0.0
      %1032 = vmatprep.subr.mxu0 0.0
      %1033 = vmatpush1.msra.mxu0 0.0
      %1034 = vmatprep.subr.mxu0 0.0
      %1035 = vmatpush1.msra.mxu0 0.0
      %1036 = vmatprep.subr.mxu0 0.0
      %1037 = vmatpush1.msra.mxu0 0.0
      %1038 = vmatprep.subr.mxu0 0.0
      %1039 = vmatpush1.msra.mxu0 0.0
      %1040 = vmatprep.subr.mxu0 0.0
      %1041 = vmatpush1.msra.mxu0 0.0
      %1042 = vmatprep.subr.mxu0 0.0
      %1043 = vmatpush1.msra.mxu0 0.0
      %1044 = vmatprep.subr.mxu0 0.0
      %1045 = vmatpush1.msra.mxu0 0.0
      %1046 = vmatprep.subr.mxu0 0.0
      %1047 = vmatpush1.msra.mxu0 0.0
      %1048 = vmatprep.subr.mxu0 0.0
      %1049 = vmatpush1.msra.mxu0 0.0
      %1050 = vmatprep.subr.mxu0 0.0
      %1051 = vmatpush1.msra.mxu0 0.0
      %1052 = vmatprep.subr.mxu0 0.0
      %1053 = vmatpush1.msra.mxu0 0.0
      %1054 = vmatprep.subr.mxu0 0.0
      %1055 = vmatpush1.msra.mxu0 0.0
      %1056 = vmatprep.subr.mxu0 0.0
      %1057 = vmatpush1.msra.mxu0 0.0
      %1058 = vmatprep.subr.mxu0 0.0
      %1059 = vmatpush1.msra.mxu0 0.0
      %1060 = vmatprep.subr.mxu0 0.0
      %1061 = vmatpush1.msra.mxu0 0.0
      %1062 = vmatprep.subr.mxu0 0.0
      %1063 = vmatpush1.msra.mxu0 0.0
      %1064 = vmatprep.subr.mxu0 0.0
      %1065 = vmatpush1.msra.mxu0 0.0
      %1066 = vmatprep.subr.mxu0 0.0
      %1067 = vmatpush1.msra.mxu0 0.0
      %1068 = vmatprep.subr.mxu0 0.0
      %1069 = vmatpush1.msra.mxu0 0.0
      %1070 = vmatprep.subr.mxu0 0.0
      %1071 = vmatpush1.msra.mxu0 0.0
      %1072 = vmatprep.subr.mxu0 0.0
      %1073 = vmatpush1.msra.mxu0 0.0
      %1074 = vmatprep.subr.mxu0 0.0
      %1075 = vmatpush1.msra.mxu0 0.0
      %1076 = vmatprep.subr.mxu0 0.0
      %1077 = vmatpush1.msra.mxu0 0.0
      %1078 = vmatprep.subr.mxu0 0.0
      %1079 = vmatpush1.msra.mxu0 0.0
      %1080 = vmatprep.subr.mxu0 0.0
      %1081 = vmatpush1.msra.mxu0 0.0
      %1082 = vmatprep.subr.mxu0 0.0
      %1083 = vmatpush1.msra.mxu0 0.0
      %1084 = vmatprep.subr.mxu0 0.0
      %1085 = vmatpush1.msra.mxu0 0.0
      %1086 = vmatprep.subr.mxu0 0.0
      %1087 = vmatpush1.msra.mxu0 0.0
      %1088 = vmatprep.mubr.f32.mxu0 0.0
      %1089 = vmatmul.mubr.f32.gmra.mrb[0].mxu0 %v456
      %v1090 = vpop.f32.mrb[0].mxu0
      %v1091 = vadd.f32 0.0, %v1090
      %v1092 = vpop.f32.mrb[0].mxu0
      %v1093 = vadd.f32 0.0, %v1092
      %1094 = vmatprep.mubr.f32.mxu0 0.0
      %1095 = vmatmul.mubr.f32.gmra.mrb[0].mxu0 %v459
      %v1096 = vpop.f32.mrb[0].mxu0
      %v1097 = vadd.f32 0.0, %v1096
      %v1098 = vpop.f32.mrb[0].mxu0
      %v1099 = vadd.f32 0.0, %v1098
      %1100 = vmatprep.mubr.f32.mxu0 0.0
      %1101 = vmatmul.mubr.f32.gmra.mrb[0].mxu0 %v462
      %v1102 = vpop.f32.mrb[0].mxu0
      %v1103 = vadd.f32 0.0, %v1102
      %v1104 = vpop.f32.mrb[0].mxu0
      %v1105 = vadd.f32 0.0, %v1104
      %1106 = vmatprep.mubr.f32.mxu0 0.0
      %1107 = vmatmul.mubr.f32.gmra.mrb[0].mxu0 %v465
      %v1108 = vpop.f32.mrb[0].mxu0
      %v1109 = vadd.f32 0.0, %v1108
      %v1110 = vpop.f32.mrb[0].mxu0
      %v1111 = vadd.f32 0.0, %v1110
      %1112 = vmatprep.mubr.f32.mxu0 0.0
      %1113 = vmatmul.mubr.f32.gmra.mrb[0].mxu0 %v468
      %v1114 = vpop.f32.mrb[0].mxu0
      %v1115 = vadd.f32 0.0, %v1114
      %v1116 = vpop.f32.mrb[0].mxu0
      %v1117 = vadd.f32 0.0, %v1116
      %1118 = vmatprep.mubr.f32.mxu0 0.0
      %1119 = vmatmul.mubr.f32.gmra.mrb[0].mxu0 %v471
      %v1120 = vpop.f32.mrb[0].mxu0
      %v1121 = vadd.f32 0.0, %v1120
      %v1122 = vpop.f32.mrb[0].mxu0
      %v1123 = vadd.f32 0.0, %v1122
      %1124 = vmatprep.mubr.f32.mxu0 0.0
      %1125 = vmatmul.mubr.f32.gmra.mrb[0].mxu0 %v474
      %v1126 = vpop.f32.mrb[0].mxu0
      %v1127 = vadd.f32 0.0, %v1126
      %v1128 = vpop.f32.mrb[0].mxu0
      %v1129 = vadd.f32 0.0, %v1128
      %1130 = vmatprep.mubr.f32.mxu0 0.0
      %1131 = vmatmul.mubr.f32.gmra.mrb[0].mxu0 %v477
      %v1132 = vpop.f32.mrb[0].mxu0
      %v1133 = vadd.f32 0.0, %v1132
      %v1134 = vpop.f32.mrb[0].mxu0
      %v1135 = vadd.f32 0.0, %v1134
      %1136 = vmatprep.mubr.f32.mxu0 0.0
      %1137 = vmatmul.mubr.f32.gmra.mrb[0].mxu0 %v480
      %v1138 = vpop.f32.mrb[0].mxu0
      %v1139 = vadd.f32 0.0, %v1138
      %v1140 = vpop.f32.mrb[0].mxu0
      %v1141 = vadd.f32 0.0, %v1140
      %1142 = vmatprep.mubr.f32.mxu0 0.0
      %1143 = vmatmul.mubr.f32.gmra.mrb[0].mxu0 %v483
      %v1144 = vpop.f32.mrb[0].mxu0
      %v1145 = vadd.f32 0.0, %v1144
      %v1146 = vpop.f32.mrb[0].mxu0
      %v1147 = vadd.f32 0.0, %v1146
      %1148 = vmatprep.mubr.f32.mxu0 0.0
      %1149 = vmatmul.mubr.f32.gmra.mrb[0].mxu0 %v486
      %v1150 = vpop.f32.mrb[0].mxu0
      %v1151 = vadd.f32 0.0, %v1150
      %v1152 = vpop.f32.mrb[0].mxu0
      %v1153 = vadd.f32 0.0, %v1152
      %1154 = vmatprep.mubr.f32.mxu0 0.0
      %1155 = vmatmul.mubr.f32.gmra.mrb[0].mxu0 %v489
      %v1156 = vpop.f32.mrb[0].mxu0
      %v1157 = vadd.f32 0.0, %v1156
      %v1158 = vpop.f32.mrb[0].mxu0
      %v1159 = vadd.f32 0.0, %v1158
      %1160 = vmatprep.mubr.f32.mxu0 0.0
      %1161 = vmatmul.mubr.f32.gmra.mrb[0].mxu0 %v492
      %v1162 = vpop.f32.mrb[0].mxu0
      %v1163 = vadd.f32 0.0, %v1162
      %v1164 = vpop.f32.mrb[0].mxu0
      %v1165 = vadd.f32 0.0, %v1164
      %1166 = vmatprep.mubr.f32.mxu0 0.0
      %1167 = vmatmul.mubr.f32.gmra.mrb[0].mxu0 %v495
      %v1168 = vpop.f32.mrb[0].mxu0
      %v1169 = vadd.f32 0.0, %v1168
      %v1170 = vpop.f32.mrb[0].mxu0
      %v1171 = vadd.f32 0.0, %v1170
      %1172 = vmatprep.mubr.f32.mxu0 0.0
      %1173 = vmatmul.mubr.f32.gmra.mrb[0].mxu0 %v498
      %v1174 = vpop.f32.mrb[0].mxu0
      %v1175 = vadd.f32 0.0, %v1174
      %v1176 = vpop.f32.mrb[0].mxu0
      %v1177 = vadd.f32 0.0, %v1176
      %1178 = vmatprep.mubr.f32.mxu0 0.0
      %1179 = vmatmul.mubr.f32.gmra.mrb[0].mxu0 %v501
      %v1180 = vpop.f32.mrb[0].mxu0
      %v1181 = vadd.f32 0.0, %v1180
      %v1182 = vpop.f32.mrb[0].mxu0
      %v1183 = vadd.f32 0.0, %v1182
      %1184 = vmatprep.mubr.f32.mxu0 0.0
      %1185 = vmatmul.mubr.f32.gmra.mrb[0].mxu0 %v504
      %v1186 = vpop.f32.mrb[0].mxu0
      %v1187 = vadd.f32 0.0, %v1186
      %v1188 = vpop.f32.mrb[0].mxu0
      %v1189 = vadd.f32 0.0, %v1188
      %1190 = vmatprep.mubr.f32.mxu0 0.0
      %1191 = vmatmul.mubr.f32.gmra.mrb[0].mxu0 %v507
      %v1192 = vpop.f32.mrb[0].mxu0
      %v1193 = vadd.f32 0.0, %v1192
      %v1194 = vpop.f32.mrb[0].mxu0
      %v1195 = vadd.f32 0.0, %v1194
      %1196 = vmatprep.mubr.f32.mxu0 0.0
      %1197 = vmatmul.mubr.f32.gmra.mrb[0].mxu0 %v510
      %v1198 = vpop.f32.mrb[0].mxu0
      %v1199 = vadd.f32 0.0, %v1198
      %v1200 = vpop.f32.mrb[0].mxu0
      %v1201 = vadd.f32 0.0, %v1200
      %1202 = vmatprep.mubr.f32.mxu0 0.0
      %1203 = vmatmul.mubr.f32.gmra.mrb[0].mxu0 %v513
      %v1204 = vpop.f32.mrb[0].mxu0
      %v1205 = vadd.f32 0.0, %v1204
      %v1206 = vpop.f32.mrb[0].mxu0
      %v1207 = vadd.f32 0.0, %v1206
      %1208 = vmatprep.mubr.f32.mxu0 0.0
      %1209 = vmatmul.mubr.f32.gmra.mrb[0].mxu0 %v516
      %v1210 = vpop.f32.mrb[0].mxu0
      %v1211 = vadd.f32 0.0, %v1210
      %v1212 = vpop.f32.mrb[0].mxu0
      %v1213 = vadd.f32 0.0, %v1212
      %1214 = vmatprep.mubr.f32.mxu0 0.0
      %1215 = vmatmul.mubr.f32.gmra.mrb[0].mxu0 %v519
      %v1216 = vpop.f32.mrb[0].mxu0
      %v1217 = vadd.f32 0.0, %v1216
      %v1218 = vpop.f32.mrb[0].mxu0
      %v1219 = vadd.f32 0.0, %v1218
      %1220 = vmatprep.mubr.f32.mxu0 0.0
      %1221 = vmatmul.mubr.f32.gmra.mrb[0].mxu0 %v522
      %v1222 = vpop.f32.mrb[0].mxu0
      %v1223 = vadd.f32 0.0, %v1222
      %v1224 = vpop.f32.mrb[0].mxu0
      %v1225 = vadd.f32 0.0, %v1224
      %1226 = vmatprep.mubr.f32.mxu0 0.0
      %1227 = vmatmul.mubr.f32.gmra.mrb[0].mxu0 %v525
      %v1228 = vpop.f32.mrb[0].mxu0
      %v1229 = vadd.f32 0.0, %v1228
      %v1230 = vpop.f32.mrb[0].mxu0
      %v1231 = vadd.f32 0.0, %v1230
      %1232 = vmatprep.mubr.f32.mxu0 0.0
      %1233 = vmatmul.mubr.f32.gmra.mrb[0].mxu0 %v528
      %v1234 = vpop.f32.mrb[0].mxu0
      %v1235 = vadd.f32 0.0, %v1234
      %v1236 = vpop.f32.mrb[0].mxu0
      %v1237 = vadd.f32 0.0, %v1236
      %1238 = vmatprep.mubr.f32.mxu0 0.0
      %1239 = vmatmul.mubr.f32.gmra.mrb[0].mxu0 %v531
      %v1240 = vpop.f32.mrb[0].mxu0
      %v1241 = vadd.f32 0.0, %v1240
      %v1242 = vpop.f32.mrb[0].mxu0
      %v1243 = vadd.f32 0.0, %v1242
      %1244 = vmatprep.mubr.f32.mxu0 0.0
      %1245 = vmatmul.mubr.f32.gmra.mrb[0].mxu0 %v534
      %v1246 = vpop.f32.mrb[0].mxu0
      %v1247 = vadd.f32 0.0, %v1246
      %v1248 = vpop.f32.mrb[0].mxu0
      %v1249 = vadd.f32 0.0, %v1248
      %1250 = vmatprep.mubr.f32.mxu0 0.0
      %1251 = vmatmul.mubr.f32.gmra.mrb[0].mxu0 %v537
      %v1252 = vpop.f32.mrb[0].mxu0
      %v1253 = vadd.f32 0.0, %v1252
      %v1254 = vpop.f32.mrb[0].mxu0
      %v1255 = vadd.f32 0.0, %v1254
      %1256 = vmatprep.mubr.f32.mxu0 0.0
      %1257 = vmatmul.mubr.f32.gmra.mrb[0].mxu0 %v540
      %v1258 = vpop.f32.mrb[0].mxu0
      %v1259 = vadd.f32 0.0, %v1258
      %v1260 = vpop.f32.mrb[0].mxu0
      %v1261 = vadd.f32 0.0, %v1260
      %1262 = vmatprep.mubr.f32.mxu0 0.0
      %1263 = vmatmul.mubr.f32.gmra.mrb[0].mxu0 %v543
      %v1264 = vpop.f32.mrb[0].mxu0
      %v1265 = vadd.f32 0.0, %v1264
      %v1266 = vpop.f32.mrb[0].mxu0
      %v1267 = vadd.f32 0.0, %v1266
      %1268 = vmatprep.mubr.f32.mxu0 0.0
      %1269 = vmatmul.mubr.f32.gmra.mrb[0].mxu0 %v546
      %v1270 = vpop.f32.mrb[0].mxu0
      %v1271 = vadd.f32 0.0, %v1270
      %v1272 = vpop.f32.mrb[0].mxu0
      %v1273 = vadd.f32 0.0, %v1272
      %1274 = vmatprep.mubr.f32.mxu0 0.0
      %1275 = vmatmul.mubr.f32.gmra.mrb[0].mxu0 %v549
      %v1276 = vpop.f32.mrb[0].mxu0
      %v1277 = vadd.f32 0.0, %v1276
      %v1278 = vpop.f32.mrb[0].mxu0
      %v1279 = vadd.f32 0.0, %v1278
      %1280 = vmatprep.mubr.f32.mxu0 0.0
      %1281 = vmatmul.mubr.f32.gmra.mrb[0].mxu0 %v552
      %v1282 = vpop.f32.mrb[0].mxu0
      %v1283 = vadd.f32 0.0, %v1282
      %v1284 = vpop.f32.mrb[0].mxu0
      %v1285 = vadd.f32 0.0, %v1284
      %1286 = vmatprep.mubr.f32.mxu0 0.0
      %1287 = vmatmul.mubr.f32.gmra.mrb[0].mxu0 %v555
      %v1288 = vpop.f32.mrb[0].mxu0
      %v1289 = vadd.f32 0.0, %v1288
      %v1290 = vpop.f32.mrb[0].mxu0
      %v1291 = vadd.f32 0.0, %v1290
      %1292 = vmatprep.mubr.f32.mxu0 0.0
      %1293 = vmatmul.mubr.f32.gmra.mrb[0].mxu0 %v558
      %v1294 = vpop.f32.mrb[0].mxu0
      %v1295 = vadd.f32 0.0, %v1294
      %v1296 = vpop.f32.mrb[0].mxu0
      %v1297 = vadd.f32 0.0, %v1296
      %1298 = vmatprep.mubr.f32.mxu0 0.0
      %1299 = vmatmul.mubr.f32.gmra.mrb[0].mxu0 %v561
      %v1300 = vpop.f32.mrb[0].mxu0
      %v1301 = vadd.f32 0.0, %v1300
      %v1302 = vpop.f32.mrb[0].mxu0
      %v1303 = vadd.f32 0.0, %v1302
      %1304 = vmatprep.mubr.f32.mxu0 0.0
      %1305 = vmatmul.mubr.f32.gmra.mrb[0].mxu0 %v564
      %v1306 = vpop.f32.mrb[0].mxu0
      %v1307 = vadd.f32 0.0, %v1306
      %v1308 = vpop.f32.mrb[0].mxu0
      %v1309 = vadd.f32 0.0, %v1308
      %1310 = vmatprep.mubr.f32.mxu0 0.0
      %1311 = vmatmul.mubr.f32.gmra.mrb[0].mxu0 %v567
      %v1312 = vpop.f32.mrb[0].mxu0
      %v1313 = vadd.f32 0.0, %v1312
      %v1314 = vpop.f32.mrb[0].mxu0
      %v1315 = vadd.f32 0.0, %v1314
      %1316 = vmatprep.mubr.f32.mxu0 0.0
      %1317 = vmatmul.mubr.f32.gmra.mrb[0].mxu0 %v570
      %v1318 = vpop.f32.mrb[0].mxu0
      %v1319 = vadd.f32 0.0, %v1318
      %v1320 = vpop.f32.mrb[0].mxu0
      %v1321 = vadd.f32 0.0, %v1320
      %1322 = vmatprep.mubr.f32.mxu0 0.0
      %1323 = vmatmul.mubr.f32.gmra.mrb[0].mxu0 %v573
      %v1324 = vpop.f32.mrb[0].mxu0
      %v1325 = vadd.f32 0.0, %v1324
      %v1326 = vpop.f32.mrb[0].mxu0
      %v1327 = vadd.f32 0.0, %v1326
      %1328 = vmatprep.mubr.f32.mxu0 0.0
      %1329 = vmatmul.mubr.f32.gmra.mrb[0].mxu0 %v576
      %v1330 = vpop.f32.mrb[0].mxu0
      %v1331 = vadd.f32 0.0, %v1330
      %v1332 = vpop.f32.mrb[0].mxu0
      %v1333 = vadd.f32 0.0, %v1332
      %1334 = vmatprep.mubr.f32.mxu0 0.0
      %1335 = vmatmul.mubr.f32.gmra.mrb[0].mxu0 %v579
      %v1336 = vpop.f32.mrb[0].mxu0
      %v1337 = vadd.f32 0.0, %v1336
      %v1338 = vpop.f32.mrb[0].mxu0
      %v1339 = vadd.f32 0.0, %v1338
      %1340 = vmatprep.mubr.f32.mxu0 0.0
      %1341 = vmatmul.mubr.f32.gmra.mrb[0].mxu0 %v582
      %v1342 = vpop.f32.mrb[0].mxu0
      %v1343 = vadd.f32 0.0, %v1342
      %v1344 = vpop.f32.mrb[0].mxu0
      %v1345 = vadd.f32 0.0, %v1344
      %1346 = vmatprep.mubr.f32.mxu0 0.0
      %1347 = vmatmul.mubr.f32.gmra.mrb[0].mxu0 %v585
      %v1348 = vpop.f32.mrb[0].mxu0
      %v1349 = vadd.f32 0.0, %v1348
      %v1350 = vpop.f32.mrb[0].mxu0
      %v1351 = vadd.f32 0.0, %v1350
      %1352 = vmatprep.mubr.f32.mxu0 0.0
      %1353 = vmatmul.mubr.f32.gmra.mrb[0].mxu0 %v588
      %v1354 = vpop.f32.mrb[0].mxu0
      %v1355 = vadd.f32 0.0, %v1354
      %v1356 = vpop.f32.mrb[0].mxu0
      %v1357 = vadd.f32 0.0, %v1356
      %1358 = vmatprep.mubr.f32.mxu0 0.0
      %1359 = vmatmul.mubr.f32.gmra.mrb[0].mxu0 %v591
      %v1360 = vpop.f32.mrb[0].mxu0
      %v1361 = vadd.f32 0.0, %v1360
      %v1362 = vpop.f32.mrb[0].mxu0
      %v1363 = vadd.f32 0.0, %v1362
      %1364 = vmatprep.mubr.f32.mxu0 0.0
      %1365 = vmatmul.mubr.f32.gmra.mrb[0].mxu0 %v594
      %v1366 = vpop.f32.mrb[0].mxu0
      %v1367 = vadd.f32 0.0, %v1366
      %v1368 = vpop.f32.mrb[0].mxu0
      %v1369 = vadd.f32 0.0, %v1368
      %1370 = vmatprep.mubr.f32.mxu0 0.0
      %1371 = vmatmul.mubr.f32.gmra.mrb[0].mxu0 %v597
      %v1372 = vpop.f32.mrb[0].mxu0
      %v1373 = vadd.f32 0.0, %v1372
      %v1374 = vpop.f32.mrb[0].mxu0
      %v1375 = vadd.f32 0.0, %v1374
      %1376 = vmatprep.mubr.f32.mxu0 0.0
      %1377 = vmatmul.mubr.f32.gmra.mrb[0].mxu0 %v600
      %v1378 = vpop.f32.mrb[0].mxu0
      %v1379 = vadd.f32 0.0, %v1378
      %v1380 = vpop.f32.mrb[0].mxu0
      %v1381 = vadd.f32 0.0, %v1380
      %1382 = vmatprep.mubr.f32.mxu0 0.0
      %1383 = vmatmul.mubr.f32.gmra.mrb[0].mxu0 %v603
      %v1384 = vpop.f32.mrb[0].mxu0
      %v1385 = vadd.f32 0.0, %v1384
      %v1386 = vpop.f32.mrb[0].mxu0
      %v1387 = vadd.f32 0.0, %v1386
      %1388 = vmatprep.mubr.f32.mxu0 0.0
      %1389 = vmatmul.mubr.f32.gmra.mrb[0].mxu0 %v606
      %v1390 = vpop.f32.mrb[0].mxu0
      %v1391 = vadd.f32 0.0, %v1390
      %v1392 = vpop.f32.mrb[0].mxu0
      %v1393 = vadd.f32 0.0, %v1392
      %1394 = vmatprep.mubr.f32.mxu0 0.0
      %1395 = vmatmul.mubr.f32.gmra.mrb[0].mxu0 %v609
      %v1396 = vpop.f32.mrb[0].mxu0
      %v1397 = vadd.f32 0.0, %v1396
      %v1398 = vpop.f32.mrb[0].mxu0
      %v1399 = vadd.f32 0.0, %v1398
      %1400 = vmatprep.mubr.f32.mxu0 0.0
      %1401 = vmatmul.mubr.f32.gmra.mrb[0].mxu0 %v612
      %v1402 = vpop.f32.mrb[0].mxu0
      %v1403 = vadd.f32 0.0, %v1402
      %v1404 = vpop.f32.mrb[0].mxu0
      %v1405 = vadd.f32 0.0, %v1404
      %1406 = vmatprep.mubr.f32.mxu0 0.0
      %1407 = vmatmul.mubr.f32.gmra.mrb[0].mxu0 %v615
      %v1408 = vpop.f32.mrb[0].mxu0
      %v1409 = vadd.f32 0.0, %v1408
      %v1410 = vpop.f32.mrb[0].mxu0
      %v1411 = vadd.f32 0.0, %v1410
      %1412 = vmatprep.mubr.f32.mxu0 0.0
      %1413 = vmatmul.mubr.f32.gmra.mrb[0].mxu0 %v618
      %v1414 = vpop.f32.mrb[0].mxu0
      %v1415 = vadd.f32 0.0, %v1414
      %v1416 = vpop.f32.mrb[0].mxu0
      %v1417 = vadd.f32 0.0, %v1416
      %1418 = vmatprep.mubr.f32.mxu0 0.0
      %1419 = vmatmul.mubr.f32.gmra.mrb[0].mxu0 %v621
      %v1420 = vpop.f32.mrb[0].mxu0
      %v1421 = vadd.f32 0.0, %v1420
      %v1422 = vpop.f32.mrb[0].mxu0
      %v1423 = vadd.f32 0.0, %v1422
      %1424 = vdwg.mxu0
      %1425 = vmatprep.subr.mxu0 0.0
      %1426 = vmatpush1.msra.mxu0 %v447
      %1427 = vmatprep.subr.mxu0 0.0
      %1428 = vmatpush1.msra.mxu0 %v452
      %1429 = vmatprep.subr.mxu0 0.0
      %1430 = vmatpush1.msra.mxu0 0.0
      %1431 = vmatprep.subr.mxu0 0.0
      %1432 = vmatpush1.msra.mxu0 0.0
      %1433 = vmatprep.subr.mxu0 0.0
      %1434 = vmatpush1.msra.mxu0 0.0
      %1435 = vmatprep.subr.mxu0 0.0
      %1436 = vmatpush1.msra.mxu0 0.0
      %1437 = vmatprep.subr.mxu0 0.0
      %1438 = vmatpush1.msra.mxu0 0.0
      %1439 = vmatprep.subr.mxu0 0.0
      %1440 = vmatpush1.msra.mxu0 0.0
      %1441 = vmatprep.subr.mxu0 0.0
      %1442 = vmatpush1.msra.mxu0 0.0
      %1443 = vmatprep.subr.mxu0 0.0
      %1444 = vmatpush1.msra.mxu0 0.0
      %1445 = vmatprep.subr.mxu0 0.0
      %1446 = vmatpush1.msra.mxu0 0.0
      %1447 = vmatprep.subr.mxu0 0.0
      %1448 = vmatpush1.msra.mxu0 0.0
      %1449 = vmatprep.subr.mxu0 0.0
      %1450 = vmatpush1.msra.mxu0 0.0
      %1451 = vmatprep.subr.mxu0 0.0
      %1452 = vmatpush1.msra.mxu0 0.0
      %1453 = vmatprep.subr.mxu0 0.0
      %1454 = vmatpush1.msra.mxu0 0.0
      %1455 = vmatprep.subr.mxu0 0.0
      %1456 = vmatpush1.msra.mxu0 0.0
      %1457 = vmatprep.subr.mxu0 0.0
      %1458 = vmatpush1.msra.mxu0 0.0
      %1459 = vmatprep.subr.mxu0 0.0
      %1460 = vmatpush1.msra.mxu0 0.0
      %1461 = vmatprep.subr.mxu0 0.0
      %1462 = vmatpush1.msra.mxu0 0.0
      %1463 = vmatprep.subr.mxu0 0.0
      %1464 = vmatpush1.msra.mxu0 0.0
      %1465 = vmatprep.subr.mxu0 0.0
      %1466 = vmatpush1.msra.mxu0 0.0
      %1467 = vmatprep.subr.mxu0 0.0
      %1468 = vmatpush1.msra.mxu0 0.0
      %1469 = vmatprep.subr.mxu0 0.0
      %1470 = vmatpush1.msra.mxu0 0.0
      %1471 = vmatprep.subr.mxu0 0.0
      %1472 = vmatpush1.msra.mxu0 0.0
      %1473 = vmatprep.subr.mxu0 0.0
      %1474 = vmatpush1.msra.mxu0 0.0
      %1475 = vmatprep.subr.mxu0 0.0
      %1476 = vmatpush1.msra.mxu0 0.0
      %1477 = vmatprep.subr.mxu0 0.0
      %1478 = vmatpush1.msra.mxu0 0.0
      %1479 = vmatprep.subr.mxu0 0.0
      %1480 = vmatpush1.msra.mxu0 0.0
      %1481 = vmatprep.subr.mxu0 0.0
      %1482 = vmatpush1.msra.mxu0 0.0
      %1483 = vmatprep.subr.mxu0 0.0
      %1484 = vmatpush1.msra.mxu0 0.0
      %1485 = vmatprep.subr.mxu0 0.0
      %1486 = vmatpush1.msra.mxu0 0.0
      %1487 = vmatprep.subr.mxu0 0.0
      %1488 = vmatpush1.msra.mxu0 0.0
      %1489 = vmatprep.mubr.f32.mxu0 0.0
      %1490 = vmatmul.mubr.f32.gmra.mrb[0].mxu0 %v456
      %v1491 = vpop.f32.mrb[0].mxu0
      %v1492 = vadd.f32 0.0, %v1491
      %v1493 = vpop.f32.mrb[0].mxu0
      %1494 = vmatprep.mubr.f32.mxu0 0.0
      %1495 = vmatmul.mubr.f32.gmra.mrb[0].mxu0 %v459
      %v1496 = vpop.f32.mrb[0].mxu0
      %v1497 = vadd.f32 0.0, %v1496
      %v1498 = vpop.f32.mrb[0].mxu0
      %1499 = vmatprep.mubr.f32.mxu0 0.0
      %1500 = vmatmul.mubr.f32.gmra.mrb[0].mxu0 %v462
      %v1501 = vpop.f32.mrb[0].mxu0
      %v1502 = vadd.f32 0.0, %v1501
      %v1503 = vpop.f32.mrb[0].mxu0
      %1504 = vmatprep.mubr.f32.mxu0 0.0
      %1505 = vmatmul.mubr.f32.gmra.mrb[0].mxu0 %v465
      %v1506 = vpop.f32.mrb[0].mxu0
      %v1507 = vadd.f32 0.0, %v1506
      %v1508 = vpop.f32.mrb[0].mxu0
      %1509 = vmatprep.mubr.f32.mxu0 0.0
      %1510 = vmatmul.mubr.f32.gmra.mrb[0].mxu0 %v468
      %v1511 = vpop.f32.mrb[0].mxu0
      %v1512 = vadd.f32 0.0, %v1511
      %v1513 = vpop.f32.mrb[0].mxu0
      %1514 = vmatprep.mubr.f32.mxu0 0.0
      %1515 = vmatmul.mubr.f32.gmra.mrb[0].mxu0 %v471
      %v1516 = vpop.f32.mrb[0].mxu0
      %v1517 = vadd.f32 0.0, %v1516
      %v1518 = vpop.f32.mrb[0].mxu0
      %1519 = vmatprep.mubr.f32.mxu0 0.0
      %1520 = vmatmul.mubr.f32.gmra.mrb[0].mxu0 %v474
      %v1521 = vpop.f32.mrb[0].mxu0
      %v1522 = vadd.f32 0.0, %v1521
      %v1523 = vpop.f32.mrb[0].mxu0
      %1524 = vmatprep.mubr.f32.mxu0 0.0
      %1525 = vmatmul.mubr.f32.gmra.mrb[0].mxu0 %v477
      %v1526 = vpop.f32.mrb[0].mxu0
      %v1527 = vadd.f32 0.0, %v1526
      %v1528 = vpop.f32.mrb[0].mxu0
      %1529 = vmatprep.mubr.f32.mxu0 0.0
      %1530 = vmatmul.mubr.f32.gmra.mrb[0].mxu0 %v480
      %v1531 = vpop.f32.mrb[0].mxu0
      %v1532 = vadd.f32 0.0, %v1531
      %v1533 = vpop.f32.mrb[0].mxu0
      %1534 = vmatprep.mubr.f32.mxu0 0.0
      %1535 = vmatmul.mubr.f32.gmra.mrb[0].mxu0 %v483
      %v1536 = vpop.f32.mrb[0].mxu0
      %v1537 = vadd.f32 0.0, %v1536
      %v1538 = vpop.f32.mrb[0].mxu0
      %1539 = vmatprep.mubr.f32.mxu0 0.0
      %1540 = vmatmul.mubr.f32.gmra.mrb[0].mxu0 %v486
      %v1541 = vpop.f32.mrb[0].mxu0
      %v1542 = vadd.f32 0.0, %v1541
      %v1543 = vpop.f32.mrb[0].mxu0
      %1544 = vmatprep.mubr.f32.mxu0 0.0
      %1545 = vmatmul.mubr.f32.gmra.mrb[0].mxu0 %v489
      %v1546 = vpop.f32.mrb[0].mxu0
      %v1547 = vadd.f32 0.0, %v1546
      %v1548 = vpop.f32.mrb[0].mxu0
      %1549 = vmatprep.mubr.f32.mxu0 0.0
      %1550 = vmatmul.mubr.f32.gmra.mrb[0].mxu0 %v492
      %v1551 = vpop.f32.mrb[0].mxu0
      %v1552 = vadd.f32 0.0, %v1551
      %v1553 = vpop.f32.mrb[0].mxu0
      %1554 = vmatprep.mubr.f32.mxu0 0.0
      %1555 = vmatmul.mubr.f32.gmra.mrb[0].mxu0 %v495
      %v1556 = vpop.f32.mrb[0].mxu0
      %v1557 = vadd.f32 0.0, %v1556
      %v1558 = vpop.f32.mrb[0].mxu0
      %1559 = vmatprep.mubr.f32.mxu0 0.0
      %1560 = vmatmul.mubr.f32.gmra.mrb[0].mxu0 %v498
      %v1561 = vpop.f32.mrb[0].mxu0
      %v1562 = vadd.f32 0.0, %v1561
      %v1563 = vpop.f32.mrb[0].mxu0
      %1564 = vmatprep.mubr.f32.mxu0 0.0
      %1565 = vmatmul.mubr.f32.gmra.mrb[0].mxu0 %v501
      %v1566 = vpop.f32.mrb[0].mxu0
      %v1567 = vadd.f32 0.0, %v1566
      %v1568 = vpop.f32.mrb[0].mxu0
      %1569 = vmatprep.mubr.f32.mxu0 0.0
      %1570 = vmatmul.mubr.f32.gmra.mrb[0].mxu0 %v504
      %v1571 = vpop.f32.mrb[0].mxu0
      %v1572 = vadd.f32 0.0, %v1571
      %v1573 = vpop.f32.mrb[0].mxu0
      %1574 = vmatprep.mubr.f32.mxu0 0.0
      %1575 = vmatmul.mubr.f32.gmra.mrb[0].mxu0 %v507
      %v1576 = vpop.f32.mrb[0].mxu0
      %v1577 = vadd.f32 0.0, %v1576
      %v1578 = vpop.f32.mrb[0].mxu0
      %1579 = vmatprep.mubr.f32.mxu0 0.0
      %1580 = vmatmul.mubr.f32.gmra.mrb[0].mxu0 %v510
      %v1581 = vpop.f32.mrb[0].mxu0
      %v1582 = vadd.f32 0.0, %v1581
      %v1583 = vpop.f32.mrb[0].mxu0
      %1584 = vmatprep.mubr.f32.mxu0 0.0
      %1585 = vmatmul.mubr.f32.gmra.mrb[0].mxu0 %v513
      %v1586 = vpop.f32.mrb[0].mxu0
      %v1587 = vadd.f32 0.0, %v1586
      %v1588 = vpop.f32.mrb[0].mxu0
      %1589 = vmatprep.mubr.f32.mxu0 0.0
      %1590 = vmatmul.mubr.f32.gmra.mrb[0].mxu0 %v516
      %v1591 = vpop.f32.mrb[0].mxu0
      %v1592 = vadd.f32 0.0, %v1591
      %v1593 = vpop.f32.mrb[0].mxu0
      %1594 = vmatprep.mubr.f32.mxu0 0.0
      %1595 = vmatmul.mubr.f32.gmra.mrb[0].mxu0 %v519
      %v1596 = vpop.f32.mrb[0].mxu0
      %v1597 = vadd.f32 0.0, %v1596
      %v1598 = vpop.f32.mrb[0].mxu0
      %1599 = vmatprep.mubr.f32.mxu0 0.0
      %1600 = vmatmul.mubr.f32.gmra.mrb[0].mxu0 %v522
      %v1601 = vpop.f32.mrb[0].mxu0
      %v1602 = vadd.f32 0.0, %v1601
      %v1603 = vpop.f32.mrb[0].mxu0
      %1604 = vmatprep.mubr.f32.mxu0 0.0
      %1605 = vmatmul.mubr.f32.gmra.mrb[0].mxu0 %v525
      %v1606 = vpop.f32.mrb[0].mxu0
      %v1607 = vadd.f32 0.0, %v1606
      %v1608 = vpop.f32.mrb[0].mxu0
      %1609 = vmatprep.mubr.f32.mxu0 0.0
      %1610 = vmatmul.mubr.f32.gmra.mrb[0].mxu0 %v528
      %v1611 = vpop.f32.mrb[0].mxu0
      %v1612 = vadd.f32 0.0, %v1611
      %v1613 = vpop.f32.mrb[0].mxu0
      %1614 = vmatprep.mubr.f32.mxu0 0.0
      %1615 = vmatmul.mubr.f32.gmra.mrb[0].mxu0 %v531
      %v1616 = vpop.f32.mrb[0].mxu0
      %v1617 = vadd.f32 0.0, %v1616
      %v1618 = vpop.f32.mrb[0].mxu0
      %1619 = vmatprep.mubr.f32.mxu0 0.0
      %1620 = vmatmul.mubr.f32.gmra.mrb[0].mxu0 %v534
      %v1621 = vpop.f32.mrb[0].mxu0
      %v1622 = vadd.f32 0.0, %v1621
      %v1623 = vpop.f32.mrb[0].mxu0
      %1624 = vmatprep.mubr.f32.mxu0 0.0
      %1625 = vmatmul.mubr.f32.gmra.mrb[0].mxu0 %v537
      %v1626 = vpop.f32.mrb[0].mxu0
      %v1627 = vadd.f32 0.0, %v1626
      %v1628 = vpop.f32.mrb[0].mxu0
      %1629 = vmatprep.mubr.f32.mxu0 0.0
      %1630 = vmatmul.mubr.f32.gmra.mrb[0].mxu0 %v540
      %v1631 = vpop.f32.mrb[0].mxu0
      %v1632 = vadd.f32 0.0, %v1631
      %v1633 = vpop.f32.mrb[0].mxu0
      %1634 = vmatprep.mubr.f32.mxu0 0.0
      %1635 = vmatmul.mubr.f32.gmra.mrb[0].mxu0 %v543
      %v1636 = vpop.f32.mrb[0].mxu0
      %v1637 = vadd.f32 0.0, %v1636
      %v1638 = vpop.f32.mrb[0].mxu0
      %1639 = vmatprep.mubr.f32.mxu0 0.0
      %1640 = vmatmul.mubr.f32.gmra.mrb[0].mxu0 %v546
      %v1641 = vpop.f32.mrb[0].mxu0
      %v1642 = vadd.f32 0.0, %v1641
      %v1643 = vpop.f32.mrb[0].mxu0
      %1644 = vmatprep.mubr.f32.mxu0 0.0
      %1645 = vmatmul.mubr.f32.gmra.mrb[0].mxu0 %v549
      %v1646 = vpop.f32.mrb[0].mxu0
      %v1647 = vadd.f32 0.0, %v1646
      %v1648 = vpop.f32.mrb[0].mxu0
      %1649 = vmatprep.mubr.f32.mxu0 0.0
      %1650 = vmatmul.mubr.f32.gmra.mrb[0].mxu0 %v552
      %v1651 = vpop.f32.mrb[0].mxu0
      %v1652 = vadd.f32 0.0, %v1651
      %v1653 = vpop.f32.mrb[0].mxu0
      %1654 = vmatprep.mubr.f32.mxu0 0.0
      %1655 = vmatmul.mubr.f32.gmra.mrb[0].mxu0 %v555
      %v1656 = vpop.f32.mrb[0].mxu0
      %v1657 = vadd.f32 0.0, %v1656
      %v1658 = vpop.f32.mrb[0].mxu0
      %1659 = vmatprep.mubr.f32.mxu0 0.0
      %1660 = vmatmul.mubr.f32.gmra.mrb[0].mxu0 %v558
      %v1661 = vpop.f32.mrb[0].mxu0
      %v1662 = vadd.f32 0.0, %v1661
      %v1663 = vpop.f32.mrb[0].mxu0
      %1664 = vmatprep.mubr.f32.mxu0 0.0
      %1665 = vmatmul.mubr.f32.gmra.mrb[0].mxu0 %v561
      %v1666 = vpop.f32.mrb[0].mxu0
      %v1667 = vadd.f32 0.0, %v1666
      %v1668 = vpop.f32.mrb[0].mxu0
      %1669 = vmatprep.mubr.f32.mxu0 0.0
      %1670 = vmatmul.mubr.f32.gmra.mrb[0].mxu0 %v564
      %v1671 = vpop.f32.mrb[0].mxu0
      %v1672 = vadd.f32 0.0, %v1671
      %v1673 = vpop.f32.mrb[0].mxu0
      %1674 = vmatprep.mubr.f32.mxu0 0.0
      %1675 = vmatmul.mubr.f32.gmra.mrb[0].mxu0 %v567
      %v1676 = vpop.f32.mrb[0].mxu0
      %v1677 = vadd.f32 0.0, %v1676
      %v1678 = vpop.f32.mrb[0].mxu0
      %1679 = vmatprep.mubr.f32.mxu0 0.0
      %1680 = vmatmul.mubr.f32.gmra.mrb[0].mxu0 %v570
      %v1681 = vpop.f32.mrb[0].mxu0
      %v1682 = vadd.f32 0.0, %v1681
      %v1683 = vpop.f32.mrb[0].mxu0
      %1684 = vmatprep.mubr.f32.mxu0 0.0
      %1685 = vmatmul.mubr.f32.gmra.mrb[0].mxu0 %v573
      %v1686 = vpop.f32.mrb[0].mxu0
      %v1687 = vadd.f32 0.0, %v1686
      %v1688 = vpop.f32.mrb[0].mxu0
      %1689 = vmatprep.mubr.f32.mxu0 0.0
      %1690 = vmatmul.mubr.f32.gmra.mrb[0].mxu0 %v576
      %v1691 = vpop.f32.mrb[0].mxu0
      %v1692 = vadd.f32 0.0, %v1691
      %v1693 = vpop.f32.mrb[0].mxu0
      %1694 = vmatprep.mubr.f32.mxu0 0.0
      %1695 = vmatmul.mubr.f32.gmra.mrb[0].mxu0 %v579
      %v1696 = vpop.f32.mrb[0].mxu0
      %v1697 = vadd.f32 0.0, %v1696
      %v1698 = vpop.f32.mrb[0].mxu0
      %1699 = vmatprep.mubr.f32.mxu0 0.0
      %1700 = vmatmul.mubr.f32.gmra.mrb[0].mxu0 %v582
      %v1701 = vpop.f32.mrb[0].mxu0
      %v1702 = vadd.f32 0.0, %v1701
      %v1703 = vpop.f32.mrb[0].mxu0
      %1704 = vmatprep.mubr.f32.mxu0 0.0
      %1705 = vmatmul.mubr.f32.gmra.mrb[0].mxu0 %v585
      %v1706 = vpop.f32.mrb[0].mxu0
      %v1707 = vadd.f32 0.0, %v1706
      %v1708 = vpop.f32.mrb[0].mxu0
      %1709 = vmatprep.mubr.f32.mxu0 0.0
      %1710 = vmatmul.mubr.f32.gmra.mrb[0].mxu0 %v588
      %v1711 = vpop.f32.mrb[0].mxu0
      %v1712 = vadd.f32 0.0, %v1711
      %v1713 = vpop.f32.mrb[0].mxu0
      %1714 = vmatprep.mubr.f32.mxu0 0.0
      %1715 = vmatmul.mubr.f32.gmra.mrb[0].mxu0 %v591
      %v1716 = vpop.f32.mrb[0].mxu0
      %v1717 = vadd.f32 0.0, %v1716
      %v1718 = vpop.f32.mrb[0].mxu0
      %1719 = vmatprep.mubr.f32.mxu0 0.0
      %1720 = vmatmul.mubr.f32.gmra.mrb[0].mxu0 %v594
      %v1721 = vpop.f32.mrb[0].mxu0
      %v1722 = vadd.f32 0.0, %v1721
      %v1723 = vpop.f32.mrb[0].mxu0
      %1724 = vmatprep.mubr.f32.mxu0 0.0
      %1725 = vmatmul.mubr.f32.gmra.mrb[0].mxu0 %v597
      %v1726 = vpop.f32.mrb[0].mxu0
      %v1727 = vadd.f32 0.0, %v1726
      %v1728 = vpop.f32.mrb[0].mxu0
      %1729 = vmatprep.mubr.f32.mxu0 0.0
      %1730 = vmatmul.mubr.f32.gmra.mrb[0].mxu0 %v600
      %v1731 = vpop.f32.mrb[0].mxu0
      %v1732 = vadd.f32 0.0, %v1731
      %v1733 = vpop.f32.mrb[0].mxu0
      %1734 = vmatprep.mubr.f32.mxu0 0.0
      %1735 = vmatmul.mubr.f32.gmra.mrb[0].mxu0 %v603
      %v1736 = vpop.f32.mrb[0].mxu0
      %v1737 = vadd.f32 0.0, %v1736
      %v1738 = vpop.f32.mrb[0].mxu0
      %1739 = vmatprep.mubr.f32.mxu0 0.0
      %1740 = vmatmul.mubr.f32.gmra.mrb[0].mxu0 %v606
      %v1741 = vpop.f32.mrb[0].mxu0
      %v1742 = vadd.f32 0.0, %v1741
      %v1743 = vpop.f32.mrb[0].mxu0
      %1744 = vmatprep.mubr.f32.mxu0 0.0
      %1745 = vmatmul.mubr.f32.gmra.mrb[0].mxu0 %v609
      %v1746 = vpop.f32.mrb[0].mxu0
      %v1747 = vadd.f32 0.0, %v1746
      %v1748 = vpop.f32.mrb[0].mxu0
      %1749 = vmatprep.mubr.f32.mxu0 0.0
      %1750 = vmatmul.mubr.f32.gmra.mrb[0].mxu0 %v612
      %v1751 = vpop.f32.mrb[0].mxu0
      %v1752 = vadd.f32 0.0, %v1751
      %v1753 = vpop.f32.mrb[0].mxu0
      %1754 = vmatprep.mubr.f32.mxu0 0.0
      %1755 = vmatmul.mubr.f32.gmra.mrb[0].mxu0 %v615
      %v1756 = vpop.f32.mrb[0].mxu0
      %v1757 = vadd.f32 0.0, %v1756
      %v1758 = vpop.f32.mrb[0].mxu0
      %1759 = vmatprep.mubr.f32.mxu0 0.0
      %1760 = vmatmul.mubr.f32.gmra.mrb[0].mxu0 %v618
      %v1761 = vpop.f32.mrb[0].mxu0
      %v1762 = vadd.f32 0.0, %v1761
      %v1763 = vpop.f32.mrb[0].mxu0
      %1764 = vmatprep.mubr.f32.mxu0 0.0
      %1765 = vmatmul.mubr.f32.gmra.mrb[0].mxu0 %v621
      %v1766 = vpop.f32.mrb[0].mxu0
      %v1767 = vadd.f32 0.0, %v1766
      %v1768 = vpop.f32.mrb[0].mxu0
      %1769 = vdwg.mxu0
      %1770 = vst [vmem:[#allocation3] sm:$0xff] %v690
      %1771 = vst [vmem:[#allocation3 + $0x8] sm:$0xff] %v692
      %1772 = vst [vmem:[#allocation3 + $0x10] sm:$0xff] %v1091
      %1773 = vst [vmem:[#allocation3 + $0x18] sm:$0xff] %v1093
      %1774 = vst [vmem:[#allocation3 + $0x20] sm:$0xff] %v1492
      %1775 = vst [vmem:[#allocation3 + $0x28] sm:$0xff] %v696
      %1776 = vst [vmem:[#allocation3 + $0x30] sm:$0xff] %v698
      %1777 = vst [vmem:[#allocation3 + $0x38] sm:$0xff] %v1097
      %1778 = vst [vmem:[#allocation3 + $0x40] sm:$0xff] %v1099
      %1779 = vst [vmem:[#allocation3 + $0x48] sm:$0xff] %v1497
      %1780 = vst [vmem:[#allocation3 + $0x50] sm:$0xff] %v702
      %1781 = vst [vmem:[#allocation3 + $0x58] sm:$0xff] %v704
      %1782 = vst [vmem:[#allocation3 + $0x60] sm:$0xff] %v1103
      %1783 = vst [vmem:[#allocation3 + $0x68] sm:$0xff] %v1105
      %1784 = vst [vmem:[#allocation3 + $0x70] sm:$0xff] %v1502
      %1785 = vst [vmem:[#allocation3 + $0x78] sm:$0xff] %v708
      %1786 = vst [vmem:[#allocation3 + $0x80] sm:$0xff] %v710
      %1787 = vst [vmem:[#allocation3 + $0x88] sm:$0xff] %v1109
      %1788 = vst [vmem:[#allocation3 + $0x90] sm:$0xff] %v1111
      %1789 = vst [vmem:[#allocation3 + $0x98] sm:$0xff] %v1507
      %1790 = vst [vmem:[#allocation3 + $0xa0] sm:$0xff] %v714
      %1791 = vst [vmem:[#allocation3 + $0xa8] sm:$0xff] %v716
      %1792 = vst [vmem:[#allocation3 + $0xb0] sm:$0xff] %v1115
      %1793 = vst [vmem:[#allocation3 + $0xb8] sm:$0xff] %v1117
      %1794 = vst [vmem:[#allocation3 + $0xc0] sm:$0xff] %v1512
      %1795 = vst [vmem:[#allocation3 + $0xc8] sm:$0xff] %v720
      %1796 = vst [vmem:[#allocation3 + $0xd0] sm:$0xff] %v722
      %1797 = vst [vmem:[#allocation3 + $0xd8] sm:$0xff] %v1121
      %1798 = vst [vmem:[#allocation3 + $0xe0] sm:$0xff] %v1123
      %1799 = vst [vmem:[#allocation3 + $0xe8] sm:$0xff] %v1517
      %1800 = vst [vmem:[#allocation3 + $0xf0] sm:$0xff] %v726
      %1801 = vst [vmem:[#allocation3 + $0xf8] sm:$0xff] %v728
      %1802 = vst [vmem:[#allocation3 + $0x100] sm:$0xff] %v1127
      %1803 = vst [vmem:[#allocation3 + $0x108] sm:$0xff] %v1129
      %1804 = vst [vmem:[#allocation3 + $0x110] sm:$0xff] %v1522
      %1805 = vst [vmem:[#allocation3 + $0x118] sm:$0xff] %v732
      %1806 = vst [vmem:[#allocation3 + $0x120] sm:$0xff] %v734
      %1807 = vst [vmem:[#allocation3 + $0x128] sm:$0xff] %v1133
      %1808 = vst [vmem:[#allocation3 + $0x130] sm:$0xff] %v1135
      %1809 = vst [vmem:[#allocation3 + $0x138] sm:$0xff] %v1527
      %1810 = vst [vmem:[#allocation3 + $0x140] sm:$0xff] %v738
      %1811 = vst [vmem:[#allocation3 + $0x148] sm:$0xff] %v740
      %1812 = vst [vmem:[#allocation3 + $0x150] sm:$0xff] %v1139
      %1813 = vst [vmem:[#allocation3 + $0x158] sm:$0xff] %v1141
      %1814 = vst [vmem:[#allocation3 + $0x160] sm:$0xff] %v1532
      %1815 = vst [vmem:[#allocation3 + $0x168] sm:$0xff] %v744
      %1816 = vst [vmem:[#allocation3 + $0x170] sm:$0xff] %v746
      %1817 = vst [vmem:[#allocation3 + $0x178] sm:$0xff] %v1145
      %1818 = vst [vmem:[#allocation3 + $0x180] sm:$0xff] %v1147
      %1819 = vst [vmem:[#allocation3 + $0x188] sm:$0xff] %v1537
      %1820 = vst [vmem:[#allocation3 + $0x190] sm:$0xff] %v750
      %1821 = vst [vmem:[#allocation3 + $0x198] sm:$0xff] %v752
      %1822 = vst [vmem:[#allocation3 + $0x1a0] sm:$0xff] %v1151
      %1823 = vst [vmem:[#allocation3 + $0x1a8] sm:$0xff] %v1153
      %1824 = vst [vmem:[#allocation3 + $0x1b0] sm:$0xff] %v1542
      %1825 = vst [vmem:[#allocation3 + $0x1b8] sm:$0xff] %v756
      %1826 = vst [vmem:[#allocation3 + $0x1c0] sm:$0xff] %v758
      %1827 = vst [vmem:[#allocation3 + $0x1c8] sm:$0xff] %v1157
      %1828 = vst [vmem:[#allocation3 + $0x1d0] sm:$0xff] %v1159
      %1829 = vst [vmem:[#allocation3 + $0x1d8] sm:$0xff] %v1547
      %1830 = vst [vmem:[#allocation3 + $0x1e0] sm:$0xff] %v762
      %1831 = vst [vmem:[#allocation3 + $0x1e8] sm:$0xff] %v764
      %1832 = vst [vmem:[#allocation3 + $0x1f0] sm:$0xff] %v1163
      %1833 = vst [vmem:[#allocation3 + $0x1f8] sm:$0xff] %v1165
      %1834 = vst [vmem:[#allocation3 + $0x200] sm:$0xff] %v1552
      %1835 = vst [vmem:[#allocation3 + $0x208] sm:$0xff] %v768
      %1836 = vst [vmem:[#allocation3 + $0x210] sm:$0xff] %v770
      %1837 = vst [vmem:[#allocation3 + $0x218] sm:$0xff] %v1169
      %1838 = vst [vmem:[#allocation3 + $0x220] sm:$0xff] %v1171
      %1839 = vst [vmem:[#allocation3 + $0x228] sm:$0xff] %v1557
      %1840 = vst [vmem:[#allocation3 + $0x230] sm:$0xff] %v774
      %1841 = vst [vmem:[#allocation3 + $0x238] sm:$0xff] %v776
      %1842 = vst [vmem:[#allocation3 + $0x240] sm:$0xff] %v1175
      %1843 = vst [vmem:[#allocation3 + $0x248] sm:$0xff] %v1177
      %1844 = vst [vmem:[#allocation3 + $0x250] sm:$0xff] %v1562
      %1845 = vst [vmem:[#allocation3 + $0x258] sm:$0xff] %v780
      %1846 = vst [vmem:[#allocation3 + $0x260] sm:$0xff] %v782
      %1847 = vst [vmem:[#allocation3 + $0x268] sm:$0xff] %v1181
      %1848 = vst [vmem:[#allocation3 + $0x270] sm:$0xff] %v1183
      %1849 = vst [vmem:[#allocation3 + $0x278] sm:$0xff] %v1567
      %1850 = vst [vmem:[#allocation3 + $0x280] sm:$0xff] %v786
      %1851 = vst [vmem:[#allocation3 + $0x288] sm:$0xff] %v788
      %1852 = vst [vmem:[#allocation3 + $0x290] sm:$0xff] %v1187
      %1853 = vst [vmem:[#allocation3 + $0x298] sm:$0xff] %v1189
      %1854 = vst [vmem:[#allocation3 + $0x2a0] sm:$0xff] %v1572
      %1855 = vst [vmem:[#allocation3 + $0x2a8] sm:$0xff] %v792
      %1856 = vst [vmem:[#allocation3 + $0x2b0] sm:$0xff] %v794
      %1857 = vst [vmem:[#allocation3 + $0x2b8] sm:$0xff] %v1193
      %1858 = vst [vmem:[#allocation3 + $0x2c0] sm:$0xff] %v1195
      %1859 = vst [vmem:[#allocation3 + $0x2c8] sm:$0xff] %v1577
      %1860 = vst [vmem:[#allocation3 + $0x2d0] sm:$0xff] %v798
      %1861 = vst [vmem:[#allocation3 + $0x2d8] sm:$0xff] %v800
      %1862 = vst [vmem:[#allocation3 + $0x2e0] sm:$0xff] %v1199
      %1863 = vst [vmem:[#allocation3 + $0x2e8] sm:$0xff] %v1201
      %1864 = vst [vmem:[#allocation3 + $0x2f0] sm:$0xff] %v1582
      %1865 = vst [vmem:[#allocation3 + $0x2f8] sm:$0xff] %v804
      %1866 = vst [vmem:[#allocation3 + $0x300] sm:$0xff] %v806
      %1867 = vst [vmem:[#allocation3 + $0x308] sm:$0xff] %v1205
      %1868 = vst [vmem:[#allocation3 + $0x310] sm:$0xff] %v1207
      %1869 = vst [vmem:[#allocation3 + $0x318] sm:$0xff] %v1587
      %1870 = vst [vmem:[#allocation3 + $0x320] sm:$0xff] %v810
      %1871 = vst [vmem:[#allocation3 + $0x328] sm:$0xff] %v812
      %1872 = vst [vmem:[#allocation3 + $0x330] sm:$0xff] %v1211
      %1873 = vst [vmem:[#allocation3 + $0x338] sm:$0xff] %v1213
      %1874 = vst [vmem:[#allocation3 + $0x340] sm:$0xff] %v1592
      %1875 = vst [vmem:[#allocation3 + $0x348] sm:$0xff] %v816
      %1876 = vst [vmem:[#allocation3 + $0x350] sm:$0xff] %v818
      %1877 = vst [vmem:[#allocation3 + $0x358] sm:$0xff] %v1217
      %1878 = vst [vmem:[#allocation3 + $0x360] sm:$0xff] %v1219
      %1879 = vst [vmem:[#allocation3 + $0x368] sm:$0xff] %v1597
      %1880 = vst [vmem:[#allocation3 + $0x370] sm:$0xff] %v822
      %1881 = vst [vmem:[#allocation3 + $0x378] sm:$0xff] %v824
      %1882 = vst [vmem:[#allocation3 + $0x380] sm:$0xff] %v1223
      %1883 = vst [vmem:[#allocation3 + $0x388] sm:$0xff] %v1225
      %1884 = vst [vmem:[#allocation3 + $0x390] sm:$0xff] %v1602
      %1885 = vst [vmem:[#allocation3 + $0x398] sm:$0xff] %v828
      %1886 = vst [vmem:[#allocation3 + $0x3a0] sm:$0xff] %v830
      %1887 = vst [vmem:[#allocation3 + $0x3a8] sm:$0xff] %v1229
      %1888 = vst [vmem:[#allocation3 + $0x3b0] sm:$0xff] %v1231
      %1889 = vst [vmem:[#allocation3 + $0x3b8] sm:$0xff] %v1607
      %1890 = vst [vmem:[#allocation3 + $0x3c0] sm:$0xff] %v834
      %1891 = vst [vmem:[#allocation3 + $0x3c8] sm:$0xff] %v836
      %1892 = vst [vmem:[#allocation3 + $0x3d0] sm:$0xff] %v1235
      %1893 = vst [vmem:[#allocation3 + $0x3d8] sm:$0xff] %v1237
      %1894 = vst [vmem:[#allocation3 + $0x3e0] sm:$0xff] %v1612
      %1895 = vst [vmem:[#allocation3 + $0x3e8] sm:$0xff] %v840
      %1896 = vst [vmem:[#allocation3 + $0x3f0] sm:$0xff] %v842
      %1897 = vst [vmem:[#allocation3 + $0x3f8] sm:$0xff] %v1241
      %1898 = vst [vmem:[#allocation3 + $0x400] sm:$0xff] %v1243
      %1899 = vst [vmem:[#allocation3 + $0x408] sm:$0xff] %v1617
      %1900 = vst [vmem:[#allocation3 + $0x410] sm:$0xff] %v846
      %1901 = vst [vmem:[#allocation3 + $0x418] sm:$0xff] %v848
      %1902 = vst [vmem:[#allocation3 + $0x420] sm:$0xff] %v1247
      %1903 = vst [vmem:[#allocation3 + $0x428] sm:$0xff] %v1249
      %1904 = vst [vmem:[#allocation3 + $0x430] sm:$0xff] %v1622
      %1905 = vst [vmem:[#allocation3 + $0x438] sm:$0xff] %v852
      %1906 = vst [vmem:[#allocation3 + $0x440] sm:$0xff] %v854
      %1907 = vst [vmem:[#allocation3 + $0x448] sm:$0xff] %v1253
      %1908 = vst [vmem:[#allocation3 + $0x450] sm:$0xff] %v1255
      %1909 = vst [vmem:[#allocation3 + $0x458] sm:$0xff] %v1627
      %1910 = vst [vmem:[#allocation3 + $0x460] sm:$0xff] %v858
      %1911 = vst [vmem:[#allocation3 + $0x468] sm:$0xff] %v860
      %1912 = vst [vmem:[#allocation3 + $0x470] sm:$0xff] %v1259
      %1913 = vst [vmem:[#allocation3 + $0x478] sm:$0xff] %v1261
      %1914 = vst [vmem:[#allocation3 + $0x480] sm:$0xff] %v1632
      %1915 = vst [vmem:[#allocation3 + $0x488] sm:$0xff] %v864
      %1916 = vst [vmem:[#allocation3 + $0x490] sm:$0xff] %v866
      %1917 = vst [vmem:[#allocation3 + $0x498] sm:$0xff] %v1265
      %1918 = vst [vmem:[#allocation3 + $0x4a0] sm:$0xff] %v1267
      %1919 = vst [vmem:[#allocation3 + $0x4a8] sm:$0xff] %v1637
      %1920 = vst [vmem:[#allocation3 + $0x4b0] sm:$0xff] %v870
      %1921 = vst [vmem:[#allocation3 + $0x4b8] sm:$0xff] %v872
      %1922 = vst [vmem:[#allocation3 + $0x4c0] sm:$0xff] %v1271
      %1923 = vst [vmem:[#allocation3 + $0x4c8] sm:$0xff] %v1273
      %1924 = vst [vmem:[#allocation3 + $0x4d0] sm:$0xff] %v1642
      %1925 = vst [vmem:[#allocation3 + $0x4d8] sm:$0xff] %v876
      %1926 = vst [vmem:[#allocation3 + $0x4e0] sm:$0xff] %v878
      %1927 = vst [vmem:[#allocation3 + $0x4e8] sm:$0xff] %v1277
      %1928 = vst [vmem:[#allocation3 + $0x4f0] sm:$0xff] %v1279
      %1929 = vst [vmem:[#allocation3 + $0x4f8] sm:$0xff] %v1647
      %1930 = vst [vmem:[#allocation3 + $0x500] sm:$0xff] %v882
      %1931 = vst [vmem:[#allocation3 + $0x508] sm:$0xff] %v884
      %1932 = vst [vmem:[#allocation3 + $0x510] sm:$0xff] %v1283
      %1933 = vst [vmem:[#allocation3 + $0x518] sm:$0xff] %v1285
      %1934 = vst [vmem:[#allocation3 + $0x520] sm:$0xff] %v1652
      %1935 = vst [vmem:[#allocation3 + $0x528] sm:$0xff] %v888
      %1936 = vst [vmem:[#allocation3 + $0x530] sm:$0xff] %v890
      %1937 = vst [vmem:[#allocation3 + $0x538] sm:$0xff] %v1289
      %1938 = vst [vmem:[#allocation3 + $0x540] sm:$0xff] %v1291
      %1939 = vst [vmem:[#allocation3 + $0x548] sm:$0xff] %v1657
      %1940 = vst [vmem:[#allocation3 + $0x550] sm:$0xff] %v894
      %1941 = vst [vmem:[#allocation3 + $0x558] sm:$0xff] %v896
      %1942 = vst [vmem:[#allocation3 + $0x560] sm:$0xff] %v1295
      %1943 = vst [vmem:[#allocation3 + $0x568] sm:$0xff] %v1297
      %1944 = vst [vmem:[#allocation3 + $0x570] sm:$0xff] %v1662
      %1945 = vst [vmem:[#allocation3 + $0x578] sm:$0xff] %v900
      %1946 = vst [vmem:[#allocation3 + $0x580] sm:$0xff] %v902
      %1947 = vst [vmem:[#allocation3 + $0x588] sm:$0xff] %v1301
      %1948 = vst [vmem:[#allocation3 + $0x590] sm:$0xff] %v1303
      %1949 = vst [vmem:[#allocation3 + $0x598] sm:$0xff] %v1667
      %1950 = vst [vmem:[#allocation3 + $0x5a0] sm:$0xff] %v906
      %1951 = vst [vmem:[#allocation3 + $0x5a8] sm:$0xff] %v908
      %1952 = vst [vmem:[#allocation3 + $0x5b0] sm:$0xff] %v1307
      %1953 = vst [vmem:[#allocation3 + $0x5b8] sm:$0xff] %v1309
      %1954 = vst [vmem:[#allocation3 + $0x5c0] sm:$0xff] %v1672
      %1955 = vst [vmem:[#allocation3 + $0x5c8] sm:$0xff] %v912
      %1956 = vst [vmem:[#allocation3 + $0x5d0] sm:$0xff] %v914
      %1957 = vst [vmem:[#allocation3 + $0x5d8] sm:$0xff] %v1313
      %1958 = vst [vmem:[#allocation3 + $0x5e0] sm:$0xff] %v1315
      %1959 = vst [vmem:[#allocation3 + $0x5e8] sm:$0xff] %v1677
      %1960 = vst [vmem:[#allocation3 + $0x5f0] sm:$0xff] %v918
      %1961 = vst [vmem:[#allocation3 + $0x5f8] sm:$0xff] %v920
      %1962 = vst [vmem:[#allocation3 + $0x600] sm:$0xff] %v1319
      %1963 = vst [vmem:[#allocation3 + $0x608] sm:$0xff] %v1321
      %1964 = vst [vmem:[#allocation3 + $0x610] sm:$0xff] %v1682
      %1965 = vst [vmem:[#allocation3 + $0x618] sm:$0xff] %v924
      %1966 = vst [vmem:[#allocation3 + $0x620] sm:$0xff] %v926
      %1967 = vst [vmem:[#allocation3 + $0x628] sm:$0xff] %v1325
      %1968 = vst [vmem:[#allocation3 + $0x630] sm:$0xff] %v1327
      %1969 = vst [vmem:[#allocation3 + $0x638] sm:$0xff] %v1687
      %1970 = vst [vmem:[#allocation3 + $0x640] sm:$0xff] %v930
      %1971 = vst [vmem:[#allocation3 + $0x648] sm:$0xff] %v932
      %1972 = vst [vmem:[#allocation3 + $0x650] sm:$0xff] %v1331
      %1973 = vst [vmem:[#allocation3 + $0x658] sm:$0xff] %v1333
      %1974 = vst [vmem:[#allocation3 + $0x660] sm:$0xff] %v1692
      %1975 = vst [vmem:[#allocation3 + $0x668] sm:$0xff] %v936
      %1976 = vst [vmem:[#allocation3 + $0x670] sm:$0xff] %v938
      %1977 = vst [vmem:[#allocation3 + $0x678] sm:$0xff] %v1337
      %1978 = vst [vmem:[#allocation3 + $0x680] sm:$0xff] %v1339
      %1979 = vst [vmem:[#allocation3 + $0x688] sm:$0xff] %v1697
      %1980 = vst [vmem:[#allocation3 + $0x690] sm:$0xff] %v942
      %1981 = vst [vmem:[#allocation3 + $0x698] sm:$0xff] %v944
      %1982 = vst [vmem:[#allocation3 + $0x6a0] sm:$0xff] %v1343
      %1983 = vst [vmem:[#allocation3 + $0x6a8] sm:$0xff] %v1345
      %1984 = vst [vmem:[#allocation3 + $0x6b0] sm:$0xff] %v1702
      %1985 = vst [vmem:[#allocation3 + $0x6b8] sm:$0xff] %v948
      %1986 = vst [vmem:[#allocation3 + $0x6c0] sm:$0xff] %v950
      %1987 = vst [vmem:[#allocation3 + $0x6c8] sm:$0xff] %v1349
      %1988 = vst [vmem:[#allocation3 + $0x6d0] sm:$0xff] %v1351
      %1989 = vst [vmem:[#allocation3 + $0x6d8] sm:$0xff] %v1707
      %1990 = vst [vmem:[#allocation3 + $0x6e0] sm:$0xff] %v954
      %1991 = vst [vmem:[#allocation3 + $0x6e8] sm:$0xff] %v956
      %1992 = vst [vmem:[#allocation3 + $0x6f0] sm:$0xff] %v1355
      %1993 = vst [vmem:[#allocation3 + $0x6f8] sm:$0xff] %v1357
      %1994 = vst [vmem:[#allocation3 + $0x700] sm:$0xff] %v1712
      %1995 = vst [vmem:[#allocation3 + $0x708] sm:$0xff] %v960
      %1996 = vst [vmem:[#allocation3 + $0x710] sm:$0xff] %v962
      %1997 = vst [vmem:[#allocation3 + $0x718] sm:$0xff] %v1361
      %1998 = vst [vmem:[#allocation3 + $0x720] sm:$0xff] %v1363
      %1999 = vst [vmem:[#allocation3 + $0x728] sm:$0xff] %v1717
      %2000 = vst [vmem:[#allocation3 + $0x730] sm:$0xff] %v966
      %2001 = vst [vmem:[#allocation3 + $0x738] sm:$0xff] %v968
      %2002 = vst [vmem:[#allocation3 + $0x740] sm:$0xff] %v1367
      %2003 = vst [vmem:[#allocation3 + $0x748] sm:$0xff] %v1369
      %2004 = vst [vmem:[#allocation3 + $0x750] sm:$0xff] %v1722
      %2005 = vst [vmem:[#allocation3 + $0x758] sm:$0xff] %v972
      %2006 = vst [vmem:[#allocation3 + $0x760] sm:$0xff] %v974
      %2007 = vst [vmem:[#allocation3 + $0x768] sm:$0xff] %v1373
      %2008 = vst [vmem:[#allocation3 + $0x770] sm:$0xff] %v1375
      %2009 = vst [vmem:[#allocation3 + $0x778] sm:$0xff] %v1727
      %2010 = vst [vmem:[#allocation3 + $0x780] sm:$0xff] %v978
      %2011 = vst [vmem:[#allocation3 + $0x788] sm:$0xff] %v980
      %2012 = vst [vmem:[#allocation3 + $0x790] sm:$0xff] %v1379
      %2013 = vst [vmem:[#allocation3 + $0x798] sm:$0xff] %v1381
      %2014 = vst [vmem:[#allocation3 + $0x7a0] sm:$0xff] %v1732
      %2015 = vst [vmem:[#allocation3 + $0x7a8] sm:$0xff] %v984
      %2016 = vst [vmem:[#allocation3 + $0x7b0] sm:$0xff] %v986
      %2017 = vst [vmem:[#allocation3 + $0x7b8] sm:$0xff] %v1385
      %2018 = vst [vmem:[#allocation3 + $0x7c0] sm:$0xff] %v1387
      %2019 = vst [vmem:[#allocation3 + $0x7c8] sm:$0xff] %v1737
      %2020 = vst [vmem:[#allocation3 + $0x7d0] sm:$0xff] %v990
      %2021 = vst [vmem:[#allocation3 + $0x7d8] sm:$0xff] %v992
      %2022 = vst [vmem:[#allocation3 + $0x7e0] sm:$0xff] %v1391
      %2023 = vst [vmem:[#allocation3 + $0x7e8] sm:$0xff] %v1393
      %2024 = vst [vmem:[#allocation3 + $0x7f0] sm:$0xff] %v1742
      %2025 = vst [vmem:[#allocation3 + $0x7f8] sm:$0xff] %v996
      %2026 = vst [vmem:[#allocation3 + $0x800] sm:$0xff] %v998
      %2027 = vst [vmem:[#allocation3 + $0x808] sm:$0xff] %v1397
      %2028 = vst [vmem:[#allocation3 + $0x810] sm:$0xff] %v1399
      %2029 = vst [vmem:[#allocation3 + $0x818] sm:$0xff] %v1747
      %2030 = vst [vmem:[#allocation3 + $0x820] sm:$0xff] %v1002
      %2031 = vst [vmem:[#allocation3 + $0x828] sm:$0xff] %v1004
      %2032 = vst [vmem:[#allocation3 + $0x830] sm:$0xff] %v1403
      %2033 = vst [vmem:[#allocation3 + $0x838] sm:$0xff] %v1405
      %2034 = vst [vmem:[#allocation3 + $0x840] sm:$0xff] %v1752
      %2035 = vst [vmem:[#allocation3 + $0x848] sm:$0xff] %v1008
      %2036 = vst [vmem:[#allocation3 + $0x850] sm:$0xff] %v1010
      %2037 = vst [vmem:[#allocation3 + $0x858] sm:$0xff] %v1409
      %2038 = vst [vmem:[#allocation3 + $0x860] sm:$0xff] %v1411
      %2039 = vst [vmem:[#allocation3 + $0x868] sm:$0xff] %v1757
      %2040 = vst [vmem:[#allocation3 + $0x870] sm:$0xff] %v1014
      %2041 = vst [vmem:[#allocation3 + $0x878] sm:$0xff] %v1016
      %2042 = vst [vmem:[#allocation3 + $0x880] sm:$0xff] %v1415
      %2043 = vst [vmem:[#allocation3 + $0x888] sm:$0xff] %v1417
      %2044 = vst [vmem:[#allocation3 + $0x890] sm:$0xff] %v1762
      %2045 = vst [vmem:[#allocation3 + $0x898] sm:$0xff] %v1020
      %2046 = vst [vmem:[#allocation3 + $0x8a0] sm:$0xff] %v1022
      %2047 = vst [vmem:[#allocation3 + $0x8a8] sm:$0xff] %v1421
      %2048 = vst [vmem:[#allocation3 + $0x8b0] sm:$0xff] %v1423
      %2049 = vst [vmem:[#allocation3 + $0x8b8] sm:$0xff] %v1767
      %s2050 = smul.u32 %s19, 1200
      %s2051 = sadd.s32 60, %s2050
      %s2052 = smul.addr %s2051, 128
      %s2053 = scalar_lea.hbm %s7, %s2052
      // Predicated region
      $region37: #{tpu_custom_call.1} parent=35 // pred_check
        _
      $region38: #{tpu_custom_call.1} parent=35 // pred_check_branch
        %2055 = sbr.rel target = $region40
      $region39: #{tpu_custom_call.1} parent=35 // pred_region
        %2056 = sst [smem:[#allocation7]] [#allocation6]
        %2057 = sst [smem:[#allocation8]] [#allocation5]
      $region40: #{tpu_custom_call.1} parent=35 // pred_fallthru
        _
      %2059 = shalt.err (0)
      %s2061 = sshll.u32 [#allocation3], 4
      %s2062 = int_to_ptr.vmem [resolvable:$true] %s2061
      %2064 = dma.vmem_to_hbm [thread:$0]  %s2062, 35840, %s2053, [#allocation4]
      %s2065 = sadd.s32 460, %s2050
      %s2066 = smul.addr %s2065, 128
      %s2067 = scalar_lea.hbm %s7, %s2066
      %s2068 = scalar_lea.sflag [#allocation4], 1
      // Predicated region
      $region41: #{tpu_custom_call.1} parent=35 // pred_check
        _
      $region42: #{tpu_custom_call.1} parent=35 // pred_check_branch
        %2070 = sbr.rel target = $region44
      $region43: #{tpu_custom_call.1} parent=35 // pred_region
        %2071 = sst [smem:[#allocation7]] [#allocation10]
        %2072 = sst [smem:[#allocation8]] [#allocation9]
      $region44: #{tpu_custom_call.1} parent=35 // pred_fallthru
        _
      %2074 = shalt.err (0)
      %s2076 = sshll.u32 [#allocation3], 4
      %s2077 = int_to_ptr.vmem [resolvable:$true] %s2076
      %2079 = dma.vmem_to_hbm [thread:$0]  %s2077, 35840, %s2067, %s2068
      %s2080 = sadd.s32 860, %s2050
      %s2081 = smul.addr %s2080, 128
      %s2082 = scalar_lea.hbm %s7, %s2081
      %s2083 = scalar_lea.sflag [#allocation4], 2
      // Predicated region
      $region45: #{tpu_custom_call.1} parent=35 // pred_check
        _
      $region46: #{tpu_custom_call.1} parent=35 // pred_check_branch
        %2085 = sbr.rel target = $region48
      $region47: #{tpu_custom_call.1} parent=35 // pred_region
        %2086 = sst [smem:[#allocation7]] [#allocation12]
        %2087 = sst [smem:[#allocation8]] [#allocation11]
      $region48: #{tpu_custom_call.1} parent=35 // pred_fallthru
        _
      %2089 = shalt.err (0)
      %s2091 = sshll.u32 [#allocation3], 4
      %s2092 = int_to_ptr.vmem [resolvable:$true] %s2091
      %2094 = dma.vmem_to_hbm [thread:$0]  %s2092, 35840, %s2082, %s2083
      %s2095 = scalar_lea.vmem %s145, 32
      %v2096 = vld [vmem:[%s2095] sm:$0xff]
      %v2097 = vld [vmem:[%s2095 + $0x8] sm:$0xff]
      %v2099 = vsel %vm219, %v2096, 0
      %v2102 = vsel %vm219, %v2097, 0
      %2104 = vmatprep.subr.mxu0 %v208
      %2105 = vmatpush1.msra.mxu0 %v207
      %2106 = vmatprep.subr.mxu0 %v213
      %2107 = vmatpush1.msra.mxu0 %v212
      %2108 = vmatprep.subr.mxu0 0.0
      %2109 = vmatpush1.msra.mxu0 0.0
      %2110 = vmatprep.subr.mxu0 0.0
      %2111 = vmatpush1.msra.mxu0 0.0
      %2112 = vmatprep.subr.mxu0 0.0
      %2113 = vmatpush1.msra.mxu0 0.0
      %2114 = vmatprep.subr.mxu0 0.0
      %2115 = vmatpush1.msra.mxu0 0.0
      %2116 = vmatprep.subr.mxu0 0.0
      %2117 = vmatpush1.msra.mxu0 0.0
      %2118 = vmatprep.subr.mxu0 0.0
      %2119 = vmatpush1.msra.mxu0 0.0
      %2120 = vmatprep.subr.mxu0 0.0
      %2121 = vmatpush1.msra.mxu0 0.0
      %2122 = vmatprep.subr.mxu0 0.0
      %2123 = vmatpush1.msra.mxu0 0.0
      %2124 = vmatprep.subr.mxu0 0.0
      %2125 = vmatpush1.msra.mxu0 0.0
      %2126 = vmatprep.subr.mxu0 0.0
      %2127 = vmatpush1.msra.mxu0 0.0
      %2128 = vmatprep.subr.mxu0 0.0
      %2129 = vmatpush1.msra.mxu0 0.0
      %2130 = vmatprep.subr.mxu0 0.0
      %2131 = vmatpush1.msra.mxu0 0.0
      %2132 = vmatprep.subr.mxu0 0.0
      %2133 = vmatpush1.msra.mxu0 0.0
      %2134 = vmatprep.subr.mxu0 0.0
      %2135 = vmatpush1.msra.mxu0 0.0
      %2136 = vmatprep.subr.mxu0 0.0
      %2137 = vmatpush1.msra.mxu0 0.0
      %2138 = vmatprep.subr.mxu0 0.0
      %2139 = vmatpush1.msra.mxu0 0.0
      %2140 = vmatprep.subr.mxu0 0.0
      %2141 = vmatpush1.msra.mxu0 0.0
      %2142 = vmatprep.subr.mxu0 0.0
      %2143 = vmatpush1.msra.mxu0 0.0
      %2144 = vmatprep.subr.mxu0 0.0
      %2145 = vmatpush1.msra.mxu0 0.0
      %2146 = vmatprep.subr.mxu0 0.0
      %2147 = vmatpush1.msra.mxu0 0.0
      %2148 = vmatprep.subr.mxu0 0.0
      %2149 = vmatpush1.msra.mxu0 0.0
      %2150 = vmatprep.subr.mxu0 0.0
      %2151 = vmatpush1.msra.mxu0 0.0
      %2152 = vmatprep.subr.mxu0 0.0
      %2153 = vmatpush1.msra.mxu0 0.0
      %2154 = vmatprep.subr.mxu0 0.0
      %2155 = vmatpush1.msra.mxu0 0.0
      %2156 = vmatprep.subr.mxu0 0.0
      %2157 = vmatpush1.msra.mxu0 0.0
      %2158 = vmatprep.subr.mxu0 0.0
      %2159 = vmatpush1.msra.mxu0 0.0
      %2160 = vmatprep.subr.mxu0 0.0
      %2161 = vmatpush1.msra.mxu0 0.0
      %2162 = vmatprep.subr.mxu0 0.0
      %2163 = vmatpush1.msra.mxu0 0.0
      %2164 = vmatprep.subr.mxu0 0.0
      %2165 = vmatpush1.msra.mxu0 0.0
      %2166 = vmatprep.subr.mxu0 0.0
      %2167 = vmatpush1.msra.mxu0 0.0
      %2168 = vmatprep.mubr.f32.mxu0 0.0
      %2169 = vmatmul.mubr.f32.gmra.mrb[0].mxu0 %v2099
      %v2170 = vpop.f32.mrb[0].mxu0
      %v2171 = vadd.f32 0.0, %v2170
      %v2172 = vpop.f32.mrb[0].mxu0
      %v2173 = vadd.f32 0.0, %v2172
      %2174 = vmatprep.mubr.f32.mxu0 0.0
      %2175 = vmatmul.mubr.f32.gmra.mrb[0].mxu0 %v2102
      %v2176 = vpop.f32.mrb[0].mxu0
      %v2177 = vadd.f32 0.0, %v2176
      %v2178 = vpop.f32.mrb[0].mxu0
      %v2179 = vadd.f32 0.0, %v2178
      %2180 = vdwg.mxu0
      %2181 = vmatprep.subr.mxu0 %v210
      %2182 = vmatpush1.msra.mxu0 %v209
      %2183 = vmatprep.subr.mxu0 %v215
      %2184 = vmatpush1.msra.mxu0 %v214
      %2185 = vmatprep.subr.mxu0 0.0
      %2186 = vmatpush1.msra.mxu0 0.0
      %2187 = vmatprep.subr.mxu0 0.0
      %2188 = vmatpush1.msra.mxu0 0.0
      %2189 = vmatprep.subr.mxu0 0.0
      %2190 = vmatpush1.msra.mxu0 0.0
      %2191 = vmatprep.subr.mxu0 0.0
      %2192 = vmatpush1.msra.mxu0 0.0
      %2193 = vmatprep.subr.mxu0 0.0
      %2194 = vmatpush1.msra.mxu0 0.0
      %2195 = vmatprep.subr.mxu0 0.0
      %2196 = vmatpush1.msra.mxu0 0.0
      %2197 = vmatprep.subr.mxu0 0.0
      %2198 = vmatpush1.msra.mxu0 0.0
      %2199 = vmatprep.subr.mxu0 0.0
      %2200 = vmatpush1.msra.mxu0 0.0
      %2201 = vmatprep.subr.mxu0 0.0
      %2202 = vmatpush1.msra.mxu0 0.0
      %2203 = vmatprep.subr.mxu0 0.0
      %2204 = vmatpush1.msra.mxu0 0.0
      %2205 = vmatprep.subr.mxu0 0.0
      %2206 = vmatpush1.msra.mxu0 0.0
      %2207 = vmatprep.subr.mxu0 0.0
      %2208 = vmatpush1.msra.mxu0 0.0
      %2209 = vmatprep.subr.mxu0 0.0
      %2210 = vmatpush1.msra.mxu0 0.0
      %2211 = vmatprep.subr.mxu0 0.0
      %2212 = vmatpush1.msra.mxu0 0.0
      %2213 = vmatprep.subr.mxu0 0.0
      %2214 = vmatpush1.msra.mxu0 0.0
      %2215 = vmatprep.subr.mxu0 0.0
      %2216 = vmatpush1.msra.mxu0 0.0
      %2217 = vmatprep.subr.mxu0 0.0
      %2218 = vmatpush1.msra.mxu0 0.0
      %2219 = vmatprep.subr.mxu0 0.0
      %2220 = vmatpush1.msra.mxu0 0.0
      %2221 = vmatprep.subr.mxu0 0.0
      %2222 = vmatpush1.msra.mxu0 0.0
      %2223 = vmatprep.subr.mxu0 0.0
      %2224 = vmatpush1.msra.mxu0 0.0
      %2225 = vmatprep.subr.mxu0 0.0
      %2226 = vmatpush1.msra.mxu0 0.0
      %2227 = vmatprep.subr.mxu0 0.0
      %2228 = vmatpush1.msra.mxu0 0.0
      %2229 = vmatprep.subr.mxu0 0.0
      %2230 = vmatpush1.msra.mxu0 0.0
      %2231 = vmatprep.subr.mxu0 0.0
      %2232 = vmatpush1.msra.mxu0 0.0
      %2233 = vmatprep.subr.mxu0 0.0
      %2234 = vmatpush1.msra.mxu0 0.0
      %2235 = vmatprep.subr.mxu0 0.0
      %2236 = vmatpush1.msra.mxu0 0.0
      %2237 = vmatprep.subr.mxu0 0.0
      %2238 = vmatpush1.msra.mxu0 0.0
      %2239 = vmatprep.subr.mxu0 0.0
      %2240 = vmatpush1.msra.mxu0 0.0
      %2241 = vmatprep.subr.mxu0 0.0
      %2242 = vmatpush1.msra.mxu0 0.0
      %2243 = vmatprep.subr.mxu0 0.0
      %2244 = vmatpush1.msra.mxu0 0.0
      %2245 = vmatprep.mubr.f32.mxu0 0.0
      %2246 = vmatmul.mubr.f32.gmra.mrb[0].mxu0 %v2099
      %v2247 = vpop.f32.mrb[0].mxu0
      %v2248 = vadd.f32 0.0, %v2247
      %v2249 = vpop.f32.mrb[0].mxu0
      %v2250 = vadd.f32 0.0, %v2249
      %2251 = vmatprep.mubr.f32.mxu0 0.0
      %2252 = vmatmul.mubr.f32.gmra.mrb[0].mxu0 %v2102
      %v2253 = vpop.f32.mrb[0].mxu0
      %v2254 = vadd.f32 0.0, %v2253
      %v2255 = vpop.f32.mrb[0].mxu0
      %v2256 = vadd.f32 0.0, %v2255
      %2257 = vdwg.mxu0
      %2258 = vmatprep.subr.mxu0 0.0
      %2259 = vmatpush1.msra.mxu0 %v211
      %2260 = vmatprep.subr.mxu0 0.0
      %2261 = vmatpush1.msra.mxu0 %v216
      %2262 = vmatprep.subr.mxu0 0.0
      %2263 = vmatpush1.msra.mxu0 0.0
      %2264 = vmatprep.subr.mxu0 0.0
      %2265 = vmatpush1.msra.mxu0 0.0
      %2266 = vmatprep.subr.mxu0 0.0
      %2267 = vmatpush1.msra.mxu0 0.0
      %2268 = vmatprep.subr.mxu0 0.0
      %2269 = vmatpush1.msra.mxu0 0.0
      %2270 = vmatprep.subr.mxu0 0.0
      %2271 = vmatpush1.msra.mxu0 0.0
      %2272 = vmatprep.subr.mxu0 0.0
      %2273 = vmatpush1.msra.mxu0 0.0
      %2274 = vmatprep.subr.mxu0 0.0
      %2275 = vmatpush1.msra.mxu0 0.0
      %2276 = vmatprep.subr.mxu0 0.0
      %2277 = vmatpush1.msra.mxu0 0.0
      %2278 = vmatprep.subr.mxu0 0.0
      %2279 = vmatpush1.msra.mxu0 0.0
      %2280 = vmatprep.subr.mxu0 0.0
      %2281 = vmatpush1.msra.mxu0 0.0
      %2282 = vmatprep.subr.mxu0 0.0
      %2283 = vmatpush1.msra.mxu0 0.0
      %2284 = vmatprep.subr.mxu0 0.0
      %2285 = vmatpush1.msra.mxu0 0.0
      %2286 = vmatprep.subr.mxu0 0.0
      %2287 = vmatpush1.msra.mxu0 0.0
      %2288 = vmatprep.subr.mxu0 0.0
      %2289 = vmatpush1.msra.mxu0 0.0
      %2290 = vmatprep.subr.mxu0 0.0
      %2291 = vmatpush1.msra.mxu0 0.0
      %2292 = vmatprep.subr.mxu0 0.0
      %2293 = vmatpush1.msra.mxu0 0.0
      %2294 = vmatprep.subr.mxu0 0.0
      %2295 = vmatpush1.msra.mxu0 0.0
      %2296 = vmatprep.subr.mxu0 0.0
      %2297 = vmatpush1.msra.mxu0 0.0
      %2298 = vmatprep.subr.mxu0 0.0
      %2299 = vmatpush1.msra.mxu0 0.0
      %2300 = vmatprep.subr.mxu0 0.0
      %2301 = vmatpush1.msra.mxu0 0.0
      %2302 = vmatprep.subr.mxu0 0.0
      %2303 = vmatpush1.msra.mxu0 0.0
      %2304 = vmatprep.subr.mxu0 0.0
      %2305 = vmatpush1.msra.mxu0 0.0
      %2306 = vmatprep.subr.mxu0 0.0
      %2307 = vmatpush1.msra.mxu0 0.0
      %2308 = vmatprep.subr.mxu0 0.0
      %2309 = vmatpush1.msra.mxu0 0.0
      %2310 = vmatprep.subr.mxu0 0.0
      %2311 = vmatpush1.msra.mxu0 0.0
      %2312 = vmatprep.subr.mxu0 0.0
      %2313 = vmatpush1.msra.mxu0 0.0
      %2314 = vmatprep.subr.mxu0 0.0
      %2315 = vmatpush1.msra.mxu0 0.0
      %2316 = vmatprep.subr.mxu0 0.0
      %2317 = vmatpush1.msra.mxu0 0.0
      %2318 = vmatprep.subr.mxu0 0.0
      %2319 = vmatpush1.msra.mxu0 0.0
      %2320 = vmatprep.subr.mxu0 0.0
      %2321 = vmatpush1.msra.mxu0 0.0
      %2322 = vmatprep.mubr.f32.mxu0 0.0
      %2323 = vmatmul.mubr.f32.gmra.mrb[0].mxu0 %v2099
      %v2324 = vpop.f32.mrb[0].mxu0
      %v2325 = vadd.f32 0.0, %v2324
      %v2326 = vpop.f32.mrb[0].mxu0
      %2327 = vmatprep.mubr.f32.mxu0 0.0
      %2328 = vmatmul.mubr.f32.gmra.mrb[0].mxu0 %v2102
      %v2329 = vpop.f32.mrb[0].mxu0
      %v2330 = vadd.f32 0.0, %v2329
      %v2331 = vpop.f32.mrb[0].mxu0
      %2332 = vdwg.mxu0
      %2333 = vmatprep.subr.mxu0 %v2173
      %2334 = vmatpush1.msra.mxu0 %v2171
      %2335 = vmatprep.subr.mxu0 %v2179
      %2336 = vmatpush1.msra.mxu0 %v2177
      %2337 = vmatprep.subr.mxu0 0.0
      %2338 = vmatpush1.msra.mxu0 0.0
      %2339 = vmatprep.subr.mxu0 0.0
      %2340 = vmatpush1.msra.mxu0 0.0
      %2341 = vmatprep.subr.mxu0 0.0
      %2342 = vmatpush1.msra.mxu0 0.0
      %2343 = vmatprep.subr.mxu0 0.0
      %2344 = vmatpush1.msra.mxu0 0.0
      %2345 = vmatprep.subr.mxu0 0.0
      %2346 = vmatpush1.msra.mxu0 0.0
      %2347 = vmatprep.subr.mxu0 0.0
      %2348 = vmatpush1.msra.mxu0 0.0
      %2349 = vmatprep.subr.mxu0 0.0
      %2350 = vmatpush1.msra.mxu0 0.0
      %2351 = vmatprep.subr.mxu0 0.0
      %2352 = vmatpush1.msra.mxu0 0.0
      %2353 = vmatprep.subr.mxu0 0.0
      %2354 = vmatpush1.msra.mxu0 0.0
      %2355 = vmatprep.subr.mxu0 0.0
      %2356 = vmatpush1.msra.mxu0 0.0
      %2357 = vmatprep.subr.mxu0 0.0
      %2358 = vmatpush1.msra.mxu0 0.0
      %2359 = vmatprep.subr.mxu0 0.0
      %2360 = vmatpush1.msra.mxu0 0.0
      %2361 = vmatprep.subr.mxu0 0.0
      %2362 = vmatpush1.msra.mxu0 0.0
      %2363 = vmatprep.subr.mxu0 0.0
      %2364 = vmatpush1.msra.mxu0 0.0
      %2365 = vmatprep.subr.mxu0 0.0
      %2366 = vmatpush1.msra.mxu0 0.0
      %2367 = vmatprep.subr.mxu0 0.0
      %2368 = vmatpush1.msra.mxu0 0.0
      %2369 = vmatprep.subr.mxu0 0.0
      %2370 = vmatpush1.msra.mxu0 0.0
      %2371 = vmatprep.subr.mxu0 0.0
      %2372 = vmatpush1.msra.mxu0 0.0
      %2373 = vmatprep.subr.mxu0 0.0
      %2374 = vmatpush1.msra.mxu0 0.0
      %2375 = vmatprep.subr.mxu0 0.0
      %2376 = vmatpush1.msra.mxu0 0.0
      %2377 = vmatprep.subr.mxu0 0.0
      %2378 = vmatpush1.msra.mxu0 0.0
      %2379 = vmatprep.subr.mxu0 0.0
      %2380 = vmatpush1.msra.mxu0 0.0
      %2381 = vmatprep.subr.mxu0 0.0
      %2382 = vmatpush1.msra.mxu0 0.0
      %2383 = vmatprep.subr.mxu0 0.0
      %2384 = vmatpush1.msra.mxu0 0.0
      %2385 = vmatprep.subr.mxu0 0.0
      %2386 = vmatpush1.msra.mxu0 0.0
      %2387 = vmatprep.subr.mxu0 0.0
      %2388 = vmatpush1.msra.mxu0 0.0
      %2389 = vmatprep.subr.mxu0 0.0
      %2390 = vmatpush1.msra.mxu0 0.0
      %2391 = vmatprep.subr.mxu0 0.0
      %2392 = vmatpush1.msra.mxu0 0.0
      %2393 = vmatprep.subr.mxu0 0.0
      %2394 = vmatpush1.msra.mxu0 0.0
      %2395 = vmatprep.subr.mxu0 0.0
      %2396 = vmatpush1.msra.mxu0 0.0
      %2397 = vmatprep.mubr.f32.mxu0 0.0
      %2398 = vmatmul.mubr.f32.gmra.mrb[0].mxu0 %v456
      %v2399 = vpop.f32.mrb[0].mxu0
      %v2400 = vadd.f32 0.0, %v2399
      %v2401 = vpop.f32.mrb[0].mxu0
      %v2402 = vadd.f32 0.0, %v2401
      %2403 = vmatprep.mubr.f32.mxu0 0.0
      %2404 = vmatmul.mubr.f32.gmra.mrb[0].mxu0 %v459
      %v2405 = vpop.f32.mrb[0].mxu0
      %v2406 = vadd.f32 0.0, %v2405
      %v2407 = vpop.f32.mrb[0].mxu0
      %v2408 = vadd.f32 0.0, %v2407
      %2409 = vmatprep.mubr.f32.mxu0 0.0
      %2410 = vmatmul.mubr.f32.gmra.mrb[0].mxu0 %v462
      %v2411 = vpop.f32.mrb[0].mxu0
      %v2412 = vadd.f32 0.0, %v2411
      %v2413 = vpop.f32.mrb[0].mxu0
      %v2414 = vadd.f32 0.0, %v2413
      %2415 = vmatprep.mubr.f32.mxu0 0.0
      %2416 = vmatmul.mubr.f32.gmra.mrb[0].mxu0 %v465
      %v2417 = vpop.f32.mrb[0].mxu0
      %v2418 = vadd.f32 0.0, %v2417
      %v2419 = vpop.f32.mrb[0].mxu0
      %v2420 = vadd.f32 0.0, %v2419
      %2421 = vmatprep.mubr.f32.mxu0 0.0
      %2422 = vmatmul.mubr.f32.gmra.mrb[0].mxu0 %v468
      %v2423 = vpop.f32.mrb[0].mxu0
      %v2424 = vadd.f32 0.0, %v2423
      %v2425 = vpop.f32.mrb[0].mxu0
      %v2426 = vadd.f32 0.0, %v2425
      %2427 = vmatprep.mubr.f32.mxu0 0.0
      %2428 = vmatmul.mubr.f32.gmra.mrb[0].mxu0 %v471
      %v2429 = vpop.f32.mrb[0].mxu0
      %v2430 = vadd.f32 0.0, %v2429
      %v2431 = vpop.f32.mrb[0].mxu0
      %v2432 = vadd.f32 0.0, %v2431
      %2433 = vmatprep.mubr.f32.mxu0 0.0
      %2434 = vmatmul.mubr.f32.gmra.mrb[0].mxu0 %v474
      %v2435 = vpop.f32.mrb[0].mxu0
      %v2436 = vadd.f32 0.0, %v2435
      %v2437 = vpop.f32.mrb[0].mxu0
      %v2438 = vadd.f32 0.0, %v2437
      %2439 = vmatprep.mubr.f32.mxu0 0.0
      %2440 = vmatmul.mubr.f32.gmra.mrb[0].mxu0 %v477
      %v2441 = vpop.f32.mrb[0].mxu0
      %v2442 = vadd.f32 0.0, %v2441
      %v2443 = vpop.f32.mrb[0].mxu0
      %v2444 = vadd.f32 0.0, %v2443
      %2445 = vmatprep.mubr.f32.mxu0 0.0
      %2446 = vmatmul.mubr.f32.gmra.mrb[0].mxu0 %v480
      %v2447 = vpop.f32.mrb[0].mxu0
      %v2448 = vadd.f32 0.0, %v2447
      %v2449 = vpop.f32.mrb[0].mxu0
      %v2450 = vadd.f32 0.0, %v2449
      %2451 = vmatprep.mubr.f32.mxu0 0.0
      %2452 = vmatmul.mubr.f32.gmra.mrb[0].mxu0 %v483
      %v2453 = vpop.f32.mrb[0].mxu0
      %v2454 = vadd.f32 0.0, %v2453
      %v2455 = vpop.f32.mrb[0].mxu0
      %v2456 = vadd.f32 0.0, %v2455
      %2457 = vmatprep.mubr.f32.mxu0 0.0
      %2458 = vmatmul.mubr.f32.gmra.mrb[0].mxu0 %v486
      %v2459 = vpop.f32.mrb[0].mxu0
      %v2460 = vadd.f32 0.0, %v2459
      %v2461 = vpop.f32.mrb[0].mxu0
      %v2462 = vadd.f32 0.0, %v2461
      %2463 = vmatprep.mubr.f32.mxu0 0.0
      %2464 = vmatmul.mubr.f32.gmra.mrb[0].mxu0 %v489
      %v2465 = vpop.f32.mrb[0].mxu0
      %v2466 = vadd.f32 0.0, %v2465
      %v2467 = vpop.f32.mrb[0].mxu0
      %v2468 = vadd.f32 0.0, %v2467
      %2469 = vmatprep.mubr.f32.mxu0 0.0
      %2470 = vmatmul.mubr.f32.gmra.mrb[0].mxu0 %v492
      %v2471 = vpop.f32.mrb[0].mxu0
      %v2472 = vadd.f32 0.0, %v2471
      %v2473 = vpop.f32.mrb[0].mxu0
      %v2474 = vadd.f32 0.0, %v2473
      %2475 = vmatprep.mubr.f32.mxu0 0.0
      %2476 = vmatmul.mubr.f32.gmra.mrb[0].mxu0 %v495
      %v2477 = vpop.f32.mrb[0].mxu0
      %v2478 = vadd.f32 0.0, %v2477
      %v2479 = vpop.f32.mrb[0].mxu0
      %v2480 = vadd.f32 0.0, %v2479
      %2481 = vmatprep.mubr.f32.mxu0 0.0
      %2482 = vmatmul.mubr.f32.gmra.mrb[0].mxu0 %v498
      %v2483 = vpop.f32.mrb[0].mxu0
      %v2484 = vadd.f32 0.0, %v2483
      %v2485 = vpop.f32.mrb[0].mxu0
      %v2486 = vadd.f32 0.0, %v2485
      %2487 = vmatprep.mubr.f32.mxu0 0.0
      %2488 = vmatmul.mubr.f32.gmra.mrb[0].mxu0 %v501
      %v2489 = vpop.f32.mrb[0].mxu0
      %v2490 = vadd.f32 0.0, %v2489
      %v2491 = vpop.f32.mrb[0].mxu0
      %v2492 = vadd.f32 0.0, %v2491
      %2493 = vmatprep.mubr.f32.mxu0 0.0
      %2494 = vmatmul.mubr.f32.gmra.mrb[0].mxu0 %v504
      %v2495 = vpop.f32.mrb[0].mxu0
      %v2496 = vadd.f32 0.0, %v2495
      %v2497 = vpop.f32.mrb[0].mxu0
      %v2498 = vadd.f32 0.0, %v2497
      %2499 = vmatprep.mubr.f32.mxu0 0.0
      %2500 = vmatmul.mubr.f32.gmra.mrb[0].mxu0 %v507
      %v2501 = vpop.f32.mrb[0].mxu0
      %v2502 = vadd.f32 0.0, %v2501
      %v2503 = vpop.f32.mrb[0].mxu0
      %v2504 = vadd.f32 0.0, %v2503
      %2505 = vmatprep.mubr.f32.mxu0 0.0
      %2506 = vmatmul.mubr.f32.gmra.mrb[0].mxu0 %v510
      %v2507 = vpop.f32.mrb[0].mxu0
      %v2508 = vadd.f32 0.0, %v2507
      %v2509 = vpop.f32.mrb[0].mxu0
      %v2510 = vadd.f32 0.0, %v2509
      %2511 = vmatprep.mubr.f32.mxu0 0.0
      %2512 = vmatmul.mubr.f32.gmra.mrb[0].mxu0 %v513
      %v2513 = vpop.f32.mrb[0].mxu0
      %v2514 = vadd.f32 0.0, %v2513
      %v2515 = vpop.f32.mrb[0].mxu0
      %v2516 = vadd.f32 0.0, %v2515
      %2517 = vmatprep.mubr.f32.mxu0 0.0
      %2518 = vmatmul.mubr.f32.gmra.mrb[0].mxu0 %v516
      %v2519 = vpop.f32.mrb[0].mxu0
      %v2520 = vadd.f32 0.0, %v2519
      %v2521 = vpop.f32.mrb[0].mxu0
      %v2522 = vadd.f32 0.0, %v2521
      %2523 = vmatprep.mubr.f32.mxu0 0.0
      %2524 = vmatmul.mubr.f32.gmra.mrb[0].mxu0 %v519
      %v2525 = vpop.f32.mrb[0].mxu0
      %v2526 = vadd.f32 0.0, %v2525
      %v2527 = vpop.f32.mrb[0].mxu0
      %v2528 = vadd.f32 0.0, %v2527
      %2529 = vmatprep.mubr.f32.mxu0 0.0
      %2530 = vmatmul.mubr.f32.gmra.mrb[0].mxu0 %v522
      %v2531 = vpop.f32.mrb[0].mxu0
      %v2532 = vadd.f32 0.0, %v2531
      %v2533 = vpop.f32.mrb[0].mxu0
      %v2534 = vadd.f32 0.0, %v2533
      %2535 = vmatprep.mubr.f32.mxu0 0.0
      %2536 = vmatmul.mubr.f32.gmra.mrb[0].mxu0 %v525
      %v2537 = vpop.f32.mrb[0].mxu0
      %v2538 = vadd.f32 0.0, %v2537
      %v2539 = vpop.f32.mrb[0].mxu0
      %v2540 = vadd.f32 0.0, %v2539
      %2541 = vmatprep.mubr.f32.mxu0 0.0
      %2542 = vmatmul.mubr.f32.gmra.mrb[0].mxu0 %v528
      %v2543 = vpop.f32.mrb[0].mxu0
      %v2544 = vadd.f32 0.0, %v2543
      %v2545 = vpop.f32.mrb[0].mxu0
      %v2546 = vadd.f32 0.0, %v2545
      %2547 = vmatprep.mubr.f32.mxu0 0.0
      %2548 = vmatmul.mubr.f32.gmra.mrb[0].mxu0 %v531
      %v2549 = vpop.f32.mrb[0].mxu0
      %v2550 = vadd.f32 0.0, %v2549
      %v2551 = vpop.f32.mrb[0].mxu0
      %v2552 = vadd.f32 0.0, %v2551
      %2553 = vmatprep.mubr.f32.mxu0 0.0
      %2554 = vmatmul.mubr.f32.gmra.mrb[0].mxu0 %v534
      %v2555 = vpop.f32.mrb[0].mxu0
      %v2556 = vadd.f32 0.0, %v2555
      %v2557 = vpop.f32.mrb[0].mxu0
      %v2558 = vadd.f32 0.0, %v2557
      %2559 = vmatprep.mubr.f32.mxu0 0.0
      %2560 = vmatmul.mubr.f32.gmra.mrb[0].mxu0 %v537
      %v2561 = vpop.f32.mrb[0].mxu0
      %v2562 = vadd.f32 0.0, %v2561
      %v2563 = vpop.f32.mrb[0].mxu0
      %v2564 = vadd.f32 0.0, %v2563
      %2565 = vmatprep.mubr.f32.mxu0 0.0
      %2566 = vmatmul.mubr.f32.gmra.mrb[0].mxu0 %v540
      %v2567 = vpop.f32.mrb[0].mxu0
      %v2568 = vadd.f32 0.0, %v2567
      %v2569 = vpop.f32.mrb[0].mxu0
      %v2570 = vadd.f32 0.0, %v2569
      %2571 = vmatprep.mubr.f32.mxu0 0.0
      %2572 = vmatmul.mubr.f32.gmra.mrb[0].mxu0 %v543
      %v2573 = vpop.f32.mrb[0].mxu0
      %v2574 = vadd.f32 0.0, %v2573
      %v2575 = vpop.f32.mrb[0].mxu0
      %v2576 = vadd.f32 0.0, %v2575
      %2577 = vmatprep.mubr.f32.mxu0 0.0
      %2578 = vmatmul.mubr.f32.gmra.mrb[0].mxu0 %v546
      %v2579 = vpop.f32.mrb[0].mxu0
      %v2580 = vadd.f32 0.0, %v2579
      %v2581 = vpop.f32.mrb[0].mxu0
      %v2582 = vadd.f32 0.0, %v2581
      %2583 = vmatprep.mubr.f32.mxu0 0.0
      %2584 = vmatmul.mubr.f32.gmra.mrb[0].mxu0 %v549
      %v2585 = vpop.f32.mrb[0].mxu0
      %v2586 = vadd.f32 0.0, %v2585
      %v2587 = vpop.f32.mrb[0].mxu0
      %v2588 = vadd.f32 0.0, %v2587
      %2589 = vmatprep.mubr.f32.mxu0 0.0
      %2590 = vmatmul.mubr.f32.gmra.mrb[0].mxu0 %v552
      %v2591 = vpop.f32.mrb[0].mxu0
      %v2592 = vadd.f32 0.0, %v2591
      %v2593 = vpop.f32.mrb[0].mxu0
      %v2594 = vadd.f32 0.0, %v2593
      %2595 = vmatprep.mubr.f32.mxu0 0.0
      %2596 = vmatmul.mubr.f32.gmra.mrb[0].mxu0 %v555
      %v2597 = vpop.f32.mrb[0].mxu0
      %v2598 = vadd.f32 0.0, %v2597
      %v2599 = vpop.f32.mrb[0].mxu0
      %v2600 = vadd.f32 0.0, %v2599
      %2601 = vmatprep.mubr.f32.mxu0 0.0
      %2602 = vmatmul.mubr.f32.gmra.mrb[0].mxu0 %v558
      %v2603 = vpop.f32.mrb[0].mxu0
      %v2604 = vadd.f32 0.0, %v2603
      %v2605 = vpop.f32.mrb[0].mxu0
      %v2606 = vadd.f32 0.0, %v2605
      %2607 = vmatprep.mubr.f32.mxu0 0.0
      %2608 = vmatmul.mubr.f32.gmra.mrb[0].mxu0 %v561
      %v2609 = vpop.f32.mrb[0].mxu0
      %v2610 = vadd.f32 0.0, %v2609
      %v2611 = vpop.f32.mrb[0].mxu0
      %v2612 = vadd.f32 0.0, %v2611
      %2613 = vmatprep.mubr.f32.mxu0 0.0
      %2614 = vmatmul.mubr.f32.gmra.mrb[0].mxu0 %v564
      %v2615 = vpop.f32.mrb[0].mxu0
      %v2616 = vadd.f32 0.0, %v2615
      %v2617 = vpop.f32.mrb[0].mxu0
      %v2618 = vadd.f32 0.0, %v2617
      %2619 = vmatprep.mubr.f32.mxu0 0.0
      %2620 = vmatmul.mubr.f32.gmra.mrb[0].mxu0 %v567
      %v2621 = vpop.f32.mrb[0].mxu0
      %v2622 = vadd.f32 0.0, %v2621
      %v2623 = vpop.f32.mrb[0].mxu0
      %v2624 = vadd.f32 0.0, %v2623
      %2625 = vmatprep.mubr.f32.mxu0 0.0
      %2626 = vmatmul.mubr.f32.gmra.mrb[0].mxu0 %v570
      %v2627 = vpop.f32.mrb[0].mxu0
      %v2628 = vadd.f32 0.0, %v2627
      %v2629 = vpop.f32.mrb[0].mxu0
      %v2630 = vadd.f32 0.0, %v2629
      %2631 = vmatprep.mubr.f32.mxu0 0.0
      %2632 = vmatmul.mubr.f32.gmra.mrb[0].mxu0 %v573
      %v2633 = vpop.f32.mrb[0].mxu0
      %v2634 = vadd.f32 0.0, %v2633
      %v2635 = vpop.f32.mrb[0].mxu0
      %v2636 = vadd.f32 0.0, %v2635
      %2637 = vmatprep.mubr.f32.mxu0 0.0
      %2638 = vmatmul.mubr.f32.gmra.mrb[0].mxu0 %v576
      %v2639 = vpop.f32.mrb[0].mxu0
      %v2640 = vadd.f32 0.0, %v2639
      %v2641 = vpop.f32.mrb[0].mxu0
      %v2642 = vadd.f32 0.0, %v2641
      %2643 = vmatprep.mubr.f32.mxu0 0.0
      %2644 = vmatmul.mubr.f32.gmra.mrb[0].mxu0 %v579
      %v2645 = vpop.f32.mrb[0].mxu0
      %v2646 = vadd.f32 0.0, %v2645
      %v2647 = vpop.f32.mrb[0].mxu0
      %v2648 = vadd.f32 0.0, %v2647
      %2649 = vmatprep.mubr.f32.mxu0 0.0
      %2650 = vmatmul.mubr.f32.gmra.mrb[0].mxu0 %v582
      %v2651 = vpop.f32.mrb[0].mxu0
      %v2652 = vadd.f32 0.0, %v2651
      %v2653 = vpop.f32.mrb[0].mxu0
      %v2654 = vadd.f32 0.0, %v2653
      %2655 = vmatprep.mubr.f32.mxu0 0.0
      %2656 = vmatmul.mubr.f32.gmra.mrb[0].mxu0 %v585
      %v2657 = vpop.f32.mrb[0].mxu0
      %v2658 = vadd.f32 0.0, %v2657
      %v2659 = vpop.f32.mrb[0].mxu0
      %v2660 = vadd.f32 0.0, %v2659
      %2661 = vmatprep.mubr.f32.mxu0 0.0
      %2662 = vmatmul.mubr.f32.gmra.mrb[0].mxu0 %v588
      %v2663 = vpop.f32.mrb[0].mxu0
      %v2664 = vadd.f32 0.0, %v2663
      %v2665 = vpop.f32.mrb[0].mxu0
      %v2666 = vadd.f32 0.0, %v2665
      %2667 = vmatprep.mubr.f32.mxu0 0.0
      %2668 = vmatmul.mubr.f32.gmra.mrb[0].mxu0 %v591
      %v2669 = vpop.f32.mrb[0].mxu0
      %v2670 = vadd.f32 0.0, %v2669
      %v2671 = vpop.f32.mrb[0].mxu0
      %v2672 = vadd.f32 0.0, %v2671
      %2673 = vmatprep.mubr.f32.mxu0 0.0
      %2674 = vmatmul.mubr.f32.gmra.mrb[0].mxu0 %v594
      %v2675 = vpop.f32.mrb[0].mxu0
      %v2676 = vadd.f32 0.0, %v2675
      %v2677 = vpop.f32.mrb[0].mxu0
      %v2678 = vadd.f32 0.0, %v2677
      %2679 = vmatprep.mubr.f32.mxu0 0.0
      %2680 = vmatmul.mubr.f32.gmra.mrb[0].mxu0 %v597
      %v2681 = vpop.f32.mrb[0].mxu0
      %v2682 = vadd.f32 0.0, %v2681
      %v2683 = vpop.f32.mrb[0].mxu0
      %v2684 = vadd.f32 0.0, %v2683
      %2685 = vmatprep.mubr.f32.mxu0 0.0
      %2686 = vmatmul.mubr.f32.gmra.mrb[0].mxu0 %v600
      %v2687 = vpop.f32.mrb[0].mxu0
      %v2688 = vadd.f32 0.0, %v2687
      %v2689 = vpop.f32.mrb[0].mxu0
      %v2690 = vadd.f32 0.0, %v2689
      %2691 = vmatprep.mubr.f32.mxu0 0.0
      %2692 = vmatmul.mubr.f32.gmra.mrb[0].mxu0 %v603
      %v2693 = vpop.f32.mrb[0].mxu0
      %v2694 = vadd.f32 0.0, %v2693
      %v2695 = vpop.f32.mrb[0].mxu0
      %v2696 = vadd.f32 0.0, %v2695
      %2697 = vmatprep.mubr.f32.mxu0 0.0
      %2698 = vmatmul.mubr.f32.gmra.mrb[0].mxu0 %v606
      %v2699 = vpop.f32.mrb[0].mxu0
      %v2700 = vadd.f32 0.0, %v2699
      %v2701 = vpop.f32.mrb[0].mxu0
      %v2702 = vadd.f32 0.0, %v2701
      %2703 = vmatprep.mubr.f32.mxu0 0.0
      %2704 = vmatmul.mubr.f32.gmra.mrb[0].mxu0 %v609
      %v2705 = vpop.f32.mrb[0].mxu0
      %v2706 = vadd.f32 0.0, %v2705
      %v2707 = vpop.f32.mrb[0].mxu0
      %v2708 = vadd.f32 0.0, %v2707
      %2709 = vmatprep.mubr.f32.mxu0 0.0
      %2710 = vmatmul.mubr.f32.gmra.mrb[0].mxu0 %v612
      %v2711 = vpop.f32.mrb[0].mxu0
      %v2712 = vadd.f32 0.0, %v2711
      %v2713 = vpop.f32.mrb[0].mxu0
      %v2714 = vadd.f32 0.0, %v2713
      %2715 = vmatprep.mubr.f32.mxu0 0.0
      %2716 = vmatmul.mubr.f32.gmra.mrb[0].mxu0 %v615
      %v2717 = vpop.f32.mrb[0].mxu0
      %v2718 = vadd.f32 0.0, %v2717
      %v2719 = vpop.f32.mrb[0].mxu0
      %v2720 = vadd.f32 0.0, %v2719
      %2721 = vmatprep.mubr.f32.mxu0 0.0
      %2722 = vmatmul.mubr.f32.gmra.mrb[0].mxu0 %v618
      %v2723 = vpop.f32.mrb[0].mxu0
      %v2724 = vadd.f32 0.0, %v2723
      %v2725 = vpop.f32.mrb[0].mxu0
      %v2726 = vadd.f32 0.0, %v2725
      %2727 = vmatprep.mubr.f32.mxu0 0.0
      %2728 = vmatmul.mubr.f32.gmra.mrb[0].mxu0 %v621
      %v2729 = vpop.f32.mrb[0].mxu0
      %v2730 = vadd.f32 0.0, %v2729
      %v2731 = vpop.f32.mrb[0].mxu0
      %v2732 = vadd.f32 0.0, %v2731
      %2733 = vdwg.mxu0
      %2734 = vmatprep.subr.mxu0 %v2250
      %2735 = vmatpush1.msra.mxu0 %v2248
      %2736 = vmatprep.subr.mxu0 %v2256
      %2737 = vmatpush1.msra.mxu0 %v2254
      %2738 = vmatprep.subr.mxu0 0.0
      %2739 = vmatpush1.msra.mxu0 0.0
      %2740 = vmatprep.subr.mxu0 0.0
      %2741 = vmatpush1.msra.mxu0 0.0
      %2742 = vmatprep.subr.mxu0 0.0
      %2743 = vmatpush1.msra.mxu0 0.0
      %2744 = vmatprep.subr.mxu0 0.0
      %2745 = vmatpush1.msra.mxu0 0.0
      %2746 = vmatprep.subr.mxu0 0.0
      %2747 = vmatpush1.msra.mxu0 0.0
      %2748 = vmatprep.subr.mxu0 0.0
      %2749 = vmatpush1.msra.mxu0 0.0
      %2750 = vmatprep.subr.mxu0 0.0
      %2751 = vmatpush1.msra.mxu0 0.0
      %2752 = vmatprep.subr.mxu0 0.0
      %2753 = vmatpush1.msra.mxu0 0.0
      %2754 = vmatprep.subr.mxu0 0.0
      %2755 = vmatpush1.msra.mxu0 0.0
      %2756 = vmatprep.subr.mxu0 0.0
      %2757 = vmatpush1.msra.mxu0 0.0
      %2758 = vmatprep.subr.mxu0 0.0
      %2759 = vmatpush1.msra.mxu0 0.0
      %2760 = vmatprep.subr.mxu0 0.0
      %2761 = vmatpush1.msra.mxu0 0.0
      %2762 = vmatprep.subr.mxu0 0.0
      %2763 = vmatpush1.msra.mxu0 0.0
      %2764 = vmatprep.subr.mxu0 0.0
      %2765 = vmatpush1.msra.mxu0 0.0
      %2766 = vmatprep.subr.mxu0 0.0
      %2767 = vmatpush1.msra.mxu0 0.0
      %2768 = vmatprep.subr.mxu0 0.0
      %2769 = vmatpush1.msra.mxu0 0.0
      %2770 = vmatprep.subr.mxu0 0.0
      %2771 = vmatpush1.msra.mxu0 0.0
      %2772 = vmatprep.subr.mxu0 0.0
      %2773 = vmatpush1.msra.mxu0 0.0
      %2774 = vmatprep.subr.mxu0 0.0
      %2775 = vmatpush1.msra.mxu0 0.0
      %2776 = vmatprep.subr.mxu0 0.0
      %2777 = vmatpush1.msra.mxu0 0.0
      %2778 = vmatprep.subr.mxu0 0.0
      %2779 = vmatpush1.msra.mxu0 0.0
      %2780 = vmatprep.subr.mxu0 0.0
      %2781 = vmatpush1.msra.mxu0 0.0
      %2782 = vmatprep.subr.mxu0 0.0
      %2783 = vmatpush1.msra.mxu0 0.0
      %2784 = vmatprep.subr.mxu0 0.0
      %2785 = vmatpush1.msra.mxu0 0.0
      %2786 = vmatprep.subr.mxu0 0.0
      %2787 = vmatpush1.msra.mxu0 0.0
      %2788 = vmatprep.subr.mxu0 0.0
      %2789 = vmatpush1.msra.mxu0 0.0
      %2790 = vmatprep.subr.mxu0 0.0
      %2791 = vmatpush1.msra.mxu0 0.0
      %2792 = vmatprep.subr.mxu0 0.0
      %2793 = vmatpush1.msra.mxu0 0.0
      %2794 = vmatprep.subr.mxu0 0.0
      %2795 = vmatpush1.msra.mxu0 0.0
      %2796 = vmatprep.subr.mxu0 0.0
      %2797 = vmatpush1.msra.mxu0 0.0
      %2798 = vmatprep.mubr.f32.mxu0 0.0
      %2799 = vmatmul.mubr.f32.gmra.mrb[0].mxu0 %v456
      %v2800 = vpop.f32.mrb[0].mxu0
      %v2801 = vadd.f32 0.0, %v2800
      %v2802 = vpop.f32.mrb[0].mxu0
      %v2803 = vadd.f32 0.0, %v2802
      %2804 = vmatprep.mubr.f32.mxu0 0.0
      %2805 = vmatmul.mubr.f32.gmra.mrb[0].mxu0 %v459
      %v2806 = vpop.f32.mrb[0].mxu0
      %v2807 = vadd.f32 0.0, %v2806
      %v2808 = vpop.f32.mrb[0].mxu0
      %v2809 = vadd.f32 0.0, %v2808
      %2810 = vmatprep.mubr.f32.mxu0 0.0
      %2811 = vmatmul.mubr.f32.gmra.mrb[0].mxu0 %v462
      %v2812 = vpop.f32.mrb[0].mxu0
      %v2813 = vadd.f32 0.0, %v2812
      %v2814 = vpop.f32.mrb[0].mxu0
      %v2815 = vadd.f32 0.0, %v2814
      %2816 = vmatprep.mubr.f32.mxu0 0.0
      %2817 = vmatmul.mubr.f32.gmra.mrb[0].mxu0 %v465
      %v2818 = vpop.f32.mrb[0].mxu0
      %v2819 = vadd.f32 0.0, %v2818
      %v2820 = vpop.f32.mrb[0].mxu0
      %v2821 = vadd.f32 0.0, %v2820
      %2822 = vmatprep.mubr.f32.mxu0 0.0
      %2823 = vmatmul.mubr.f32.gmra.mrb[0].mxu0 %v468
      %v2824 = vpop.f32.mrb[0].mxu0
      %v2825 = vadd.f32 0.0, %v2824
      %v2826 = vpop.f32.mrb[0].mxu0
      %v2827 = vadd.f32 0.0, %v2826
      %2828 = vmatprep.mubr.f32.mxu0 0.0
      %2829 = vmatmul.mubr.f32.gmra.mrb[0].mxu0 %v471
      %v2830 = vpop.f32.mrb[0].mxu0
      %v2831 = vadd.f32 0.0, %v2830
      %v2832 = vpop.f32.mrb[0].mxu0
      %v2833 = vadd.f32 0.0, %v2832
      %2834 = vmatprep.mubr.f32.mxu0 0.0
      %2835 = vmatmul.mubr.f32.gmra.mrb[0].mxu0 %v474
      %v2836 = vpop.f32.mrb[0].mxu0
      %v2837 = vadd.f32 0.0, %v2836
      %v2838 = vpop.f32.mrb[0].mxu0
      %v2839 = vadd.f32 0.0, %v2838
      %2840 = vmatprep.mubr.f32.mxu0 0.0
      %2841 = vmatmul.mubr.f32.gmra.mrb[0].mxu0 %v477
      %v2842 = vpop.f32.mrb[0].mxu0
      %v2843 = vadd.f32 0.0, %v2842
      %v2844 = vpop.f32.mrb[0].mxu0
      %v2845 = vadd.f32 0.0, %v2844
      %2846 = vmatprep.mubr.f32.mxu0 0.0
      %2847 = vmatmul.mubr.f32.gmra.mrb[0].mxu0 %v480
      %v2848 = vpop.f32.mrb[0].mxu0
      %v2849 = vadd.f32 0.0, %v2848
      %v2850 = vpop.f32.mrb[0].mxu0
      %v2851 = vadd.f32 0.0, %v2850
      %2852 = vmatprep.mubr.f32.mxu0 0.0
      %2853 = vmatmul.mubr.f32.gmra.mrb[0].mxu0 %v483
      %v2854 = vpop.f32.mrb[0].mxu0
      %v2855 = vadd.f32 0.0, %v2854
      %v2856 = vpop.f32.mrb[0].mxu0
      %v2857 = vadd.f32 0.0, %v2856
      %2858 = vmatprep.mubr.f32.mxu0 0.0
      %2859 = vmatmul.mubr.f32.gmra.mrb[0].mxu0 %v486
      %v2860 = vpop.f32.mrb[0].mxu0
      %v2861 = vadd.f32 0.0, %v2860
      %v2862 = vpop.f32.mrb[0].mxu0
      %v2863 = vadd.f32 0.0, %v2862
      %2864 = vmatprep.mubr.f32.mxu0 0.0
      %2865 = vmatmul.mubr.f32.gmra.mrb[0].mxu0 %v489
      %v2866 = vpop.f32.mrb[0].mxu0
      %v2867 = vadd.f32 0.0, %v2866
      %v2868 = vpop.f32.mrb[0].mxu0
      %v2869 = vadd.f32 0.0, %v2868
      %2870 = vmatprep.mubr.f32.mxu0 0.0
      %2871 = vmatmul.mubr.f32.gmra.mrb[0].mxu0 %v492
      %v2872 = vpop.f32.mrb[0].mxu0
      %v2873 = vadd.f32 0.0, %v2872
      %v2874 = vpop.f32.mrb[0].mxu0
      %v2875 = vadd.f32 0.0, %v2874
      %2876 = vmatprep.mubr.f32.mxu0 0.0
      %2877 = vmatmul.mubr.f32.gmra.mrb[0].mxu0 %v495
      %v2878 = vpop.f32.mrb[0].mxu0
      %v2879 = vadd.f32 0.0, %v2878
      %v2880 = vpop.f32.mrb[0].mxu0
      %v2881 = vadd.f32 0.0, %v2880
      %2882 = vmatprep.mubr.f32.mxu0 0.0
      %2883 = vmatmul.mubr.f32.gmra.mrb[0].mxu0 %v498
      %v2884 = vpop.f32.mrb[0].mxu0
      %v2885 = vadd.f32 0.0, %v2884
      %v2886 = vpop.f32.mrb[0].mxu0
      %v2887 = vadd.f32 0.0, %v2886
      %2888 = vmatprep.mubr.f32.mxu0 0.0
      %2889 = vmatmul.mubr.f32.gmra.mrb[0].mxu0 %v501
      %v2890 = vpop.f32.mrb[0].mxu0
      %v2891 = vadd.f32 0.0, %v2890
      %v2892 = vpop.f32.mrb[0].mxu0
      %v2893 = vadd.f32 0.0, %v2892
      %2894 = vmatprep.mubr.f32.mxu0 0.0
      %2895 = vmatmul.mubr.f32.gmra.mrb[0].mxu0 %v504
      %v2896 = vpop.f32.mrb[0].mxu0
      %v2897 = vadd.f32 0.0, %v2896
      %v2898 = vpop.f32.mrb[0].mxu0
      %v2899 = vadd.f32 0.0, %v2898
      %2900 = vmatprep.mubr.f32.mxu0 0.0
      %2901 = vmatmul.mubr.f32.gmra.mrb[0].mxu0 %v507
      %v2902 = vpop.f32.mrb[0].mxu0
      %v2903 = vadd.f32 0.0, %v2902
      %v2904 = vpop.f32.mrb[0].mxu0
      %v2905 = vadd.f32 0.0, %v2904
      %2906 = vmatprep.mubr.f32.mxu0 0.0
      %2907 = vmatmul.mubr.f32.gmra.mrb[0].mxu0 %v510
      %v2908 = vpop.f32.mrb[0].mxu0
      %v2909 = vadd.f32 0.0, %v2908
      %v2910 = vpop.f32.mrb[0].mxu0
      %v2911 = vadd.f32 0.0, %v2910
      %2912 = vmatprep.mubr.f32.mxu0 0.0
      %2913 = vmatmul.mubr.f32.gmra.mrb[0].mxu0 %v513
      %v2914 = vpop.f32.mrb[0].mxu0
      %v2915 = vadd.f32 0.0, %v2914
      %v2916 = vpop.f32.mrb[0].mxu0
      %v2917 = vadd.f32 0.0, %v2916
      %2918 = vmatprep.mubr.f32.mxu0 0.0
      %2919 = vmatmul.mubr.f32.gmra.mrb[0].mxu0 %v516
      %v2920 = vpop.f32.mrb[0].mxu0
      %v2921 = vadd.f32 0.0, %v2920
      %v2922 = vpop.f32.mrb[0].mxu0
      %v2923 = vadd.f32 0.0, %v2922
      %2924 = vmatprep.mubr.f32.mxu0 0.0
      %2925 = vmatmul.mubr.f32.gmra.mrb[0].mxu0 %v519
      %v2926 = vpop.f32.mrb[0].mxu0
      %v2927 = vadd.f32 0.0, %v2926
      %v2928 = vpop.f32.mrb[0].mxu0
      %v2929 = vadd.f32 0.0, %v2928
      %2930 = vmatprep.mubr.f32.mxu0 0.0
      %2931 = vmatmul.mubr.f32.gmra.mrb[0].mxu0 %v522
      %v2932 = vpop.f32.mrb[0].mxu0
      %v2933 = vadd.f32 0.0, %v2932
      %v2934 = vpop.f32.mrb[0].mxu0
      %v2935 = vadd.f32 0.0, %v2934
      %2936 = vmatprep.mubr.f32.mxu0 0.0
      %2937 = vmatmul.mubr.f32.gmra.mrb[0].mxu0 %v525
      %v2938 = vpop.f32.mrb[0].mxu0
      %v2939 = vadd.f32 0.0, %v2938
      %v2940 = vpop.f32.mrb[0].mxu0
      %v2941 = vadd.f32 0.0, %v2940
      %2942 = vmatprep.mubr.f32.mxu0 0.0
      %2943 = vmatmul.mubr.f32.gmra.mrb[0].mxu0 %v528
      %v2944 = vpop.f32.mrb[0].mxu0
      %v2945 = vadd.f32 0.0, %v2944
      %v2946 = vpop.f32.mrb[0].mxu0
      %v2947 = vadd.f32 0.0, %v2946
      %2948 = vmatprep.mubr.f32.mxu0 0.0
      %2949 = vmatmul.mubr.f32.gmra.mrb[0].mxu0 %v531
      %v2950 = vpop.f32.mrb[0].mxu0
      %v2951 = vadd.f32 0.0, %v2950
      %v2952 = vpop.f32.mrb[0].mxu0
      %v2953 = vadd.f32 0.0, %v2952
      %2954 = vmatprep.mubr.f32.mxu0 0.0
      %2955 = vmatmul.mubr.f32.gmra.mrb[0].mxu0 %v534
      %v2956 = vpop.f32.mrb[0].mxu0
      %v2957 = vadd.f32 0.0, %v2956
      %v2958 = vpop.f32.mrb[0].mxu0
      %v2959 = vadd.f32 0.0, %v2958
      %2960 = vmatprep.mubr.f32.mxu0 0.0
      %2961 = vmatmul.mubr.f32.gmra.mrb[0].mxu0 %v537
      %v2962 = vpop.f32.mrb[0].mxu0
      %v2963 = vadd.f32 0.0, %v2962
      %v2964 = vpop.f32.mrb[0].mxu0
      %v2965 = vadd.f32 0.0, %v2964
      %2966 = vmatprep.mubr.f32.mxu0 0.0
      %2967 = vmatmul.mubr.f32.gmra.mrb[0].mxu0 %v540
      %v2968 = vpop.f32.mrb[0].mxu0
      %v2969 = vadd.f32 0.0, %v2968
      %v2970 = vpop.f32.mrb[0].mxu0
      %v2971 = vadd.f32 0.0, %v2970
      %2972 = vmatprep.mubr.f32.mxu0 0.0
      %2973 = vmatmul.mubr.f32.gmra.mrb[0].mxu0 %v543
      %v2974 = vpop.f32.mrb[0].mxu0
      %v2975 = vadd.f32 0.0, %v2974
      %v2976 = vpop.f32.mrb[0].mxu0
      %v2977 = vadd.f32 0.0, %v2976
      %2978 = vmatprep.mubr.f32.mxu0 0.0
      %2979 = vmatmul.mubr.f32.gmra.mrb[0].mxu0 %v546
      %v2980 = vpop.f32.mrb[0].mxu0
      %v2981 = vadd.f32 0.0, %v2980
      %v2982 = vpop.f32.mrb[0].mxu0
      %v2983 = vadd.f32 0.0, %v2982
      %2984 = vmatprep.mubr.f32.mxu0 0.0
      %2985 = vmatmul.mubr.f32.gmra.mrb[0].mxu0 %v549
      %v2986 = vpop.f32.mrb[0].mxu0
      %v2987 = vadd.f32 0.0, %v2986
      %v2988 = vpop.f32.mrb[0].mxu0
      %v2989 = vadd.f32 0.0, %v2988
      %2990 = vmatprep.mubr.f32.mxu0 0.0
      %2991 = vmatmul.mubr.f32.gmra.mrb[0].mxu0 %v552
      %v2992 = vpop.f32.mrb[0].mxu0
      %v2993 = vadd.f32 0.0, %v2992
      %v2994 = vpop.f32.mrb[0].mxu0
      %v2995 = vadd.f32 0.0, %v2994
      %2996 = vmatprep.mubr.f32.mxu0 0.0
      %2997 = vmatmul.mubr.f32.gmra.mrb[0].mxu0 %v555
      %v2998 = vpop.f32.mrb[0].mxu0
      %v2999 = vadd.f32 0.0, %v2998
      %v3000 = vpop.f32.mrb[0].mxu0
      %v3001 = vadd.f32 0.0, %v3000
      %3002 = vmatprep.mubr.f32.mxu0 0.0
      %3003 = vmatmul.mubr.f32.gmra.mrb[0].mxu0 %v558
      %v3004 = vpop.f32.mrb[0].mxu0
      %v3005 = vadd.f32 0.0, %v3004
      %v3006 = vpop.f32.mrb[0].mxu0
      %v3007 = vadd.f32 0.0, %v3006
      %3008 = vmatprep.mubr.f32.mxu0 0.0
      %3009 = vmatmul.mubr.f32.gmra.mrb[0].mxu0 %v561
      %v3010 = vpop.f32.mrb[0].mxu0
      %v3011 = vadd.f32 0.0, %v3010
      %v3012 = vpop.f32.mrb[0].mxu0
      %v3013 = vadd.f32 0.0, %v3012
      %3014 = vmatprep.mubr.f32.mxu0 0.0
      %3015 = vmatmul.mubr.f32.gmra.mrb[0].mxu0 %v564
      %v3016 = vpop.f32.mrb[0].mxu0
      %v3017 = vadd.f32 0.0, %v3016
      %v3018 = vpop.f32.mrb[0].mxu0
      %v3019 = vadd.f32 0.0, %v3018
      %3020 = vmatprep.mubr.f32.mxu0 0.0
      %3021 = vmatmul.mubr.f32.gmra.mrb[0].mxu0 %v567
      %v3022 = vpop.f32.mrb[0].mxu0
      %v3023 = vadd.f32 0.0, %v3022
      %v3024 = vpop.f32.mrb[0].mxu0
      %v3025 = vadd.f32 0.0, %v3024
      %3026 = vmatprep.mubr.f32.mxu0 0.0
      %3027 = vmatmul.mubr.f32.gmra.mrb[0].mxu0 %v570
      %v3028 = vpop.f32.mrb[0].mxu0
      %v3029 = vadd.f32 0.0, %v3028
      %v3030 = vpop.f32.mrb[0].mxu0
      %v3031 = vadd.f32 0.0, %v3030
      %3032 = vmatprep.mubr.f32.mxu0 0.0
      %3033 = vmatmul.mubr.f32.gmra.mrb[0].mxu0 %v573
      %v3034 = vpop.f32.mrb[0].mxu0
      %v3035 = vadd.f32 0.0, %v3034
      %v3036 = vpop.f32.mrb[0].mxu0
      %v3037 = vadd.f32 0.0, %v3036
      %3038 = vmatprep.mubr.f32.mxu0 0.0
      %3039 = vmatmul.mubr.f32.gmra.mrb[0].mxu0 %v576
      %v3040 = vpop.f32.mrb[0].mxu0
      %v3041 = vadd.f32 0.0, %v3040
      %v3042 = vpop.f32.mrb[0].mxu0
      %v3043 = vadd.f32 0.0, %v3042
      %3044 = vmatprep.mubr.f32.mxu0 0.0
      %3045 = vmatmul.mubr.f32.gmra.mrb[0].mxu0 %v579
      %v3046 = vpop.f32.mrb[0].mxu0
      %v3047 = vadd.f32 0.0, %v3046
      %v3048 = vpop.f32.mrb[0].mxu0
      %v3049 = vadd.f32 0.0, %v3048
      %3050 = vmatprep.mubr.f32.mxu0 0.0
      %3051 = vmatmul.mubr.f32.gmra.mrb[0].mxu0 %v582
      %v3052 = vpop.f32.mrb[0].mxu0
      %v3053 = vadd.f32 0.0, %v3052
      %v3054 = vpop.f32.mrb[0].mxu0
      %v3055 = vadd.f32 0.0, %v3054
      %3056 = vmatprep.mubr.f32.mxu0 0.0
      %3057 = vmatmul.mubr.f32.gmra.mrb[0].mxu0 %v585
      %v3058 = vpop.f32.mrb[0].mxu0
      %v3059 = vadd.f32 0.0, %v3058
      %v3060 = vpop.f32.mrb[0].mxu0
      %v3061 = vadd.f32 0.0, %v3060
      %3062 = vmatprep.mubr.f32.mxu0 0.0
      %3063 = vmatmul.mubr.f32.gmra.mrb[0].mxu0 %v588
      %v3064 = vpop.f32.mrb[0].mxu0
      %v3065 = vadd.f32 0.0, %v3064
      %v3066 = vpop.f32.mrb[0].mxu0
      %v3067 = vadd.f32 0.0, %v3066
      %3068 = vmatprep.mubr.f32.mxu0 0.0
      %3069 = vmatmul.mubr.f32.gmra.mrb[0].mxu0 %v591
      %v3070 = vpop.f32.mrb[0].mxu0
      %v3071 = vadd.f32 0.0, %v3070
      %v3072 = vpop.f32.mrb[0].mxu0
      %v3073 = vadd.f32 0.0, %v3072
      %3074 = vmatprep.mubr.f32.mxu0 0.0
      %3075 = vmatmul.mubr.f32.gmra.mrb[0].mxu0 %v594
      %v3076 = vpop.f32.mrb[0].mxu0
      %v3077 = vadd.f32 0.0, %v3076
      %v3078 = vpop.f32.mrb[0].mxu0
      %v3079 = vadd.f32 0.0, %v3078
      %3080 = vmatprep.mubr.f32.mxu0 0.0
      %3081 = vmatmul.mubr.f32.gmra.mrb[0].mxu0 %v597
      %v3082 = vpop.f32.mrb[0].mxu0
      %v3083 = vadd.f32 0.0, %v3082
      %v3084 = vpop.f32.mrb[0].mxu0
      %v3085 = vadd.f32 0.0, %v3084
      %3086 = vmatprep.mubr.f32.mxu0 0.0
      %3087 = vmatmul.mubr.f32.gmra.mrb[0].mxu0 %v600
      %v3088 = vpop.f32.mrb[0].mxu0
      %v3089 = vadd.f32 0.0, %v3088
      %v3090 = vpop.f32.mrb[0].mxu0
      %v3091 = vadd.f32 0.0, %v3090
      %3092 = vmatprep.mubr.f32.mxu0 0.0
      %3093 = vmatmul.mubr.f32.gmra.mrb[0].mxu0 %v603
      %v3094 = vpop.f32.mrb[0].mxu0
      %v3095 = vadd.f32 0.0, %v3094
      %v3096 = vpop.f32.mrb[0].mxu0
      %v3097 = vadd.f32 0.0, %v3096
      %3098 = vmatprep.mubr.f32.mxu0 0.0
      %3099 = vmatmul.mubr.f32.gmra.mrb[0].mxu0 %v606
      %v3100 = vpop.f32.mrb[0].mxu0
      %v3101 = vadd.f32 0.0, %v3100
      %v3102 = vpop.f32.mrb[0].mxu0
      %v3103 = vadd.f32 0.0, %v3102
      %3104 = vmatprep.mubr.f32.mxu0 0.0
      %3105 = vmatmul.mubr.f32.gmra.mrb[0].mxu0 %v609
      %v3106 = vpop.f32.mrb[0].mxu0
      %v3107 = vadd.f32 0.0, %v3106
      %v3108 = vpop.f32.mrb[0].mxu0
      %v3109 = vadd.f32 0.0, %v3108
      %3110 = vmatprep.mubr.f32.mxu0 0.0
      %3111 = vmatmul.mubr.f32.gmra.mrb[0].mxu0 %v612
      %v3112 = vpop.f32.mrb[0].mxu0
      %v3113 = vadd.f32 0.0, %v3112
      %v3114 = vpop.f32.mrb[0].mxu0
      %v3115 = vadd.f32 0.0, %v3114
      %3116 = vmatprep.mubr.f32.mxu0 0.0
      %3117 = vmatmul.mubr.f32.gmra.mrb[0].mxu0 %v615
      %v3118 = vpop.f32.mrb[0].mxu0
      %v3119 = vadd.f32 0.0, %v3118
      %v3120 = vpop.f32.mrb[0].mxu0
      %v3121 = vadd.f32 0.0, %v3120
      %3122 = vmatprep.mubr.f32.mxu0 0.0
      %3123 = vmatmul.mubr.f32.gmra.mrb[0].mxu0 %v618
      %v3124 = vpop.f32.mrb[0].mxu0
      %v3125 = vadd.f32 0.0, %v3124
      %v3126 = vpop.f32.mrb[0].mxu0
      %v3127 = vadd.f32 0.0, %v3126
      %3128 = vmatprep.mubr.f32.mxu0 0.0
      %3129 = vmatmul.mubr.f32.gmra.mrb[0].mxu0 %v621
      %v3130 = vpop.f32.mrb[0].mxu0
      %v3131 = vadd.f32 0.0, %v3130
      %v3132 = vpop.f32.mrb[0].mxu0
      %v3133 = vadd.f32 0.0, %v3132
      %3134 = vdwg.mxu0
      %3135 = vmatprep.subr.mxu0 0.0
      %3136 = vmatpush1.msra.mxu0 %v2325
      %3137 = vmatprep.subr.mxu0 0.0
      %3138 = vmatpush1.msra.mxu0 %v2330
      %3139 = vmatprep.subr.mxu0 0.0
      %3140 = vmatpush1.msra.mxu0 0.0
      %3141 = vmatprep.subr.mxu0 0.0
      %3142 = vmatpush1.msra.mxu0 0.0
      %3143 = vmatprep.subr.mxu0 0.0
      %3144 = vmatpush1.msra.mxu0 0.0
      %3145 = vmatprep.subr.mxu0 0.0
      %3146 = vmatpush1.msra.mxu0 0.0
      %3147 = vmatprep.subr.mxu0 0.0
      %3148 = vmatpush1.msra.mxu0 0.0
      %3149 = vmatprep.subr.mxu0 0.0
      %3150 = vmatpush1.msra.mxu0 0.0
      %3151 = vmatprep.subr.mxu0 0.0
      %3152 = vmatpush1.msra.mxu0 0.0
      %3153 = vmatprep.subr.mxu0 0.0
      %3154 = vmatpush1.msra.mxu0 0.0
      %3155 = vmatprep.subr.mxu0 0.0
      %3156 = vmatpush1.msra.mxu0 0.0
      %3157 = vmatprep.subr.mxu0 0.0
      %3158 = vmatpush1.msra.mxu0 0.0
      %3159 = vmatprep.subr.mxu0 0.0
      %3160 = vmatpush1.msra.mxu0 0.0
      %3161 = vmatprep.subr.mxu0 0.0
      %3162 = vmatpush1.msra.mxu0 0.0
      %3163 = vmatprep.subr.mxu0 0.0
      %3164 = vmatpush1.msra.mxu0 0.0
      %3165 = vmatprep.subr.mxu0 0.0
      %3166 = vmatpush1.msra.mxu0 0.0
      %3167 = vmatprep.subr.mxu0 0.0
      %3168 = vmatpush1.msra.mxu0 0.0
      %3169 = vmatprep.subr.mxu0 0.0
      %3170 = vmatpush1.msra.mxu0 0.0
      %3171 = vmatprep.subr.mxu0 0.0
      %3172 = vmatpush1.msra.mxu0 0.0
      %3173 = vmatprep.subr.mxu0 0.0
      %3174 = vmatpush1.msra.mxu0 0.0
      %3175 = vmatprep.subr.mxu0 0.0
      %3176 = vmatpush1.msra.mxu0 0.0
      %3177 = vmatprep.subr.mxu0 0.0
      %3178 = vmatpush1.msra.mxu0 0.0
      %3179 = vmatprep.subr.mxu0 0.0
      %3180 = vmatpush1.msra.mxu0 0.0
      %3181 = vmatprep.subr.mxu0 0.0
      %3182 = vmatpush1.msra.mxu0 0.0
      %3183 = vmatprep.subr.mxu0 0.0
      %3184 = vmatpush1.msra.mxu0 0.0
      %3185 = vmatprep.subr.mxu0 0.0
      %3186 = vmatpush1.msra.mxu0 0.0
      %3187 = vmatprep.subr.mxu0 0.0
      %3188 = vmatpush1.msra.mxu0 0.0
      %3189 = vmatprep.subr.mxu0 0.0
      %3190 = vmatpush1.msra.mxu0 0.0
      %3191 = vmatprep.subr.mxu0 0.0
      %3192 = vmatpush1.msra.mxu0 0.0
      %3193 = vmatprep.subr.mxu0 0.0
      %3194 = vmatpush1.msra.mxu0 0.0
      %3195 = vmatprep.subr.mxu0 0.0
      %3196 = vmatpush1.msra.mxu0 0.0
      %3197 = vmatprep.subr.mxu0 0.0
      %3198 = vmatpush1.msra.mxu0 0.0
      %3199 = vmatprep.mubr.f32.mxu0 0.0
      %3200 = vmatmul.mubr.f32.gmra.mrb[0].mxu0 %v456
      %v3201 = vpop.f32.mrb[0].mxu0
      %v3202 = vadd.f32 0.0, %v3201
      %v3203 = vpop.f32.mrb[0].mxu0
      %3204 = vmatprep.mubr.f32.mxu0 0.0
      %3205 = vmatmul.mubr.f32.gmra.mrb[0].mxu0 %v459
      %v3206 = vpop.f32.mrb[0].mxu0
      %v3207 = vadd.f32 0.0, %v3206
      %v3208 = vpop.f32.mrb[0].mxu0
      %3209 = vmatprep.mubr.f32.mxu0 0.0
      %3210 = vmatmul.mubr.f32.gmra.mrb[0].mxu0 %v462
      %v3211 = vpop.f32.mrb[0].mxu0
      %v3212 = vadd.f32 0.0, %v3211
      %v3213 = vpop.f32.mrb[0].mxu0
      %3214 = vmatprep.mubr.f32.mxu0 0.0
      %3215 = vmatmul.mubr.f32.gmra.mrb[0].mxu0 %v465
      %v3216 = vpop.f32.mrb[0].mxu0
      %v3217 = vadd.f32 0.0, %v3216
      %v3218 = vpop.f32.mrb[0].mxu0
      %3219 = vmatprep.mubr.f32.mxu0 0.0
      %3220 = vmatmul.mubr.f32.gmra.mrb[0].mxu0 %v468
      %v3221 = vpop.f32.mrb[0].mxu0
      %v3222 = vadd.f32 0.0, %v3221
      %v3223 = vpop.f32.mrb[0].mxu0
      %3224 = vmatprep.mubr.f32.mxu0 0.0
      %3225 = vmatmul.mubr.f32.gmra.mrb[0].mxu0 %v471
      %v3226 = vpop.f32.mrb[0].mxu0
      %v3227 = vadd.f32 0.0, %v3226
      %v3228 = vpop.f32.mrb[0].mxu0
      %3229 = vmatprep.mubr.f32.mxu0 0.0
      %3230 = vmatmul.mubr.f32.gmra.mrb[0].mxu0 %v474
      %v3231 = vpop.f32.mrb[0].mxu0
      %v3232 = vadd.f32 0.0, %v3231
      %v3233 = vpop.f32.mrb[0].mxu0
      %3234 = vmatprep.mubr.f32.mxu0 0.0
      %3235 = vmatmul.mubr.f32.gmra.mrb[0].mxu0 %v477
      %v3236 = vpop.f32.mrb[0].mxu0
      %v3237 = vadd.f32 0.0, %v3236
      %v3238 = vpop.f32.mrb[0].mxu0
      %3239 = vmatprep.mubr.f32.mxu0 0.0
      %3240 = vmatmul.mubr.f32.gmra.mrb[0].mxu0 %v480
      %v3241 = vpop.f32.mrb[0].mxu0
      %v3242 = vadd.f32 0.0, %v3241
      %v3243 = vpop.f32.mrb[0].mxu0
      %3244 = vmatprep.mubr.f32.mxu0 0.0
      %3245 = vmatmul.mubr.f32.gmra.mrb[0].mxu0 %v483
      %v3246 = vpop.f32.mrb[0].mxu0
      %v3247 = vadd.f32 0.0, %v3246
      %v3248 = vpop.f32.mrb[0].mxu0
      %3249 = vmatprep.mubr.f32.mxu0 0.0
      %3250 = vmatmul.mubr.f32.gmra.mrb[0].mxu0 %v486
      %v3251 = vpop.f32.mrb[0].mxu0
      %v3252 = vadd.f32 0.0, %v3251
      %v3253 = vpop.f32.mrb[0].mxu0
      %3254 = vmatprep.mubr.f32.mxu0 0.0
      %3255 = vmatmul.mubr.f32.gmra.mrb[0].mxu0 %v489
      %v3256 = vpop.f32.mrb[0].mxu0
      %v3257 = vadd.f32 0.0, %v3256
      %v3258 = vpop.f32.mrb[0].mxu0
      %3259 = vmatprep.mubr.f32.mxu0 0.0
      %3260 = vmatmul.mubr.f32.gmra.mrb[0].mxu0 %v492
      %v3261 = vpop.f32.mrb[0].mxu0
      %v3262 = vadd.f32 0.0, %v3261
      %v3263 = vpop.f32.mrb[0].mxu0
      %3264 = vmatprep.mubr.f32.mxu0 0.0
      %3265 = vmatmul.mubr.f32.gmra.mrb[0].mxu0 %v495
      %v3266 = vpop.f32.mrb[0].mxu0
      %v3267 = vadd.f32 0.0, %v3266
      %v3268 = vpop.f32.mrb[0].mxu0
      %3269 = vmatprep.mubr.f32.mxu0 0.0
      %3270 = vmatmul.mubr.f32.gmra.mrb[0].mxu0 %v498
      %v3271 = vpop.f32.mrb[0].mxu0
      %v3272 = vadd.f32 0.0, %v3271
      %v3273 = vpop.f32.mrb[0].mxu0
      %3274 = vmatprep.mubr.f32.mxu0 0.0
      %3275 = vmatmul.mubr.f32.gmra.mrb[0].mxu0 %v501
      %v3276 = vpop.f32.mrb[0].mxu0
      %v3277 = vadd.f32 0.0, %v3276
      %v3278 = vpop.f32.mrb[0].mxu0
      %3279 = vmatprep.mubr.f32.mxu0 0.0
      %3280 = vmatmul.mubr.f32.gmra.mrb[0].mxu0 %v504
      %v3281 = vpop.f32.mrb[0].mxu0
      %v3282 = vadd.f32 0.0, %v3281
      %v3283 = vpop.f32.mrb[0].mxu0
      %3284 = vmatprep.mubr.f32.mxu0 0.0
      %3285 = vmatmul.mubr.f32.gmra.mrb[0].mxu0 %v507
      %v3286 = vpop.f32.mrb[0].mxu0
      %v3287 = vadd.f32 0.0, %v3286
      %v3288 = vpop.f32.mrb[0].mxu0
      %3289 = vmatprep.mubr.f32.mxu0 0.0
      %3290 = vmatmul.mubr.f32.gmra.mrb[0].mxu0 %v510
      %v3291 = vpop.f32.mrb[0].mxu0
      %v3292 = vadd.f32 0.0, %v3291
      %v3293 = vpop.f32.mrb[0].mxu0
      %3294 = vmatprep.mubr.f32.mxu0 0.0
      %3295 = vmatmul.mubr.f32.gmra.mrb[0].mxu0 %v513
      %v3296 = vpop.f32.mrb[0].mxu0
      %v3297 = vadd.f32 0.0, %v3296
      %v3298 = vpop.f32.mrb[0].mxu0
      %3299 = vmatprep.mubr.f32.mxu0 0.0
      %3300 = vmatmul.mubr.f32.gmra.mrb[0].mxu0 %v516
      %v3301 = vpop.f32.mrb[0].mxu0
      %v3302 = vadd.f32 0.0, %v3301
      %v3303 = vpop.f32.mrb[0].mxu0
      %3304 = vmatprep.mubr.f32.mxu0 0.0
      %3305 = vmatmul.mubr.f32.gmra.mrb[0].mxu0 %v519
      %v3306 = vpop.f32.mrb[0].mxu0
      %v3307 = vadd.f32 0.0, %v3306
      %v3308 = vpop.f32.mrb[0].mxu0
      %3309 = vmatprep.mubr.f32.mxu0 0.0
      %3310 = vmatmul.mubr.f32.gmra.mrb[0].mxu0 %v522
      %v3311 = vpop.f32.mrb[0].mxu0
      %v3312 = vadd.f32 0.0, %v3311
      %v3313 = vpop.f32.mrb[0].mxu0
      %3314 = vmatprep.mubr.f32.mxu0 0.0
      %3315 = vmatmul.mubr.f32.gmra.mrb[0].mxu0 %v525
      %v3316 = vpop.f32.mrb[0].mxu0
      %v3317 = vadd.f32 0.0, %v3316
      %v3318 = vpop.f32.mrb[0].mxu0
      %3319 = vmatprep.mubr.f32.mxu0 0.0
      %3320 = vmatmul.mubr.f32.gmra.mrb[0].mxu0 %v528
      %v3321 = vpop.f32.mrb[0].mxu0
      %v3322 = vadd.f32 0.0, %v3321
      %v3323 = vpop.f32.mrb[0].mxu0
      %3324 = vmatprep.mubr.f32.mxu0 0.0
      %3325 = vmatmul.mubr.f32.gmra.mrb[0].mxu0 %v531
      %v3326 = vpop.f32.mrb[0].mxu0
      %v3327 = vadd.f32 0.0, %v3326
      %v3328 = vpop.f32.mrb[0].mxu0
      %3329 = vmatprep.mubr.f32.mxu0 0.0
      %3330 = vmatmul.mubr.f32.gmra.mrb[0].mxu0 %v534
      %v3331 = vpop.f32.mrb[0].mxu0
      %v3332 = vadd.f32 0.0, %v3331
      %v3333 = vpop.f32.mrb[0].mxu0
      %3334 = vmatprep.mubr.f32.mxu0 0.0
      %3335 = vmatmul.mubr.f32.gmra.mrb[0].mxu0 %v537
      %v3336 = vpop.f32.mrb[0].mxu0
      %v3337 = vadd.f32 0.0, %v3336
      %v3338 = vpop.f32.mrb[0].mxu0
      %3339 = vmatprep.mubr.f32.mxu0 0.0
      %3340 = vmatmul.mubr.f32.gmra.mrb[0].mxu0 %v540
      %v3341 = vpop.f32.mrb[0].mxu0
      %v3342 = vadd.f32 0.0, %v3341
      %v3343 = vpop.f32.mrb[0].mxu0
      %3344 = vmatprep.mubr.f32.mxu0 0.0
      %3345 = vmatmul.mubr.f32.gmra.mrb[0].mxu0 %v543
      %v3346 = vpop.f32.mrb[0].mxu0
      %v3347 = vadd.f32 0.0, %v3346
      %v3348 = vpop.f32.mrb[0].mxu0
      %3349 = vmatprep.mubr.f32.mxu0 0.0
      %3350 = vmatmul.mubr.f32.gmra.mrb[0].mxu0 %v546
      %v3351 = vpop.f32.mrb[0].mxu0
      %v3352 = vadd.f32 0.0, %v3351
      %v3353 = vpop.f32.mrb[0].mxu0
      %3354 = vmatprep.mubr.f32.mxu0 0.0
      %3355 = vmatmul.mubr.f32.gmra.mrb[0].mxu0 %v549
      %v3356 = vpop.f32.mrb[0].mxu0
      %v3357 = vadd.f32 0.0, %v3356
      %v3358 = vpop.f32.mrb[0].mxu0
      %3359 = vmatprep.mubr.f32.mxu0 0.0
      %3360 = vmatmul.mubr.f32.gmra.mrb[0].mxu0 %v552
      %v3361 = vpop.f32.mrb[0].mxu0
      %v3362 = vadd.f32 0.0, %v3361
      %v3363 = vpop.f32.mrb[0].mxu0
      %3364 = vmatprep.mubr.f32.mxu0 0.0
      %3365 = vmatmul.mubr.f32.gmra.mrb[0].mxu0 %v555
      %v3366 = vpop.f32.mrb[0].mxu0
      %v3367 = vadd.f32 0.0, %v3366
      %v3368 = vpop.f32.mrb[0].mxu0
      %3369 = vmatprep.mubr.f32.mxu0 0.0
      %3370 = vmatmul.mubr.f32.gmra.mrb[0].mxu0 %v558
      %v3371 = vpop.f32.mrb[0].mxu0
      %v3372 = vadd.f32 0.0, %v3371
      %v3373 = vpop.f32.mrb[0].mxu0
      %3374 = vmatprep.mubr.f32.mxu0 0.0
      %3375 = vmatmul.mubr.f32.gmra.mrb[0].mxu0 %v561
      %v3376 = vpop.f32.mrb[0].mxu0
      %v3377 = vadd.f32 0.0, %v3376
      %v3378 = vpop.f32.mrb[0].mxu0
      %3379 = vmatprep.mubr.f32.mxu0 0.0
      %3380 = vmatmul.mubr.f32.gmra.mrb[0].mxu0 %v564
      %v3381 = vpop.f32.mrb[0].mxu0
      %v3382 = vadd.f32 0.0, %v3381
      %v3383 = vpop.f32.mrb[0].mxu0
      %3384 = vmatprep.mubr.f32.mxu0 0.0
      %3385 = vmatmul.mubr.f32.gmra.mrb[0].mxu0 %v567
      %v3386 = vpop.f32.mrb[0].mxu0
      %v3387 = vadd.f32 0.0, %v3386
      %v3388 = vpop.f32.mrb[0].mxu0
      %3389 = vmatprep.mubr.f32.mxu0 0.0
      %3390 = vmatmul.mubr.f32.gmra.mrb[0].mxu0 %v570
      %v3391 = vpop.f32.mrb[0].mxu0
      %v3392 = vadd.f32 0.0, %v3391
      %v3393 = vpop.f32.mrb[0].mxu0
      %3394 = vmatprep.mubr.f32.mxu0 0.0
      %3395 = vmatmul.mubr.f32.gmra.mrb[0].mxu0 %v573
      %v3396 = vpop.f32.mrb[0].mxu0
      %v3397 = vadd.f32 0.0, %v3396
      %v3398 = vpop.f32.mrb[0].mxu0
      %3399 = vmatprep.mubr.f32.mxu0 0.0
      %3400 = vmatmul.mubr.f32.gmra.mrb[0].mxu0 %v576
      %v3401 = vpop.f32.mrb[0].mxu0
      %v3402 = vadd.f32 0.0, %v3401
      %v3403 = vpop.f32.mrb[0].mxu0
      %3404 = vmatprep.mubr.f32.mxu0 0.0
      %3405 = vmatmul.mubr.f32.gmra.mrb[0].mxu0 %v579
      %v3406 = vpop.f32.mrb[0].mxu0
      %v3407 = vadd.f32 0.0, %v3406
      %v3408 = vpop.f32.mrb[0].mxu0
      %3409 = vmatprep.mubr.f32.mxu0 0.0
      %3410 = vmatmul.mubr.f32.gmra.mrb[0].mxu0 %v582
      %v3411 = vpop.f32.mrb[0].mxu0
      %v3412 = vadd.f32 0.0, %v3411
      %v3413 = vpop.f32.mrb[0].mxu0
      %3414 = vmatprep.mubr.f32.mxu0 0.0
      %3415 = vmatmul.mubr.f32.gmra.mrb[0].mxu0 %v585
      %v3416 = vpop.f32.mrb[0].mxu0
      %v3417 = vadd.f32 0.0, %v3416
      %v3418 = vpop.f32.mrb[0].mxu0
      %3419 = vmatprep.mubr.f32.mxu0 0.0
      %3420 = vmatmul.mubr.f32.gmra.mrb[0].mxu0 %v588
      %v3421 = vpop.f32.mrb[0].mxu0
      %v3422 = vadd.f32 0.0, %v3421
      %v3423 = vpop.f32.mrb[0].mxu0
      %3424 = vmatprep.mubr.f32.mxu0 0.0
      %3425 = vmatmul.mubr.f32.gmra.mrb[0].mxu0 %v591
      %v3426 = vpop.f32.mrb[0].mxu0
      %v3427 = vadd.f32 0.0, %v3426
      %v3428 = vpop.f32.mrb[0].mxu0
      %3429 = vmatprep.mubr.f32.mxu0 0.0
      %3430 = vmatmul.mubr.f32.gmra.mrb[0].mxu0 %v594
      %v3431 = vpop.f32.mrb[0].mxu0
      %v3432 = vadd.f32 0.0, %v3431
      %v3433 = vpop.f32.mrb[0].mxu0
      %3434 = vmatprep.mubr.f32.mxu0 0.0
      %3435 = vmatmul.mubr.f32.gmra.mrb[0].mxu0 %v597
      %v3436 = vpop.f32.mrb[0].mxu0
      %v3437 = vadd.f32 0.0, %v3436
      %v3438 = vpop.f32.mrb[0].mxu0
      %3439 = vmatprep.mubr.f32.mxu0 0.0
      %3440 = vmatmul.mubr.f32.gmra.mrb[0].mxu0 %v600
      %v3441 = vpop.f32.mrb[0].mxu0
      %v3442 = vadd.f32 0.0, %v3441
      %v3443 = vpop.f32.mrb[0].mxu0
      %3444 = vmatprep.mubr.f32.mxu0 0.0
      %3445 = vmatmul.mubr.f32.gmra.mrb[0].mxu0 %v603
      %v3446 = vpop.f32.mrb[0].mxu0
      %v3447 = vadd.f32 0.0, %v3446
      %v3448 = vpop.f32.mrb[0].mxu0
      %3449 = vmatprep.mubr.f32.mxu0 0.0
      %3450 = vmatmul.mubr.f32.gmra.mrb[0].mxu0 %v606
      %v3451 = vpop.f32.mrb[0].mxu0
      %v3452 = vadd.f32 0.0, %v3451
      %v3453 = vpop.f32.mrb[0].mxu0
      %3454 = vmatprep.mubr.f32.mxu0 0.0
      %3455 = vmatmul.mubr.f32.gmra.mrb[0].mxu0 %v609
      %v3456 = vpop.f32.mrb[0].mxu0
      %v3457 = vadd.f32 0.0, %v3456
      %v3458 = vpop.f32.mrb[0].mxu0
      %3459 = vmatprep.mubr.f32.mxu0 0.0
      %3460 = vmatmul.mubr.f32.gmra.mrb[0].mxu0 %v612
      %v3461 = vpop.f32.mrb[0].mxu0
      %v3462 = vadd.f32 0.0, %v3461
      %v3463 = vpop.f32.mrb[0].mxu0
      %3464 = vmatprep.mubr.f32.mxu0 0.0
      %3465 = vmatmul.mubr.f32.gmra.mrb[0].mxu0 %v615
      %v3466 = vpop.f32.mrb[0].mxu0
      %v3467 = vadd.f32 0.0, %v3466
      %v3468 = vpop.f32.mrb[0].mxu0
      %3469 = vmatprep.mubr.f32.mxu0 0.0
      %3470 = vmatmul.mubr.f32.gmra.mrb[0].mxu0 %v618
      %v3471 = vpop.f32.mrb[0].mxu0
      %v3472 = vadd.f32 0.0, %v3471
      %v3473 = vpop.f32.mrb[0].mxu0
      %3474 = vmatprep.mubr.f32.mxu0 0.0
      %3475 = vmatmul.mubr.f32.gmra.mrb[0].mxu0 %v621
      %v3476 = vpop.f32.mrb[0].mxu0
      %v3477 = vadd.f32 0.0, %v3476
      %v3478 = vpop.f32.mrb[0].mxu0
      %3479 = vdwg.mxu0
      %3480 = vst [vmem:[#allocation2] sm:$0xff] %v2400
      %3481 = vst [vmem:[#allocation2 + $0x8] sm:$0xff] %v2402
      %3482 = vst [vmem:[#allocation2 + $0x10] sm:$0xff] %v2801
      %3483 = vst [vmem:[#allocation2 + $0x18] sm:$0xff] %v2803
      %3484 = vst [vmem:[#allocation2 + $0x20] sm:$0xff] %v3202
      %3485 = vst [vmem:[#allocation2 + $0x28] sm:$0xff] %v2406
      %3486 = vst [vmem:[#allocation2 + $0x30] sm:$0xff] %v2408
      %3487 = vst [vmem:[#allocation2 + $0x38] sm:$0xff] %v2807
      %3488 = vst [vmem:[#allocation2 + $0x40] sm:$0xff] %v2809
      %3489 = vst [vmem:[#allocation2 + $0x48] sm:$0xff] %v3207
      %3490 = vst [vmem:[#allocation2 + $0x50] sm:$0xff] %v2412
      %3491 = vst [vmem:[#allocation2 + $0x58] sm:$0xff] %v2414
      %3492 = vst [vmem:[#allocation2 + $0x60] sm:$0xff] %v2813
      %3493 = vst [vmem:[#allocation2 + $0x68] sm:$0xff] %v2815
      %3494 = vst [vmem:[#allocation2 + $0x70] sm:$0xff] %v3212
      %3495 = vst [vmem:[#allocation2 + $0x78] sm:$0xff] %v2418
      %3496 = vst [vmem:[#allocation2 + $0x80] sm:$0xff] %v2420
      %3497 = vst [vmem:[#allocation2 + $0x88] sm:$0xff] %v2819
      %3498 = vst [vmem:[#allocation2 + $0x90] sm:$0xff] %v2821
      %3499 = vst [vmem:[#allocation2 + $0x98] sm:$0xff] %v3217
      %3500 = vst [vmem:[#allocation2 + $0xa0] sm:$0xff] %v2424
      %3501 = vst [vmem:[#allocation2 + $0xa8] sm:$0xff] %v2426
      %3502 = vst [vmem:[#allocation2 + $0xb0] sm:$0xff] %v2825
      %3503 = vst [vmem:[#allocation2 + $0xb8] sm:$0xff] %v2827
      %3504 = vst [vmem:[#allocation2 + $0xc0] sm:$0xff] %v3222
      %3505 = vst [vmem:[#allocation2 + $0xc8] sm:$0xff] %v2430
      %3506 = vst [vmem:[#allocation2 + $0xd0] sm:$0xff] %v2432
      %3507 = vst [vmem:[#allocation2 + $0xd8] sm:$0xff] %v2831
      %3508 = vst [vmem:[#allocation2 + $0xe0] sm:$0xff] %v2833
      %3509 = vst [vmem:[#allocation2 + $0xe8] sm:$0xff] %v3227
      %3510 = vst [vmem:[#allocation2 + $0xf0] sm:$0xff] %v2436
      %3511 = vst [vmem:[#allocation2 + $0xf8] sm:$0xff] %v2438
      %3512 = vst [vmem:[#allocation2 + $0x100] sm:$0xff] %v2837
      %3513 = vst [vmem:[#allocation2 + $0x108] sm:$0xff] %v2839
      %3514 = vst [vmem:[#allocation2 + $0x110] sm:$0xff] %v3232
      %3515 = vst [vmem:[#allocation2 + $0x118] sm:$0xff] %v2442
      %3516 = vst [vmem:[#allocation2 + $0x120] sm:$0xff] %v2444
      %3517 = vst [vmem:[#allocation2 + $0x128] sm:$0xff] %v2843
      %3518 = vst [vmem:[#allocation2 + $0x130] sm:$0xff] %v2845
      %3519 = vst [vmem:[#allocation2 + $0x138] sm:$0xff] %v3237
      %3520 = vst [vmem:[#allocation2 + $0x140] sm:$0xff] %v2448
      %3521 = vst [vmem:[#allocation2 + $0x148] sm:$0xff] %v2450
      %3522 = vst [vmem:[#allocation2 + $0x150] sm:$0xff] %v2849
      %3523 = vst [vmem:[#allocation2 + $0x158] sm:$0xff] %v2851
      %3524 = vst [vmem:[#allocation2 + $0x160] sm:$0xff] %v3242
      %3525 = vst [vmem:[#allocation2 + $0x168] sm:$0xff] %v2454
      %3526 = vst [vmem:[#allocation2 + $0x170] sm:$0xff] %v2456
      %3527 = vst [vmem:[#allocation2 + $0x178] sm:$0xff] %v2855
      %3528 = vst [vmem:[#allocation2 + $0x180] sm:$0xff] %v2857
      %3529 = vst [vmem:[#allocation2 + $0x188] sm:$0xff] %v3247
      %3530 = vst [vmem:[#allocation2 + $0x190] sm:$0xff] %v2460
      %3531 = vst [vmem:[#allocation2 + $0x198] sm:$0xff] %v2462
      %3532 = vst [vmem:[#allocation2 + $0x1a0] sm:$0xff] %v2861
      %3533 = vst [vmem:[#allocation2 + $0x1a8] sm:$0xff] %v2863
      %3534 = vst [vmem:[#allocation2 + $0x1b0] sm:$0xff] %v3252
      %3535 = vst [vmem:[#allocation2 + $0x1b8] sm:$0xff] %v2466
      %3536 = vst [vmem:[#allocation2 + $0x1c0] sm:$0xff] %v2468
      %3537 = vst [vmem:[#allocation2 + $0x1c8] sm:$0xff] %v2867
      %3538 = vst [vmem:[#allocation2 + $0x1d0] sm:$0xff] %v2869
      %3539 = vst [vmem:[#allocation2 + $0x1d8] sm:$0xff] %v3257
      %3540 = vst [vmem:[#allocation2 + $0x1e0] sm:$0xff] %v2472
      %3541 = vst [vmem:[#allocation2 + $0x1e8] sm:$0xff] %v2474
      %3542 = vst [vmem:[#allocation2 + $0x1f0] sm:$0xff] %v2873
      %3543 = vst [vmem:[#allocation2 + $0x1f8] sm:$0xff] %v2875
      %3544 = vst [vmem:[#allocation2 + $0x200] sm:$0xff] %v3262
      %3545 = vst [vmem:[#allocation2 + $0x208] sm:$0xff] %v2478
      %3546 = vst [vmem:[#allocation2 + $0x210] sm:$0xff] %v2480
      %3547 = vst [vmem:[#allocation2 + $0x218] sm:$0xff] %v2879
      %3548 = vst [vmem:[#allocation2 + $0x220] sm:$0xff] %v2881
      %3549 = vst [vmem:[#allocation2 + $0x228] sm:$0xff] %v3267
      %3550 = vst [vmem:[#allocation2 + $0x230] sm:$0xff] %v2484
      %3551 = vst [vmem:[#allocation2 + $0x238] sm:$0xff] %v2486
      %3552 = vst [vmem:[#allocation2 + $0x240] sm:$0xff] %v2885
      %3553 = vst [vmem:[#allocation2 + $0x248] sm:$0xff] %v2887
      %3554 = vst [vmem:[#allocation2 + $0x250] sm:$0xff] %v3272
      %3555 = vst [vmem:[#allocation2 + $0x258] sm:$0xff] %v2490
      %3556 = vst [vmem:[#allocation2 + $0x260] sm:$0xff] %v2492
      %3557 = vst [vmem:[#allocation2 + $0x268] sm:$0xff] %v2891
      %3558 = vst [vmem:[#allocation2 + $0x270] sm:$0xff] %v2893
      %3559 = vst [vmem:[#allocation2 + $0x278] sm:$0xff] %v3277
      %3560 = vst [vmem:[#allocation2 + $0x280] sm:$0xff] %v2496
      %3561 = vst [vmem:[#allocation2 + $0x288] sm:$0xff] %v2498
      %3562 = vst [vmem:[#allocation2 + $0x290] sm:$0xff] %v2897
      %3563 = vst [vmem:[#allocation2 + $0x298] sm:$0xff] %v2899
      %3564 = vst [vmem:[#allocation2 + $0x2a0] sm:$0xff] %v3282
      %3565 = vst [vmem:[#allocation2 + $0x2a8] sm:$0xff] %v2502
      %3566 = vst [vmem:[#allocation2 + $0x2b0] sm:$0xff] %v2504
      %3567 = vst [vmem:[#allocation2 + $0x2b8] sm:$0xff] %v2903
      %3568 = vst [vmem:[#allocation2 + $0x2c0] sm:$0xff] %v2905
      %3569 = vst [vmem:[#allocation2 + $0x2c8] sm:$0xff] %v3287
      %3570 = vst [vmem:[#allocation2 + $0x2d0] sm:$0xff] %v2508
      %3571 = vst [vmem:[#allocation2 + $0x2d8] sm:$0xff] %v2510
      %3572 = vst [vmem:[#allocation2 + $0x2e0] sm:$0xff] %v2909
      %3573 = vst [vmem:[#allocation2 + $0x2e8] sm:$0xff] %v2911
      %3574 = vst [vmem:[#allocation2 + $0x2f0] sm:$0xff] %v3292
      %3575 = vst [vmem:[#allocation2 + $0x2f8] sm:$0xff] %v2514
      %3576 = vst [vmem:[#allocation2 + $0x300] sm:$0xff] %v2516
      %3577 = vst [vmem:[#allocation2 + $0x308] sm:$0xff] %v2915
      %3578 = vst [vmem:[#allocation2 + $0x310] sm:$0xff] %v2917
      %3579 = vst [vmem:[#allocation2 + $0x318] sm:$0xff] %v3297
      %3580 = vst [vmem:[#allocation2 + $0x320] sm:$0xff] %v2520
      %3581 = vst [vmem:[#allocation2 + $0x328] sm:$0xff] %v2522
      %3582 = vst [vmem:[#allocation2 + $0x330] sm:$0xff] %v2921
      %3583 = vst [vmem:[#allocation2 + $0x338] sm:$0xff] %v2923
      %3584 = vst [vmem:[#allocation2 + $0x340] sm:$0xff] %v3302
      %3585 = vst [vmem:[#allocation2 + $0x348] sm:$0xff] %v2526
      %3586 = vst [vmem:[#allocation2 + $0x350] sm:$0xff] %v2528
      %3587 = vst [vmem:[#allocation2 + $0x358] sm:$0xff] %v2927
      %3588 = vst [vmem:[#allocation2 + $0x360] sm:$0xff] %v2929
      %3589 = vst [vmem:[#allocation2 + $0x368] sm:$0xff] %v3307
      %3590 = vst [vmem:[#allocation2 + $0x370] sm:$0xff] %v2532
      %3591 = vst [vmem:[#allocation2 + $0x378] sm:$0xff] %v2534
      %3592 = vst [vmem:[#allocation2 + $0x380] sm:$0xff] %v2933
      %3593 = vst [vmem:[#allocation2 + $0x388] sm:$0xff] %v2935
      %3594 = vst [vmem:[#allocation2 + $0x390] sm:$0xff] %v3312
      %3595 = vst [vmem:[#allocation2 + $0x398] sm:$0xff] %v2538
      %3596 = vst [vmem:[#allocation2 + $0x3a0] sm:$0xff] %v2540
      %3597 = vst [vmem:[#allocation2 + $0x3a8] sm:$0xff] %v2939
      %3598 = vst [vmem:[#allocation2 + $0x3b0] sm:$0xff] %v2941
      %3599 = vst [vmem:[#allocation2 + $0x3b8] sm:$0xff] %v3317
      %3600 = vst [vmem:[#allocation2 + $0x3c0] sm:$0xff] %v2544
      %3601 = vst [vmem:[#allocation2 + $0x3c8] sm:$0xff] %v2546
      %3602 = vst [vmem:[#allocation2 + $0x3d0] sm:$0xff] %v2945
      %3603 = vst [vmem:[#allocation2 + $0x3d8] sm:$0xff] %v2947
      %3604 = vst [vmem:[#allocation2 + $0x3e0] sm:$0xff] %v3322
      %3605 = vst [vmem:[#allocation2 + $0x3e8] sm:$0xff] %v2550
      %3606 = vst [vmem:[#allocation2 + $0x3f0] sm:$0xff] %v2552
      %3607 = vst [vmem:[#allocation2 + $0x3f8] sm:$0xff] %v2951
      %3608 = vst [vmem:[#allocation2 + $0x400] sm:$0xff] %v2953
      %3609 = vst [vmem:[#allocation2 + $0x408] sm:$0xff] %v3327
      %3610 = vst [vmem:[#allocation2 + $0x410] sm:$0xff] %v2556
      %3611 = vst [vmem:[#allocation2 + $0x418] sm:$0xff] %v2558
      %3612 = vst [vmem:[#allocation2 + $0x420] sm:$0xff] %v2957
      %3613 = vst [vmem:[#allocation2 + $0x428] sm:$0xff] %v2959
      %3614 = vst [vmem:[#allocation2 + $0x430] sm:$0xff] %v3332
      %3615 = vst [vmem:[#allocation2 + $0x438] sm:$0xff] %v2562
      %3616 = vst [vmem:[#allocation2 + $0x440] sm:$0xff] %v2564
      %3617 = vst [vmem:[#allocation2 + $0x448] sm:$0xff] %v2963
      %3618 = vst [vmem:[#allocation2 + $0x450] sm:$0xff] %v2965
      %3619 = vst [vmem:[#allocation2 + $0x458] sm:$0xff] %v3337
      %3620 = vst [vmem:[#allocation2 + $0x460] sm:$0xff] %v2568
      %3621 = vst [vmem:[#allocation2 + $0x468] sm:$0xff] %v2570
      %3622 = vst [vmem:[#allocation2 + $0x470] sm:$0xff] %v2969
      %3623 = vst [vmem:[#allocation2 + $0x478] sm:$0xff] %v2971
      %3624 = vst [vmem:[#allocation2 + $0x480] sm:$0xff] %v3342
      %3625 = vst [vmem:[#allocation2 + $0x488] sm:$0xff] %v2574
      %3626 = vst [vmem:[#allocation2 + $0x490] sm:$0xff] %v2576
      %3627 = vst [vmem:[#allocation2 + $0x498] sm:$0xff] %v2975
      %3628 = vst [vmem:[#allocation2 + $0x4a0] sm:$0xff] %v2977
      %3629 = vst [vmem:[#allocation2 + $0x4a8] sm:$0xff] %v3347
      %3630 = vst [vmem:[#allocation2 + $0x4b0] sm:$0xff] %v2580
      %3631 = vst [vmem:[#allocation2 + $0x4b8] sm:$0xff] %v2582
      %3632 = vst [vmem:[#allocation2 + $0x4c0] sm:$0xff] %v2981
      %3633 = vst [vmem:[#allocation2 + $0x4c8] sm:$0xff] %v2983
      %3634 = vst [vmem:[#allocation2 + $0x4d0] sm:$0xff] %v3352
      %3635 = vst [vmem:[#allocation2 + $0x4d8] sm:$0xff] %v2586
      %3636 = vst [vmem:[#allocation2 + $0x4e0] sm:$0xff] %v2588
      %3637 = vst [vmem:[#allocation2 + $0x4e8] sm:$0xff] %v2987
      %3638 = vst [vmem:[#allocation2 + $0x4f0] sm:$0xff] %v2989
      %3639 = vst [vmem:[#allocation2 + $0x4f8] sm:$0xff] %v3357
      %3640 = vst [vmem:[#allocation2 + $0x500] sm:$0xff] %v2592
      %3641 = vst [vmem:[#allocation2 + $0x508] sm:$0xff] %v2594
      %3642 = vst [vmem:[#allocation2 + $0x510] sm:$0xff] %v2993
      %3643 = vst [vmem:[#allocation2 + $0x518] sm:$0xff] %v2995
      %3644 = vst [vmem:[#allocation2 + $0x520] sm:$0xff] %v3362
      %3645 = vst [vmem:[#allocation2 + $0x528] sm:$0xff] %v2598
      %3646 = vst [vmem:[#allocation2 + $0x530] sm:$0xff] %v2600
      %3647 = vst [vmem:[#allocation2 + $0x538] sm:$0xff] %v2999
      %3648 = vst [vmem:[#allocation2 + $0x540] sm:$0xff] %v3001
      %3649 = vst [vmem:[#allocation2 + $0x548] sm:$0xff] %v3367
      %3650 = vst [vmem:[#allocation2 + $0x550] sm:$0xff] %v2604
      %3651 = vst [vmem:[#allocation2 + $0x558] sm:$0xff] %v2606
      %3652 = vst [vmem:[#allocation2 + $0x560] sm:$0xff] %v3005
      %3653 = vst [vmem:[#allocation2 + $0x568] sm:$0xff] %v3007
      %3654 = vst [vmem:[#allocation2 + $0x570] sm:$0xff] %v3372
      %3655 = vst [vmem:[#allocation2 + $0x578] sm:$0xff] %v2610
      %3656 = vst [vmem:[#allocation2 + $0x580] sm:$0xff] %v2612
      %3657 = vst [vmem:[#allocation2 + $0x588] sm:$0xff] %v3011
      %3658 = vst [vmem:[#allocation2 + $0x590] sm:$0xff] %v3013
      %3659 = vst [vmem:[#allocation2 + $0x598] sm:$0xff] %v3377
      %3660 = vst [vmem:[#allocation2 + $0x5a0] sm:$0xff] %v2616
      %3661 = vst [vmem:[#allocation2 + $0x5a8] sm:$0xff] %v2618
      %3662 = vst [vmem:[#allocation2 + $0x5b0] sm:$0xff] %v3017
      %3663 = vst [vmem:[#allocation2 + $0x5b8] sm:$0xff] %v3019
      %3664 = vst [vmem:[#allocation2 + $0x5c0] sm:$0xff] %v3382
      %3665 = vst [vmem:[#allocation2 + $0x5c8] sm:$0xff] %v2622
      %3666 = vst [vmem:[#allocation2 + $0x5d0] sm:$0xff] %v2624
      %3667 = vst [vmem:[#allocation2 + $0x5d8] sm:$0xff] %v3023
      %3668 = vst [vmem:[#allocation2 + $0x5e0] sm:$0xff] %v3025
      %3669 = vst [vmem:[#allocation2 + $0x5e8] sm:$0xff] %v3387
      %3670 = vst [vmem:[#allocation2 + $0x5f0] sm:$0xff] %v2628
      %3671 = vst [vmem:[#allocation2 + $0x5f8] sm:$0xff] %v2630
      %3672 = vst [vmem:[#allocation2 + $0x600] sm:$0xff] %v3029
      %3673 = vst [vmem:[#allocation2 + $0x608] sm:$0xff] %v3031
      %3674 = vst [vmem:[#allocation2 + $0x610] sm:$0xff] %v3392
      %3675 = vst [vmem:[#allocation2 + $0x618] sm:$0xff] %v2634
      %3676 = vst [vmem:[#allocation2 + $0x620] sm:$0xff] %v2636
      %3677 = vst [vmem:[#allocation2 + $0x628] sm:$0xff] %v3035
      %3678 = vst [vmem:[#allocation2 + $0x630] sm:$0xff] %v3037
      %3679 = vst [vmem:[#allocation2 + $0x638] sm:$0xff] %v3397
      %3680 = vst [vmem:[#allocation2 + $0x640] sm:$0xff] %v2640
      %3681 = vst [vmem:[#allocation2 + $0x648] sm:$0xff] %v2642
      %3682 = vst [vmem:[#allocation2 + $0x650] sm:$0xff] %v3041
      %3683 = vst [vmem:[#allocation2 + $0x658] sm:$0xff] %v3043
      %3684 = vst [vmem:[#allocation2 + $0x660] sm:$0xff] %v3402
      %3685 = vst [vmem:[#allocation2 + $0x668] sm:$0xff] %v2646
      %3686 = vst [vmem:[#allocation2 + $0x670] sm:$0xff] %v2648
      %3687 = vst [vmem:[#allocation2 + $0x678] sm:$0xff] %v3047
      %3688 = vst [vmem:[#allocation2 + $0x680] sm:$0xff] %v3049
      %3689 = vst [vmem:[#allocation2 + $0x688] sm:$0xff] %v3407
      %3690 = vst [vmem:[#allocation2 + $0x690] sm:$0xff] %v2652
      %3691 = vst [vmem:[#allocation2 + $0x698] sm:$0xff] %v2654
      %3692 = vst [vmem:[#allocation2 + $0x6a0] sm:$0xff] %v3053
      %3693 = vst [vmem:[#allocation2 + $0x6a8] sm:$0xff] %v3055
      %3694 = vst [vmem:[#allocation2 + $0x6b0] sm:$0xff] %v3412
      %3695 = vst [vmem:[#allocation2 + $0x6b8] sm:$0xff] %v2658
      %3696 = vst [vmem:[#allocation2 + $0x6c0] sm:$0xff] %v2660
      %3697 = vst [vmem:[#allocation2 + $0x6c8] sm:$0xff] %v3059
      %3698 = vst [vmem:[#allocation2 + $0x6d0] sm:$0xff] %v3061
      %3699 = vst [vmem:[#allocation2 + $0x6d8] sm:$0xff] %v3417
      %3700 = vst [vmem:[#allocation2 + $0x6e0] sm:$0xff] %v2664
      %3701 = vst [vmem:[#allocation2 + $0x6e8] sm:$0xff] %v2666
      %3702 = vst [vmem:[#allocation2 + $0x6f0] sm:$0xff] %v3065
      %3703 = vst [vmem:[#allocation2 + $0x6f8] sm:$0xff] %v3067
      %3704 = vst [vmem:[#allocation2 + $0x700] sm:$0xff] %v3422
      %3705 = vst [vmem:[#allocation2 + $0x708] sm:$0xff] %v2670
      %3706 = vst [vmem:[#allocation2 + $0x710] sm:$0xff] %v2672
      %3707 = vst [vmem:[#allocation2 + $0x718] sm:$0xff] %v3071
      %3708 = vst [vmem:[#allocation2 + $0x720] sm:$0xff] %v3073
      %3709 = vst [vmem:[#allocation2 + $0x728] sm:$0xff] %v3427
      %3710 = vst [vmem:[#allocation2 + $0x730] sm:$0xff] %v2676
      %3711 = vst [vmem:[#allocation2 + $0x738] sm:$0xff] %v2678
      %3712 = vst [vmem:[#allocation2 + $0x740] sm:$0xff] %v3077
      %3713 = vst [vmem:[#allocation2 + $0x748] sm:$0xff] %v3079
      %3714 = vst [vmem:[#allocation2 + $0x750] sm:$0xff] %v3432
      %3715 = vst [vmem:[#allocation2 + $0x758] sm:$0xff] %v2682
      %3716 = vst [vmem:[#allocation2 + $0x760] sm:$0xff] %v2684
      %3717 = vst [vmem:[#allocation2 + $0x768] sm:$0xff] %v3083
      %3718 = vst [vmem:[#allocation2 + $0x770] sm:$0xff] %v3085
      %3719 = vst [vmem:[#allocation2 + $0x778] sm:$0xff] %v3437
      %3720 = vst [vmem:[#allocation2 + $0x780] sm:$0xff] %v2688
      %3721 = vst [vmem:[#allocation2 + $0x788] sm:$0xff] %v2690
      %3722 = vst [vmem:[#allocation2 + $0x790] sm:$0xff] %v3089
      %3723 = vst [vmem:[#allocation2 + $0x798] sm:$0xff] %v3091
      %3724 = vst [vmem:[#allocation2 + $0x7a0] sm:$0xff] %v3442
      %3725 = vst [vmem:[#allocation2 + $0x7a8] sm:$0xff] %v2694
      %3726 = vst [vmem:[#allocation2 + $0x7b0] sm:$0xff] %v2696
      %3727 = vst [vmem:[#allocation2 + $0x7b8] sm:$0xff] %v3095
      %3728 = vst [vmem:[#allocation2 + $0x7c0] sm:$0xff] %v3097
      %3729 = vst [vmem:[#allocation2 + $0x7c8] sm:$0xff] %v3447
      %3730 = vst [vmem:[#allocation2 + $0x7d0] sm:$0xff] %v2700
      %3731 = vst [vmem:[#allocation2 + $0x7d8] sm:$0xff] %v2702
      %3732 = vst [vmem:[#allocation2 + $0x7e0] sm:$0xff] %v3101
      %3733 = vst [vmem:[#allocation2 + $0x7e8] sm:$0xff] %v3103
      %3734 = vst [vmem:[#allocation2 + $0x7f0] sm:$0xff] %v3452
      %3735 = vst [vmem:[#allocation2 + $0x7f8] sm:$0xff] %v2706
      %3736 = vst [vmem:[#allocation2 + $0x800] sm:$0xff] %v2708
      %3737 = vst [vmem:[#allocation2 + $0x808] sm:$0xff] %v3107
      %3738 = vst [vmem:[#allocation2 + $0x810] sm:$0xff] %v3109
      %3739 = vst [vmem:[#allocation2 + $0x818] sm:$0xff] %v3457
      %3740 = vst [vmem:[#allocation2 + $0x820] sm:$0xff] %v2712
      %3741 = vst [vmem:[#allocation2 + $0x828] sm:$0xff] %v2714
      %3742 = vst [vmem:[#allocation2 + $0x830] sm:$0xff] %v3113
      %3743 = vst [vmem:[#allocation2 + $0x838] sm:$0xff] %v3115
      %3744 = vst [vmem:[#allocation2 + $0x840] sm:$0xff] %v3462
      %3745 = vst [vmem:[#allocation2 + $0x848] sm:$0xff] %v2718
      %3746 = vst [vmem:[#allocation2 + $0x850] sm:$0xff] %v2720
      %3747 = vst [vmem:[#allocation2 + $0x858] sm:$0xff] %v3119
      %3748 = vst [vmem:[#allocation2 + $0x860] sm:$0xff] %v3121
      %3749 = vst [vmem:[#allocation2 + $0x868] sm:$0xff] %v3467
      %3750 = vst [vmem:[#allocation2 + $0x870] sm:$0xff] %v2724
      %3751 = vst [vmem:[#allocation2 + $0x878] sm:$0xff] %v2726
      %3752 = vst [vmem:[#allocation2 + $0x880] sm:$0xff] %v3125
      %3753 = vst [vmem:[#allocation2 + $0x888] sm:$0xff] %v3127
      %3754 = vst [vmem:[#allocation2 + $0x890] sm:$0xff] %v3472
      %3755 = vst [vmem:[#allocation2 + $0x898] sm:$0xff] %v2730
      %3756 = vst [vmem:[#allocation2 + $0x8a0] sm:$0xff] %v2732
      %3757 = vst [vmem:[#allocation2 + $0x8a8] sm:$0xff] %v3131
      %3758 = vst [vmem:[#allocation2 + $0x8b0] sm:$0xff] %v3133
      %3759 = vst [vmem:[#allocation2 + $0x8b8] sm:$0xff] %v3477
      %s3760 = smul.addr %s2051, 128
      %s3761 = scalar_lea.hbm %s6, %s3760
      %s3762 = scalar_lea.sflag [#allocation4], 3
      // Predicated region
      $region49: #{tpu_custom_call.1} parent=35 // pred_check
        _
      $region50: #{tpu_custom_call.1} parent=35 // pred_check_branch
        %3764 = sbr.rel target = $region52
      $region51: #{tpu_custom_call.1} parent=35 // pred_region
        %3765 = sst [smem:[#allocation7]] [#allocation14]
        %3766 = sst [smem:[#allocation8]] [#allocation13]
      $region52: #{tpu_custom_call.1} parent=35 // pred_fallthru
        _
      %3768 = shalt.err (0)
      %s3770 = sshll.u32 [#allocation2], 4
      %s3771 = int_to_ptr.vmem [resolvable:$true] %s3770
      %3773 = dma.vmem_to_hbm [thread:$0]  %s3771, 35840, %s3761, %s3762
      %s3774 = scalar_lea.vmem %s145, 16
      %v3775 = vld [vmem:[%s3774] sm:$0xff]
      %v3776 = vld [vmem:[%s3774 + $0x8] sm:$0xff]
      %v3778 = vsel %vm219, %v3775, 0
      %v3781 = vsel %vm219, %v3776, 0
      %3783 = vmatprep.subr.mxu0 %v208
      %3784 = vmatpush1.msra.mxu0 %v207
      %3785 = vmatprep.subr.mxu0 %v213
      %3786 = vmatpush1.msra.mxu0 %v212
      %3787 = vmatprep.subr.mxu0 0.0
      %3788 = vmatpush1.msra.mxu0 0.0
      %3789 = vmatprep.subr.mxu0 0.0
      %3790 = vmatpush1.msra.mxu0 0.0
      %3791 = vmatprep.subr.mxu0 0.0
      %3792 = vmatpush1.msra.mxu0 0.0
      %3793 = vmatprep.subr.mxu0 0.0
      %3794 = vmatpush1.msra.mxu0 0.0
      %3795 = vmatprep.subr.mxu0 0.0
      %3796 = vmatpush1.msra.mxu0 0.0
      %3797 = vmatprep.subr.mxu0 0.0
      %3798 = vmatpush1.msra.mxu0 0.0
      %3799 = vmatprep.subr.mxu0 0.0
      %3800 = vmatpush1.msra.mxu0 0.0
      %3801 = vmatprep.subr.mxu0 0.0
      %3802 = vmatpush1.msra.mxu0 0.0
      %3803 = vmatprep.subr.mxu0 0.0
      %3804 = vmatpush1.msra.mxu0 0.0
      %3805 = vmatprep.subr.mxu0 0.0
      %3806 = vmatpush1.msra.mxu0 0.0
      %3807 = vmatprep.subr.mxu0 0.0
      %3808 = vmatpush1.msra.mxu0 0.0
      %3809 = vmatprep.subr.mxu0 0.0
      %3810 = vmatpush1.msra.mxu0 0.0
      %3811 = vmatprep.subr.mxu0 0.0
      %3812 = vmatpush1.msra.mxu0 0.0
      %3813 = vmatprep.subr.mxu0 0.0
      %3814 = vmatpush1.msra.mxu0 0.0
      %3815 = vmatprep.subr.mxu0 0.0
      %3816 = vmatpush1.msra.mxu0 0.0
      %3817 = vmatprep.subr.mxu0 0.0
      %3818 = vmatpush1.msra.mxu0 0.0
      %3819 = vmatprep.subr.mxu0 0.0
      %3820 = vmatpush1.msra.mxu0 0.0
      %3821 = vmatprep.subr.mxu0 0.0
      %3822 = vmatpush1.msra.mxu0 0.0
      %3823 = vmatprep.subr.mxu0 0.0
      %3824 = vmatpush1.msra.mxu0 0.0
      %3825 = vmatprep.subr.mxu0 0.0
      %3826 = vmatpush1.msra.mxu0 0.0
      %3827 = vmatprep.subr.mxu0 0.0
      %3828 = vmatpush1.msra.mxu0 0.0
      %3829 = vmatprep.subr.mxu0 0.0
      %3830 = vmatpush1.msra.mxu0 0.0
      %3831 = vmatprep.subr.mxu0 0.0
      %3832 = vmatpush1.msra.mxu0 0.0
      %3833 = vmatprep.subr.mxu0 0.0
      %3834 = vmatpush1.msra.mxu0 0.0
      %3835 = vmatprep.subr.mxu0 0.0
      %3836 = vmatpush1.msra.mxu0 0.0
      %3837 = vmatprep.subr.mxu0 0.0
      %3838 = vmatpush1.msra.mxu0 0.0
      %3839 = vmatprep.subr.mxu0 0.0
      %3840 = vmatpush1.msra.mxu0 0.0
      %3841 = vmatprep.subr.mxu0 0.0
      %3842 = vmatpush1.msra.mxu0 0.0
      %3843 = vmatprep.subr.mxu0 0.0
      %3844 = vmatpush1.msra.mxu0 0.0
      %3845 = vmatprep.subr.mxu0 0.0
      %3846 = vmatpush1.msra.mxu0 0.0
      %3847 = vmatprep.mubr.f32.mxu0 0.0
      %3848 = vmatmul.mubr.f32.gmra.mrb[0].mxu0 %v3778
      %v3849 = vpop.f32.mrb[0].mxu0
      %v3850 = vadd.f32 0.0, %v3849
      %v3851 = vpop.f32.mrb[0].mxu0
      %v3852 = vadd.f32 0.0, %v3851
      %3853 = vmatprep.mubr.f32.mxu0 0.0
      %3854 = vmatmul.mubr.f32.gmra.mrb[0].mxu0 %v3781
      %v3855 = vpop.f32.mrb[0].mxu0
      %v3856 = vadd.f32 0.0, %v3855
      %v3857 = vpop.f32.mrb[0].mxu0
      %v3858 = vadd.f32 0.0, %v3857
      %3859 = vdwg.mxu0
      %3860 = vmatprep.subr.mxu0 %v210
      %3861 = vmatpush1.msra.mxu0 %v209
      %3862 = vmatprep.subr.mxu0 %v215
      %3863 = vmatpush1.msra.mxu0 %v214
      %3864 = vmatprep.subr.mxu0 0.0
      %3865 = vmatpush1.msra.mxu0 0.0
      %3866 = vmatprep.subr.mxu0 0.0
      %3867 = vmatpush1.msra.mxu0 0.0
      %3868 = vmatprep.subr.mxu0 0.0
      %3869 = vmatpush1.msra.mxu0 0.0
      %3870 = vmatprep.subr.mxu0 0.0
      %3871 = vmatpush1.msra.mxu0 0.0
      %3872 = vmatprep.subr.mxu0 0.0
      %3873 = vmatpush1.msra.mxu0 0.0
      %3874 = vmatprep.subr.mxu0 0.0
      %3875 = vmatpush1.msra.mxu0 0.0
      %3876 = vmatprep.subr.mxu0 0.0
      %3877 = vmatpush1.msra.mxu0 0.0
      %3878 = vmatprep.subr.mxu0 0.0
      %3879 = vmatpush1.msra.mxu0 0.0
      %3880 = vmatprep.subr.mxu0 0.0
      %3881 = vmatpush1.msra.mxu0 0.0
      %3882 = vmatprep.subr.mxu0 0.0
      %3883 = vmatpush1.msra.mxu0 0.0
      %3884 = vmatprep.subr.mxu0 0.0
      %3885 = vmatpush1.msra.mxu0 0.0
      %3886 = vmatprep.subr.mxu0 0.0
      %3887 = vmatpush1.msra.mxu0 0.0
      %3888 = vmatprep.subr.mxu0 0.0
      %3889 = vmatpush1.msra.mxu0 0.0
      %3890 = vmatprep.subr.mxu0 0.0
      %3891 = vmatpush1.msra.mxu0 0.0
      %3892 = vmatprep.subr.mxu0 0.0
      %3893 = vmatpush1.msra.mxu0 0.0
      %3894 = vmatprep.subr.mxu0 0.0
      %3895 = vmatpush1.msra.mxu0 0.0
      %3896 = vmatprep.subr.mxu0 0.0
      %3897 = vmatpush1.msra.mxu0 0.0
      %3898 = vmatprep.subr.mxu0 0.0
      %3899 = vmatpush1.msra.mxu0 0.0
      %3900 = vmatprep.subr.mxu0 0.0
      %3901 = vmatpush1.msra.mxu0 0.0
      %3902 = vmatprep.subr.mxu0 0.0
      %3903 = vmatpush1.msra.mxu0 0.0
      %3904 = vmatprep.subr.mxu0 0.0
      %3905 = vmatpush1.msra.mxu0 0.0
      %3906 = vmatprep.subr.mxu0 0.0
      %3907 = vmatpush1.msra.mxu0 0.0
      %3908 = vmatprep.subr.mxu0 0.0
      %3909 = vmatpush1.msra.mxu0 0.0
      %3910 = vmatprep.subr.mxu0 0.0
      %3911 = vmatpush1.msra.mxu0 0.0
      %3912 = vmatprep.subr.mxu0 0.0
      %3913 = vmatpush1.msra.mxu0 0.0
      %3914 = vmatprep.subr.mxu0 0.0
      %3915 = vmatpush1.msra.mxu0 0.0
      %3916 = vmatprep.subr.mxu0 0.0
      %3917 = vmatpush1.msra.mxu0 0.0
      %3918 = vmatprep.subr.mxu0 0.0
      %3919 = vmatpush1.msra.mxu0 0.0
      %3920 = vmatprep.subr.mxu0 0.0
      %3921 = vmatpush1.msra.mxu0 0.0
      %3922 = vmatprep.subr.mxu0 0.0
      %3923 = vmatpush1.msra.mxu0 0.0
      %3924 = vmatprep.mubr.f32.mxu0 0.0
      %3925 = vmatmul.mubr.f32.gmra.mrb[0].mxu0 %v3778
      %v3926 = vpop.f32.mrb[0].mxu0
      %v3927 = vadd.f32 0.0, %v3926
      %v3928 = vpop.f32.mrb[0].mxu0
      %v3929 = vadd.f32 0.0, %v3928
      %3930 = vmatprep.mubr.f32.mxu0 0.0
      %3931 = vmatmul.mubr.f32.gmra.mrb[0].mxu0 %v3781
      %v3932 = vpop.f32.mrb[0].mxu0
      %v3933 = vadd.f32 0.0, %v3932
      %v3934 = vpop.f32.mrb[0].mxu0
      %v3935 = vadd.f32 0.0, %v3934
      %3936 = vdwg.mxu0
      %3937 = vmatprep.subr.mxu0 0.0
      %3938 = vmatpush1.msra.mxu0 %v211
      %3939 = vmatprep.subr.mxu0 0.0
      %3940 = vmatpush1.msra.mxu0 %v216
      %3941 = vmatprep.subr.mxu0 0.0
      %3942 = vmatpush1.msra.mxu0 0.0
      %3943 = vmatprep.subr.mxu0 0.0
      %3944 = vmatpush1.msra.mxu0 0.0
      %3945 = vmatprep.subr.mxu0 0.0
      %3946 = vmatpush1.msra.mxu0 0.0
      %3947 = vmatprep.subr.mxu0 0.0
      %3948 = vmatpush1.msra.mxu0 0.0
      %3949 = vmatprep.subr.mxu0 0.0
      %3950 = vmatpush1.msra.mxu0 0.0
      %3951 = vmatprep.subr.mxu0 0.0
      %3952 = vmatpush1.msra.mxu0 0.0
      %3953 = vmatprep.subr.mxu0 0.0
      %3954 = vmatpush1.msra.mxu0 0.0
      %3955 = vmatprep.subr.mxu0 0.0
      %3956 = vmatpush1.msra.mxu0 0.0
      %3957 = vmatprep.subr.mxu0 0.0
      %3958 = vmatpush1.msra.mxu0 0.0
      %3959 = vmatprep.subr.mxu0 0.0
      %3960 = vmatpush1.msra.mxu0 0.0
      %3961 = vmatprep.subr.mxu0 0.0
      %3962 = vmatpush1.msra.mxu0 0.0
      %3963 = vmatprep.subr.mxu0 0.0
      %3964 = vmatpush1.msra.mxu0 0.0
      %3965 = vmatprep.subr.mxu0 0.0
      %3966 = vmatpush1.msra.mxu0 0.0
      %3967 = vmatprep.subr.mxu0 0.0
      %3968 = vmatpush1.msra.mxu0 0.0
      %3969 = vmatprep.subr.mxu0 0.0
      %3970 = vmatpush1.msra.mxu0 0.0
      %3971 = vmatprep.subr.mxu0 0.0
      %3972 = vmatpush1.msra.mxu0 0.0
      %3973 = vmatprep.subr.mxu0 0.0
      %3974 = vmatpush1.msra.mxu0 0.0
      %3975 = vmatprep.subr.mxu0 0.0
      %3976 = vmatpush1.msra.mxu0 0.0
      %3977 = vmatprep.subr.mxu0 0.0
      %3978 = vmatpush1.msra.mxu0 0.0
      %3979 = vmatprep.subr.mxu0 0.0
      %3980 = vmatpush1.msra.mxu0 0.0
      %3981 = vmatprep.subr.mxu0 0.0
      %3982 = vmatpush1.msra.mxu0 0.0
      %3983 = vmatprep.subr.mxu0 0.0
      %3984 = vmatpush1.msra.mxu0 0.0
      %3985 = vmatprep.subr.mxu0 0.0
      %3986 = vmatpush1.msra.mxu0 0.0
      %3987 = vmatprep.subr.mxu0 0.0
      %3988 = vmatpush1.msra.mxu0 0.0
      %3989 = vmatprep.subr.mxu0 0.0
      %3990 = vmatpush1.msra.mxu0 0.0
      %3991 = vmatprep.subr.mxu0 0.0
      %3992 = vmatpush1.msra.mxu0 0.0
      %3993 = vmatprep.subr.mxu0 0.0
      %3994 = vmatpush1.msra.mxu0 0.0
      %3995 = vmatprep.subr.mxu0 0.0
      %3996 = vmatpush1.msra.mxu0 0.0
      %3997 = vmatprep.subr.mxu0 0.0
      %3998 = vmatpush1.msra.mxu0 0.0
      %3999 = vmatprep.subr.mxu0 0.0
      %4000 = vmatpush1.msra.mxu0 0.0
      %4001 = vmatprep.mubr.f32.mxu0 0.0
      %4002 = vmatmul.mubr.f32.gmra.mrb[0].mxu0 %v3778
      %v4003 = vpop.f32.mrb[0].mxu0
      %v4004 = vadd.f32 0.0, %v4003
      %v4005 = vpop.f32.mrb[0].mxu0
      %4006 = vmatprep.mubr.f32.mxu0 0.0
      %4007 = vmatmul.mubr.f32.gmra.mrb[0].mxu0 %v3781
      %v4008 = vpop.f32.mrb[0].mxu0
      %v4009 = vadd.f32 0.0, %v4008
      %v4010 = vpop.f32.mrb[0].mxu0
      %4011 = vdwg.mxu0
      %4012 = vmatprep.subr.mxu0 %v3852
      %4013 = vmatpush1.msra.mxu0 %v3850
      %4014 = vmatprep.subr.mxu0 %v3858
      %4015 = vmatpush1.msra.mxu0 %v3856
      %4016 = vmatprep.subr.mxu0 0.0
      %4017 = vmatpush1.msra.mxu0 0.0
      %4018 = vmatprep.subr.mxu0 0.0
      %4019 = vmatpush1.msra.mxu0 0.0
      %4020 = vmatprep.subr.mxu0 0.0
      %4021 = vmatpush1.msra.mxu0 0.0
      %4022 = vmatprep.subr.mxu0 0.0
      %4023 = vmatpush1.msra.mxu0 0.0
      %4024 = vmatprep.subr.mxu0 0.0
      %4025 = vmatpush1.msra.mxu0 0.0
      %4026 = vmatprep.subr.mxu0 0.0
      %4027 = vmatpush1.msra.mxu0 0.0
      %4028 = vmatprep.subr.mxu0 0.0
      %4029 = vmatpush1.msra.mxu0 0.0
      %4030 = vmatprep.subr.mxu0 0.0
      %4031 = vmatpush1.msra.mxu0 0.0
      %4032 = vmatprep.subr.mxu0 0.0
      %4033 = vmatpush1.msra.mxu0 0.0
      %4034 = vmatprep.subr.mxu0 0.0
      %4035 = vmatpush1.msra.mxu0 0.0
      %4036 = vmatprep.subr.mxu0 0.0
      %4037 = vmatpush1.msra.mxu0 0.0
      %4038 = vmatprep.subr.mxu0 0.0
      %4039 = vmatpush1.msra.mxu0 0.0
      %4040 = vmatprep.subr.mxu0 0.0
      %4041 = vmatpush1.msra.mxu0 0.0
      %4042 = vmatprep.subr.mxu0 0.0
      %4043 = vmatpush1.msra.mxu0 0.0
      %4044 = vmatprep.subr.mxu0 0.0
      %4045 = vmatpush1.msra.mxu0 0.0
      %4046 = vmatprep.subr.mxu0 0.0
      %4047 = vmatpush1.msra.mxu0 0.0
      %4048 = vmatprep.subr.mxu0 0.0
      %4049 = vmatpush1.msra.mxu0 0.0
      %4050 = vmatprep.subr.mxu0 0.0
      %4051 = vmatpush1.msra.mxu0 0.0
      %4052 = vmatprep.subr.mxu0 0.0
      %4053 = vmatpush1.msra.mxu0 0.0
      %4054 = vmatprep.subr.mxu0 0.0
      %4055 = vmatpush1.msra.mxu0 0.0
      %4056 = vmatprep.subr.mxu0 0.0
      %4057 = vmatpush1.msra.mxu0 0.0
      %4058 = vmatprep.subr.mxu0 0.0
      %4059 = vmatpush1.msra.mxu0 0.0
      %4060 = vmatprep.subr.mxu0 0.0
      %4061 = vmatpush1.msra.mxu0 0.0
      %4062 = vmatprep.subr.mxu0 0.0
      %4063 = vmatpush1.msra.mxu0 0.0
      %4064 = vmatprep.subr.mxu0 0.0
      %4065 = vmatpush1.msra.mxu0 0.0
      %4066 = vmatprep.subr.mxu0 0.0
      %4067 = vmatpush1.msra.mxu0 0.0
      %4068 = vmatprep.subr.mxu0 0.0
      %4069 = vmatpush1.msra.mxu0 0.0
      %4070 = vmatprep.subr.mxu0 0.0
      %4071 = vmatpush1.msra.mxu0 0.0
      %4072 = vmatprep.subr.mxu0 0.0
      %4073 = vmatpush1.msra.mxu0 0.0
      %4074 = vmatprep.subr.mxu0 0.0
      %4075 = vmatpush1.msra.mxu0 0.0
      %4076 = vmatprep.mubr.f32.mxu0 0.0
      %4077 = vmatmul.mubr.f32.gmra.mrb[0].mxu0 %v456
      %v4078 = vpop.f32.mrb[0].mxu0
      %v4079 = vadd.f32 0.0, %v4078
      %v4080 = vpop.f32.mrb[0].mxu0
      %v4081 = vadd.f32 0.0, %v4080
      %4082 = vmatprep.mubr.f32.mxu0 0.0
      %4083 = vmatmul.mubr.f32.gmra.mrb[0].mxu0 %v459
      %v4084 = vpop.f32.mrb[0].mxu0
      %v4085 = vadd.f32 0.0, %v4084
      %v4086 = vpop.f32.mrb[0].mxu0
      %v4087 = vadd.f32 0.0, %v4086
      %4088 = vmatprep.mubr.f32.mxu0 0.0
      %4089 = vmatmul.mubr.f32.gmra.mrb[0].mxu0 %v462
      %v4090 = vpop.f32.mrb[0].mxu0
      %v4091 = vadd.f32 0.0, %v4090
      %v4092 = vpop.f32.mrb[0].mxu0
      %v4093 = vadd.f32 0.0, %v4092
      %4094 = vmatprep.mubr.f32.mxu0 0.0
      %4095 = vmatmul.mubr.f32.gmra.mrb[0].mxu0 %v465
      %v4096 = vpop.f32.mrb[0].mxu0
      %v4097 = vadd.f32 0.0, %v4096
      %v4098 = vpop.f32.mrb[0].mxu0
      %v4099 = vadd.f32 0.0, %v4098
      %4100 = vmatprep.mubr.f32.mxu0 0.0
      %4101 = vmatmul.mubr.f32.gmra.mrb[0].mxu0 %v468
      %v4102 = vpop.f32.mrb[0].mxu0
      %v4103 = vadd.f32 0.0, %v4102
      %v4104 = vpop.f32.mrb[0].mxu0
      %v4105 = vadd.f32 0.0, %v4104
      %4106 = vmatprep.mubr.f32.mxu0 0.0
      %4107 = vmatmul.mubr.f32.gmra.mrb[0].mxu0 %v471
      %v4108 = vpop.f32.mrb[0].mxu0
      %v4109 = vadd.f32 0.0, %v4108
      %v4110 = vpop.f32.mrb[0].mxu0
      %v4111 = vadd.f32 0.0, %v4110
      %4112 = vmatprep.mubr.f32.mxu0 0.0
      %4113 = vmatmul.mubr.f32.gmra.mrb[0].mxu0 %v474
      %v4114 = vpop.f32.mrb[0].mxu0
      %v4115 = vadd.f32 0.0, %v4114
      %v4116 = vpop.f32.mrb[0].mxu0
      %v4117 = vadd.f32 0.0, %v4116
      %4118 = vmatprep.mubr.f32.mxu0 0.0
      %4119 = vmatmul.mubr.f32.gmra.mrb[0].mxu0 %v477
      %v4120 = vpop.f32.mrb[0].mxu0
      %v4121 = vadd.f32 0.0, %v4120
      %v4122 = vpop.f32.mrb[0].mxu0
      %v4123 = vadd.f32 0.0, %v4122
      %4124 = vmatprep.mubr.f32.mxu0 0.0
      %4125 = vmatmul.mubr.f32.gmra.mrb[0].mxu0 %v480
      %v4126 = vpop.f32.mrb[0].mxu0
      %v4127 = vadd.f32 0.0, %v4126
      %v4128 = vpop.f32.mrb[0].mxu0
      %v4129 = vadd.f32 0.0, %v4128
      %4130 = vmatprep.mubr.f32.mxu0 0.0
      %4131 = vmatmul.mubr.f32.gmra.mrb[0].mxu0 %v483
      %v4132 = vpop.f32.mrb[0].mxu0
      %v4133 = vadd.f32 0.0, %v4132
      %v4134 = vpop.f32.mrb[0].mxu0
      %v4135 = vadd.f32 0.0, %v4134
      %4136 = vmatprep.mubr.f32.mxu0 0.0
      %4137 = vmatmul.mubr.f32.gmra.mrb[0].mxu0 %v486
      %v4138 = vpop.f32.mrb[0].mxu0
      %v4139 = vadd.f32 0.0, %v4138
      %v4140 = vpop.f32.mrb[0].mxu0
      %v4141 = vadd.f32 0.0, %v4140
      %4142 = vmatprep.mubr.f32.mxu0 0.0
      %4143 = vmatmul.mubr.f32.gmra.mrb[0].mxu0 %v489
      %v4144 = vpop.f32.mrb[0].mxu0
      %v4145 = vadd.f32 0.0, %v4144
      %v4146 = vpop.f32.mrb[0].mxu0
      %v4147 = vadd.f32 0.0, %v4146
      %4148 = vmatprep.mubr.f32.mxu0 0.0
      %4149 = vmatmul.mubr.f32.gmra.mrb[0].mxu0 %v492
      %v4150 = vpop.f32.mrb[0].mxu0
      %v4151 = vadd.f32 0.0, %v4150
      %v4152 = vpop.f32.mrb[0].mxu0
      %v4153 = vadd.f32 0.0, %v4152
      %4154 = vmatprep.mubr.f32.mxu0 0.0
      %4155 = vmatmul.mubr.f32.gmra.mrb[0].mxu0 %v495
      %v4156 = vpop.f32.mrb[0].mxu0
      %v4157 = vadd.f32 0.0, %v4156
      %v4158 = vpop.f32.mrb[0].mxu0
      %v4159 = vadd.f32 0.0, %v4158
      %4160 = vmatprep.mubr.f32.mxu0 0.0
      %4161 = vmatmul.mubr.f32.gmra.mrb[0].mxu0 %v498
      %v4162 = vpop.f32.mrb[0].mxu0
      %v4163 = vadd.f32 0.0, %v4162
      %v4164 = vpop.f32.mrb[0].mxu0
      %v4165 = vadd.f32 0.0, %v4164
      %4166 = vmatprep.mubr.f32.mxu0 0.0
      %4167 = vmatmul.mubr.f32.gmra.mrb[0].mxu0 %v501
      %v4168 = vpop.f32.mrb[0].mxu0
      %v4169 = vadd.f32 0.0, %v4168
      %v4170 = vpop.f32.mrb[0].mxu0
      %v4171 = vadd.f32 0.0, %v4170
      %4172 = vmatprep.mubr.f32.mxu0 0.0
      %4173 = vmatmul.mubr.f32.gmra.mrb[0].mxu0 %v504
      %v4174 = vpop.f32.mrb[0].mxu0
      %v4175 = vadd.f32 0.0, %v4174
      %v4176 = vpop.f32.mrb[0].mxu0
      %v4177 = vadd.f32 0.0, %v4176
      %4178 = vmatprep.mubr.f32.mxu0 0.0
      %4179 = vmatmul.mubr.f32.gmra.mrb[0].mxu0 %v507
      %v4180 = vpop.f32.mrb[0].mxu0
      %v4181 = vadd.f32 0.0, %v4180
      %v4182 = vpop.f32.mrb[0].mxu0
      %v4183 = vadd.f32 0.0, %v4182
      %4184 = vmatprep.mubr.f32.mxu0 0.0
      %4185 = vmatmul.mubr.f32.gmra.mrb[0].mxu0 %v510
      %v4186 = vpop.f32.mrb[0].mxu0
      %v4187 = vadd.f32 0.0, %v4186
      %v4188 = vpop.f32.mrb[0].mxu0
      %v4189 = vadd.f32 0.0, %v4188
      %4190 = vmatprep.mubr.f32.mxu0 0.0
      %4191 = vmatmul.mubr.f32.gmra.mrb[0].mxu0 %v513
      %v4192 = vpop.f32.mrb[0].mxu0
      %v4193 = vadd.f32 0.0, %v4192
      %v4194 = vpop.f32.mrb[0].mxu0
      %v4195 = vadd.f32 0.0, %v4194
      %4196 = vmatprep.mubr.f32.mxu0 0.0
      %4197 = vmatmul.mubr.f32.gmra.mrb[0].mxu0 %v516
      %v4198 = vpop.f32.mrb[0].mxu0
      %v4199 = vadd.f32 0.0, %v4198
      %v4200 = vpop.f32.mrb[0].mxu0
      %v4201 = vadd.f32 0.0, %v4200
      %4202 = vmatprep.mubr.f32.mxu0 0.0
      %4203 = vmatmul.mubr.f32.gmra.mrb[0].mxu0 %v519
      %v4204 = vpop.f32.mrb[0].mxu0
      %v4205 = vadd.f32 0.0, %v4204
      %v4206 = vpop.f32.mrb[0].mxu0
      %v4207 = vadd.f32 0.0, %v4206
      %4208 = vmatprep.mubr.f32.mxu0 0.0
      %4209 = vmatmul.mubr.f32.gmra.mrb[0].mxu0 %v522
      %v4210 = vpop.f32.mrb[0].mxu0
      %v4211 = vadd.f32 0.0, %v4210
      %v4212 = vpop.f32.mrb[0].mxu0
      %v4213 = vadd.f32 0.0, %v4212
      %4214 = vmatprep.mubr.f32.mxu0 0.0
      %4215 = vmatmul.mubr.f32.gmra.mrb[0].mxu0 %v525
      %v4216 = vpop.f32.mrb[0].mxu0
      %v4217 = vadd.f32 0.0, %v4216
      %v4218 = vpop.f32.mrb[0].mxu0
      %v4219 = vadd.f32 0.0, %v4218
      %4220 = vmatprep.mubr.f32.mxu0 0.0
      %4221 = vmatmul.mubr.f32.gmra.mrb[0].mxu0 %v528
      %v4222 = vpop.f32.mrb[0].mxu0
      %v4223 = vadd.f32 0.0, %v4222
      %v4224 = vpop.f32.mrb[0].mxu0
      %v4225 = vadd.f32 0.0, %v4224
      %4226 = vmatprep.mubr.f32.mxu0 0.0
      %4227 = vmatmul.mubr.f32.gmra.mrb[0].mxu0 %v531
      %v4228 = vpop.f32.mrb[0].mxu0
      %v4229 = vadd.f32 0.0, %v4228
      %v4230 = vpop.f32.mrb[0].mxu0
      %v4231 = vadd.f32 0.0, %v4230
      %4232 = vmatprep.mubr.f32.mxu0 0.0
      %4233 = vmatmul.mubr.f32.gmra.mrb[0].mxu0 %v534
      %v4234 = vpop.f32.mrb[0].mxu0
      %v4235 = vadd.f32 0.0, %v4234
      %v4236 = vpop.f32.mrb[0].mxu0
      %v4237 = vadd.f32 0.0, %v4236
      %4238 = vmatprep.mubr.f32.mxu0 0.0
      %4239 = vmatmul.mubr.f32.gmra.mrb[0].mxu0 %v537
      %v4240 = vpop.f32.mrb[0].mxu0
      %v4241 = vadd.f32 0.0, %v4240
      %v4242 = vpop.f32.mrb[0].mxu0
      %v4243 = vadd.f32 0.0, %v4242
      %4244 = vmatprep.mubr.f32.mxu0 0.0
      %4245 = vmatmul.mubr.f32.gmra.mrb[0].mxu0 %v540
      %v4246 = vpop.f32.mrb[0].mxu0
      %v4247 = vadd.f32 0.0, %v4246
      %v4248 = vpop.f32.mrb[0].mxu0
      %v4249 = vadd.f32 0.0, %v4248
      %4250 = vmatprep.mubr.f32.mxu0 0.0
      %4251 = vmatmul.mubr.f32.gmra.mrb[0].mxu0 %v543
      %v4252 = vpop.f32.mrb[0].mxu0
      %v4253 = vadd.f32 0.0, %v4252
      %v4254 = vpop.f32.mrb[0].mxu0
      %v4255 = vadd.f32 0.0, %v4254
      %4256 = vmatprep.mubr.f32.mxu0 0.0
      %4257 = vmatmul.mubr.f32.gmra.mrb[0].mxu0 %v546
      %v4258 = vpop.f32.mrb[0].mxu0
      %v4259 = vadd.f32 0.0, %v4258
      %v4260 = vpop.f32.mrb[0].mxu0
      %v4261 = vadd.f32 0.0, %v4260
      %4262 = vmatprep.mubr.f32.mxu0 0.0
      %4263 = vmatmul.mubr.f32.gmra.mrb[0].mxu0 %v549
      %v4264 = vpop.f32.mrb[0].mxu0
      %v4265 = vadd.f32 0.0, %v4264
      %v4266 = vpop.f32.mrb[0].mxu0
      %v4267 = vadd.f32 0.0, %v4266
      %4268 = vmatprep.mubr.f32.mxu0 0.0
      %4269 = vmatmul.mubr.f32.gmra.mrb[0].mxu0 %v552
      %v4270 = vpop.f32.mrb[0].mxu0
      %v4271 = vadd.f32 0.0, %v4270
      %v4272 = vpop.f32.mrb[0].mxu0
      %v4273 = vadd.f32 0.0, %v4272
      %4274 = vmatprep.mubr.f32.mxu0 0.0
      %4275 = vmatmul.mubr.f32.gmra.mrb[0].mxu0 %v555
      %v4276 = vpop.f32.mrb[0].mxu0
      %v4277 = vadd.f32 0.0, %v4276
      %v4278 = vpop.f32.mrb[0].mxu0
      %v4279 = vadd.f32 0.0, %v4278
      %4280 = vmatprep.mubr.f32.mxu0 0.0
      %4281 = vmatmul.mubr.f32.gmra.mrb[0].mxu0 %v558
      %v4282 = vpop.f32.mrb[0].mxu0
      %v4283 = vadd.f32 0.0, %v4282
      %v4284 = vpop.f32.mrb[0].mxu0
      %v4285 = vadd.f32 0.0, %v4284
      %4286 = vmatprep.mubr.f32.mxu0 0.0
      %4287 = vmatmul.mubr.f32.gmra.mrb[0].mxu0 %v561
      %v4288 = vpop.f32.mrb[0].mxu0
      %v4289 = vadd.f32 0.0, %v4288
      %v4290 = vpop.f32.mrb[0].mxu0
      %v4291 = vadd.f32 0.0, %v4290
      %4292 = vmatprep.mubr.f32.mxu0 0.0
      %4293 = vmatmul.mubr.f32.gmra.mrb[0].mxu0 %v564
      %v4294 = vpop.f32.mrb[0].mxu0
      %v4295 = vadd.f32 0.0, %v4294
      %v4296 = vpop.f32.mrb[0].mxu0
      %v4297 = vadd.f32 0.0, %v4296
      %4298 = vmatprep.mubr.f32.mxu0 0.0
      %4299 = vmatmul.mubr.f32.gmra.mrb[0].mxu0 %v567
      %v4300 = vpop.f32.mrb[0].mxu0
      %v4301 = vadd.f32 0.0, %v4300
      %v4302 = vpop.f32.mrb[0].mxu0
      %v4303 = vadd.f32 0.0, %v4302
      %4304 = vmatprep.mubr.f32.mxu0 0.0
      %4305 = vmatmul.mubr.f32.gmra.mrb[0].mxu0 %v570
      %v4306 = vpop.f32.mrb[0].mxu0
      %v4307 = vadd.f32 0.0, %v4306
      %v4308 = vpop.f32.mrb[0].mxu0
      %v4309 = vadd.f32 0.0, %v4308
      %4310 = vmatprep.mubr.f32.mxu0 0.0
      %4311 = vmatmul.mubr.f32.gmra.mrb[0].mxu0 %v573
      %v4312 = vpop.f32.mrb[0].mxu0
      %v4313 = vadd.f32 0.0, %v4312
      %v4314 = vpop.f32.mrb[0].mxu0
      %v4315 = vadd.f32 0.0, %v4314
      %4316 = vmatprep.mubr.f32.mxu0 0.0
      %4317 = vmatmul.mubr.f32.gmra.mrb[0].mxu0 %v576
      %v4318 = vpop.f32.mrb[0].mxu0
      %v4319 = vadd.f32 0.0, %v4318
      %v4320 = vpop.f32.mrb[0].mxu0
      %v4321 = vadd.f32 0.0, %v4320
      %4322 = vmatprep.mubr.f32.mxu0 0.0
      %4323 = vmatmul.mubr.f32.gmra.mrb[0].mxu0 %v579
      %v4324 = vpop.f32.mrb[0].mxu0
      %v4325 = vadd.f32 0.0, %v4324
      %v4326 = vpop.f32.mrb[0].mxu0
      %v4327 = vadd.f32 0.0, %v4326
      %4328 = vmatprep.mubr.f32.mxu0 0.0
      %4329 = vmatmul.mubr.f32.gmra.mrb[0].mxu0 %v582
      %v4330 = vpop.f32.mrb[0].mxu0
      %v4331 = vadd.f32 0.0, %v4330
      %v4332 = vpop.f32.mrb[0].mxu0
      %v4333 = vadd.f32 0.0, %v4332
      %4334 = vmatprep.mubr.f32.mxu0 0.0
      %4335 = vmatmul.mubr.f32.gmra.mrb[0].mxu0 %v585
      %v4336 = vpop.f32.mrb[0].mxu0
      %v4337 = vadd.f32 0.0, %v4336
      %v4338 = vpop.f32.mrb[0].mxu0
      %v4339 = vadd.f32 0.0, %v4338
      %4340 = vmatprep.mubr.f32.mxu0 0.0
      %4341 = vmatmul.mubr.f32.gmra.mrb[0].mxu0 %v588
      %v4342 = vpop.f32.mrb[0].mxu0
      %v4343 = vadd.f32 0.0, %v4342
      %v4344 = vpop.f32.mrb[0].mxu0
      %v4345 = vadd.f32 0.0, %v4344
      %4346 = vmatprep.mubr.f32.mxu0 0.0
      %4347 = vmatmul.mubr.f32.gmra.mrb[0].mxu0 %v591
      %v4348 = vpop.f32.mrb[0].mxu0
      %v4349 = vadd.f32 0.0, %v4348
      %v4350 = vpop.f32.mrb[0].mxu0
      %v4351 = vadd.f32 0.0, %v4350
      %4352 = vmatprep.mubr.f32.mxu0 0.0
      %4353 = vmatmul.mubr.f32.gmra.mrb[0].mxu0 %v594
      %v4354 = vpop.f32.mrb[0].mxu0
      %v4355 = vadd.f32 0.0, %v4354
      %v4356 = vpop.f32.mrb[0].mxu0
      %v4357 = vadd.f32 0.0, %v4356
      %4358 = vmatprep.mubr.f32.mxu0 0.0
      %4359 = vmatmul.mubr.f32.gmra.mrb[0].mxu0 %v597
      %v4360 = vpop.f32.mrb[0].mxu0
      %v4361 = vadd.f32 0.0, %v4360
      %v4362 = vpop.f32.mrb[0].mxu0
      %v4363 = vadd.f32 0.0, %v4362
      %4364 = vmatprep.mubr.f32.mxu0 0.0
      %4365 = vmatmul.mubr.f32.gmra.mrb[0].mxu0 %v600
      %v4366 = vpop.f32.mrb[0].mxu0
      %v4367 = vadd.f32 0.0, %v4366
      %v4368 = vpop.f32.mrb[0].mxu0
      %v4369 = vadd.f32 0.0, %v4368
      %4370 = vmatprep.mubr.f32.mxu0 0.0
      %4371 = vmatmul.mubr.f32.gmra.mrb[0].mxu0 %v603
      %v4372 = vpop.f32.mrb[0].mxu0
      %v4373 = vadd.f32 0.0, %v4372
      %v4374 = vpop.f32.mrb[0].mxu0
      %v4375 = vadd.f32 0.0, %v4374
      %4376 = vmatprep.mubr.f32.mxu0 0.0
      %4377 = vmatmul.mubr.f32.gmra.mrb[0].mxu0 %v606
      %v4378 = vpop.f32.mrb[0].mxu0
      %v4379 = vadd.f32 0.0, %v4378
      %v4380 = vpop.f32.mrb[0].mxu0
      %v4381 = vadd.f32 0.0, %v4380
      %4382 = vmatprep.mubr.f32.mxu0 0.0
      %4383 = vmatmul.mubr.f32.gmra.mrb[0].mxu0 %v609
      %v4384 = vpop.f32.mrb[0].mxu0
      %v4385 = vadd.f32 0.0, %v4384
      %v4386 = vpop.f32.mrb[0].mxu0
      %v4387 = vadd.f32 0.0, %v4386
      %4388 = vmatprep.mubr.f32.mxu0 0.0
      %4389 = vmatmul.mubr.f32.gmra.mrb[0].mxu0 %v612
      %v4390 = vpop.f32.mrb[0].mxu0
      %v4391 = vadd.f32 0.0, %v4390
      %v4392 = vpop.f32.mrb[0].mxu0
      %v4393 = vadd.f32 0.0, %v4392
      %4394 = vmatprep.mubr.f32.mxu0 0.0
      %4395 = vmatmul.mubr.f32.gmra.mrb[0].mxu0 %v615
      %v4396 = vpop.f32.mrb[0].mxu0
      %v4397 = vadd.f32 0.0, %v4396
      %v4398 = vpop.f32.mrb[0].mxu0
      %v4399 = vadd.f32 0.0, %v4398
      %4400 = vmatprep.mubr.f32.mxu0 0.0
      %4401 = vmatmul.mubr.f32.gmra.mrb[0].mxu0 %v618
      %v4402 = vpop.f32.mrb[0].mxu0
      %v4403 = vadd.f32 0.0, %v4402
      %v4404 = vpop.f32.mrb[0].mxu0
      %v4405 = vadd.f32 0.0, %v4404
      %4406 = vmatprep.mubr.f32.mxu0 0.0
      %4407 = vmatmul.mubr.f32.gmra.mrb[0].mxu0 %v621
      %v4408 = vpop.f32.mrb[0].mxu0
      %v4409 = vadd.f32 0.0, %v4408
      %v4410 = vpop.f32.mrb[0].mxu0
      %v4411 = vadd.f32 0.0, %v4410
      %4412 = vdwg.mxu0
      %4413 = vmatprep.subr.mxu0 %v3929
      %4414 = vmatpush1.msra.mxu0 %v3927
      %4415 = vmatprep.subr.mxu0 %v3935
      %4416 = vmatpush1.msra.mxu0 %v3933
      %4417 = vmatprep.subr.mxu0 0.0
      %4418 = vmatpush1.msra.mxu0 0.0
      %4419 = vmatprep.subr.mxu0 0.0
      %4420 = vmatpush1.msra.mxu0 0.0
      %4421 = vmatprep.subr.mxu0 0.0
      %4422 = vmatpush1.msra.mxu0 0.0
      %4423 = vmatprep.subr.mxu0 0.0
      %4424 = vmatpush1.msra.mxu0 0.0
      %4425 = vmatprep.subr.mxu0 0.0
      %4426 = vmatpush1.msra.mxu0 0.0
      %4427 = vmatprep.subr.mxu0 0.0
      %4428 = vmatpush1.msra.mxu0 0.0
      %4429 = vmatprep.subr.mxu0 0.0
      %4430 = vmatpush1.msra.mxu0 0.0
      %4431 = vmatprep.subr.mxu0 0.0
      %4432 = vmatpush1.msra.mxu0 0.0
      %4433 = vmatprep.subr.mxu0 0.0
      %4434 = vmatpush1.msra.mxu0 0.0
      %4435 = vmatprep.subr.mxu0 0.0
      %4436 = vmatpush1.msra.mxu0 0.0
      %4437 = vmatprep.subr.mxu0 0.0
      %4438 = vmatpush1.msra.mxu0 0.0
      %4439 = vmatprep.subr.mxu0 0.0
      %4440 = vmatpush1.msra.mxu0 0.0
      %4441 = vmatprep.subr.mxu0 0.0
      %4442 = vmatpush1.msra.mxu0 0.0
      %4443 = vmatprep.subr.mxu0 0.0
      %4444 = vmatpush1.msra.mxu0 0.0
      %4445 = vmatprep.subr.mxu0 0.0
      %4446 = vmatpush1.msra.mxu0 0.0
      %4447 = vmatprep.subr.mxu0 0.0
      %4448 = vmatpush1.msra.mxu0 0.0
      %4449 = vmatprep.subr.mxu0 0.0
      %4450 = vmatpush1.msra.mxu0 0.0
      %4451 = vmatprep.subr.mxu0 0.0
      %4452 = vmatpush1.msra.mxu0 0.0
      %4453 = vmatprep.subr.mxu0 0.0
      %4454 = vmatpush1.msra.mxu0 0.0
      %4455 = vmatprep.subr.mxu0 0.0
      %4456 = vmatpush1.msra.mxu0 0.0
      %4457 = vmatprep.subr.mxu0 0.0
      %4458 = vmatpush1.msra.mxu0 0.0
      %4459 = vmatprep.subr.mxu0 0.0
      %4460 = vmatpush1.msra.mxu0 0.0
      %4461 = vmatprep.subr.mxu0 0.0
      %4462 = vmatpush1.msra.mxu0 0.0
      %4463 = vmatprep.subr.mxu0 0.0
      %4464 = vmatpush1.msra.mxu0 0.0
      %4465 = vmatprep.subr.mxu0 0.0
      %4466 = vmatpush1.msra.mxu0 0.0
      %4467 = vmatprep.subr.mxu0 0.0
      %4468 = vmatpush1.msra.mxu0 0.0
      %4469 = vmatprep.subr.mxu0 0.0
      %4470 = vmatpush1.msra.mxu0 0.0
      %4471 = vmatprep.subr.mxu0 0.0
      %4472 = vmatpush1.msra.mxu0 0.0
      %4473 = vmatprep.subr.mxu0 0.0
      %4474 = vmatpush1.msra.mxu0 0.0
      %4475 = vmatprep.subr.mxu0 0.0
      %4476 = vmatpush1.msra.mxu0 0.0
      %4477 = vmatprep.mubr.f32.mxu0 0.0
      %4478 = vmatmul.mubr.f32.gmra.mrb[0].mxu0 %v456
      %v4479 = vpop.f32.mrb[0].mxu0
      %v4480 = vadd.f32 0.0, %v4479
      %v4481 = vpop.f32.mrb[0].mxu0
      %v4482 = vadd.f32 0.0, %v4481
      %4483 = vmatprep.mubr.f32.mxu0 0.0
      %4484 = vmatmul.mubr.f32.gmra.mrb[0].mxu0 %v459
      %v4485 = vpop.f32.mrb[0].mxu0
      %v4486 = vadd.f32 0.0, %v4485
      %v4487 = vpop.f32.mrb[0].mxu0
      %v4488 = vadd.f32 0.0, %v4487
      %4489 = vmatprep.mubr.f32.mxu0 0.0
      %4490 = vmatmul.mubr.f32.gmra.mrb[0].mxu0 %v462
      %v4491 = vpop.f32.mrb[0].mxu0
      %v4492 = vadd.f32 0.0, %v4491
      %v4493 = vpop.f32.mrb[0].mxu0
      %v4494 = vadd.f32 0.0, %v4493
      %4495 = vmatprep.mubr.f32.mxu0 0.0
      %4496 = vmatmul.mubr.f32.gmra.mrb[0].mxu0 %v465
      %v4497 = vpop.f32.mrb[0].mxu0
      %v4498 = vadd.f32 0.0, %v4497
      %v4499 = vpop.f32.mrb[0].mxu0
      %v4500 = vadd.f32 0.0, %v4499
      %4501 = vmatprep.mubr.f32.mxu0 0.0
      %4502 = vmatmul.mubr.f32.gmra.mrb[0].mxu0 %v468
      %v4503 = vpop.f32.mrb[0].mxu0
      %v4504 = vadd.f32 0.0, %v4503
      %v4505 = vpop.f32.mrb[0].mxu0
      %v4506 = vadd.f32 0.0, %v4505
      %4507 = vmatprep.mubr.f32.mxu0 0.0
      %4508 = vmatmul.mubr.f32.gmra.mrb[0].mxu0 %v471
      %v4509 = vpop.f32.mrb[0].mxu0
      %v4510 = vadd.f32 0.0, %v4509
      %v4511 = vpop.f32.mrb[0].mxu0
      %v4512 = vadd.f32 0.0, %v4511
      %4513 = vmatprep.mubr.f32.mxu0 0.0
      %4514 = vmatmul.mubr.f32.gmra.mrb[0].mxu0 %v474
      %v4515 = vpop.f32.mrb[0].mxu0
      %v4516 = vadd.f32 0.0, %v4515
      %v4517 = vpop.f32.mrb[0].mxu0
      %v4518 = vadd.f32 0.0, %v4517
      %4519 = vmatprep.mubr.f32.mxu0 0.0
      %4520 = vmatmul.mubr.f32.gmra.mrb[0].mxu0 %v477
      %v4521 = vpop.f32.mrb[0].mxu0
      %v4522 = vadd.f32 0.0, %v4521
      %v4523 = vpop.f32.mrb[0].mxu0
      %v4524 = vadd.f32 0.0, %v4523
      %4525 = vmatprep.mubr.f32.mxu0 0.0
      %4526 = vmatmul.mubr.f32.gmra.mrb[0].mxu0 %v480
      %v4527 = vpop.f32.mrb[0].mxu0
      %v4528 = vadd.f32 0.0, %v4527
      %v4529 = vpop.f32.mrb[0].mxu0
      %v4530 = vadd.f32 0.0, %v4529
      %4531 = vmatprep.mubr.f32.mxu0 0.0
      %4532 = vmatmul.mubr.f32.gmra.mrb[0].mxu0 %v483
      %v4533 = vpop.f32.mrb[0].mxu0
      %v4534 = vadd.f32 0.0, %v4533
      %v4535 = vpop.f32.mrb[0].mxu0
      %v4536 = vadd.f32 0.0, %v4535
      %4537 = vmatprep.mubr.f32.mxu0 0.0
      %4538 = vmatmul.mubr.f32.gmra.mrb[0].mxu0 %v486
      %v4539 = vpop.f32.mrb[0].mxu0
      %v4540 = vadd.f32 0.0, %v4539
      %v4541 = vpop.f32.mrb[0].mxu0
      %v4542 = vadd.f32 0.0, %v4541
      %4543 = vmatprep.mubr.f32.mxu0 0.0
      %4544 = vmatmul.mubr.f32.gmra.mrb[0].mxu0 %v489
      %v4545 = vpop.f32.mrb[0].mxu0
      %v4546 = vadd.f32 0.0, %v4545
      %v4547 = vpop.f32.mrb[0].mxu0
      %v4548 = vadd.f32 0.0, %v4547
      %4549 = vmatprep.mubr.f32.mxu0 0.0
      %4550 = vmatmul.mubr.f32.gmra.mrb[0].mxu0 %v492
      %v4551 = vpop.f32.mrb[0].mxu0
      %v4552 = vadd.f32 0.0, %v4551
      %v4553 = vpop.f32.mrb[0].mxu0
      %v4554 = vadd.f32 0.0, %v4553
      %4555 = vmatprep.mubr.f32.mxu0 0.0
      %4556 = vmatmul.mubr.f32.gmra.mrb[0].mxu0 %v495
      %v4557 = vpop.f32.mrb[0].mxu0
      %v4558 = vadd.f32 0.0, %v4557
      %v4559 = vpop.f32.mrb[0].mxu0
      %v4560 = vadd.f32 0.0, %v4559
      %4561 = vmatprep.mubr.f32.mxu0 0.0
      %4562 = vmatmul.mubr.f32.gmra.mrb[0].mxu0 %v498
      %v4563 = vpop.f32.mrb[0].mxu0
      %v4564 = vadd.f32 0.0, %v4563
      %v4565 = vpop.f32.mrb[0].mxu0
      %v4566 = vadd.f32 0.0, %v4565
      %4567 = vmatprep.mubr.f32.mxu0 0.0
      %4568 = vmatmul.mubr.f32.gmra.mrb[0].mxu0 %v501
      %v4569 = vpop.f32.mrb[0].mxu0
      %v4570 = vadd.f32 0.0, %v4569
      %v4571 = vpop.f32.mrb[0].mxu0
      %v4572 = vadd.f32 0.0, %v4571
      %4573 = vmatprep.mubr.f32.mxu0 0.0
      %4574 = vmatmul.mubr.f32.gmra.mrb[0].mxu0 %v504
      %v4575 = vpop.f32.mrb[0].mxu0
      %v4576 = vadd.f32 0.0, %v4575
      %v4577 = vpop.f32.mrb[0].mxu0
      %v4578 = vadd.f32 0.0, %v4577
      %4579 = vmatprep.mubr.f32.mxu0 0.0
      %4580 = vmatmul.mubr.f32.gmra.mrb[0].mxu0 %v507
      %v4581 = vpop.f32.mrb[0].mxu0
      %v4582 = vadd.f32 0.0, %v4581
      %v4583 = vpop.f32.mrb[0].mxu0
      %v4584 = vadd.f32 0.0, %v4583
      %4585 = vmatprep.mubr.f32.mxu0 0.0
      %4586 = vmatmul.mubr.f32.gmra.mrb[0].mxu0 %v510
      %v4587 = vpop.f32.mrb[0].mxu0
      %v4588 = vadd.f32 0.0, %v4587
      %v4589 = vpop.f32.mrb[0].mxu0
      %v4590 = vadd.f32 0.0, %v4589
      %4591 = vmatprep.mubr.f32.mxu0 0.0
      %4592 = vmatmul.mubr.f32.gmra.mrb[0].mxu0 %v513
      %v4593 = vpop.f32.mrb[0].mxu0
      %v4594 = vadd.f32 0.0, %v4593
      %v4595 = vpop.f32.mrb[0].mxu0
      %v4596 = vadd.f32 0.0, %v4595
      %4597 = vmatprep.mubr.f32.mxu0 0.0
      %4598 = vmatmul.mubr.f32.gmra.mrb[0].mxu0 %v516
      %v4599 = vpop.f32.mrb[0].mxu0
      %v4600 = vadd.f32 0.0, %v4599
      %v4601 = vpop.f32.mrb[0].mxu0
      %v4602 = vadd.f32 0.0, %v4601
      %4603 = vmatprep.mubr.f32.mxu0 0.0
      %4604 = vmatmul.mubr.f32.gmra.mrb[0].mxu0 %v519
      %v4605 = vpop.f32.mrb[0].mxu0
      %v4606 = vadd.f32 0.0, %v4605
      %v4607 = vpop.f32.mrb[0].mxu0
      %v4608 = vadd.f32 0.0, %v4607
      %4609 = vmatprep.mubr.f32.mxu0 0.0
      %4610 = vmatmul.mubr.f32.gmra.mrb[0].mxu0 %v522
      %v4611 = vpop.f32.mrb[0].mxu0
      %v4612 = vadd.f32 0.0, %v4611
      %v4613 = vpop.f32.mrb[0].mxu0
      %v4614 = vadd.f32 0.0, %v4613
      %4615 = vmatprep.mubr.f32.mxu0 0.0
      %4616 = vmatmul.mubr.f32.gmra.mrb[0].mxu0 %v525
      %v4617 = vpop.f32.mrb[0].mxu0
      %v4618 = vadd.f32 0.0, %v4617
      %v4619 = vpop.f32.mrb[0].mxu0
      %v4620 = vadd.f32 0.0, %v4619
      %4621 = vmatprep.mubr.f32.mxu0 0.0
      %4622 = vmatmul.mubr.f32.gmra.mrb[0].mxu0 %v528
      %v4623 = vpop.f32.mrb[0].mxu0
      %v4624 = vadd.f32 0.0, %v4623
      %v4625 = vpop.f32.mrb[0].mxu0
      %v4626 = vadd.f32 0.0, %v4625
      %4627 = vmatprep.mubr.f32.mxu0 0.0
      %4628 = vmatmul.mubr.f32.gmra.mrb[0].mxu0 %v531
      %v4629 = vpop.f32.mrb[0].mxu0
      %v4630 = vadd.f32 0.0, %v4629
      %v4631 = vpop.f32.mrb[0].mxu0
      %v4632 = vadd.f32 0.0, %v4631
      %4633 = vmatprep.mubr.f32.mxu0 0.0
      %4634 = vmatmul.mubr.f32.gmra.mrb[0].mxu0 %v534
      %v4635 = vpop.f32.mrb[0].mxu0
      %v4636 = vadd.f32 0.0, %v4635
      %v4637 = vpop.f32.mrb[0].mxu0
      %v4638 = vadd.f32 0.0, %v4637
      %4639 = vmatprep.mubr.f32.mxu0 0.0
      %4640 = vmatmul.mubr.f32.gmra.mrb[0].mxu0 %v537
      %v4641 = vpop.f32.mrb[0].mxu0
      %v4642 = vadd.f32 0.0, %v4641
      %v4643 = vpop.f32.mrb[0].mxu0
      %v4644 = vadd.f32 0.0, %v4643
      %4645 = vmatprep.mubr.f32.mxu0 0.0
      %4646 = vmatmul.mubr.f32.gmra.mrb[0].mxu0 %v540
      %v4647 = vpop.f32.mrb[0].mxu0
      %v4648 = vadd.f32 0.0, %v4647
      %v4649 = vpop.f32.mrb[0].mxu0
      %v4650 = vadd.f32 0.0, %v4649
      %4651 = vmatprep.mubr.f32.mxu0 0.0
      %4652 = vmatmul.mubr.f32.gmra.mrb[0].mxu0 %v543
      %v4653 = vpop.f32.mrb[0].mxu0
      %v4654 = vadd.f32 0.0, %v4653
      %v4655 = vpop.f32.mrb[0].mxu0
      %v4656 = vadd.f32 0.0, %v4655
      %4657 = vmatprep.mubr.f32.mxu0 0.0
      %4658 = vmatmul.mubr.f32.gmra.mrb[0].mxu0 %v546
      %v4659 = vpop.f32.mrb[0].mxu0
      %v4660 = vadd.f32 0.0, %v4659
      %v4661 = vpop.f32.mrb[0].mxu0
      %v4662 = vadd.f32 0.0, %v4661
      %4663 = vmatprep.mubr.f32.mxu0 0.0
      %4664 = vmatmul.mubr.f32.gmra.mrb[0].mxu0 %v549
      %v4665 = vpop.f32.mrb[0].mxu0
      %v4666 = vadd.f32 0.0, %v4665
      %v4667 = vpop.f32.mrb[0].mxu0
      %v4668 = vadd.f32 0.0, %v4667
      %4669 = vmatprep.mubr.f32.mxu0 0.0
      %4670 = vmatmul.mubr.f32.gmra.mrb[0].mxu0 %v552
      %v4671 = vpop.f32.mrb[0].mxu0
      %v4672 = vadd.f32 0.0, %v4671
      %v4673 = vpop.f32.mrb[0].mxu0
      %v4674 = vadd.f32 0.0, %v4673
      %4675 = vmatprep.mubr.f32.mxu0 0.0
      %4676 = vmatmul.mubr.f32.gmra.mrb[0].mxu0 %v555
      %v4677 = vpop.f32.mrb[0].mxu0
      %v4678 = vadd.f32 0.0, %v4677
      %v4679 = vpop.f32.mrb[0].mxu0
      %v4680 = vadd.f32 0.0, %v4679
      %4681 = vmatprep.mubr.f32.mxu0 0.0
      %4682 = vmatmul.mubr.f32.gmra.mrb[0].mxu0 %v558
      %v4683 = vpop.f32.mrb[0].mxu0
      %v4684 = vadd.f32 0.0, %v4683
      %v4685 = vpop.f32.mrb[0].mxu0
      %v4686 = vadd.f32 0.0, %v4685
      %4687 = vmatprep.mubr.f32.mxu0 0.0
      %4688 = vmatmul.mubr.f32.gmra.mrb[0].mxu0 %v561
      %v4689 = vpop.f32.mrb[0].mxu0
      %v4690 = vadd.f32 0.0, %v4689
      %v4691 = vpop.f32.mrb[0].mxu0
      %v4692 = vadd.f32 0.0, %v4691
      %4693 = vmatprep.mubr.f32.mxu0 0.0
      %4694 = vmatmul.mubr.f32.gmra.mrb[0].mxu0 %v564
      %v4695 = vpop.f32.mrb[0].mxu0
      %v4696 = vadd.f32 0.0, %v4695
      %v4697 = vpop.f32.mrb[0].mxu0
      %v4698 = vadd.f32 0.0, %v4697
      %4699 = vmatprep.mubr.f32.mxu0 0.0
      %4700 = vmatmul.mubr.f32.gmra.mrb[0].mxu0 %v567
      %v4701 = vpop.f32.mrb[0].mxu0
      %v4702 = vadd.f32 0.0, %v4701
      %v4703 = vpop.f32.mrb[0].mxu0
      %v4704 = vadd.f32 0.0, %v4703
      %4705 = vmatprep.mubr.f32.mxu0 0.0
      %4706 = vmatmul.mubr.f32.gmra.mrb[0].mxu0 %v570
      %v4707 = vpop.f32.mrb[0].mxu0
      %v4708 = vadd.f32 0.0, %v4707
      %v4709 = vpop.f32.mrb[0].mxu0
      %v4710 = vadd.f32 0.0, %v4709
      %4711 = vmatprep.mubr.f32.mxu0 0.0
      %4712 = vmatmul.mubr.f32.gmra.mrb[0].mxu0 %v573
      %v4713 = vpop.f32.mrb[0].mxu0
      %v4714 = vadd.f32 0.0, %v4713
      %v4715 = vpop.f32.mrb[0].mxu0
      %v4716 = vadd.f32 0.0, %v4715
      %4717 = vmatprep.mubr.f32.mxu0 0.0
      %4718 = vmatmul.mubr.f32.gmra.mrb[0].mxu0 %v576
      %v4719 = vpop.f32.mrb[0].mxu0
      %v4720 = vadd.f32 0.0, %v4719
      %v4721 = vpop.f32.mrb[0].mxu0
      %v4722 = vadd.f32 0.0, %v4721
      %4723 = vmatprep.mubr.f32.mxu0 0.0
      %4724 = vmatmul.mubr.f32.gmra.mrb[0].mxu0 %v579
      %v4725 = vpop.f32.mrb[0].mxu0
      %v4726 = vadd.f32 0.0, %v4725
      %v4727 = vpop.f32.mrb[0].mxu0
      %v4728 = vadd.f32 0.0, %v4727
      %4729 = vmatprep.mubr.f32.mxu0 0.0
      %4730 = vmatmul.mubr.f32.gmra.mrb[0].mxu0 %v582
      %v4731 = vpop.f32.mrb[0].mxu0
      %v4732 = vadd.f32 0.0, %v4731
      %v4733 = vpop.f32.mrb[0].mxu0
      %v4734 = vadd.f32 0.0, %v4733
      %4735 = vmatprep.mubr.f32.mxu0 0.0
      %4736 = vmatmul.mubr.f32.gmra.mrb[0].mxu0 %v585
      %v4737 = vpop.f32.mrb[0].mxu0
      %v4738 = vadd.f32 0.0, %v4737
      %v4739 = vpop.f32.mrb[0].mxu0
      %v4740 = vadd.f32 0.0, %v4739
      %4741 = vmatprep.mubr.f32.mxu0 0.0
      %4742 = vmatmul.mubr.f32.gmra.mrb[0].mxu0 %v588
      %v4743 = vpop.f32.mrb[0].mxu0
      %v4744 = vadd.f32 0.0, %v4743
      %v4745 = vpop.f32.mrb[0].mxu0
      %v4746 = vadd.f32 0.0, %v4745
      %4747 = vmatprep.mubr.f32.mxu0 0.0
      %4748 = vmatmul.mubr.f32.gmra.mrb[0].mxu0 %v591
      %v4749 = vpop.f32.mrb[0].mxu0
      %v4750 = vadd.f32 0.0, %v4749
      %v4751 = vpop.f32.mrb[0].mxu0
      %v4752 = vadd.f32 0.0, %v4751
      %4753 = vmatprep.mubr.f32.mxu0 0.0
      %4754 = vmatmul.mubr.f32.gmra.mrb[0].mxu0 %v594
      %v4755 = vpop.f32.mrb[0].mxu0
      %v4756 = vadd.f32 0.0, %v4755
      %v4757 = vpop.f32.mrb[0].mxu0
      %v4758 = vadd.f32 0.0, %v4757
      %4759 = vmatprep.mubr.f32.mxu0 0.0
      %4760 = vmatmul.mubr.f32.gmra.mrb[0].mxu0 %v597
      %v4761 = vpop.f32.mrb[0].mxu0
      %v4762 = vadd.f32 0.0, %v4761
      %v4763 = vpop.f32.mrb[0].mxu0
      %v4764 = vadd.f32 0.0, %v4763
      %4765 = vmatprep.mubr.f32.mxu0 0.0
      %4766 = vmatmul.mubr.f32.gmra.mrb[0].mxu0 %v600
      %v4767 = vpop.f32.mrb[0].mxu0
      %v4768 = vadd.f32 0.0, %v4767
      %v4769 = vpop.f32.mrb[0].mxu0
      %v4770 = vadd.f32 0.0, %v4769
      %4771 = vmatprep.mubr.f32.mxu0 0.0
      %4772 = vmatmul.mubr.f32.gmra.mrb[0].mxu0 %v603
      %v4773 = vpop.f32.mrb[0].mxu0
      %v4774 = vadd.f32 0.0, %v4773
      %v4775 = vpop.f32.mrb[0].mxu0
      %v4776 = vadd.f32 0.0, %v4775
      %4777 = vmatprep.mubr.f32.mxu0 0.0
      %4778 = vmatmul.mubr.f32.gmra.mrb[0].mxu0 %v606
      %v4779 = vpop.f32.mrb[0].mxu0
      %v4780 = vadd.f32 0.0, %v4779
      %v4781 = vpop.f32.mrb[0].mxu0
      %v4782 = vadd.f32 0.0, %v4781
      %4783 = vmatprep.mubr.f32.mxu0 0.0
      %4784 = vmatmul.mubr.f32.gmra.mrb[0].mxu0 %v609
      %v4785 = vpop.f32.mrb[0].mxu0
      %v4786 = vadd.f32 0.0, %v4785
      %v4787 = vpop.f32.mrb[0].mxu0
      %v4788 = vadd.f32 0.0, %v4787
      %4789 = vmatprep.mubr.f32.mxu0 0.0
      %4790 = vmatmul.mubr.f32.gmra.mrb[0].mxu0 %v612
      %v4791 = vpop.f32.mrb[0].mxu0
      %v4792 = vadd.f32 0.0, %v4791
      %v4793 = vpop.f32.mrb[0].mxu0
      %v4794 = vadd.f32 0.0, %v4793
      %4795 = vmatprep.mubr.f32.mxu0 0.0
      %4796 = vmatmul.mubr.f32.gmra.mrb[0].mxu0 %v615
      %v4797 = vpop.f32.mrb[0].mxu0
      %v4798 = vadd.f32 0.0, %v4797
      %v4799 = vpop.f32.mrb[0].mxu0
      %v4800 = vadd.f32 0.0, %v4799
      %4801 = vmatprep.mubr.f32.mxu0 0.0
      %4802 = vmatmul.mubr.f32.gmra.mrb[0].mxu0 %v618
      %v4803 = vpop.f32.mrb[0].mxu0
      %v4804 = vadd.f32 0.0, %v4803
      %v4805 = vpop.f32.mrb[0].mxu0
      %v4806 = vadd.f32 0.0, %v4805
      %4807 = vmatprep.mubr.f32.mxu0 0.0
      %4808 = vmatmul.mubr.f32.gmra.mrb[0].mxu0 %v621
      %v4809 = vpop.f32.mrb[0].mxu0
      %v4810 = vadd.f32 0.0, %v4809
      %v4811 = vpop.f32.mrb[0].mxu0
      %v4812 = vadd.f32 0.0, %v4811
      %4813 = vdwg.mxu0
      %4814 = vmatprep.subr.mxu0 0.0
      %4815 = vmatpush1.msra.mxu0 %v4004
      %4816 = vmatprep.subr.mxu0 0.0
      %4817 = vmatpush1.msra.mxu0 %v4009
      %4818 = vmatprep.subr.mxu0 0.0
      %4819 = vmatpush1.msra.mxu0 0.0
      %4820 = vmatprep.subr.mxu0 0.0
      %4821 = vmatpush1.msra.mxu0 0.0
      %4822 = vmatprep.subr.mxu0 0.0
      %4823 = vmatpush1.msra.mxu0 0.0
      %4824 = vmatprep.subr.mxu0 0.0
      %4825 = vmatpush1.msra.mxu0 0.0
      %4826 = vmatprep.subr.mxu0 0.0
      %4827 = vmatpush1.msra.mxu0 0.0
      %4828 = vmatprep.subr.mxu0 0.0
      %4829 = vmatpush1.msra.mxu0 0.0
      %4830 = vmatprep.subr.mxu0 0.0
      %4831 = vmatpush1.msra.mxu0 0.0
      %4832 = vmatprep.subr.mxu0 0.0
      %4833 = vmatpush1.msra.mxu0 0.0
      %4834 = vmatprep.subr.mxu0 0.0
      %4835 = vmatpush1.msra.mxu0 0.0
      %4836 = vmatprep.subr.mxu0 0.0
      %4837 = vmatpush1.msra.mxu0 0.0
      %4838 = vmatprep.subr.mxu0 0.0
      %4839 = vmatpush1.msra.mxu0 0.0
      %4840 = vmatprep.subr.mxu0 0.0
      %4841 = vmatpush1.msra.mxu0 0.0
      %4842 = vmatprep.subr.mxu0 0.0
      %4843 = vmatpush1.msra.mxu0 0.0
      %4844 = vmatprep.subr.mxu0 0.0
      %4845 = vmatpush1.msra.mxu0 0.0
      %4846 = vmatprep.subr.mxu0 0.0
      %4847 = vmatpush1.msra.mxu0 0.0
      %4848 = vmatprep.subr.mxu0 0.0
      %4849 = vmatpush1.msra.mxu0 0.0
      %4850 = vmatprep.subr.mxu0 0.0
      %4851 = vmatpush1.msra.mxu0 0.0
      %4852 = vmatprep.subr.mxu0 0.0
      %4853 = vmatpush1.msra.mxu0 0.0
      %4854 = vmatprep.subr.mxu0 0.0
      %4855 = vmatpush1.msra.mxu0 0.0
      %4856 = vmatprep.subr.mxu0 0.0
      %4857 = vmatpush1.msra.mxu0 0.0
      %4858 = vmatprep.subr.mxu0 0.0
      %4859 = vmatpush1.msra.mxu0 0.0
      %4860 = vmatprep.subr.mxu0 0.0
      %4861 = vmatpush1.msra.mxu0 0.0
      %4862 = vmatprep.subr.mxu0 0.0
      %4863 = vmatpush1.msra.mxu0 0.0
      %4864 = vmatprep.subr.mxu0 0.0
      %4865 = vmatpush1.msra.mxu0 0.0
      %4866 = vmatprep.subr.mxu0 0.0
      %4867 = vmatpush1.msra.mxu0 0.0
      %4868 = vmatprep.subr.mxu0 0.0
      %4869 = vmatpush1.msra.mxu0 0.0
      %4870 = vmatprep.subr.mxu0 0.0
      %4871 = vmatpush1.msra.mxu0 0.0
      %4872 = vmatprep.subr.mxu0 0.0
      %4873 = vmatpush1.msra.mxu0 0.0
      %4874 = vmatprep.subr.mxu0 0.0
      %4875 = vmatpush1.msra.mxu0 0.0
      %4876 = vmatprep.subr.mxu0 0.0
      %4877 = vmatpush1.msra.mxu0 0.0
      %4878 = vmatprep.mubr.f32.mxu0 0.0
      %4879 = vmatmul.mubr.f32.gmra.mrb[0].mxu0 %v456
      %v4880 = vpop.f32.mrb[0].mxu0
      %v4881 = vadd.f32 0.0, %v4880
      %v4882 = vpop.f32.mrb[0].mxu0
      %4883 = vmatprep.mubr.f32.mxu0 0.0
      %4884 = vmatmul.mubr.f32.gmra.mrb[0].mxu0 %v459
      %v4885 = vpop.f32.mrb[0].mxu0
      %v4886 = vadd.f32 0.0, %v4885
      %v4887 = vpop.f32.mrb[0].mxu0
      %4888 = vmatprep.mubr.f32.mxu0 0.0
      %4889 = vmatmul.mubr.f32.gmra.mrb[0].mxu0 %v462
      %v4890 = vpop.f32.mrb[0].mxu0
      %v4891 = vadd.f32 0.0, %v4890
      %v4892 = vpop.f32.mrb[0].mxu0
      %4893 = vmatprep.mubr.f32.mxu0 0.0
      %4894 = vmatmul.mubr.f32.gmra.mrb[0].mxu0 %v465
      %v4895 = vpop.f32.mrb[0].mxu0
      %v4896 = vadd.f32 0.0, %v4895
      %v4897 = vpop.f32.mrb[0].mxu0
      %4898 = vmatprep.mubr.f32.mxu0 0.0
      %4899 = vmatmul.mubr.f32.gmra.mrb[0].mxu0 %v468
      %v4900 = vpop.f32.mrb[0].mxu0
      %v4901 = vadd.f32 0.0, %v4900
      %v4902 = vpop.f32.mrb[0].mxu0
      %4903 = vmatprep.mubr.f32.mxu0 0.0
      %4904 = vmatmul.mubr.f32.gmra.mrb[0].mxu0 %v471
      %v4905 = vpop.f32.mrb[0].mxu0
      %v4906 = vadd.f32 0.0, %v4905
      %v4907 = vpop.f32.mrb[0].mxu0
      %4908 = vmatprep.mubr.f32.mxu0 0.0
      %4909 = vmatmul.mubr.f32.gmra.mrb[0].mxu0 %v474
      %v4910 = vpop.f32.mrb[0].mxu0
      %v4911 = vadd.f32 0.0, %v4910
      %v4912 = vpop.f32.mrb[0].mxu0
      %4913 = vmatprep.mubr.f32.mxu0 0.0
      %4914 = vmatmul.mubr.f32.gmra.mrb[0].mxu0 %v477
      %v4915 = vpop.f32.mrb[0].mxu0
      %v4916 = vadd.f32 0.0, %v4915
      %v4917 = vpop.f32.mrb[0].mxu0
      %4918 = vmatprep.mubr.f32.mxu0 0.0
      %4919 = vmatmul.mubr.f32.gmra.mrb[0].mxu0 %v480
      %v4920 = vpop.f32.mrb[0].mxu0
      %v4921 = vadd.f32 0.0, %v4920
      %v4922 = vpop.f32.mrb[0].mxu0
      %4923 = vmatprep.mubr.f32.mxu0 0.0
      %4924 = vmatmul.mubr.f32.gmra.mrb[0].mxu0 %v483
      %v4925 = vpop.f32.mrb[0].mxu0
      %v4926 = vadd.f32 0.0, %v4925
      %v4927 = vpop.f32.mrb[0].mxu0
      %4928 = vmatprep.mubr.f32.mxu0 0.0
      %4929 = vmatmul.mubr.f32.gmra.mrb[0].mxu0 %v486
      %v4930 = vpop.f32.mrb[0].mxu0
      %v4931 = vadd.f32 0.0, %v4930
      %v4932 = vpop.f32.mrb[0].mxu0
      %4933 = vmatprep.mubr.f32.mxu0 0.0
      %4934 = vmatmul.mubr.f32.gmra.mrb[0].mxu0 %v489
      %v4935 = vpop.f32.mrb[0].mxu0
      %v4936 = vadd.f32 0.0, %v4935
      %v4937 = vpop.f32.mrb[0].mxu0
      %4938 = vmatprep.mubr.f32.mxu0 0.0
      %4939 = vmatmul.mubr.f32.gmra.mrb[0].mxu0 %v492
      %v4940 = vpop.f32.mrb[0].mxu0
      %v4941 = vadd.f32 0.0, %v4940
      %v4942 = vpop.f32.mrb[0].mxu0
      %4943 = vmatprep.mubr.f32.mxu0 0.0
      %4944 = vmatmul.mubr.f32.gmra.mrb[0].mxu0 %v495
      %v4945 = vpop.f32.mrb[0].mxu0
      %v4946 = vadd.f32 0.0, %v4945
      %v4947 = vpop.f32.mrb[0].mxu0
      %4948 = vmatprep.mubr.f32.mxu0 0.0
      %4949 = vmatmul.mubr.f32.gmra.mrb[0].mxu0 %v498
      %v4950 = vpop.f32.mrb[0].mxu0
      %v4951 = vadd.f32 0.0, %v4950
      %v4952 = vpop.f32.mrb[0].mxu0
      %4953 = vmatprep.mubr.f32.mxu0 0.0
      %4954 = vmatmul.mubr.f32.gmra.mrb[0].mxu0 %v501
      %v4955 = vpop.f32.mrb[0].mxu0
      %v4956 = vadd.f32 0.0, %v4955
      %v4957 = vpop.f32.mrb[0].mxu0
      %4958 = vmatprep.mubr.f32.mxu0 0.0
      %4959 = vmatmul.mubr.f32.gmra.mrb[0].mxu0 %v504
      %v4960 = vpop.f32.mrb[0].mxu0
      %v4961 = vadd.f32 0.0, %v4960
      %v4962 = vpop.f32.mrb[0].mxu0
      %4963 = vmatprep.mubr.f32.mxu0 0.0
      %4964 = vmatmul.mubr.f32.gmra.mrb[0].mxu0 %v507
      %v4965 = vpop.f32.mrb[0].mxu0
      %v4966 = vadd.f32 0.0, %v4965
      %v4967 = vpop.f32.mrb[0].mxu0
      %4968 = vmatprep.mubr.f32.mxu0 0.0
      %4969 = vmatmul.mubr.f32.gmra.mrb[0].mxu0 %v510
      %v4970 = vpop.f32.mrb[0].mxu0
      %v4971 = vadd.f32 0.0, %v4970
      %v4972 = vpop.f32.mrb[0].mxu0
      %4973 = vmatprep.mubr.f32.mxu0 0.0
      %4974 = vmatmul.mubr.f32.gmra.mrb[0].mxu0 %v513
      %v4975 = vpop.f32.mrb[0].mxu0
      %v4976 = vadd.f32 0.0, %v4975
      %v4977 = vpop.f32.mrb[0].mxu0
      %4978 = vmatprep.mubr.f32.mxu0 0.0
      %4979 = vmatmul.mubr.f32.gmra.mrb[0].mxu0 %v516
      %v4980 = vpop.f32.mrb[0].mxu0
      %v4981 = vadd.f32 0.0, %v4980
      %v4982 = vpop.f32.mrb[0].mxu0
      %4983 = vmatprep.mubr.f32.mxu0 0.0
      %4984 = vmatmul.mubr.f32.gmra.mrb[0].mxu0 %v519
      %v4985 = vpop.f32.mrb[0].mxu0
      %v4986 = vadd.f32 0.0, %v4985
      %v4987 = vpop.f32.mrb[0].mxu0
      %4988 = vmatprep.mubr.f32.mxu0 0.0
      %4989 = vmatmul.mubr.f32.gmra.mrb[0].mxu0 %v522
      %v4990 = vpop.f32.mrb[0].mxu0
      %v4991 = vadd.f32 0.0, %v4990
      %v4992 = vpop.f32.mrb[0].mxu0
      %4993 = vmatprep.mubr.f32.mxu0 0.0
      %4994 = vmatmul.mubr.f32.gmra.mrb[0].mxu0 %v525
      %v4995 = vpop.f32.mrb[0].mxu0
      %v4996 = vadd.f32 0.0, %v4995
      %v4997 = vpop.f32.mrb[0].mxu0
      %4998 = vmatprep.mubr.f32.mxu0 0.0
      %4999 = vmatmul.mubr.f32.gmra.mrb[0].mxu0 %v528
      %v5000 = vpop.f32.mrb[0].mxu0
      %v5001 = vadd.f32 0.0, %v5000
      %v5002 = vpop.f32.mrb[0].mxu0
      %5003 = vmatprep.mubr.f32.mxu0 0.0
      %5004 = vmatmul.mubr.f32.gmra.mrb[0].mxu0 %v531
      %v5005 = vpop.f32.mrb[0].mxu0
      %v5006 = vadd.f32 0.0, %v5005
      %v5007 = vpop.f32.mrb[0].mxu0
      %5008 = vmatprep.mubr.f32.mxu0 0.0
      %5009 = vmatmul.mubr.f32.gmra.mrb[0].mxu0 %v534
      %v5010 = vpop.f32.mrb[0].mxu0
      %v5011 = vadd.f32 0.0, %v5010
      %v5012 = vpop.f32.mrb[0].mxu0
      %5013 = vmatprep.mubr.f32.mxu0 0.0
      %5014 = vmatmul.mubr.f32.gmra.mrb[0].mxu0 %v537
      %v5015 = vpop.f32.mrb[0].mxu0
      %v5016 = vadd.f32 0.0, %v5015
      %v5017 = vpop.f32.mrb[0].mxu0
      %5018 = vmatprep.mubr.f32.mxu0 0.0
      %5019 = vmatmul.mubr.f32.gmra.mrb[0].mxu0 %v540
      %v5020 = vpop.f32.mrb[0].mxu0
      %v5021 = vadd.f32 0.0, %v5020
      %v5022 = vpop.f32.mrb[0].mxu0
      %5023 = vmatprep.mubr.f32.mxu0 0.0
      %5024 = vmatmul.mubr.f32.gmra.mrb[0].mxu0 %v543
      %v5025 = vpop.f32.mrb[0].mxu0
      %v5026 = vadd.f32 0.0, %v5025
      %v5027 = vpop.f32.mrb[0].mxu0
      %5028 = vmatprep.mubr.f32.mxu0 0.0
      %5029 = vmatmul.mubr.f32.gmra.mrb[0].mxu0 %v546
      %v5030 = vpop.f32.mrb[0].mxu0
      %v5031 = vadd.f32 0.0, %v5030
      %v5032 = vpop.f32.mrb[0].mxu0
      %5033 = vmatprep.mubr.f32.mxu0 0.0
      %5034 = vmatmul.mubr.f32.gmra.mrb[0].mxu0 %v549
      %v5035 = vpop.f32.mrb[0].mxu0
      %v5036 = vadd.f32 0.0, %v5035
      %v5037 = vpop.f32.mrb[0].mxu0
      %5038 = vmatprep.mubr.f32.mxu0 0.0
      %5039 = vmatmul.mubr.f32.gmra.mrb[0].mxu0 %v552
      %v5040 = vpop.f32.mrb[0].mxu0
      %v5041 = vadd.f32 0.0, %v5040
      %v5042 = vpop.f32.mrb[0].mxu0
      %5043 = vmatprep.mubr.f32.mxu0 0.0
      %5044 = vmatmul.mubr.f32.gmra.mrb[0].mxu0 %v555
      %v5045 = vpop.f32.mrb[0].mxu0
      %v5046 = vadd.f32 0.0, %v5045
      %v5047 = vpop.f32.mrb[0].mxu0
      %5048 = vmatprep.mubr.f32.mxu0 0.0
      %5049 = vmatmul.mubr.f32.gmra.mrb[0].mxu0 %v558
      %v5050 = vpop.f32.mrb[0].mxu0
      %v5051 = vadd.f32 0.0, %v5050
      %v5052 = vpop.f32.mrb[0].mxu0
      %5053 = vmatprep.mubr.f32.mxu0 0.0
      %5054 = vmatmul.mubr.f32.gmra.mrb[0].mxu0 %v561
      %v5055 = vpop.f32.mrb[0].mxu0
      %v5056 = vadd.f32 0.0, %v5055
      %v5057 = vpop.f32.mrb[0].mxu0
      %5058 = vmatprep.mubr.f32.mxu0 0.0
      %5059 = vmatmul.mubr.f32.gmra.mrb[0].mxu0 %v564
      %v5060 = vpop.f32.mrb[0].mxu0
      %v5061 = vadd.f32 0.0, %v5060
      %v5062 = vpop.f32.mrb[0].mxu0
      %5063 = vmatprep.mubr.f32.mxu0 0.0
      %5064 = vmatmul.mubr.f32.gmra.mrb[0].mxu0 %v567
      %v5065 = vpop.f32.mrb[0].mxu0
      %v5066 = vadd.f32 0.0, %v5065
      %v5067 = vpop.f32.mrb[0].mxu0
      %5068 = vmatprep.mubr.f32.mxu0 0.0
      %5069 = vmatmul.mubr.f32.gmra.mrb[0].mxu0 %v570
      %v5070 = vpop.f32.mrb[0].mxu0
      %v5071 = vadd.f32 0.0, %v5070
      %v5072 = vpop.f32.mrb[0].mxu0
      %5073 = vmatprep.mubr.f32.mxu0 0.0
      %5074 = vmatmul.mubr.f32.gmra.mrb[0].mxu0 %v573
      %v5075 = vpop.f32.mrb[0].mxu0
      %v5076 = vadd.f32 0.0, %v5075
      %v5077 = vpop.f32.mrb[0].mxu0
      %5078 = vmatprep.mubr.f32.mxu0 0.0
      %5079 = vmatmul.mubr.f32.gmra.mrb[0].mxu0 %v576
      %v5080 = vpop.f32.mrb[0].mxu0
      %v5081 = vadd.f32 0.0, %v5080
      %v5082 = vpop.f32.mrb[0].mxu0
      %5083 = vmatprep.mubr.f32.mxu0 0.0
      %5084 = vmatmul.mubr.f32.gmra.mrb[0].mxu0 %v579
      %v5085 = vpop.f32.mrb[0].mxu0
      %v5086 = vadd.f32 0.0, %v5085
      %v5087 = vpop.f32.mrb[0].mxu0
      %5088 = vmatprep.mubr.f32.mxu0 0.0
      %5089 = vmatmul.mubr.f32.gmra.mrb[0].mxu0 %v582
      %v5090 = vpop.f32.mrb[0].mxu0
      %v5091 = vadd.f32 0.0, %v5090
      %v5092 = vpop.f32.mrb[0].mxu0
      %5093 = vmatprep.mubr.f32.mxu0 0.0
      %5094 = vmatmul.mubr.f32.gmra.mrb[0].mxu0 %v585
      %v5095 = vpop.f32.mrb[0].mxu0
      %v5096 = vadd.f32 0.0, %v5095
      %v5097 = vpop.f32.mrb[0].mxu0
      %5098 = vmatprep.mubr.f32.mxu0 0.0
      %5099 = vmatmul.mubr.f32.gmra.mrb[0].mxu0 %v588
      %v5100 = vpop.f32.mrb[0].mxu0
      %v5101 = vadd.f32 0.0, %v5100
      %v5102 = vpop.f32.mrb[0].mxu0
      %5103 = vmatprep.mubr.f32.mxu0 0.0
      %5104 = vmatmul.mubr.f32.gmra.mrb[0].mxu0 %v591
      %v5105 = vpop.f32.mrb[0].mxu0
      %v5106 = vadd.f32 0.0, %v5105
      %v5107 = vpop.f32.mrb[0].mxu0
      %5108 = vmatprep.mubr.f32.mxu0 0.0
      %5109 = vmatmul.mubr.f32.gmra.mrb[0].mxu0 %v594
      %v5110 = vpop.f32.mrb[0].mxu0
      %v5111 = vadd.f32 0.0, %v5110
      %v5112 = vpop.f32.mrb[0].mxu0
      %5113 = vmatprep.mubr.f32.mxu0 0.0
      %5114 = vmatmul.mubr.f32.gmra.mrb[0].mxu0 %v597
      %v5115 = vpop.f32.mrb[0].mxu0
      %v5116 = vadd.f32 0.0, %v5115
      %v5117 = vpop.f32.mrb[0].mxu0
      %5118 = vmatprep.mubr.f32.mxu0 0.0
      %5119 = vmatmul.mubr.f32.gmra.mrb[0].mxu0 %v600
      %v5120 = vpop.f32.mrb[0].mxu0
      %v5121 = vadd.f32 0.0, %v5120
      %v5122 = vpop.f32.mrb[0].mxu0
      %5123 = vmatprep.mubr.f32.mxu0 0.0
      %5124 = vmatmul.mubr.f32.gmra.mrb[0].mxu0 %v603
      %v5125 = vpop.f32.mrb[0].mxu0
      %v5126 = vadd.f32 0.0, %v5125
      %v5127 = vpop.f32.mrb[0].mxu0
      %5128 = vmatprep.mubr.f32.mxu0 0.0
      %5129 = vmatmul.mubr.f32.gmra.mrb[0].mxu0 %v606
      %v5130 = vpop.f32.mrb[0].mxu0
      %v5131 = vadd.f32 0.0, %v5130
      %v5132 = vpop.f32.mrb[0].mxu0
      %5133 = vmatprep.mubr.f32.mxu0 0.0
      %5134 = vmatmul.mubr.f32.gmra.mrb[0].mxu0 %v609
      %v5135 = vpop.f32.mrb[0].mxu0
      %v5136 = vadd.f32 0.0, %v5135
      %v5137 = vpop.f32.mrb[0].mxu0
      %5138 = vmatprep.mubr.f32.mxu0 0.0
      %5139 = vmatmul.mubr.f32.gmra.mrb[0].mxu0 %v612
      %v5140 = vpop.f32.mrb[0].mxu0
      %v5141 = vadd.f32 0.0, %v5140
      %v5142 = vpop.f32.mrb[0].mxu0
      %5143 = vmatprep.mubr.f32.mxu0 0.0
      %5144 = vmatmul.mubr.f32.gmra.mrb[0].mxu0 %v615
      %v5145 = vpop.f32.mrb[0].mxu0
      %v5146 = vadd.f32 0.0, %v5145
      %v5147 = vpop.f32.mrb[0].mxu0
      %5148 = vmatprep.mubr.f32.mxu0 0.0
      %5149 = vmatmul.mubr.f32.gmra.mrb[0].mxu0 %v618
      %v5150 = vpop.f32.mrb[0].mxu0
      %v5151 = vadd.f32 0.0, %v5150
      %v5152 = vpop.f32.mrb[0].mxu0
      %5153 = vmatprep.mubr.f32.mxu0 0.0
      %5154 = vmatmul.mubr.f32.gmra.mrb[0].mxu0 %v621
      %v5155 = vpop.f32.mrb[0].mxu0
      %v5156 = vadd.f32 0.0, %v5155
      %v5157 = vpop.f32.mrb[0].mxu0
      %5158 = vdwg.mxu0
      %s5159 = scalar_lea.vmem [#allocation2], 2240
      %5160 = vst [vmem:[%s5159] sm:$0xff] %v4079
      %5161 = vst [vmem:[%s5159 + $0x8] sm:$0xff] %v4081
      %5162 = vst [vmem:[%s5159 + $0x10] sm:$0xff] %v4480
      %5163 = vst [vmem:[%s5159 + $0x18] sm:$0xff] %v4482
      %5164 = vst [vmem:[%s5159 + $0x20] sm:$0xff] %v4881
      %5165 = vst [vmem:[%s5159 + $0x28] sm:$0xff] %v4085
      %5166 = vst [vmem:[%s5159 + $0x30] sm:$0xff] %v4087
      %5167 = vst [vmem:[%s5159 + $0x38] sm:$0xff] %v4486
      %5168 = vst [vmem:[%s5159 + $0x40] sm:$0xff] %v4488
      %5169 = vst [vmem:[%s5159 + $0x48] sm:$0xff] %v4886
      %5170 = vst [vmem:[%s5159 + $0x50] sm:$0xff] %v4091
      %5171 = vst [vmem:[%s5159 + $0x58] sm:$0xff] %v4093
      %5172 = vst [vmem:[%s5159 + $0x60] sm:$0xff] %v4492
      %5173 = vst [vmem:[%s5159 + $0x68] sm:$0xff] %v4494
      %5174 = vst [vmem:[%s5159 + $0x70] sm:$0xff] %v4891
      %5175 = vst [vmem:[%s5159 + $0x78] sm:$0xff] %v4097
      %5176 = vst [vmem:[%s5159 + $0x80] sm:$0xff] %v4099
      %5177 = vst [vmem:[%s5159 + $0x88] sm:$0xff] %v4498
      %5178 = vst [vmem:[%s5159 + $0x90] sm:$0xff] %v4500
      %5179 = vst [vmem:[%s5159 + $0x98] sm:$0xff] %v4896
      %5180 = vst [vmem:[%s5159 + $0xa0] sm:$0xff] %v4103
      %5181 = vst [vmem:[%s5159 + $0xa8] sm:$0xff] %v4105
      %5182 = vst [vmem:[%s5159 + $0xb0] sm:$0xff] %v4504
      %5183 = vst [vmem:[%s5159 + $0xb8] sm:$0xff] %v4506
      %5184 = vst [vmem:[%s5159 + $0xc0] sm:$0xff] %v4901
      %5185 = vst [vmem:[%s5159 + $0xc8] sm:$0xff] %v4109
      %5186 = vst [vmem:[%s5159 + $0xd0] sm:$0xff] %v4111
      %5187 = vst [vmem:[%s5159 + $0xd8] sm:$0xff] %v4510
      %5188 = vst [vmem:[%s5159 + $0xe0] sm:$0xff] %v4512
      %5189 = vst [vmem:[%s5159 + $0xe8] sm:$0xff] %v4906
      %5190 = vst [vmem:[%s5159 + $0xf0] sm:$0xff] %v4115
      %5191 = vst [vmem:[%s5159 + $0xf8] sm:$0xff] %v4117
      %5192 = vst [vmem:[%s5159 + $0x100] sm:$0xff] %v4516
      %5193 = vst [vmem:[%s5159 + $0x108] sm:$0xff] %v4518
      %5194 = vst [vmem:[%s5159 + $0x110] sm:$0xff] %v4911
      %5195 = vst [vmem:[%s5159 + $0x118] sm:$0xff] %v4121
      %5196 = vst [vmem:[%s5159 + $0x120] sm:$0xff] %v4123
      %5197 = vst [vmem:[%s5159 + $0x128] sm:$0xff] %v4522
      %5198 = vst [vmem:[%s5159 + $0x130] sm:$0xff] %v4524
      %5199 = vst [vmem:[%s5159 + $0x138] sm:$0xff] %v4916
      %5200 = vst [vmem:[%s5159 + $0x140] sm:$0xff] %v4127
      %5201 = vst [vmem:[%s5159 + $0x148] sm:$0xff] %v4129
      %5202 = vst [vmem:[%s5159 + $0x150] sm:$0xff] %v4528
      %5203 = vst [vmem:[%s5159 + $0x158] sm:$0xff] %v4530
      %5204 = vst [vmem:[%s5159 + $0x160] sm:$0xff] %v4921
      %5205 = vst [vmem:[%s5159 + $0x168] sm:$0xff] %v4133
      %5206 = vst [vmem:[%s5159 + $0x170] sm:$0xff] %v4135
      %5207 = vst [vmem:[%s5159 + $0x178] sm:$0xff] %v4534
      %5208 = vst [vmem:[%s5159 + $0x180] sm:$0xff] %v4536
      %5209 = vst [vmem:[%s5159 + $0x188] sm:$0xff] %v4926
      %5210 = vst [vmem:[%s5159 + $0x190] sm:$0xff] %v4139
      %5211 = vst [vmem:[%s5159 + $0x198] sm:$0xff] %v4141
      %5212 = vst [vmem:[%s5159 + $0x1a0] sm:$0xff] %v4540
      %5213 = vst [vmem:[%s5159 + $0x1a8] sm:$0xff] %v4542
      %5214 = vst [vmem:[%s5159 + $0x1b0] sm:$0xff] %v4931
      %5215 = vst [vmem:[%s5159 + $0x1b8] sm:$0xff] %v4145
      %5216 = vst [vmem:[%s5159 + $0x1c0] sm:$0xff] %v4147
      %5217 = vst [vmem:[%s5159 + $0x1c8] sm:$0xff] %v4546
      %5218 = vst [vmem:[%s5159 + $0x1d0] sm:$0xff] %v4548
      %5219 = vst [vmem:[%s5159 + $0x1d8] sm:$0xff] %v4936
      %5220 = vst [vmem:[%s5159 + $0x1e0] sm:$0xff] %v4151
      %5221 = vst [vmem:[%s5159 + $0x1e8] sm:$0xff] %v4153
      %5222 = vst [vmem:[%s5159 + $0x1f0] sm:$0xff] %v4552
      %5223 = vst [vmem:[%s5159 + $0x1f8] sm:$0xff] %v4554
      %5224 = vst [vmem:[%s5159 + $0x200] sm:$0xff] %v4941
      %5225 = vst [vmem:[%s5159 + $0x208] sm:$0xff] %v4157
      %5226 = vst [vmem:[%s5159 + $0x210] sm:$0xff] %v4159
      %5227 = vst [vmem:[%s5159 + $0x218] sm:$0xff] %v4558
      %5228 = vst [vmem:[%s5159 + $0x220] sm:$0xff] %v4560
      %5229 = vst [vmem:[%s5159 + $0x228] sm:$0xff] %v4946
      %5230 = vst [vmem:[%s5159 + $0x230] sm:$0xff] %v4163
      %5231 = vst [vmem:[%s5159 + $0x238] sm:$0xff] %v4165
      %5232 = vst [vmem:[%s5159 + $0x240] sm:$0xff] %v4564
      %5233 = vst [vmem:[%s5159 + $0x248] sm:$0xff] %v4566
      %5234 = vst [vmem:[%s5159 + $0x250] sm:$0xff] %v4951
      %5235 = vst [vmem:[%s5159 + $0x258] sm:$0xff] %v4169
      %5236 = vst [vmem:[%s5159 + $0x260] sm:$0xff] %v4171
      %5237 = vst [vmem:[%s5159 + $0x268] sm:$0xff] %v4570
      %5238 = vst [vmem:[%s5159 + $0x270] sm:$0xff] %v4572
      %5239 = vst [vmem:[%s5159 + $0x278] sm:$0xff] %v4956
      %5240 = vst [vmem:[%s5159 + $0x280] sm:$0xff] %v4175
      %5241 = vst [vmem:[%s5159 + $0x288] sm:$0xff] %v4177
      %5242 = vst [vmem:[%s5159 + $0x290] sm:$0xff] %v4576
      %5243 = vst [vmem:[%s5159 + $0x298] sm:$0xff] %v4578
      %5244 = vst [vmem:[%s5159 + $0x2a0] sm:$0xff] %v4961
      %5245 = vst [vmem:[%s5159 + $0x2a8] sm:$0xff] %v4181
      %5246 = vst [vmem:[%s5159 + $0x2b0] sm:$0xff] %v4183
      %5247 = vst [vmem:[%s5159 + $0x2b8] sm:$0xff] %v4582
      %5248 = vst [vmem:[%s5159 + $0x2c0] sm:$0xff] %v4584
      %5249 = vst [vmem:[%s5159 + $0x2c8] sm:$0xff] %v4966
      %5250 = vst [vmem:[%s5159 + $0x2d0] sm:$0xff] %v4187
      %5251 = vst [vmem:[%s5159 + $0x2d8] sm:$0xff] %v4189
      %5252 = vst [vmem:[%s5159 + $0x2e0] sm:$0xff] %v4588
      %5253 = vst [vmem:[%s5159 + $0x2e8] sm:$0xff] %v4590
      %5254 = vst [vmem:[%s5159 + $0x2f0] sm:$0xff] %v4971
      %5255 = vst [vmem:[%s5159 + $0x2f8] sm:$0xff] %v4193
      %5256 = vst [vmem:[%s5159 + $0x300] sm:$0xff] %v4195
      %5257 = vst [vmem:[%s5159 + $0x308] sm:$0xff] %v4594
      %5258 = vst [vmem:[%s5159 + $0x310] sm:$0xff] %v4596
      %5259 = vst [vmem:[%s5159 + $0x318] sm:$0xff] %v4976
      %5260 = vst [vmem:[%s5159 + $0x320] sm:$0xff] %v4199
      %5261 = vst [vmem:[%s5159 + $0x328] sm:$0xff] %v4201
      %5262 = vst [vmem:[%s5159 + $0x330] sm:$0xff] %v4600
      %5263 = vst [vmem:[%s5159 + $0x338] sm:$0xff] %v4602
      %5264 = vst [vmem:[%s5159 + $0x340] sm:$0xff] %v4981
      %5265 = vst [vmem:[%s5159 + $0x348] sm:$0xff] %v4205
      %5266 = vst [vmem:[%s5159 + $0x350] sm:$0xff] %v4207
      %5267 = vst [vmem:[%s5159 + $0x358] sm:$0xff] %v4606
      %5268 = vst [vmem:[%s5159 + $0x360] sm:$0xff] %v4608
      %5269 = vst [vmem:[%s5159 + $0x368] sm:$0xff] %v4986
      %5270 = vst [vmem:[%s5159 + $0x370] sm:$0xff] %v4211
      %5271 = vst [vmem:[%s5159 + $0x378] sm:$0xff] %v4213
      %5272 = vst [vmem:[%s5159 + $0x380] sm:$0xff] %v4612
      %5273 = vst [vmem:[%s5159 + $0x388] sm:$0xff] %v4614
      %5274 = vst [vmem:[%s5159 + $0x390] sm:$0xff] %v4991
      %5275 = vst [vmem:[%s5159 + $0x398] sm:$0xff] %v4217
      %5276 = vst [vmem:[%s5159 + $0x3a0] sm:$0xff] %v4219
      %5277 = vst [vmem:[%s5159 + $0x3a8] sm:$0xff] %v4618
      %5278 = vst [vmem:[%s5159 + $0x3b0] sm:$0xff] %v4620
      %5279 = vst [vmem:[%s5159 + $0x3b8] sm:$0xff] %v4996
      %5280 = vst [vmem:[%s5159 + $0x3c0] sm:$0xff] %v4223
      %5281 = vst [vmem:[%s5159 + $0x3c8] sm:$0xff] %v4225
      %5282 = vst [vmem:[%s5159 + $0x3d0] sm:$0xff] %v4624
      %5283 = vst [vmem:[%s5159 + $0x3d8] sm:$0xff] %v4626
      %5284 = vst [vmem:[%s5159 + $0x3e0] sm:$0xff] %v5001
      %5285 = vst [vmem:[%s5159 + $0x3e8] sm:$0xff] %v4229
      %5286 = vst [vmem:[%s5159 + $0x3f0] sm:$0xff] %v4231
      %5287 = vst [vmem:[%s5159 + $0x3f8] sm:$0xff] %v4630
      %5288 = vst [vmem:[%s5159 + $0x400] sm:$0xff] %v4632
      %5289 = vst [vmem:[%s5159 + $0x408] sm:$0xff] %v5006
      %5290 = vst [vmem:[%s5159 + $0x410] sm:$0xff] %v4235
      %5291 = vst [vmem:[%s5159 + $0x418] sm:$0xff] %v4237
      %5292 = vst [vmem:[%s5159 + $0x420] sm:$0xff] %v4636
      %5293 = vst [vmem:[%s5159 + $0x428] sm:$0xff] %v4638
      %5294 = vst [vmem:[%s5159 + $0x430] sm:$0xff] %v5011
      %5295 = vst [vmem:[%s5159 + $0x438] sm:$0xff] %v4241
      %5296 = vst [vmem:[%s5159 + $0x440] sm:$0xff] %v4243
      %5297 = vst [vmem:[%s5159 + $0x448] sm:$0xff] %v4642
      %5298 = vst [vmem:[%s5159 + $0x450] sm:$0xff] %v4644
      %5299 = vst [vmem:[%s5159 + $0x458] sm:$0xff] %v5016
      %5300 = vst [vmem:[%s5159 + $0x460] sm:$0xff] %v4247
      %5301 = vst [vmem:[%s5159 + $0x468] sm:$0xff] %v4249
      %5302 = vst [vmem:[%s5159 + $0x470] sm:$0xff] %v4648
      %5303 = vst [vmem:[%s5159 + $0x478] sm:$0xff] %v4650
      %5304 = vst [vmem:[%s5159 + $0x480] sm:$0xff] %v5021
      %5305 = vst [vmem:[%s5159 + $0x488] sm:$0xff] %v4253
      %5306 = vst [vmem:[%s5159 + $0x490] sm:$0xff] %v4255
      %5307 = vst [vmem:[%s5159 + $0x498] sm:$0xff] %v4654
      %5308 = vst [vmem:[%s5159 + $0x4a0] sm:$0xff] %v4656
      %5309 = vst [vmem:[%s5159 + $0x4a8] sm:$0xff] %v5026
      %5310 = vst [vmem:[%s5159 + $0x4b0] sm:$0xff] %v4259
      %5311 = vst [vmem:[%s5159 + $0x4b8] sm:$0xff] %v4261
      %5312 = vst [vmem:[%s5159 + $0x4c0] sm:$0xff] %v4660
      %5313 = vst [vmem:[%s5159 + $0x4c8] sm:$0xff] %v4662
      %5314 = vst [vmem:[%s5159 + $0x4d0] sm:$0xff] %v5031
      %5315 = vst [vmem:[%s5159 + $0x4d8] sm:$0xff] %v4265
      %5316 = vst [vmem:[%s5159 + $0x4e0] sm:$0xff] %v4267
      %5317 = vst [vmem:[%s5159 + $0x4e8] sm:$0xff] %v4666
      %5318 = vst [vmem:[%s5159 + $0x4f0] sm:$0xff] %v4668
      %5319 = vst [vmem:[%s5159 + $0x4f8] sm:$0xff] %v5036
      %5320 = vst [vmem:[%s5159 + $0x500] sm:$0xff] %v4271
      %5321 = vst [vmem:[%s5159 + $0x508] sm:$0xff] %v4273
      %5322 = vst [vmem:[%s5159 + $0x510] sm:$0xff] %v4672
      %5323 = vst [vmem:[%s5159 + $0x518] sm:$0xff] %v4674
      %5324 = vst [vmem:[%s5159 + $0x520] sm:$0xff] %v5041
      %5325 = vst [vmem:[%s5159 + $0x528] sm:$0xff] %v4277
      %5326 = vst [vmem:[%s5159 + $0x530] sm:$0xff] %v4279
      %5327 = vst [vmem:[%s5159 + $0x538] sm:$0xff] %v4678
      %5328 = vst [vmem:[%s5159 + $0x540] sm:$0xff] %v4680
      %5329 = vst [vmem:[%s5159 + $0x548] sm:$0xff] %v5046
      %5330 = vst [vmem:[%s5159 + $0x550] sm:$0xff] %v4283
      %5331 = vst [vmem:[%s5159 + $0x558] sm:$0xff] %v4285
      %5332 = vst [vmem:[%s5159 + $0x560] sm:$0xff] %v4684
      %5333 = vst [vmem:[%s5159 + $0x568] sm:$0xff] %v4686
      %5334 = vst [vmem:[%s5159 + $0x570] sm:$0xff] %v5051
      %5335 = vst [vmem:[%s5159 + $0x578] sm:$0xff] %v4289
      %5336 = vst [vmem:[%s5159 + $0x580] sm:$0xff] %v4291
      %5337 = vst [vmem:[%s5159 + $0x588] sm:$0xff] %v4690
      %5338 = vst [vmem:[%s5159 + $0x590] sm:$0xff] %v4692
      %5339 = vst [vmem:[%s5159 + $0x598] sm:$0xff] %v5056
      %5340 = vst [vmem:[%s5159 + $0x5a0] sm:$0xff] %v4295
      %5341 = vst [vmem:[%s5159 + $0x5a8] sm:$0xff] %v4297
      %5342 = vst [vmem:[%s5159 + $0x5b0] sm:$0xff] %v4696
      %5343 = vst [vmem:[%s5159 + $0x5b8] sm:$0xff] %v4698
      %5344 = vst [vmem:[%s5159 + $0x5c0] sm:$0xff] %v5061
      %5345 = vst [vmem:[%s5159 + $0x5c8] sm:$0xff] %v4301
      %5346 = vst [vmem:[%s5159 + $0x5d0] sm:$0xff] %v4303
      %5347 = vst [vmem:[%s5159 + $0x5d8] sm:$0xff] %v4702
      %5348 = vst [vmem:[%s5159 + $0x5e0] sm:$0xff] %v4704
      %5349 = vst [vmem:[%s5159 + $0x5e8] sm:$0xff] %v5066
      %5350 = vst [vmem:[%s5159 + $0x5f0] sm:$0xff] %v4307
      %5351 = vst [vmem:[%s5159 + $0x5f8] sm:$0xff] %v4309
      %5352 = vst [vmem:[%s5159 + $0x600] sm:$0xff] %v4708
      %5353 = vst [vmem:[%s5159 + $0x608] sm:$0xff] %v4710
      %5354 = vst [vmem:[%s5159 + $0x610] sm:$0xff] %v5071
      %5355 = vst [vmem:[%s5159 + $0x618] sm:$0xff] %v4313
      %5356 = vst [vmem:[%s5159 + $0x620] sm:$0xff] %v4315
      %5357 = vst [vmem:[%s5159 + $0x628] sm:$0xff] %v4714
      %5358 = vst [vmem:[%s5159 + $0x630] sm:$0xff] %v4716
      %5359 = vst [vmem:[%s5159 + $0x638] sm:$0xff] %v5076
      %5360 = vst [vmem:[%s5159 + $0x640] sm:$0xff] %v4319
      %5361 = vst [vmem:[%s5159 + $0x648] sm:$0xff] %v4321
      %5362 = vst [vmem:[%s5159 + $0x650] sm:$0xff] %v4720
      %5363 = vst [vmem:[%s5159 + $0x658] sm:$0xff] %v4722
      %5364 = vst [vmem:[%s5159 + $0x660] sm:$0xff] %v5081
      %5365 = vst [vmem:[%s5159 + $0x668] sm:$0xff] %v4325
      %5366 = vst [vmem:[%s5159 + $0x670] sm:$0xff] %v4327
      %5367 = vst [vmem:[%s5159 + $0x678] sm:$0xff] %v4726
      %5368 = vst [vmem:[%s5159 + $0x680] sm:$0xff] %v4728
      %5369 = vst [vmem:[%s5159 + $0x688] sm:$0xff] %v5086
      %5370 = vst [vmem:[%s5159 + $0x690] sm:$0xff] %v4331
      %5371 = vst [vmem:[%s5159 + $0x698] sm:$0xff] %v4333
      %5372 = vst [vmem:[%s5159 + $0x6a0] sm:$0xff] %v4732
      %5373 = vst [vmem:[%s5159 + $0x6a8] sm:$0xff] %v4734
      %5374 = vst [vmem:[%s5159 + $0x6b0] sm:$0xff] %v5091
      %5375 = vst [vmem:[%s5159 + $0x6b8] sm:$0xff] %v4337
      %5376 = vst [vmem:[%s5159 + $0x6c0] sm:$0xff] %v4339
      %5377 = vst [vmem:[%s5159 + $0x6c8] sm:$0xff] %v4738
      %5378 = vst [vmem:[%s5159 + $0x6d0] sm:$0xff] %v4740
      %5379 = vst [vmem:[%s5159 + $0x6d8] sm:$0xff] %v5096
      %5380 = vst [vmem:[%s5159 + $0x6e0] sm:$0xff] %v4343
      %5381 = vst [vmem:[%s5159 + $0x6e8] sm:$0xff] %v4345
      %5382 = vst [vmem:[%s5159 + $0x6f0] sm:$0xff] %v4744
      %5383 = vst [vmem:[%s5159 + $0x6f8] sm:$0xff] %v4746
      %5384 = vst [vmem:[%s5159 + $0x700] sm:$0xff] %v5101
      %5385 = vst [vmem:[%s5159 + $0x708] sm:$0xff] %v4349
      %5386 = vst [vmem:[%s5159 + $0x710] sm:$0xff] %v4351
      %5387 = vst [vmem:[%s5159 + $0x718] sm:$0xff] %v4750
      %5388 = vst [vmem:[%s5159 + $0x720] sm:$0xff] %v4752
      %5389 = vst [vmem:[%s5159 + $0x728] sm:$0xff] %v5106
      %5390 = vst [vmem:[%s5159 + $0x730] sm:$0xff] %v4355
      %5391 = vst [vmem:[%s5159 + $0x738] sm:$0xff] %v4357
      %5392 = vst [vmem:[%s5159 + $0x740] sm:$0xff] %v4756
      %5393 = vst [vmem:[%s5159 + $0x748] sm:$0xff] %v4758
      %5394 = vst [vmem:[%s5159 + $0x750] sm:$0xff] %v5111
      %5395 = vst [vmem:[%s5159 + $0x758] sm:$0xff] %v4361
      %5396 = vst [vmem:[%s5159 + $0x760] sm:$0xff] %v4363
      %5397 = vst [vmem:[%s5159 + $0x768] sm:$0xff] %v4762
      %5398 = vst [vmem:[%s5159 + $0x770] sm:$0xff] %v4764
      %5399 = vst [vmem:[%s5159 + $0x778] sm:$0xff] %v5116
      %5400 = vst [vmem:[%s5159 + $0x780] sm:$0xff] %v4367
      %5401 = vst [vmem:[%s5159 + $0x788] sm:$0xff] %v4369
      %5402 = vst [vmem:[%s5159 + $0x790] sm:$0xff] %v4768
      %5403 = vst [vmem:[%s5159 + $0x798] sm:$0xff] %v4770
      %5404 = vst [vmem:[%s5159 + $0x7a0] sm:$0xff] %v5121
      %5405 = vst [vmem:[%s5159 + $0x7a8] sm:$0xff] %v4373
      %5406 = vst [vmem:[%s5159 + $0x7b0] sm:$0xff] %v4375
      %5407 = vst [vmem:[%s5159 + $0x7b8] sm:$0xff] %v4774
      %5408 = vst [vmem:[%s5159 + $0x7c0] sm:$0xff] %v4776
      %5409 = vst [vmem:[%s5159 + $0x7c8] sm:$0xff] %v5126
      %5410 = vst [vmem:[%s5159 + $0x7d0] sm:$0xff] %v4379
      %5411 = vst [vmem:[%s5159 + $0x7d8] sm:$0xff] %v4381
      %5412 = vst [vmem:[%s5159 + $0x7e0] sm:$0xff] %v4780
      %5413 = vst [vmem:[%s5159 + $0x7e8] sm:$0xff] %v4782
      %5414 = vst [vmem:[%s5159 + $0x7f0] sm:$0xff] %v5131
      %5415 = vst [vmem:[%s5159 + $0x7f8] sm:$0xff] %v4385
      %5416 = vst [vmem:[%s5159 + $0x800] sm:$0xff] %v4387
      %5417 = vst [vmem:[%s5159 + $0x808] sm:$0xff] %v4786
      %5418 = vst [vmem:[%s5159 + $0x810] sm:$0xff] %v4788
      %5419 = vst [vmem:[%s5159 + $0x818] sm:$0xff] %v5136
      %5420 = vst [vmem:[%s5159 + $0x820] sm:$0xff] %v4391
      %5421 = vst [vmem:[%s5159 + $0x828] sm:$0xff] %v4393
      %5422 = vst [vmem:[%s5159 + $0x830] sm:$0xff] %v4792
      %5423 = vst [vmem:[%s5159 + $0x838] sm:$0xff] %v4794
      %5424 = vst [vmem:[%s5159 + $0x840] sm:$0xff] %v5141
      %5425 = vst [vmem:[%s5159 + $0x848] sm:$0xff] %v4397
      %5426 = vst [vmem:[%s5159 + $0x850] sm:$0xff] %v4399
      %5427 = vst [vmem:[%s5159 + $0x858] sm:$0xff] %v4798
      %5428 = vst [vmem:[%s5159 + $0x860] sm:$0xff] %v4800
      %5429 = vst [vmem:[%s5159 + $0x868] sm:$0xff] %v5146
      %5430 = vst [vmem:[%s5159 + $0x870] sm:$0xff] %v4403
      %5431 = vst [vmem:[%s5159 + $0x878] sm:$0xff] %v4405
      %5432 = vst [vmem:[%s5159 + $0x880] sm:$0xff] %v4804
      %5433 = vst [vmem:[%s5159 + $0x888] sm:$0xff] %v4806
      %5434 = vst [vmem:[%s5159 + $0x890] sm:$0xff] %v5151
      %5435 = vst [vmem:[%s5159 + $0x898] sm:$0xff] %v4409
      %5436 = vst [vmem:[%s5159 + $0x8a0] sm:$0xff] %v4411
      %5437 = vst [vmem:[%s5159 + $0x8a8] sm:$0xff] %v4810
      %5438 = vst [vmem:[%s5159 + $0x8b0] sm:$0xff] %v4812
      %5439 = vst [vmem:[%s5159 + $0x8b8] sm:$0xff] %v5156
      %s5440 = smul.addr %s2065, 128
      %s5441 = scalar_lea.hbm %s6, %s5440
      %s5442 = scalar_lea.sflag [#allocation4], 4
      // Predicated region
      $region53: #{tpu_custom_call.1} parent=35 // pred_check
        _
      $region54: #{tpu_custom_call.1} parent=35 // pred_check_branch
        %5444 = sbr.rel target = $region56
      $region55: #{tpu_custom_call.1} parent=35 // pred_region
        %5445 = sst [smem:[#allocation7]] [#allocation16]
        %5446 = sst [smem:[#allocation8]] [#allocation15]
      $region56: #{tpu_custom_call.1} parent=35 // pred_fallthru
        _
      %5448 = shalt.err (0)
      %s5450 = sshll.u32 %s5159, 4
      %s5451 = int_to_ptr.vmem [resolvable:$true] %s5450
      %5453 = dma.vmem_to_hbm [thread:$0]  %s5451, 35840, %s5441, %s5442
      %v5454 = vld [vmem:[%s145] sm:$0xff]
      %v5455 = vld [vmem:[%s145 + $0x8] sm:$0xff]
      %v5457 = vsel %vm219, %v5454, 0
      %v5460 = vsel %vm219, %v5455, 0
      %5462 = vmatprep.subr.mxu0 %v208
      %5463 = vmatpush1.msra.mxu0 %v207
      %5464 = vmatprep.subr.mxu0 %v213
      %5465 = vmatpush1.msra.mxu0 %v212
      %5466 = vmatprep.subr.mxu0 0.0
      %5467 = vmatpush1.msra.mxu0 0.0
      %5468 = vmatprep.subr.mxu0 0.0
      %5469 = vmatpush1.msra.mxu0 0.0
      %5470 = vmatprep.subr.mxu0 0.0
      %5471 = vmatpush1.msra.mxu0 0.0
      %5472 = vmatprep.subr.mxu0 0.0
      %5473 = vmatpush1.msra.mxu0 0.0
      %5474 = vmatprep.subr.mxu0 0.0
      %5475 = vmatpush1.msra.mxu0 0.0
      %5476 = vmatprep.subr.mxu0 0.0
      %5477 = vmatpush1.msra.mxu0 0.0
      %5478 = vmatprep.subr.mxu0 0.0
      %5479 = vmatpush1.msra.mxu0 0.0
      %5480 = vmatprep.subr.mxu0 0.0
      %5481 = vmatpush1.msra.mxu0 0.0
      %5482 = vmatprep.subr.mxu0 0.0
      %5483 = vmatpush1.msra.mxu0 0.0
      %5484 = vmatprep.subr.mxu0 0.0
      %5485 = vmatpush1.msra.mxu0 0.0
      %5486 = vmatprep.subr.mxu0 0.0
      %5487 = vmatpush1.msra.mxu0 0.0
      %5488 = vmatprep.subr.mxu0 0.0
      %5489 = vmatpush1.msra.mxu0 0.0
      %5490 = vmatprep.subr.mxu0 0.0
      %5491 = vmatpush1.msra.mxu0 0.0
      %5492 = vmatprep.subr.mxu0 0.0
      %5493 = vmatpush1.msra.mxu0 0.0
      %5494 = vmatprep.subr.mxu0 0.0
      %5495 = vmatpush1.msra.mxu0 0.0
      %5496 = vmatprep.subr.mxu0 0.0
      %5497 = vmatpush1.msra.mxu0 0.0
      %5498 = vmatprep.subr.mxu0 0.0
      %5499 = vmatpush1.msra.mxu0 0.0
      %5500 = vmatprep.subr.mxu0 0.0
      %5501 = vmatpush1.msra.mxu0 0.0
      %5502 = vmatprep.subr.mxu0 0.0
      %5503 = vmatpush1.msra.mxu0 0.0
      %5504 = vmatprep.subr.mxu0 0.0
      %5505 = vmatpush1.msra.mxu0 0.0
      %5506 = vmatprep.subr.mxu0 0.0
      %5507 = vmatpush1.msra.mxu0 0.0
      %5508 = vmatprep.subr.mxu0 0.0
      %5509 = vmatpush1.msra.mxu0 0.0
      %5510 = vmatprep.subr.mxu0 0.0
      %5511 = vmatpush1.msra.mxu0 0.0
      %5512 = vmatprep.subr.mxu0 0.0
      %5513 = vmatpush1.msra.mxu0 0.0
      %5514 = vmatprep.subr.mxu0 0.0
      %5515 = vmatpush1.msra.mxu0 0.0
      %5516 = vmatprep.subr.mxu0 0.0
      %5517 = vmatpush1.msra.mxu0 0.0
      %5518 = vmatprep.subr.mxu0 0.0
      %5519 = vmatpush1.msra.mxu0 0.0
      %5520 = vmatprep.subr.mxu0 0.0
      %5521 = vmatpush1.msra.mxu0 0.0
      %5522 = vmatprep.subr.mxu0 0.0
      %5523 = vmatpush1.msra.mxu0 0.0
      %5524 = vmatprep.subr.mxu0 0.0
      %5525 = vmatpush1.msra.mxu0 0.0
      %5526 = vmatprep.mubr.f32.mxu0 0.0
      %5527 = vmatmul.mubr.f32.gmra.mrb[0].mxu0 %v5457
      %v5528 = vpop.f32.mrb[0].mxu0
      %v5529 = vadd.f32 0.0, %v5528
      %v5530 = vpop.f32.mrb[0].mxu0
      %v5531 = vadd.f32 0.0, %v5530
      %5532 = vmatprep.mubr.f32.mxu0 0.0
      %5533 = vmatmul.mubr.f32.gmra.mrb[0].mxu0 %v5460
      %v5534 = vpop.f32.mrb[0].mxu0
      %v5535 = vadd.f32 0.0, %v5534
      %v5536 = vpop.f32.mrb[0].mxu0
      %v5537 = vadd.f32 0.0, %v5536
      %5538 = vdwg.mxu0
      %5539 = vmatprep.subr.mxu0 %v210
      %5540 = vmatpush1.msra.mxu0 %v209
      %5541 = vmatprep.subr.mxu0 %v215
      %5542 = vmatpush1.msra.mxu0 %v214
      %5543 = vmatprep.subr.mxu0 0.0
      %5544 = vmatpush1.msra.mxu0 0.0
      %5545 = vmatprep.subr.mxu0 0.0
      %5546 = vmatpush1.msra.mxu0 0.0
      %5547 = vmatprep.subr.mxu0 0.0
      %5548 = vmatpush1.msra.mxu0 0.0
      %5549 = vmatprep.subr.mxu0 0.0
      %5550 = vmatpush1.msra.mxu0 0.0
      %5551 = vmatprep.subr.mxu0 0.0
      %5552 = vmatpush1.msra.mxu0 0.0
      %5553 = vmatprep.subr.mxu0 0.0
      %5554 = vmatpush1.msra.mxu0 0.0
      %5555 = vmatprep.subr.mxu0 0.0
      %5556 = vmatpush1.msra.mxu0 0.0
      %5557 = vmatprep.subr.mxu0 0.0
      %5558 = vmatpush1.msra.mxu0 0.0
      %5559 = vmatprep.subr.mxu0 0.0
      %5560 = vmatpush1.msra.mxu0 0.0
      %5561 = vmatprep.subr.mxu0 0.0
      %5562 = vmatpush1.msra.mxu0 0.0
      %5563 = vmatprep.subr.mxu0 0.0
      %5564 = vmatpush1.msra.mxu0 0.0
      %5565 = vmatprep.subr.mxu0 0.0
      %5566 = vmatpush1.msra.mxu0 0.0
      %5567 = vmatprep.subr.mxu0 0.0
      %5568 = vmatpush1.msra.mxu0 0.0
      %5569 = vmatprep.subr.mxu0 0.0
      %5570 = vmatpush1.msra.mxu0 0.0
      %5571 = vmatprep.subr.mxu0 0.0
      %5572 = vmatpush1.msra.mxu0 0.0
      %5573 = vmatprep.subr.mxu0 0.0
      %5574 = vmatpush1.msra.mxu0 0.0
      %5575 = vmatprep.subr.mxu0 0.0
      %5576 = vmatpush1.msra.mxu0 0.0
      %5577 = vmatprep.subr.mxu0 0.0
      %5578 = vmatpush1.msra.mxu0 0.0
      %5579 = vmatprep.subr.mxu0 0.0
      %5580 = vmatpush1.msra.mxu0 0.0
      %5581 = vmatprep.subr.mxu0 0.0
      %5582 = vmatpush1.msra.mxu0 0.0
      %5583 = vmatprep.subr.mxu0 0.0
      %5584 = vmatpush1.msra.mxu0 0.0
      %5585 = vmatprep.subr.mxu0 0.0
      %5586 = vmatpush1.msra.mxu0 0.0
      %5587 = vmatprep.subr.mxu0 0.0
      %5588 = vmatpush1.msra.mxu0 0.0
      %5589 = vmatprep.subr.mxu0 0.0
      %5590 = vmatpush1.msra.mxu0 0.0
      %5591 = vmatprep.subr.mxu0 0.0
      %5592 = vmatpush1.msra.mxu0 0.0
      %5593 = vmatprep.subr.mxu0 0.0
      %5594 = vmatpush1.msra.mxu0 0.0
      %5595 = vmatprep.subr.mxu0 0.0
      %5596 = vmatpush1.msra.mxu0 0.0
      %5597 = vmatprep.subr.mxu0 0.0
      %5598 = vmatpush1.msra.mxu0 0.0
      %5599 = vmatprep.subr.mxu0 0.0
      %5600 = vmatpush1.msra.mxu0 0.0
      %5601 = vmatprep.subr.mxu0 0.0
      %5602 = vmatpush1.msra.mxu0 0.0
      %5603 = vmatprep.mubr.f32.mxu0 0.0
      %5604 = vmatmul.mubr.f32.gmra.mrb[0].mxu0 %v5457
      %v5605 = vpop.f32.mrb[0].mxu0
      %v5606 = vadd.f32 0.0, %v5605
      %v5607 = vpop.f32.mrb[0].mxu0
      %v5608 = vadd.f32 0.0, %v5607
      %5609 = vmatprep.mubr.f32.mxu0 0.0
      %5610 = vmatmul.mubr.f32.gmra.mrb[0].mxu0 %v5460
      %v5611 = vpop.f32.mrb[0].mxu0
      %v5612 = vadd.f32 0.0, %v5611
      %v5613 = vpop.f32.mrb[0].mxu0
      %v5614 = vadd.f32 0.0, %v5613
      %5615 = vdwg.mxu0
      %5616 = vmatprep.subr.mxu0 0.0
      %5617 = vmatpush1.msra.mxu0 %v211
      %5618 = vmatprep.subr.mxu0 0.0
      %5619 = vmatpush1.msra.mxu0 %v216
      %5620 = vmatprep.subr.mxu0 0.0
      %5621 = vmatpush1.msra.mxu0 0.0
      %5622 = vmatprep.subr.mxu0 0.0
      %5623 = vmatpush1.msra.mxu0 0.0
      %5624 = vmatprep.subr.mxu0 0.0
      %5625 = vmatpush1.msra.mxu0 0.0
      %5626 = vmatprep.subr.mxu0 0.0
      %5627 = vmatpush1.msra.mxu0 0.0
      %5628 = vmatprep.subr.mxu0 0.0
      %5629 = vmatpush1.msra.mxu0 0.0
      %5630 = vmatprep.subr.mxu0 0.0
      %5631 = vmatpush1.msra.mxu0 0.0
      %5632 = vmatprep.subr.mxu0 0.0
      %5633 = vmatpush1.msra.mxu0 0.0
      %5634 = vmatprep.subr.mxu0 0.0
      %5635 = vmatpush1.msra.mxu0 0.0
      %5636 = vmatprep.subr.mxu0 0.0
      %5637 = vmatpush1.msra.mxu0 0.0
      %5638 = vmatprep.subr.mxu0 0.0
      %5639 = vmatpush1.msra.mxu0 0.0
      %5640 = vmatprep.subr.mxu0 0.0
      %5641 = vmatpush1.msra.mxu0 0.0
      %5642 = vmatprep.subr.mxu0 0.0
      %5643 = vmatpush1.msra.mxu0 0.0
      %5644 = vmatprep.subr.mxu0 0.0
      %5645 = vmatpush1.msra.mxu0 0.0
      %5646 = vmatprep.subr.mxu0 0.0
      %5647 = vmatpush1.msra.mxu0 0.0
      %5648 = vmatprep.subr.mxu0 0.0
      %5649 = vmatpush1.msra.mxu0 0.0
      %5650 = vmatprep.subr.mxu0 0.0
      %5651 = vmatpush1.msra.mxu0 0.0
      %5652 = vmatprep.subr.mxu0 0.0
      %5653 = vmatpush1.msra.mxu0 0.0
      %5654 = vmatprep.subr.mxu0 0.0
      %5655 = vmatpush1.msra.mxu0 0.0
      %5656 = vmatprep.subr.mxu0 0.0
      %5657 = vmatpush1.msra.mxu0 0.0
      %5658 = vmatprep.subr.mxu0 0.0
      %5659 = vmatpush1.msra.mxu0 0.0
      %5660 = vmatprep.subr.mxu0 0.0
      %5661 = vmatpush1.msra.mxu0 0.0
      %5662 = vmatprep.subr.mxu0 0.0
      %5663 = vmatpush1.msra.mxu0 0.0
      %5664 = vmatprep.subr.mxu0 0.0
      %5665 = vmatpush1.msra.mxu0 0.0
      %5666 = vmatprep.subr.mxu0 0.0
      %5667 = vmatpush1.msra.mxu0 0.0
      %5668 = vmatprep.subr.mxu0 0.0
      %5669 = vmatpush1.msra.mxu0 0.0
      %5670 = vmatprep.subr.mxu0 0.0
      %5671 = vmatpush1.msra.mxu0 0.0
      %5672 = vmatprep.subr.mxu0 0.0
      %5673 = vmatpush1.msra.mxu0 0.0
      %5674 = vmatprep.subr.mxu0 0.0
      %5675 = vmatpush1.msra.mxu0 0.0
      %5676 = vmatprep.subr.mxu0 0.0
      %5677 = vmatpush1.msra.mxu0 0.0
      %5678 = vmatprep.subr.mxu0 0.0
      %5679 = vmatpush1.msra.mxu0 0.0
      %5680 = vmatprep.mubr.f32.mxu0 0.0
      %5681 = vmatmul.mubr.f32.gmra.mrb[0].mxu0 %v5457
      %v5682 = vpop.f32.mrb[0].mxu0
      %v5683 = vadd.f32 0.0, %v5682
      %v5684 = vpop.f32.mrb[0].mxu0
      %5685 = vmatprep.mubr.f32.mxu0 0.0
      %5686 = vmatmul.mubr.f32.gmra.mrb[0].mxu0 %v5460
      %v5687 = vpop.f32.mrb[0].mxu0
      %v5688 = vadd.f32 0.0, %v5687
      %v5689 = vpop.f32.mrb[0].mxu0
      %5690 = vdwg.mxu0
      %5691 = vmatprep.subr.mxu0 %v5531
      %5692 = vmatpush1.msra.mxu0 %v5529
      %5693 = vmatprep.subr.mxu0 %v5537
      %5694 = vmatpush1.msra.mxu0 %v5535
      %5695 = vmatprep.subr.mxu0 0.0
      %5696 = vmatpush1.msra.mxu0 0.0
      %5697 = vmatprep.subr.mxu0 0.0
      %5698 = vmatpush1.msra.mxu0 0.0
      %5699 = vmatprep.subr.mxu0 0.0
      %5700 = vmatpush1.msra.mxu0 0.0
      %5701 = vmatprep.subr.mxu0 0.0
      %5702 = vmatpush1.msra.mxu0 0.0
      %5703 = vmatprep.subr.mxu0 0.0
      %5704 = vmatpush1.msra.mxu0 0.0
      %5705 = vmatprep.subr.mxu0 0.0
      %5706 = vmatpush1.msra.mxu0 0.0
      %5707 = vmatprep.subr.mxu0 0.0
      %5708 = vmatpush1.msra.mxu0 0.0
      %5709 = vmatprep.subr.mxu0 0.0
      %5710 = vmatpush1.msra.mxu0 0.0
      %5711 = vmatprep.subr.mxu0 0.0
      %5712 = vmatpush1.msra.mxu0 0.0
      %5713 = vmatprep.subr.mxu0 0.0
      %5714 = vmatpush1.msra.mxu0 0.0
      %5715 = vmatprep.subr.mxu0 0.0
      %5716 = vmatpush1.msra.mxu0 0.0
      %5717 = vmatprep.subr.mxu0 0.0
      %5718 = vmatpush1.msra.mxu0 0.0
      %5719 = vmatprep.subr.mxu0 0.0
      %5720 = vmatpush1.msra.mxu0 0.0
      %5721 = vmatprep.subr.mxu0 0.0
      %5722 = vmatpush1.msra.mxu0 0.0
      %5723 = vmatprep.subr.mxu0 0.0
      %5724 = vmatpush1.msra.mxu0 0.0
      %5725 = vmatprep.subr.mxu0 0.0
      %5726 = vmatpush1.msra.mxu0 0.0
      %5727 = vmatprep.subr.mxu0 0.0
      %5728 = vmatpush1.msra.mxu0 0.0
      %5729 = vmatprep.subr.mxu0 0.0
      %5730 = vmatpush1.msra.mxu0 0.0
      %5731 = vmatprep.subr.mxu0 0.0
      %5732 = vmatpush1.msra.mxu0 0.0
      %5733 = vmatprep.subr.mxu0 0.0
      %5734 = vmatpush1.msra.mxu0 0.0
      %5735 = vmatprep.subr.mxu0 0.0
      %5736 = vmatpush1.msra.mxu0 0.0
      %5737 = vmatprep.subr.mxu0 0.0
      %5738 = vmatpush1.msra.mxu0 0.0
      %5739 = vmatprep.subr.mxu0 0.0
      %5740 = vmatpush1.msra.mxu0 0.0
      %5741 = vmatprep.subr.mxu0 0.0
      %5742 = vmatpush1.msra.mxu0 0.0
      %5743 = vmatprep.subr.mxu0 0.0
      %5744 = vmatpush1.msra.mxu0 0.0
      %5745 = vmatprep.subr.mxu0 0.0
      %5746 = vmatpush1.msra.mxu0 0.0
      %5747 = vmatprep.subr.mxu0 0.0
      %5748 = vmatpush1.msra.mxu0 0.0
      %5749 = vmatprep.subr.mxu0 0.0
      %5750 = vmatpush1.msra.mxu0 0.0
      %5751 = vmatprep.subr.mxu0 0.0
      %5752 = vmatpush1.msra.mxu0 0.0
      %5753 = vmatprep.subr.mxu0 0.0
      %5754 = vmatpush1.msra.mxu0 0.0
      %5755 = vmatprep.mubr.f32.mxu0 0.0
      %5756 = vmatmul.mubr.f32.gmra.mrb[0].mxu0 %v456
      %v5757 = vpop.f32.mrb[0].mxu0
      %v5758 = vadd.f32 0.0, %v5757
      %v5759 = vpop.f32.mrb[0].mxu0
      %v5760 = vadd.f32 0.0, %v5759
      %5761 = vmatprep.mubr.f32.mxu0 0.0
      %5762 = vmatmul.mubr.f32.gmra.mrb[0].mxu0 %v459
      %v5763 = vpop.f32.mrb[0].mxu0
      %v5764 = vadd.f32 0.0, %v5763
      %v5765 = vpop.f32.mrb[0].mxu0
      %v5766 = vadd.f32 0.0, %v5765
      %5767 = vmatprep.mubr.f32.mxu0 0.0
      %5768 = vmatmul.mubr.f32.gmra.mrb[0].mxu0 %v462
      %v5769 = vpop.f32.mrb[0].mxu0
      %v5770 = vadd.f32 0.0, %v5769
      %v5771 = vpop.f32.mrb[0].mxu0
      %v5772 = vadd.f32 0.0, %v5771
      %5773 = vmatprep.mubr.f32.mxu0 0.0
      %5774 = vmatmul.mubr.f32.gmra.mrb[0].mxu0 %v465
      %v5775 = vpop.f32.mrb[0].mxu0
      %v5776 = vadd.f32 0.0, %v5775
      %v5777 = vpop.f32.mrb[0].mxu0
      %v5778 = vadd.f32 0.0, %v5777
      %5779 = vmatprep.mubr.f32.mxu0 0.0
      %5780 = vmatmul.mubr.f32.gmra.mrb[0].mxu0 %v468
      %v5781 = vpop.f32.mrb[0].mxu0
      %v5782 = vadd.f32 0.0, %v5781
      %v5783 = vpop.f32.mrb[0].mxu0
      %v5784 = vadd.f32 0.0, %v5783
      %5785 = vmatprep.mubr.f32.mxu0 0.0
      %5786 = vmatmul.mubr.f32.gmra.mrb[0].mxu0 %v471
      %v5787 = vpop.f32.mrb[0].mxu0
      %v5788 = vadd.f32 0.0, %v5787
      %v5789 = vpop.f32.mrb[0].mxu0
      %v5790 = vadd.f32 0.0, %v5789
      %5791 = vmatprep.mubr.f32.mxu0 0.0
      %5792 = vmatmul.mubr.f32.gmra.mrb[0].mxu0 %v474
      %v5793 = vpop.f32.mrb[0].mxu0
      %v5794 = vadd.f32 0.0, %v5793
      %v5795 = vpop.f32.mrb[0].mxu0
      %v5796 = vadd.f32 0.0, %v5795
      %5797 = vmatprep.mubr.f32.mxu0 0.0
      %5798 = vmatmul.mubr.f32.gmra.mrb[0].mxu0 %v477
      %v5799 = vpop.f32.mrb[0].mxu0
      %v5800 = vadd.f32 0.0, %v5799
      %v5801 = vpop.f32.mrb[0].mxu0
      %v5802 = vadd.f32 0.0, %v5801
      %5803 = vmatprep.mubr.f32.mxu0 0.0
      %5804 = vmatmul.mubr.f32.gmra.mrb[0].mxu0 %v480
      %v5805 = vpop.f32.mrb[0].mxu0
      %v5806 = vadd.f32 0.0, %v5805
      %v5807 = vpop.f32.mrb[0].mxu0
      %v5808 = vadd.f32 0.0, %v5807
      %5809 = vmatprep.mubr.f32.mxu0 0.0
      %5810 = vmatmul.mubr.f32.gmra.mrb[0].mxu0 %v483
      %v5811 = vpop.f32.mrb[0].mxu0
      %v5812 = vadd.f32 0.0, %v5811
      %v5813 = vpop.f32.mrb[0].mxu0
      %v5814 = vadd.f32 0.0, %v5813
      %5815 = vmatprep.mubr.f32.mxu0 0.0
      %5816 = vmatmul.mubr.f32.gmra.mrb[0].mxu0 %v486
      %v5817 = vpop.f32.mrb[0].mxu0
      %v5818 = vadd.f32 0.0, %v5817
      %v5819 = vpop.f32.mrb[0].mxu0
      %v5820 = vadd.f32 0.0, %v5819
      %5821 = vmatprep.mubr.f32.mxu0 0.0
      %5822 = vmatmul.mubr.f32.gmra.mrb[0].mxu0 %v489
      %v5823 = vpop.f32.mrb[0].mxu0
      %v5824 = vadd.f32 0.0, %v5823
      %v5825 = vpop.f32.mrb[0].mxu0
      %v5826 = vadd.f32 0.0, %v5825
      %5827 = vmatprep.mubr.f32.mxu0 0.0
      %5828 = vmatmul.mubr.f32.gmra.mrb[0].mxu0 %v492
      %v5829 = vpop.f32.mrb[0].mxu0
      %v5830 = vadd.f32 0.0, %v5829
      %v5831 = vpop.f32.mrb[0].mxu0
      %v5832 = vadd.f32 0.0, %v5831
      %5833 = vmatprep.mubr.f32.mxu0 0.0
      %5834 = vmatmul.mubr.f32.gmra.mrb[0].mxu0 %v495
      %v5835 = vpop.f32.mrb[0].mxu0
      %v5836 = vadd.f32 0.0, %v5835
      %v5837 = vpop.f32.mrb[0].mxu0
      %v5838 = vadd.f32 0.0, %v5837
      %5839 = vmatprep.mubr.f32.mxu0 0.0
      %5840 = vmatmul.mubr.f32.gmra.mrb[0].mxu0 %v498
      %v5841 = vpop.f32.mrb[0].mxu0
      %v5842 = vadd.f32 0.0, %v5841
      %v5843 = vpop.f32.mrb[0].mxu0
      %v5844 = vadd.f32 0.0, %v5843
      %5845 = vmatprep.mubr.f32.mxu0 0.0
      %5846 = vmatmul.mubr.f32.gmra.mrb[0].mxu0 %v501
      %v5847 = vpop.f32.mrb[0].mxu0
      %v5848 = vadd.f32 0.0, %v5847
      %v5849 = vpop.f32.mrb[0].mxu0
      %v5850 = vadd.f32 0.0, %v5849
      %5851 = vmatprep.mubr.f32.mxu0 0.0
      %5852 = vmatmul.mubr.f32.gmra.mrb[0].mxu0 %v504
      %v5853 = vpop.f32.mrb[0].mxu0
      %v5854 = vadd.f32 0.0, %v5853
      %v5855 = vpop.f32.mrb[0].mxu0
      %v5856 = vadd.f32 0.0, %v5855
      %5857 = vmatprep.mubr.f32.mxu0 0.0
      %5858 = vmatmul.mubr.f32.gmra.mrb[0].mxu0 %v507
      %v5859 = vpop.f32.mrb[0].mxu0
      %v5860 = vadd.f32 0.0, %v5859
      %v5861 = vpop.f32.mrb[0].mxu0
      %v5862 = vadd.f32 0.0, %v5861
      %5863 = vmatprep.mubr.f32.mxu0 0.0
      %5864 = vmatmul.mubr.f32.gmra.mrb[0].mxu0 %v510
      %v5865 = vpop.f32.mrb[0].mxu0
      %v5866 = vadd.f32 0.0, %v5865
      %v5867 = vpop.f32.mrb[0].mxu0
      %v5868 = vadd.f32 0.0, %v5867
      %5869 = vmatprep.mubr.f32.mxu0 0.0
      %5870 = vmatmul.mubr.f32.gmra.mrb[0].mxu0 %v513
      %v5871 = vpop.f32.mrb[0].mxu0
      %v5872 = vadd.f32 0.0, %v5871
      %v5873 = vpop.f32.mrb[0].mxu0
      %v5874 = vadd.f32 0.0, %v5873
      %5875 = vmatprep.mubr.f32.mxu0 0.0
      %5876 = vmatmul.mubr.f32.gmra.mrb[0].mxu0 %v516
      %v5877 = vpop.f32.mrb[0].mxu0
      %v5878 = vadd.f32 0.0, %v5877
      %v5879 = vpop.f32.mrb[0].mxu0
      %v5880 = vadd.f32 0.0, %v5879
      %5881 = vmatprep.mubr.f32.mxu0 0.0
      %5882 = vmatmul.mubr.f32.gmra.mrb[0].mxu0 %v519
      %v5883 = vpop.f32.mrb[0].mxu0
      %v5884 = vadd.f32 0.0, %v5883
      %v5885 = vpop.f32.mrb[0].mxu0
      %v5886 = vadd.f32 0.0, %v5885
      %5887 = vmatprep.mubr.f32.mxu0 0.0
      %5888 = vmatmul.mubr.f32.gmra.mrb[0].mxu0 %v522
      %v5889 = vpop.f32.mrb[0].mxu0
      %v5890 = vadd.f32 0.0, %v5889
      %v5891 = vpop.f32.mrb[0].mxu0
      %v5892 = vadd.f32 0.0, %v5891
      %5893 = vmatprep.mubr.f32.mxu0 0.0
      %5894 = vmatmul.mubr.f32.gmra.mrb[0].mxu0 %v525
      %v5895 = vpop.f32.mrb[0].mxu0
      %v5896 = vadd.f32 0.0, %v5895
      %v5897 = vpop.f32.mrb[0].mxu0
      %v5898 = vadd.f32 0.0, %v5897
      %5899 = vmatprep.mubr.f32.mxu0 0.0
      %5900 = vmatmul.mubr.f32.gmra.mrb[0].mxu0 %v528
      %v5901 = vpop.f32.mrb[0].mxu0
      %v5902 = vadd.f32 0.0, %v5901
      %v5903 = vpop.f32.mrb[0].mxu0
      %v5904 = vadd.f32 0.0, %v5903
      %5905 = vmatprep.mubr.f32.mxu0 0.0
      %5906 = vmatmul.mubr.f32.gmra.mrb[0].mxu0 %v531
      %v5907 = vpop.f32.mrb[0].mxu0
      %v5908 = vadd.f32 0.0, %v5907
      %v5909 = vpop.f32.mrb[0].mxu0
      %v5910 = vadd.f32 0.0, %v5909
      %5911 = vmatprep.mubr.f32.mxu0 0.0
      %5912 = vmatmul.mubr.f32.gmra.mrb[0].mxu0 %v534
      %v5913 = vpop.f32.mrb[0].mxu0
      %v5914 = vadd.f32 0.0, %v5913
      %v5915 = vpop.f32.mrb[0].mxu0
      %v5916 = vadd.f32 0.0, %v5915
      %5917 = vmatprep.mubr.f32.mxu0 0.0
      %5918 = vmatmul.mubr.f32.gmra.mrb[0].mxu0 %v537
      %v5919 = vpop.f32.mrb[0].mxu0
      %v5920 = vadd.f32 0.0, %v5919
      %v5921 = vpop.f32.mrb[0].mxu0
      %v5922 = vadd.f32 0.0, %v5921
      %5923 = vmatprep.mubr.f32.mxu0 0.0
      %5924 = vmatmul.mubr.f32.gmra.mrb[0].mxu0 %v540
      %v5925 = vpop.f32.mrb[0].mxu0
      %v5926 = vadd.f32 0.0, %v5925
      %v5927 = vpop.f32.mrb[0].mxu0
      %v5928 = vadd.f32 0.0, %v5927
      %5929 = vmatprep.mubr.f32.mxu0 0.0
      %5930 = vmatmul.mubr.f32.gmra.mrb[0].mxu0 %v543
      %v5931 = vpop.f32.mrb[0].mxu0
      %v5932 = vadd.f32 0.0, %v5931
      %v5933 = vpop.f32.mrb[0].mxu0
      %v5934 = vadd.f32 0.0, %v5933
      %5935 = vmatprep.mubr.f32.mxu0 0.0
      %5936 = vmatmul.mubr.f32.gmra.mrb[0].mxu0 %v546
      %v5937 = vpop.f32.mrb[0].mxu0
      %v5938 = vadd.f32 0.0, %v5937
      %v5939 = vpop.f32.mrb[0].mxu0
      %v5940 = vadd.f32 0.0, %v5939
      %5941 = vmatprep.mubr.f32.mxu0 0.0
      %5942 = vmatmul.mubr.f32.gmra.mrb[0].mxu0 %v549
      %v5943 = vpop.f32.mrb[0].mxu0
      %v5944 = vadd.f32 0.0, %v5943
      %v5945 = vpop.f32.mrb[0].mxu0
      %v5946 = vadd.f32 0.0, %v5945
      %5947 = vmatprep.mubr.f32.mxu0 0.0
      %5948 = vmatmul.mubr.f32.gmra.mrb[0].mxu0 %v552
      %v5949 = vpop.f32.mrb[0].mxu0
      %v5950 = vadd.f32 0.0, %v5949
      %v5951 = vpop.f32.mrb[0].mxu0
      %v5952 = vadd.f32 0.0, %v5951
      %5953 = vmatprep.mubr.f32.mxu0 0.0
      %5954 = vmatmul.mubr.f32.gmra.mrb[0].mxu0 %v555
      %v5955 = vpop.f32.mrb[0].mxu0
      %v5956 = vadd.f32 0.0, %v5955
      %v5957 = vpop.f32.mrb[0].mxu0
      %v5958 = vadd.f32 0.0, %v5957
      %5959 = vmatprep.mubr.f32.mxu0 0.0
      %5960 = vmatmul.mubr.f32.gmra.mrb[0].mxu0 %v558
      %v5961 = vpop.f32.mrb[0].mxu0
      %v5962 = vadd.f32 0.0, %v5961
      %v5963 = vpop.f32.mrb[0].mxu0
      %v5964 = vadd.f32 0.0, %v5963
      %5965 = vmatprep.mubr.f32.mxu0 0.0
      %5966 = vmatmul.mubr.f32.gmra.mrb[0].mxu0 %v561
      %v5967 = vpop.f32.mrb[0].mxu0
      %v5968 = vadd.f32 0.0, %v5967
      %v5969 = vpop.f32.mrb[0].mxu0
      %v5970 = vadd.f32 0.0, %v5969
      %5971 = vmatprep.mubr.f32.mxu0 0.0
      %5972 = vmatmul.mubr.f32.gmra.mrb[0].mxu0 %v564
      %v5973 = vpop.f32.mrb[0].mxu0
      %v5974 = vadd.f32 0.0, %v5973
      %v5975 = vpop.f32.mrb[0].mxu0
      %v5976 = vadd.f32 0.0, %v5975
      %5977 = vmatprep.mubr.f32.mxu0 0.0
      %5978 = vmatmul.mubr.f32.gmra.mrb[0].mxu0 %v567
      %v5979 = vpop.f32.mrb[0].mxu0
      %v5980 = vadd.f32 0.0, %v5979
      %v5981 = vpop.f32.mrb[0].mxu0
      %v5982 = vadd.f32 0.0, %v5981
      %5983 = vmatprep.mubr.f32.mxu0 0.0
      %5984 = vmatmul.mubr.f32.gmra.mrb[0].mxu0 %v570
      %v5985 = vpop.f32.mrb[0].mxu0
      %v5986 = vadd.f32 0.0, %v5985
      %v5987 = vpop.f32.mrb[0].mxu0
      %v5988 = vadd.f32 0.0, %v5987
      %5989 = vmatprep.mubr.f32.mxu0 0.0
      %5990 = vmatmul.mubr.f32.gmra.mrb[0].mxu0 %v573
      %v5991 = vpop.f32.mrb[0].mxu0
      %v5992 = vadd.f32 0.0, %v5991
      %v5993 = vpop.f32.mrb[0].mxu0
      %v5994 = vadd.f32 0.0, %v5993
      %5995 = vmatprep.mubr.f32.mxu0 0.0
      %5996 = vmatmul.mubr.f32.gmra.mrb[0].mxu0 %v576
      %v5997 = vpop.f32.mrb[0].mxu0
      %v5998 = vadd.f32 0.0, %v5997
      %v5999 = vpop.f32.mrb[0].mxu0
      %v6000 = vadd.f32 0.0, %v5999
      %6001 = vmatprep.mubr.f32.mxu0 0.0
      %6002 = vmatmul.mubr.f32.gmra.mrb[0].mxu0 %v579
      %v6003 = vpop.f32.mrb[0].mxu0
      %v6004 = vadd.f32 0.0, %v6003
      %v6005 = vpop.f32.mrb[0].mxu0
      %v6006 = vadd.f32 0.0, %v6005
      %6007 = vmatprep.mubr.f32.mxu0 0.0
      %6008 = vmatmul.mubr.f32.gmra.mrb[0].mxu0 %v582
      %v6009 = vpop.f32.mrb[0].mxu0
      %v6010 = vadd.f32 0.0, %v6009
      %v6011 = vpop.f32.mrb[0].mxu0
      %v6012 = vadd.f32 0.0, %v6011
      %6013 = vmatprep.mubr.f32.mxu0 0.0
      %6014 = vmatmul.mubr.f32.gmra.mrb[0].mxu0 %v585
      %v6015 = vpop.f32.mrb[0].mxu0
      %v6016 = vadd.f32 0.0, %v6015
      %v6017 = vpop.f32.mrb[0].mxu0
      %v6018 = vadd.f32 0.0, %v6017
      %6019 = vmatprep.mubr.f32.mxu0 0.0
      %6020 = vmatmul.mubr.f32.gmra.mrb[0].mxu0 %v588
      %v6021 = vpop.f32.mrb[0].mxu0
      %v6022 = vadd.f32 0.0, %v6021
      %v6023 = vpop.f32.mrb[0].mxu0
      %v6024 = vadd.f32 0.0, %v6023
      %6025 = vmatprep.mubr.f32.mxu0 0.0
      %6026 = vmatmul.mubr.f32.gmra.mrb[0].mxu0 %v591
      %v6027 = vpop.f32.mrb[0].mxu0
      %v6028 = vadd.f32 0.0, %v6027
      %v6029 = vpop.f32.mrb[0].mxu0
      %v6030 = vadd.f32 0.0, %v6029
      %6031 = vmatprep.mubr.f32.mxu0 0.0
      %6032 = vmatmul.mubr.f32.gmra.mrb[0].mxu0 %v594
      %v6033 = vpop.f32.mrb[0].mxu0
      %v6034 = vadd.f32 0.0, %v6033
      %v6035 = vpop.f32.mrb[0].mxu0
      %v6036 = vadd.f32 0.0, %v6035
      %6037 = vmatprep.mubr.f32.mxu0 0.0
      %6038 = vmatmul.mubr.f32.gmra.mrb[0].mxu0 %v597
      %v6039 = vpop.f32.mrb[0].mxu0
      %v6040 = vadd.f32 0.0, %v6039
      %v6041 = vpop.f32.mrb[0].mxu0
      %v6042 = vadd.f32 0.0, %v6041
      %6043 = vmatprep.mubr.f32.mxu0 0.0
      %6044 = vmatmul.mubr.f32.gmra.mrb[0].mxu0 %v600
      %v6045 = vpop.f32.mrb[0].mxu0
      %v6046 = vadd.f32 0.0, %v6045
      %v6047 = vpop.f32.mrb[0].mxu0
      %v6048 = vadd.f32 0.0, %v6047
      %6049 = vmatprep.mubr.f32.mxu0 0.0
      %6050 = vmatmul.mubr.f32.gmra.mrb[0].mxu0 %v603
      %v6051 = vpop.f32.mrb[0].mxu0
      %v6052 = vadd.f32 0.0, %v6051
      %v6053 = vpop.f32.mrb[0].mxu0
      %v6054 = vadd.f32 0.0, %v6053
      %6055 = vmatprep.mubr.f32.mxu0 0.0
      %6056 = vmatmul.mubr.f32.gmra.mrb[0].mxu0 %v606
      %v6057 = vpop.f32.mrb[0].mxu0
      %v6058 = vadd.f32 0.0, %v6057
      %v6059 = vpop.f32.mrb[0].mxu0
      %v6060 = vadd.f32 0.0, %v6059
      %6061 = vmatprep.mubr.f32.mxu0 0.0
      %6062 = vmatmul.mubr.f32.gmra.mrb[0].mxu0 %v609
      %v6063 = vpop.f32.mrb[0].mxu0
      %v6064 = vadd.f32 0.0, %v6063
      %v6065 = vpop.f32.mrb[0].mxu0
      %v6066 = vadd.f32 0.0, %v6065
      %6067 = vmatprep.mubr.f32.mxu0 0.0
      %6068 = vmatmul.mubr.f32.gmra.mrb[0].mxu0 %v612
      %v6069 = vpop.f32.mrb[0].mxu0
      %v6070 = vadd.f32 0.0, %v6069
      %v6071 = vpop.f32.mrb[0].mxu0
      %v6072 = vadd.f32 0.0, %v6071
      %6073 = vmatprep.mubr.f32.mxu0 0.0
      %6074 = vmatmul.mubr.f32.gmra.mrb[0].mxu0 %v615
      %v6075 = vpop.f32.mrb[0].mxu0
      %v6076 = vadd.f32 0.0, %v6075
      %v6077 = vpop.f32.mrb[0].mxu0
      %v6078 = vadd.f32 0.0, %v6077
      %6079 = vmatprep.mubr.f32.mxu0 0.0
      %6080 = vmatmul.mubr.f32.gmra.mrb[0].mxu0 %v618
      %v6081 = vpop.f32.mrb[0].mxu0
      %v6082 = vadd.f32 0.0, %v6081
      %v6083 = vpop.f32.mrb[0].mxu0
      %v6084 = vadd.f32 0.0, %v6083
      %6085 = vmatprep.mubr.f32.mxu0 0.0
      %6086 = vmatmul.mubr.f32.gmra.mrb[0].mxu0 %v621
      %v6087 = vpop.f32.mrb[0].mxu0
      %v6088 = vadd.f32 0.0, %v6087
      %v6089 = vpop.f32.mrb[0].mxu0
      %v6090 = vadd.f32 0.0, %v6089
      %6091 = vdwg.mxu0
      %6092 = vmatprep.subr.mxu0 %v5608
      %6093 = vmatpush1.msra.mxu0 %v5606
      %6094 = vmatprep.subr.mxu0 %v5614
      %6095 = vmatpush1.msra.mxu0 %v5612
      %6096 = vmatprep.subr.mxu0 0.0
      %6097 = vmatpush1.msra.mxu0 0.0
      %6098 = vmatprep.subr.mxu0 0.0
      %6099 = vmatpush1.msra.mxu0 0.0
      %6100 = vmatprep.subr.mxu0 0.0
      %6101 = vmatpush1.msra.mxu0 0.0
      %6102 = vmatprep.subr.mxu0 0.0
      %6103 = vmatpush1.msra.mxu0 0.0
      %6104 = vmatprep.subr.mxu0 0.0
      %6105 = vmatpush1.msra.mxu0 0.0
      %6106 = vmatprep.subr.mxu0 0.0
      %6107 = vmatpush1.msra.mxu0 0.0
      %6108 = vmatprep.subr.mxu0 0.0
      %6109 = vmatpush1.msra.mxu0 0.0
      %6110 = vmatprep.subr.mxu0 0.0
      %6111 = vmatpush1.msra.mxu0 0.0
      %6112 = vmatprep.subr.mxu0 0.0
      %6113 = vmatpush1.msra.mxu0 0.0
      %6114 = vmatprep.subr.mxu0 0.0
      %6115 = vmatpush1.msra.mxu0 0.0
      %6116 = vmatprep.subr.mxu0 0.0
      %6117 = vmatpush1.msra.mxu0 0.0
      %6118 = vmatprep.subr.mxu0 0.0
      %6119 = vmatpush1.msra.mxu0 0.0
      %6120 = vmatprep.subr.mxu0 0.0
      %6121 = vmatpush1.msra.mxu0 0.0
      %6122 = vmatprep.subr.mxu0 0.0
      %6123 = vmatpush1.msra.mxu0 0.0
      %6124 = vmatprep.subr.mxu0 0.0
      %6125 = vmatpush1.msra.mxu0 0.0
      %6126 = vmatprep.subr.mxu0 0.0
      %6127 = vmatpush1.msra.mxu0 0.0
      %6128 = vmatprep.subr.mxu0 0.0
      %6129 = vmatpush1.msra.mxu0 0.0
      %6130 = vmatprep.subr.mxu0 0.0
      %6131 = vmatpush1.msra.mxu0 0.0
      %6132 = vmatprep.subr.mxu0 0.0
      %6133 = vmatpush1.msra.mxu0 0.0
      %6134 = vmatprep.subr.mxu0 0.0
      %6135 = vmatpush1.msra.mxu0 0.0
      %6136 = vmatprep.subr.mxu0 0.0
      %6137 = vmatpush1.msra.mxu0 0.0
      %6138 = vmatprep.subr.mxu0 0.0
      %6139 = vmatpush1.msra.mxu0 0.0
      %6140 = vmatprep.subr.mxu0 0.0
      %6141 = vmatpush1.msra.mxu0 0.0
      %6142 = vmatprep.subr.mxu0 0.0
      %6143 = vmatpush1.msra.mxu0 0.0
      %6144 = vmatprep.subr.mxu0 0.0
      %6145 = vmatpush1.msra.mxu0 0.0
      %6146 = vmatprep.subr.mxu0 0.0
      %6147 = vmatpush1.msra.mxu0 0.0
      %6148 = vmatprep.subr.mxu0 0.0
      %6149 = vmatpush1.msra.mxu0 0.0
      %6150 = vmatprep.subr.mxu0 0.0
      %6151 = vmatpush1.msra.mxu0 0.0
      %6152 = vmatprep.subr.mxu0 0.0
      %6153 = vmatpush1.msra.mxu0 0.0
      %6154 = vmatprep.subr.mxu0 0.0
      %6155 = vmatpush1.msra.mxu0 0.0
      %6156 = vmatprep.mubr.f32.mxu0 0.0
      %6157 = vmatmul.mubr.f32.gmra.mrb[0].mxu0 %v456
      %v6158 = vpop.f32.mrb[0].mxu0
      %v6159 = vadd.f32 0.0, %v6158
      %v6160 = vpop.f32.mrb[0].mxu0
      %v6161 = vadd.f32 0.0, %v6160
      %6162 = vmatprep.mubr.f32.mxu0 0.0
      %6163 = vmatmul.mubr.f32.gmra.mrb[0].mxu0 %v459
      %v6164 = vpop.f32.mrb[0].mxu0
      %v6165 = vadd.f32 0.0, %v6164
      %v6166 = vpop.f32.mrb[0].mxu0
      %v6167 = vadd.f32 0.0, %v6166
      %6168 = vmatprep.mubr.f32.mxu0 0.0
      %6169 = vmatmul.mubr.f32.gmra.mrb[0].mxu0 %v462
      %v6170 = vpop.f32.mrb[0].mxu0
      %v6171 = vadd.f32 0.0, %v6170
      %v6172 = vpop.f32.mrb[0].mxu0
      %v6173 = vadd.f32 0.0, %v6172
      %6174 = vmatprep.mubr.f32.mxu0 0.0
      %6175 = vmatmul.mubr.f32.gmra.mrb[0].mxu0 %v465
      %v6176 = vpop.f32.mrb[0].mxu0
      %v6177 = vadd.f32 0.0, %v6176
      %v6178 = vpop.f32.mrb[0].mxu0
      %v6179 = vadd.f32 0.0, %v6178
      %6180 = vmatprep.mubr.f32.mxu0 0.0
      %6181 = vmatmul.mubr.f32.gmra.mrb[0].mxu0 %v468
      %v6182 = vpop.f32.mrb[0].mxu0
      %v6183 = vadd.f32 0.0, %v6182
      %v6184 = vpop.f32.mrb[0].mxu0
      %v6185 = vadd.f32 0.0, %v6184
      %6186 = vmatprep.mubr.f32.mxu0 0.0
      %6187 = vmatmul.mubr.f32.gmra.mrb[0].mxu0 %v471
      %v6188 = vpop.f32.mrb[0].mxu0
      %v6189 = vadd.f32 0.0, %v6188
      %v6190 = vpop.f32.mrb[0].mxu0
      %v6191 = vadd.f32 0.0, %v6190
      %6192 = vmatprep.mubr.f32.mxu0 0.0
      %6193 = vmatmul.mubr.f32.gmra.mrb[0].mxu0 %v474
      %v6194 = vpop.f32.mrb[0].mxu0
      %v6195 = vadd.f32 0.0, %v6194
      %v6196 = vpop.f32.mrb[0].mxu0
      %v6197 = vadd.f32 0.0, %v6196
      %6198 = vmatprep.mubr.f32.mxu0 0.0
      %6199 = vmatmul.mubr.f32.gmra.mrb[0].mxu0 %v477
      %v6200 = vpop.f32.mrb[0].mxu0
      %v6201 = vadd.f32 0.0, %v6200
      %v6202 = vpop.f32.mrb[0].mxu0
      %v6203 = vadd.f32 0.0, %v6202
      %6204 = vmatprep.mubr.f32.mxu0 0.0
      %6205 = vmatmul.mubr.f32.gmra.mrb[0].mxu0 %v480
      %v6206 = vpop.f32.mrb[0].mxu0
      %v6207 = vadd.f32 0.0, %v6206
      %v6208 = vpop.f32.mrb[0].mxu0
      %v6209 = vadd.f32 0.0, %v6208
      %6210 = vmatprep.mubr.f32.mxu0 0.0
      %6211 = vmatmul.mubr.f32.gmra.mrb[0].mxu0 %v483
      %v6212 = vpop.f32.mrb[0].mxu0
      %v6213 = vadd.f32 0.0, %v6212
      %v6214 = vpop.f32.mrb[0].mxu0
      %v6215 = vadd.f32 0.0, %v6214
      %6216 = vmatprep.mubr.f32.mxu0 0.0
      %6217 = vmatmul.mubr.f32.gmra.mrb[0].mxu0 %v486
      %v6218 = vpop.f32.mrb[0].mxu0
      %v6219 = vadd.f32 0.0, %v6218
      %v6220 = vpop.f32.mrb[0].mxu0
      %v6221 = vadd.f32 0.0, %v6220
      %6222 = vmatprep.mubr.f32.mxu0 0.0
      %6223 = vmatmul.mubr.f32.gmra.mrb[0].mxu0 %v489
      %v6224 = vpop.f32.mrb[0].mxu0
      %v6225 = vadd.f32 0.0, %v6224
      %v6226 = vpop.f32.mrb[0].mxu0
      %v6227 = vadd.f32 0.0, %v6226
      %6228 = vmatprep.mubr.f32.mxu0 0.0
      %6229 = vmatmul.mubr.f32.gmra.mrb[0].mxu0 %v492
      %v6230 = vpop.f32.mrb[0].mxu0
      %v6231 = vadd.f32 0.0, %v6230
      %v6232 = vpop.f32.mrb[0].mxu0
      %v6233 = vadd.f32 0.0, %v6232
      %6234 = vmatprep.mubr.f32.mxu0 0.0
      %6235 = vmatmul.mubr.f32.gmra.mrb[0].mxu0 %v495
      %v6236 = vpop.f32.mrb[0].mxu0
      %v6237 = vadd.f32 0.0, %v6236
      %v6238 = vpop.f32.mrb[0].mxu0
      %v6239 = vadd.f32 0.0, %v6238
      %6240 = vmatprep.mubr.f32.mxu0 0.0
      %6241 = vmatmul.mubr.f32.gmra.mrb[0].mxu0 %v498
      %v6242 = vpop.f32.mrb[0].mxu0
      %v6243 = vadd.f32 0.0, %v6242
      %v6244 = vpop.f32.mrb[0].mxu0
      %v6245 = vadd.f32 0.0, %v6244
      %6246 = vmatprep.mubr.f32.mxu0 0.0
      %6247 = vmatmul.mubr.f32.gmra.mrb[0].mxu0 %v501
      %v6248 = vpop.f32.mrb[0].mxu0
      %v6249 = vadd.f32 0.0, %v6248
      %v6250 = vpop.f32.mrb[0].mxu0
      %v6251 = vadd.f32 0.0, %v6250
      %6252 = vmatprep.mubr.f32.mxu0 0.0
      %6253 = vmatmul.mubr.f32.gmra.mrb[0].mxu0 %v504
      %v6254 = vpop.f32.mrb[0].mxu0
      %v6255 = vadd.f32 0.0, %v6254
      %v6256 = vpop.f32.mrb[0].mxu0
      %v6257 = vadd.f32 0.0, %v6256
      %6258 = vmatprep.mubr.f32.mxu0 0.0
      %6259 = vmatmul.mubr.f32.gmra.mrb[0].mxu0 %v507
      %v6260 = vpop.f32.mrb[0].mxu0
      %v6261 = vadd.f32 0.0, %v6260
      %v6262 = vpop.f32.mrb[0].mxu0
      %v6263 = vadd.f32 0.0, %v6262
      %6264 = vmatprep.mubr.f32.mxu0 0.0
      %6265 = vmatmul.mubr.f32.gmra.mrb[0].mxu0 %v510
      %v6266 = vpop.f32.mrb[0].mxu0
      %v6267 = vadd.f32 0.0, %v6266
      %v6268 = vpop.f32.mrb[0].mxu0
      %v6269 = vadd.f32 0.0, %v6268
      %6270 = vmatprep.mubr.f32.mxu0 0.0
      %6271 = vmatmul.mubr.f32.gmra.mrb[0].mxu0 %v513
      %v6272 = vpop.f32.mrb[0].mxu0
      %v6273 = vadd.f32 0.0, %v6272
      %v6274 = vpop.f32.mrb[0].mxu0
      %v6275 = vadd.f32 0.0, %v6274
      %6276 = vmatprep.mubr.f32.mxu0 0.0
      %6277 = vmatmul.mubr.f32.gmra.mrb[0].mxu0 %v516
      %v6278 = vpop.f32.mrb[0].mxu0
      %v6279 = vadd.f32 0.0, %v6278
      %v6280 = vpop.f32.mrb[0].mxu0
      %v6281 = vadd.f32 0.0, %v6280
      %6282 = vmatprep.mubr.f32.mxu0 0.0
      %6283 = vmatmul.mubr.f32.gmra.mrb[0].mxu0 %v519
      %v6284 = vpop.f32.mrb[0].mxu0
      %v6285 = vadd.f32 0.0, %v6284
      %v6286 = vpop.f32.mrb[0].mxu0
      %v6287 = vadd.f32 0.0, %v6286
      %6288 = vmatprep.mubr.f32.mxu0 0.0
      %6289 = vmatmul.mubr.f32.gmra.mrb[0].mxu0 %v522
      %v6290 = vpop.f32.mrb[0].mxu0
      %v6291 = vadd.f32 0.0, %v6290
      %v6292 = vpop.f32.mrb[0].mxu0
      %v6293 = vadd.f32 0.0, %v6292
      %6294 = vmatprep.mubr.f32.mxu0 0.0
      %6295 = vmatmul.mubr.f32.gmra.mrb[0].mxu0 %v525
      %v6296 = vpop.f32.mrb[0].mxu0
      %v6297 = vadd.f32 0.0, %v6296
      %v6298 = vpop.f32.mrb[0].mxu0
      %v6299 = vadd.f32 0.0, %v6298
      %6300 = vmatprep.mubr.f32.mxu0 0.0
      %6301 = vmatmul.mubr.f32.gmra.mrb[0].mxu0 %v528
      %v6302 = vpop.f32.mrb[0].mxu0
      %v6303 = vadd.f32 0.0, %v6302
      %v6304 = vpop.f32.mrb[0].mxu0
      %v6305 = vadd.f32 0.0, %v6304
      %6306 = vmatprep.mubr.f32.mxu0 0.0
      %6307 = vmatmul.mubr.f32.gmra.mrb[0].mxu0 %v531
      %v6308 = vpop.f32.mrb[0].mxu0
      %v6309 = vadd.f32 0.0, %v6308
      %v6310 = vpop.f32.mrb[0].mxu0
      %v6311 = vadd.f32 0.0, %v6310
      %6312 = vmatprep.mubr.f32.mxu0 0.0
      %6313 = vmatmul.mubr.f32.gmra.mrb[0].mxu0 %v534
      %v6314 = vpop.f32.mrb[0].mxu0
      %v6315 = vadd.f32 0.0, %v6314
      %v6316 = vpop.f32.mrb[0].mxu0
      %v6317 = vadd.f32 0.0, %v6316
      %6318 = vmatprep.mubr.f32.mxu0 0.0
      %6319 = vmatmul.mubr.f32.gmra.mrb[0].mxu0 %v537
      %v6320 = vpop.f32.mrb[0].mxu0
      %v6321 = vadd.f32 0.0, %v6320
      %v6322 = vpop.f32.mrb[0].mxu0
      %v6323 = vadd.f32 0.0, %v6322
      %6324 = vmatprep.mubr.f32.mxu0 0.0
      %6325 = vmatmul.mubr.f32.gmra.mrb[0].mxu0 %v540
      %v6326 = vpop.f32.mrb[0].mxu0
      %v6327 = vadd.f32 0.0, %v6326
      %v6328 = vpop.f32.mrb[0].mxu0
      %v6329 = vadd.f32 0.0, %v6328
      %6330 = vmatprep.mubr.f32.mxu0 0.0
      %6331 = vmatmul.mubr.f32.gmra.mrb[0].mxu0 %v543
      %v6332 = vpop.f32.mrb[0].mxu0
      %v6333 = vadd.f32 0.0, %v6332
      %v6334 = vpop.f32.mrb[0].mxu0
      %v6335 = vadd.f32 0.0, %v6334
      %6336 = vmatprep.mubr.f32.mxu0 0.0
      %6337 = vmatmul.mubr.f32.gmra.mrb[0].mxu0 %v546
      %v6338 = vpop.f32.mrb[0].mxu0
      %v6339 = vadd.f32 0.0, %v6338
      %v6340 = vpop.f32.mrb[0].mxu0
      %v6341 = vadd.f32 0.0, %v6340
      %6342 = vmatprep.mubr.f32.mxu0 0.0
      %6343 = vmatmul.mubr.f32.gmra.mrb[0].mxu0 %v549
      %v6344 = vpop.f32.mrb[0].mxu0
      %v6345 = vadd.f32 0.0, %v6344
      %v6346 = vpop.f32.mrb[0].mxu0
      %v6347 = vadd.f32 0.0, %v6346
      %6348 = vmatprep.mubr.f32.mxu0 0.0
      %6349 = vmatmul.mubr.f32.gmra.mrb[0].mxu0 %v552
      %v6350 = vpop.f32.mrb[0].mxu0
      %v6351 = vadd.f32 0.0, %v6350
      %v6352 = vpop.f32.mrb[0].mxu0
      %v6353 = vadd.f32 0.0, %v6352
      %6354 = vmatprep.mubr.f32.mxu0 0.0
      %6355 = vmatmul.mubr.f32.gmra.mrb[0].mxu0 %v555
      %v6356 = vpop.f32.mrb[0].mxu0
      %v6357 = vadd.f32 0.0, %v6356
      %v6358 = vpop.f32.mrb[0].mxu0
      %v6359 = vadd.f32 0.0, %v6358
      %6360 = vmatprep.mubr.f32.mxu0 0.0
      %6361 = vmatmul.mubr.f32.gmra.mrb[0].mxu0 %v558
      %v6362 = vpop.f32.mrb[0].mxu0
      %v6363 = vadd.f32 0.0, %v6362
      %v6364 = vpop.f32.mrb[0].mxu0
      %v6365 = vadd.f32 0.0, %v6364
      %6366 = vmatprep.mubr.f32.mxu0 0.0
      %6367 = vmatmul.mubr.f32.gmra.mrb[0].mxu0 %v561
      %v6368 = vpop.f32.mrb[0].mxu0
      %v6369 = vadd.f32 0.0, %v6368
      %v6370 = vpop.f32.mrb[0].mxu0
      %v6371 = vadd.f32 0.0, %v6370
      %6372 = vmatprep.mubr.f32.mxu0 0.0
      %6373 = vmatmul.mubr.f32.gmra.mrb[0].mxu0 %v564
      %v6374 = vpop.f32.mrb[0].mxu0
      %v6375 = vadd.f32 0.0, %v6374
      %v6376 = vpop.f32.mrb[0].mxu0
      %v6377 = vadd.f32 0.0, %v6376
      %6378 = vmatprep.mubr.f32.mxu0 0.0
      %6379 = vmatmul.mubr.f32.gmra.mrb[0].mxu0 %v567
      %v6380 = vpop.f32.mrb[0].mxu0
      %v6381 = vadd.f32 0.0, %v6380
      %v6382 = vpop.f32.mrb[0].mxu0
      %v6383 = vadd.f32 0.0, %v6382
      %6384 = vmatprep.mubr.f32.mxu0 0.0
      %6385 = vmatmul.mubr.f32.gmra.mrb[0].mxu0 %v570
      %v6386 = vpop.f32.mrb[0].mxu0
      %v6387 = vadd.f32 0.0, %v6386
      %v6388 = vpop.f32.mrb[0].mxu0
      %v6389 = vadd.f32 0.0, %v6388
      %6390 = vmatprep.mubr.f32.mxu0 0.0
      %6391 = vmatmul.mubr.f32.gmra.mrb[0].mxu0 %v573
      %v6392 = vpop.f32.mrb[0].mxu0
      %v6393 = vadd.f32 0.0, %v6392
      %v6394 = vpop.f32.mrb[0].mxu0
      %v6395 = vadd.f32 0.0, %v6394
      %6396 = vmatprep.mubr.f32.mxu0 0.0
      %6397 = vmatmul.mubr.f32.gmra.mrb[0].mxu0 %v576
      %v6398 = vpop.f32.mrb[0].mxu0
      %v6399 = vadd.f32 0.0, %v6398
      %v6400 = vpop.f32.mrb[0].mxu0
      %v6401 = vadd.f32 0.0, %v6400
      %6402 = vmatprep.mubr.f32.mxu0 0.0
      %6403 = vmatmul.mubr.f32.gmra.mrb[0].mxu0 %v579
      %v6404 = vpop.f32.mrb[0].mxu0
      %v6405 = vadd.f32 0.0, %v6404
      %v6406 = vpop.f32.mrb[0].mxu0
      %v6407 = vadd.f32 0.0, %v6406
      %6408 = vmatprep.mubr.f32.mxu0 0.0
      %6409 = vmatmul.mubr.f32.gmra.mrb[0].mxu0 %v582
      %v6410 = vpop.f32.mrb[0].mxu0
      %v6411 = vadd.f32 0.0, %v6410
      %v6412 = vpop.f32.mrb[0].mxu0
      %v6413 = vadd.f32 0.0, %v6412
      %6414 = vmatprep.mubr.f32.mxu0 0.0
      %6415 = vmatmul.mubr.f32.gmra.mrb[0].mxu0 %v585
      %v6416 = vpop.f32.mrb[0].mxu0
      %v6417 = vadd.f32 0.0, %v6416
      %v6418 = vpop.f32.mrb[0].mxu0
      %v6419 = vadd.f32 0.0, %v6418
      %6420 = vmatprep.mubr.f32.mxu0 0.0
      %6421 = vmatmul.mubr.f32.gmra.mrb[0].mxu0 %v588
      %v6422 = vpop.f32.mrb[0].mxu0
      %v6423 = vadd.f32 0.0, %v6422
      %v6424 = vpop.f32.mrb[0].mxu0
      %v6425 = vadd.f32 0.0, %v6424
      %6426 = vmatprep.mubr.f32.mxu0 0.0
      %6427 = vmatmul.mubr.f32.gmra.mrb[0].mxu0 %v591
      %v6428 = vpop.f32.mrb[0].mxu0
      %v6429 = vadd.f32 0.0, %v6428
      %v6430 = vpop.f32.mrb[0].mxu0
      %v6431 = vadd.f32 0.0, %v6430
      %6432 = vmatprep.mubr.f32.mxu0 0.0
      %6433 = vmatmul.mubr.f32.gmra.mrb[0].mxu0 %v594
      %v6434 = vpop.f32.mrb[0].mxu0
      %v6435 = vadd.f32 0.0, %v6434
      %v6436 = vpop.f32.mrb[0].mxu0
      %v6437 = vadd.f32 0.0, %v6436
      %6438 = vmatprep.mubr.f32.mxu0 0.0
      %6439 = vmatmul.mubr.f32.gmra.mrb[0].mxu0 %v597
      %v6440 = vpop.f32.mrb[0].mxu0
      %v6441 = vadd.f32 0.0, %v6440
      %v6442 = vpop.f32.mrb[0].mxu0
      %v6443 = vadd.f32 0.0, %v6442
      %6444 = vmatprep.mubr.f32.mxu0 0.0
      %6445 = vmatmul.mubr.f32.gmra.mrb[0].mxu0 %v600
      %v6446 = vpop.f32.mrb[0].mxu0
      %v6447 = vadd.f32 0.0, %v6446
      %v6448 = vpop.f32.mrb[0].mxu0
      %v6449 = vadd.f32 0.0, %v6448
      %6450 = vmatprep.mubr.f32.mxu0 0.0
      %6451 = vmatmul.mubr.f32.gmra.mrb[0].mxu0 %v603
      %v6452 = vpop.f32.mrb[0].mxu0
      %v6453 = vadd.f32 0.0, %v6452
      %v6454 = vpop.f32.mrb[0].mxu0
      %v6455 = vadd.f32 0.0, %v6454
      %6456 = vmatprep.mubr.f32.mxu0 0.0
      %6457 = vmatmul.mubr.f32.gmra.mrb[0].mxu0 %v606
      %v6458 = vpop.f32.mrb[0].mxu0
      %v6459 = vadd.f32 0.0, %v6458
      %v6460 = vpop.f32.mrb[0].mxu0
      %v6461 = vadd.f32 0.0, %v6460
      %6462 = vmatprep.mubr.f32.mxu0 0.0
      %6463 = vmatmul.mubr.f32.gmra.mrb[0].mxu0 %v609
      %v6464 = vpop.f32.mrb[0].mxu0
      %v6465 = vadd.f32 0.0, %v6464
      %v6466 = vpop.f32.mrb[0].mxu0
      %v6467 = vadd.f32 0.0, %v6466
      %6468 = vmatprep.mubr.f32.mxu0 0.0
      %6469 = vmatmul.mubr.f32.gmra.mrb[0].mxu0 %v612
      %v6470 = vpop.f32.mrb[0].mxu0
      %v6471 = vadd.f32 0.0, %v6470
      %v6472 = vpop.f32.mrb[0].mxu0
      %v6473 = vadd.f32 0.0, %v6472
      %6474 = vmatprep.mubr.f32.mxu0 0.0
      %6475 = vmatmul.mubr.f32.gmra.mrb[0].mxu0 %v615
      %v6476 = vpop.f32.mrb[0].mxu0
      %v6477 = vadd.f32 0.0, %v6476
      %v6478 = vpop.f32.mrb[0].mxu0
      %v6479 = vadd.f32 0.0, %v6478
      %6480 = vmatprep.mubr.f32.mxu0 0.0
      %6481 = vmatmul.mubr.f32.gmra.mrb[0].mxu0 %v618
      %v6482 = vpop.f32.mrb[0].mxu0
      %v6483 = vadd.f32 0.0, %v6482
      %v6484 = vpop.f32.mrb[0].mxu0
      %v6485 = vadd.f32 0.0, %v6484
      %6486 = vmatprep.mubr.f32.mxu0 0.0
      %6487 = vmatmul.mubr.f32.gmra.mrb[0].mxu0 %v621
      %v6488 = vpop.f32.mrb[0].mxu0
      %v6489 = vadd.f32 0.0, %v6488
      %v6490 = vpop.f32.mrb[0].mxu0
      %v6491 = vadd.f32 0.0, %v6490
      %6492 = vdwg.mxu0
      %6493 = vmatprep.subr.mxu0 0.0
      %6494 = vmatpush1.msra.mxu0 %v5683
      %6495 = vmatprep.subr.mxu0 0.0
      %6496 = vmatpush1.msra.mxu0 %v5688
      %6497 = vmatprep.subr.mxu0 0.0
      %6498 = vmatpush1.msra.mxu0 0.0
      %6499 = vmatprep.subr.mxu0 0.0
      %6500 = vmatpush1.msra.mxu0 0.0
      %6501 = vmatprep.subr.mxu0 0.0
      %6502 = vmatpush1.msra.mxu0 0.0
      %6503 = vmatprep.subr.mxu0 0.0
      %6504 = vmatpush1.msra.mxu0 0.0
      %6505 = vmatprep.subr.mxu0 0.0
      %6506 = vmatpush1.msra.mxu0 0.0
      %6507 = vmatprep.subr.mxu0 0.0
      %6508 = vmatpush1.msra.mxu0 0.0
      %6509 = vmatprep.subr.mxu0 0.0
      %6510 = vmatpush1.msra.mxu0 0.0
      %6511 = vmatprep.subr.mxu0 0.0
      %6512 = vmatpush1.msra.mxu0 0.0
      %6513 = vmatprep.subr.mxu0 0.0
      %6514 = vmatpush1.msra.mxu0 0.0
      %6515 = vmatprep.subr.mxu0 0.0
      %6516 = vmatpush1.msra.mxu0 0.0
      %6517 = vmatprep.subr.mxu0 0.0
      %6518 = vmatpush1.msra.mxu0 0.0
      %6519 = vmatprep.subr.mxu0 0.0
      %6520 = vmatpush1.msra.mxu0 0.0
      %6521 = vmatprep.subr.mxu0 0.0
      %6522 = vmatpush1.msra.mxu0 0.0
      %6523 = vmatprep.subr.mxu0 0.0
      %6524 = vmatpush1.msra.mxu0 0.0
      %6525 = vmatprep.subr.mxu0 0.0
      %6526 = vmatpush1.msra.mxu0 0.0
      %6527 = vmatprep.subr.mxu0 0.0
      %6528 = vmatpush1.msra.mxu0 0.0
      %6529 = vmatprep.subr.mxu0 0.0
      %6530 = vmatpush1.msra.mxu0 0.0
      %6531 = vmatprep.subr.mxu0 0.0
      %6532 = vmatpush1.msra.mxu0 0.0
      %6533 = vmatprep.subr.mxu0 0.0
      %6534 = vmatpush1.msra.mxu0 0.0
      %6535 = vmatprep.subr.mxu0 0.0
      %6536 = vmatpush1.msra.mxu0 0.0
      %6537 = vmatprep.subr.mxu0 0.0
      %6538 = vmatpush1.msra.mxu0 0.0
      %6539 = vmatprep.subr.mxu0 0.0
      %6540 = vmatpush1.msra.mxu0 0.0
      %6541 = vmatprep.subr.mxu0 0.0
      %6542 = vmatpush1.msra.mxu0 0.0
      %6543 = vmatprep.subr.mxu0 0.0
      %6544 = vmatpush1.msra.mxu0 0.0
      %6545 = vmatprep.subr.mxu0 0.0
      %6546 = vmatpush1.msra.mxu0 0.0
      %6547 = vmatprep.subr.mxu0 0.0
      %6548 = vmatpush1.msra.mxu0 0.0
      %6549 = vmatprep.subr.mxu0 0.0
      %6550 = vmatpush1.msra.mxu0 0.0
      %6551 = vmatprep.subr.mxu0 0.0
      %6552 = vmatpush1.msra.mxu0 0.0
      %6553 = vmatprep.subr.mxu0 0.0
      %6554 = vmatpush1.msra.mxu0 0.0
      %6555 = vmatprep.subr.mxu0 0.0
      %6556 = vmatpush1.msra.mxu0 0.0
      %6557 = vmatprep.mubr.f32.mxu0 0.0
      %6558 = vmatmul.mubr.f32.gmra.mrb[0].mxu0 %v456
      %v6559 = vpop.f32.mrb[0].mxu0
      %v6560 = vadd.f32 0.0, %v6559
      %v6561 = vpop.f32.mrb[0].mxu0
      %6562 = vmatprep.mubr.f32.mxu0 0.0
      %6563 = vmatmul.mubr.f32.gmra.mrb[0].mxu0 %v459
      %v6564 = vpop.f32.mrb[0].mxu0
      %v6565 = vadd.f32 0.0, %v6564
      %v6566 = vpop.f32.mrb[0].mxu0
      %6567 = vmatprep.mubr.f32.mxu0 0.0
      %6568 = vmatmul.mubr.f32.gmra.mrb[0].mxu0 %v462
      %v6569 = vpop.f32.mrb[0].mxu0
      %v6570 = vadd.f32 0.0, %v6569
      %v6571 = vpop.f32.mrb[0].mxu0
      %6572 = vmatprep.mubr.f32.mxu0 0.0
      %6573 = vmatmul.mubr.f32.gmra.mrb[0].mxu0 %v465
      %v6574 = vpop.f32.mrb[0].mxu0
      %v6575 = vadd.f32 0.0, %v6574
      %v6576 = vpop.f32.mrb[0].mxu0
      %6577 = vmatprep.mubr.f32.mxu0 0.0
      %6578 = vmatmul.mubr.f32.gmra.mrb[0].mxu0 %v468
      %v6579 = vpop.f32.mrb[0].mxu0
      %v6580 = vadd.f32 0.0, %v6579
      %v6581 = vpop.f32.mrb[0].mxu0
      %6582 = vmatprep.mubr.f32.mxu0 0.0
      %6583 = vmatmul.mubr.f32.gmra.mrb[0].mxu0 %v471
      %v6584 = vpop.f32.mrb[0].mxu0
      %v6585 = vadd.f32 0.0, %v6584
      %v6586 = vpop.f32.mrb[0].mxu0
      %6587 = vmatprep.mubr.f32.mxu0 0.0
      %6588 = vmatmul.mubr.f32.gmra.mrb[0].mxu0 %v474
      %v6589 = vpop.f32.mrb[0].mxu0
      %v6590 = vadd.f32 0.0, %v6589
      %v6591 = vpop.f32.mrb[0].mxu0
      %6592 = vmatprep.mubr.f32.mxu0 0.0
      %6593 = vmatmul.mubr.f32.gmra.mrb[0].mxu0 %v477
      %v6594 = vpop.f32.mrb[0].mxu0
      %v6595 = vadd.f32 0.0, %v6594
      %v6596 = vpop.f32.mrb[0].mxu0
      %6597 = vmatprep.mubr.f32.mxu0 0.0
      %6598 = vmatmul.mubr.f32.gmra.mrb[0].mxu0 %v480
      %v6599 = vpop.f32.mrb[0].mxu0
      %v6600 = vadd.f32 0.0, %v6599
      %v6601 = vpop.f32.mrb[0].mxu0
      %6602 = vmatprep.mubr.f32.mxu0 0.0
      %6603 = vmatmul.mubr.f32.gmra.mrb[0].mxu0 %v483
      %v6604 = vpop.f32.mrb[0].mxu0
      %v6605 = vadd.f32 0.0, %v6604
      %v6606 = vpop.f32.mrb[0].mxu0
      %6607 = vmatprep.mubr.f32.mxu0 0.0
      %6608 = vmatmul.mubr.f32.gmra.mrb[0].mxu0 %v486
      %v6609 = vpop.f32.mrb[0].mxu0
      %v6610 = vadd.f32 0.0, %v6609
      %v6611 = vpop.f32.mrb[0].mxu0
      %6612 = vmatprep.mubr.f32.mxu0 0.0
      %6613 = vmatmul.mubr.f32.gmra.mrb[0].mxu0 %v489
      %v6614 = vpop.f32.mrb[0].mxu0
      %v6615 = vadd.f32 0.0, %v6614
      %v6616 = vpop.f32.mrb[0].mxu0
      %6617 = vmatprep.mubr.f32.mxu0 0.0
      %6618 = vmatmul.mubr.f32.gmra.mrb[0].mxu0 %v492
      %v6619 = vpop.f32.mrb[0].mxu0
      %v6620 = vadd.f32 0.0, %v6619
      %v6621 = vpop.f32.mrb[0].mxu0
      %6622 = vmatprep.mubr.f32.mxu0 0.0
      %6623 = vmatmul.mubr.f32.gmra.mrb[0].mxu0 %v495
      %v6624 = vpop.f32.mrb[0].mxu0
      %v6625 = vadd.f32 0.0, %v6624
      %v6626 = vpop.f32.mrb[0].mxu0
      %6627 = vmatprep.mubr.f32.mxu0 0.0
      %6628 = vmatmul.mubr.f32.gmra.mrb[0].mxu0 %v498
      %v6629 = vpop.f32.mrb[0].mxu0
      %v6630 = vadd.f32 0.0, %v6629
      %v6631 = vpop.f32.mrb[0].mxu0
      %6632 = vmatprep.mubr.f32.mxu0 0.0
      %6633 = vmatmul.mubr.f32.gmra.mrb[0].mxu0 %v501
      %v6634 = vpop.f32.mrb[0].mxu0
      %v6635 = vadd.f32 0.0, %v6634
      %v6636 = vpop.f32.mrb[0].mxu0
      %6637 = vmatprep.mubr.f32.mxu0 0.0
      %6638 = vmatmul.mubr.f32.gmra.mrb[0].mxu0 %v504
      %v6639 = vpop.f32.mrb[0].mxu0
      %v6640 = vadd.f32 0.0, %v6639
      %v6641 = vpop.f32.mrb[0].mxu0
      %6642 = vmatprep.mubr.f32.mxu0 0.0
      %6643 = vmatmul.mubr.f32.gmra.mrb[0].mxu0 %v507
      %v6644 = vpop.f32.mrb[0].mxu0
      %v6645 = vadd.f32 0.0, %v6644
      %v6646 = vpop.f32.mrb[0].mxu0
      %6647 = vmatprep.mubr.f32.mxu0 0.0
      %6648 = vmatmul.mubr.f32.gmra.mrb[0].mxu0 %v510
      %v6649 = vpop.f32.mrb[0].mxu0
      %v6650 = vadd.f32 0.0, %v6649
      %v6651 = vpop.f32.mrb[0].mxu0
      %6652 = vmatprep.mubr.f32.mxu0 0.0
      %6653 = vmatmul.mubr.f32.gmra.mrb[0].mxu0 %v513
      %v6654 = vpop.f32.mrb[0].mxu0
      %v6655 = vadd.f32 0.0, %v6654
      %v6656 = vpop.f32.mrb[0].mxu0
      %6657 = vmatprep.mubr.f32.mxu0 0.0
      %6658 = vmatmul.mubr.f32.gmra.mrb[0].mxu0 %v516
      %v6659 = vpop.f32.mrb[0].mxu0
      %v6660 = vadd.f32 0.0, %v6659
      %v6661 = vpop.f32.mrb[0].mxu0
      %6662 = vmatprep.mubr.f32.mxu0 0.0
      %6663 = vmatmul.mubr.f32.gmra.mrb[0].mxu0 %v519
      %v6664 = vpop.f32.mrb[0].mxu0
      %v6665 = vadd.f32 0.0, %v6664
      %v6666 = vpop.f32.mrb[0].mxu0
      %6667 = vmatprep.mubr.f32.mxu0 0.0
      %6668 = vmatmul.mubr.f32.gmra.mrb[0].mxu0 %v522
      %v6669 = vpop.f32.mrb[0].mxu0
      %v6670 = vadd.f32 0.0, %v6669
      %v6671 = vpop.f32.mrb[0].mxu0
      %6672 = vmatprep.mubr.f32.mxu0 0.0
      %6673 = vmatmul.mubr.f32.gmra.mrb[0].mxu0 %v525
      %v6674 = vpop.f32.mrb[0].mxu0
      %v6675 = vadd.f32 0.0, %v6674
      %v6676 = vpop.f32.mrb[0].mxu0
      %6677 = vmatprep.mubr.f32.mxu0 0.0
      %6678 = vmatmul.mubr.f32.gmra.mrb[0].mxu0 %v528
      %v6679 = vpop.f32.mrb[0].mxu0
      %v6680 = vadd.f32 0.0, %v6679
      %v6681 = vpop.f32.mrb[0].mxu0
      %6682 = vmatprep.mubr.f32.mxu0 0.0
      %6683 = vmatmul.mubr.f32.gmra.mrb[0].mxu0 %v531
      %v6684 = vpop.f32.mrb[0].mxu0
      %v6685 = vadd.f32 0.0, %v6684
      %v6686 = vpop.f32.mrb[0].mxu0
      %6687 = vmatprep.mubr.f32.mxu0 0.0
      %6688 = vmatmul.mubr.f32.gmra.mrb[0].mxu0 %v534
      %v6689 = vpop.f32.mrb[0].mxu0
      %v6690 = vadd.f32 0.0, %v6689
      %v6691 = vpop.f32.mrb[0].mxu0
      %6692 = vmatprep.mubr.f32.mxu0 0.0
      %6693 = vmatmul.mubr.f32.gmra.mrb[0].mxu0 %v537
      %v6694 = vpop.f32.mrb[0].mxu0
      %v6695 = vadd.f32 0.0, %v6694
      %v6696 = vpop.f32.mrb[0].mxu0
      %6697 = vmatprep.mubr.f32.mxu0 0.0
      %6698 = vmatmul.mubr.f32.gmra.mrb[0].mxu0 %v540
      %v6699 = vpop.f32.mrb[0].mxu0
      %v6700 = vadd.f32 0.0, %v6699
      %v6701 = vpop.f32.mrb[0].mxu0
      %6702 = vmatprep.mubr.f32.mxu0 0.0
      %6703 = vmatmul.mubr.f32.gmra.mrb[0].mxu0 %v543
      %v6704 = vpop.f32.mrb[0].mxu0
      %v6705 = vadd.f32 0.0, %v6704
      %v6706 = vpop.f32.mrb[0].mxu0
      %6707 = vmatprep.mubr.f32.mxu0 0.0
      %6708 = vmatmul.mubr.f32.gmra.mrb[0].mxu0 %v546
      %v6709 = vpop.f32.mrb[0].mxu0
      %v6710 = vadd.f32 0.0, %v6709
      %v6711 = vpop.f32.mrb[0].mxu0
      %6712 = vmatprep.mubr.f32.mxu0 0.0
      %6713 = vmatmul.mubr.f32.gmra.mrb[0].mxu0 %v549
      %v6714 = vpop.f32.mrb[0].mxu0
      %v6715 = vadd.f32 0.0, %v6714
      %v6716 = vpop.f32.mrb[0].mxu0
      %6717 = vmatprep.mubr.f32.mxu0 0.0
      %6718 = vmatmul.mubr.f32.gmra.mrb[0].mxu0 %v552
      %v6719 = vpop.f32.mrb[0].mxu0
      %v6720 = vadd.f32 0.0, %v6719
      %v6721 = vpop.f32.mrb[0].mxu0
      %6722 = vmatprep.mubr.f32.mxu0 0.0
      %6723 = vmatmul.mubr.f32.gmra.mrb[0].mxu0 %v555
      %v6724 = vpop.f32.mrb[0].mxu0
      %v6725 = vadd.f32 0.0, %v6724
      %v6726 = vpop.f32.mrb[0].mxu0
      %6727 = vmatprep.mubr.f32.mxu0 0.0
      %6728 = vmatmul.mubr.f32.gmra.mrb[0].mxu0 %v558
      %v6729 = vpop.f32.mrb[0].mxu0
      %v6730 = vadd.f32 0.0, %v6729
      %v6731 = vpop.f32.mrb[0].mxu0
      %6732 = vmatprep.mubr.f32.mxu0 0.0
      %6733 = vmatmul.mubr.f32.gmra.mrb[0].mxu0 %v561
      %v6734 = vpop.f32.mrb[0].mxu0
      %v6735 = vadd.f32 0.0, %v6734
      %v6736 = vpop.f32.mrb[0].mxu0
      %6737 = vmatprep.mubr.f32.mxu0 0.0
      %6738 = vmatmul.mubr.f32.gmra.mrb[0].mxu0 %v564
      %v6739 = vpop.f32.mrb[0].mxu0
      %v6740 = vadd.f32 0.0, %v6739
      %v6741 = vpop.f32.mrb[0].mxu0
      %6742 = vmatprep.mubr.f32.mxu0 0.0
      %6743 = vmatmul.mubr.f32.gmra.mrb[0].mxu0 %v567
      %v6744 = vpop.f32.mrb[0].mxu0
      %v6745 = vadd.f32 0.0, %v6744
      %v6746 = vpop.f32.mrb[0].mxu0
      %6747 = vmatprep.mubr.f32.mxu0 0.0
      %6748 = vmatmul.mubr.f32.gmra.mrb[0].mxu0 %v570
      %v6749 = vpop.f32.mrb[0].mxu0
      %v6750 = vadd.f32 0.0, %v6749
      %v6751 = vpop.f32.mrb[0].mxu0
      %6752 = vmatprep.mubr.f32.mxu0 0.0
      %6753 = vmatmul.mubr.f32.gmra.mrb[0].mxu0 %v573
      %v6754 = vpop.f32.mrb[0].mxu0
      %v6755 = vadd.f32 0.0, %v6754
      %v6756 = vpop.f32.mrb[0].mxu0
      %6757 = vmatprep.mubr.f32.mxu0 0.0
      %6758 = vmatmul.mubr.f32.gmra.mrb[0].mxu0 %v576
      %v6759 = vpop.f32.mrb[0].mxu0
      %v6760 = vadd.f32 0.0, %v6759
      %v6761 = vpop.f32.mrb[0].mxu0
      %6762 = vmatprep.mubr.f32.mxu0 0.0
      %6763 = vmatmul.mubr.f32.gmra.mrb[0].mxu0 %v579
      %v6764 = vpop.f32.mrb[0].mxu0
      %v6765 = vadd.f32 0.0, %v6764
      %v6766 = vpop.f32.mrb[0].mxu0
      %6767 = vmatprep.mubr.f32.mxu0 0.0
      %6768 = vmatmul.mubr.f32.gmra.mrb[0].mxu0 %v582
      %v6769 = vpop.f32.mrb[0].mxu0
      %v6770 = vadd.f32 0.0, %v6769
      %v6771 = vpop.f32.mrb[0].mxu0
      %6772 = vmatprep.mubr.f32.mxu0 0.0
      %6773 = vmatmul.mubr.f32.gmra.mrb[0].mxu0 %v585
      %v6774 = vpop.f32.mrb[0].mxu0
      %v6775 = vadd.f32 0.0, %v6774
      %v6776 = vpop.f32.mrb[0].mxu0
      %6777 = vmatprep.mubr.f32.mxu0 0.0
      %6778 = vmatmul.mubr.f32.gmra.mrb[0].mxu0 %v588
      %v6779 = vpop.f32.mrb[0].mxu0
      %v6780 = vadd.f32 0.0, %v6779
      %v6781 = vpop.f32.mrb[0].mxu0
      %6782 = vmatprep.mubr.f32.mxu0 0.0
      %6783 = vmatmul.mubr.f32.gmra.mrb[0].mxu0 %v591
      %v6784 = vpop.f32.mrb[0].mxu0
      %v6785 = vadd.f32 0.0, %v6784
      %v6786 = vpop.f32.mrb[0].mxu0
      %6787 = vmatprep.mubr.f32.mxu0 0.0
      %6788 = vmatmul.mubr.f32.gmra.mrb[0].mxu0 %v594
      %v6789 = vpop.f32.mrb[0].mxu0
      %v6790 = vadd.f32 0.0, %v6789
      %v6791 = vpop.f32.mrb[0].mxu0
      %6792 = vmatprep.mubr.f32.mxu0 0.0
      %6793 = vmatmul.mubr.f32.gmra.mrb[0].mxu0 %v597
      %v6794 = vpop.f32.mrb[0].mxu0
      %v6795 = vadd.f32 0.0, %v6794
      %v6796 = vpop.f32.mrb[0].mxu0
      %6797 = vmatprep.mubr.f32.mxu0 0.0
      %6798 = vmatmul.mubr.f32.gmra.mrb[0].mxu0 %v600
      %v6799 = vpop.f32.mrb[0].mxu0
      %v6800 = vadd.f32 0.0, %v6799
      %v6801 = vpop.f32.mrb[0].mxu0
      %6802 = vmatprep.mubr.f32.mxu0 0.0
      %6803 = vmatmul.mubr.f32.gmra.mrb[0].mxu0 %v603
      %v6804 = vpop.f32.mrb[0].mxu0
      %v6805 = vadd.f32 0.0, %v6804
      %v6806 = vpop.f32.mrb[0].mxu0
      %6807 = vmatprep.mubr.f32.mxu0 0.0
      %6808 = vmatmul.mubr.f32.gmra.mrb[0].mxu0 %v606
      %v6809 = vpop.f32.mrb[0].mxu0
      %v6810 = vadd.f32 0.0, %v6809
      %v6811 = vpop.f32.mrb[0].mxu0
      %6812 = vmatprep.mubr.f32.mxu0 0.0
      %6813 = vmatmul.mubr.f32.gmra.mrb[0].mxu0 %v609
      %v6814 = vpop.f32.mrb[0].mxu0
      %v6815 = vadd.f32 0.0, %v6814
      %v6816 = vpop.f32.mrb[0].mxu0
      %6817 = vmatprep.mubr.f32.mxu0 0.0
      %6818 = vmatmul.mubr.f32.gmra.mrb[0].mxu0 %v612
      %v6819 = vpop.f32.mrb[0].mxu0
      %v6820 = vadd.f32 0.0, %v6819
      %v6821 = vpop.f32.mrb[0].mxu0
      %6822 = vmatprep.mubr.f32.mxu0 0.0
      %6823 = vmatmul.mubr.f32.gmra.mrb[0].mxu0 %v615
      %v6824 = vpop.f32.mrb[0].mxu0
      %v6825 = vadd.f32 0.0, %v6824
      %v6826 = vpop.f32.mrb[0].mxu0
      %6827 = vmatprep.mubr.f32.mxu0 0.0
      %6828 = vmatmul.mubr.f32.gmra.mrb[0].mxu0 %v618
      %v6829 = vpop.f32.mrb[0].mxu0
      %v6830 = vadd.f32 0.0, %v6829
      %v6831 = vpop.f32.mrb[0].mxu0
      %6832 = vmatprep.mubr.f32.mxu0 0.0
      %6833 = vmatmul.mubr.f32.gmra.mrb[0].mxu0 %v621
      %v6834 = vpop.f32.mrb[0].mxu0
      %v6835 = vadd.f32 0.0, %v6834
      %v6836 = vpop.f32.mrb[0].mxu0
      %6837 = vdwg.mxu0
      %s6838 = scalar_lea.vmem [#allocation2], 4480
      %6839 = vst [vmem:[%s6838] sm:$0xff] %v5758
      %6840 = vst [vmem:[%s6838 + $0x8] sm:$0xff] %v5760
      %6841 = vst [vmem:[%s6838 + $0x10] sm:$0xff] %v6159
      %6842 = vst [vmem:[%s6838 + $0x18] sm:$0xff] %v6161
      %6843 = vst [vmem:[%s6838 + $0x20] sm:$0xff] %v6560
      %6844 = vst [vmem:[%s6838 + $0x28] sm:$0xff] %v5764
      %6845 = vst [vmem:[%s6838 + $0x30] sm:$0xff] %v5766
      %6846 = vst [vmem:[%s6838 + $0x38] sm:$0xff] %v6165
      %6847 = vst [vmem:[%s6838 + $0x40] sm:$0xff] %v6167
      %6848 = vst [vmem:[%s6838 + $0x48] sm:$0xff] %v6565
      %6849 = vst [vmem:[%s6838 + $0x50] sm:$0xff] %v5770
      %6850 = vst [vmem:[%s6838 + $0x58] sm:$0xff] %v5772
      %6851 = vst [vmem:[%s6838 + $0x60] sm:$0xff] %v6171
      %6852 = vst [vmem:[%s6838 + $0x68] sm:$0xff] %v6173
      %6853 = vst [vmem:[%s6838 + $0x70] sm:$0xff] %v6570
      %6854 = vst [vmem:[%s6838 + $0x78] sm:$0xff] %v5776
      %6855 = vst [vmem:[%s6838 + $0x80] sm:$0xff] %v5778
      %6856 = vst [vmem:[%s6838 + $0x88] sm:$0xff] %v6177
      %6857 = vst [vmem:[%s6838 + $0x90] sm:$0xff] %v6179
      %6858 = vst [vmem:[%s6838 + $0x98] sm:$0xff] %v6575
      %6859 = vst [vmem:[%s6838 + $0xa0] sm:$0xff] %v5782
      %6860 = vst [vmem:[%s6838 + $0xa8] sm:$0xff] %v5784
      %6861 = vst [vmem:[%s6838 + $0xb0] sm:$0xff] %v6183
      %6862 = vst [vmem:[%s6838 + $0xb8] sm:$0xff] %v6185
      %6863 = vst [vmem:[%s6838 + $0xc0] sm:$0xff] %v6580
      %6864 = vst [vmem:[%s6838 + $0xc8] sm:$0xff] %v5788
      %6865 = vst [vmem:[%s6838 + $0xd0] sm:$0xff] %v5790
      %6866 = vst [vmem:[%s6838 + $0xd8] sm:$0xff] %v6189
      %6867 = vst [vmem:[%s6838 + $0xe0] sm:$0xff] %v6191
      %6868 = vst [vmem:[%s6838 + $0xe8] sm:$0xff] %v6585
      %6869 = vst [vmem:[%s6838 + $0xf0] sm:$0xff] %v5794
      %6870 = vst [vmem:[%s6838 + $0xf8] sm:$0xff] %v5796
      %6871 = vst [vmem:[%s6838 + $0x100] sm:$0xff] %v6195
      %6872 = vst [vmem:[%s6838 + $0x108] sm:$0xff] %v6197
      %6873 = vst [vmem:[%s6838 + $0x110] sm:$0xff] %v6590
      %6874 = vst [vmem:[%s6838 + $0x118] sm:$0xff] %v5800
      %6875 = vst [vmem:[%s6838 + $0x120] sm:$0xff] %v5802
      %6876 = vst [vmem:[%s6838 + $0x128] sm:$0xff] %v6201
      %6877 = vst [vmem:[%s6838 + $0x130] sm:$0xff] %v6203
      %6878 = vst [vmem:[%s6838 + $0x138] sm:$0xff] %v6595
      %6879 = vst [vmem:[%s6838 + $0x140] sm:$0xff] %v5806
      %6880 = vst [vmem:[%s6838 + $0x148] sm:$0xff] %v5808
      %6881 = vst [vmem:[%s6838 + $0x150] sm:$0xff] %v6207
      %6882 = vst [vmem:[%s6838 + $0x158] sm:$0xff] %v6209
      %6883 = vst [vmem:[%s6838 + $0x160] sm:$0xff] %v6600
      %6884 = vst [vmem:[%s6838 + $0x168] sm:$0xff] %v5812
      %6885 = vst [vmem:[%s6838 + $0x170] sm:$0xff] %v5814
      %6886 = vst [vmem:[%s6838 + $0x178] sm:$0xff] %v6213
      %6887 = vst [vmem:[%s6838 + $0x180] sm:$0xff] %v6215
      %6888 = vst [vmem:[%s6838 + $0x188] sm:$0xff] %v6605
      %6889 = vst [vmem:[%s6838 + $0x190] sm:$0xff] %v5818
      %6890 = vst [vmem:[%s6838 + $0x198] sm:$0xff] %v5820
      %6891 = vst [vmem:[%s6838 + $0x1a0] sm:$0xff] %v6219
      %6892 = vst [vmem:[%s6838 + $0x1a8] sm:$0xff] %v6221
      %6893 = vst [vmem:[%s6838 + $0x1b0] sm:$0xff] %v6610
      %6894 = vst [vmem:[%s6838 + $0x1b8] sm:$0xff] %v5824
      %6895 = vst [vmem:[%s6838 + $0x1c0] sm:$0xff] %v5826
      %6896 = vst [vmem:[%s6838 + $0x1c8] sm:$0xff] %v6225
      %6897 = vst [vmem:[%s6838 + $0x1d0] sm:$0xff] %v6227
      %6898 = vst [vmem:[%s6838 + $0x1d8] sm:$0xff] %v6615
      %6899 = vst [vmem:[%s6838 + $0x1e0] sm:$0xff] %v5830
      %6900 = vst [vmem:[%s6838 + $0x1e8] sm:$0xff] %v5832
      %6901 = vst [vmem:[%s6838 + $0x1f0] sm:$0xff] %v6231
      %6902 = vst [vmem:[%s6838 + $0x1f8] sm:$0xff] %v6233
      %6903 = vst [vmem:[%s6838 + $0x200] sm:$0xff] %v6620
      %6904 = vst [vmem:[%s6838 + $0x208] sm:$0xff] %v5836
      %6905 = vst [vmem:[%s6838 + $0x210] sm:$0xff] %v5838
      %6906 = vst [vmem:[%s6838 + $0x218] sm:$0xff] %v6237
      %6907 = vst [vmem:[%s6838 + $0x220] sm:$0xff] %v6239
      %6908 = vst [vmem:[%s6838 + $0x228] sm:$0xff] %v6625
      %6909 = vst [vmem:[%s6838 + $0x230] sm:$0xff] %v5842
      %6910 = vst [vmem:[%s6838 + $0x238] sm:$0xff] %v5844
      %6911 = vst [vmem:[%s6838 + $0x240] sm:$0xff] %v6243
      %6912 = vst [vmem:[%s6838 + $0x248] sm:$0xff] %v6245
      %6913 = vst [vmem:[%s6838 + $0x250] sm:$0xff] %v6630
      %6914 = vst [vmem:[%s6838 + $0x258] sm:$0xff] %v5848
      %6915 = vst [vmem:[%s6838 + $0x260] sm:$0xff] %v5850
      %6916 = vst [vmem:[%s6838 + $0x268] sm:$0xff] %v6249
      %6917 = vst [vmem:[%s6838 + $0x270] sm:$0xff] %v6251
      %6918 = vst [vmem:[%s6838 + $0x278] sm:$0xff] %v6635
      %6919 = vst [vmem:[%s6838 + $0x280] sm:$0xff] %v5854
      %6920 = vst [vmem:[%s6838 + $0x288] sm:$0xff] %v5856
      %6921 = vst [vmem:[%s6838 + $0x290] sm:$0xff] %v6255
      %6922 = vst [vmem:[%s6838 + $0x298] sm:$0xff] %v6257
      %6923 = vst [vmem:[%s6838 + $0x2a0] sm:$0xff] %v6640
      %6924 = vst [vmem:[%s6838 + $0x2a8] sm:$0xff] %v5860
      %6925 = vst [vmem:[%s6838 + $0x2b0] sm:$0xff] %v5862
      %6926 = vst [vmem:[%s6838 + $0x2b8] sm:$0xff] %v6261
      %6927 = vst [vmem:[%s6838 + $0x2c0] sm:$0xff] %v6263
      %6928 = vst [vmem:[%s6838 + $0x2c8] sm:$0xff] %v6645
      %6929 = vst [vmem:[%s6838 + $0x2d0] sm:$0xff] %v5866
      %6930 = vst [vmem:[%s6838 + $0x2d8] sm:$0xff] %v5868
      %6931 = vst [vmem:[%s6838 + $0x2e0] sm:$0xff] %v6267
      %6932 = vst [vmem:[%s6838 + $0x2e8] sm:$0xff] %v6269
      %6933 = vst [vmem:[%s6838 + $0x2f0] sm:$0xff] %v6650
      %6934 = vst [vmem:[%s6838 + $0x2f8] sm:$0xff] %v5872
      %6935 = vst [vmem:[%s6838 + $0x300] sm:$0xff] %v5874
      %6936 = vst [vmem:[%s6838 + $0x308] sm:$0xff] %v6273
      %6937 = vst [vmem:[%s6838 + $0x310] sm:$0xff] %v6275
      %6938 = vst [vmem:[%s6838 + $0x318] sm:$0xff] %v6655
      %6939 = vst [vmem:[%s6838 + $0x320] sm:$0xff] %v5878
      %6940 = vst [vmem:[%s6838 + $0x328] sm:$0xff] %v5880
      %6941 = vst [vmem:[%s6838 + $0x330] sm:$0xff] %v6279
      %6942 = vst [vmem:[%s6838 + $0x338] sm:$0xff] %v6281
      %6943 = vst [vmem:[%s6838 + $0x340] sm:$0xff] %v6660
      %6944 = vst [vmem:[%s6838 + $0x348] sm:$0xff] %v5884
      %6945 = vst [vmem:[%s6838 + $0x350] sm:$0xff] %v5886
      %6946 = vst [vmem:[%s6838 + $0x358] sm:$0xff] %v6285
      %6947 = vst [vmem:[%s6838 + $0x360] sm:$0xff] %v6287
      %6948 = vst [vmem:[%s6838 + $0x368] sm:$0xff] %v6665
      %6949 = vst [vmem:[%s6838 + $0x370] sm:$0xff] %v5890
      %6950 = vst [vmem:[%s6838 + $0x378] sm:$0xff] %v5892
      %6951 = vst [vmem:[%s6838 + $0x380] sm:$0xff] %v6291
      %6952 = vst [vmem:[%s6838 + $0x388] sm:$0xff] %v6293
      %6953 = vst [vmem:[%s6838 + $0x390] sm:$0xff] %v6670
      %6954 = vst [vmem:[%s6838 + $0x398] sm:$0xff] %v5896
      %6955 = vst [vmem:[%s6838 + $0x3a0] sm:$0xff] %v5898
      %6956 = vst [vmem:[%s6838 + $0x3a8] sm:$0xff] %v6297
      %6957 = vst [vmem:[%s6838 + $0x3b0] sm:$0xff] %v6299
      %6958 = vst [vmem:[%s6838 + $0x3b8] sm:$0xff] %v6675
      %6959 = vst [vmem:[%s6838 + $0x3c0] sm:$0xff] %v5902
      %6960 = vst [vmem:[%s6838 + $0x3c8] sm:$0xff] %v5904
      %6961 = vst [vmem:[%s6838 + $0x3d0] sm:$0xff] %v6303
      %6962 = vst [vmem:[%s6838 + $0x3d8] sm:$0xff] %v6305
      %6963 = vst [vmem:[%s6838 + $0x3e0] sm:$0xff] %v6680
      %6964 = vst [vmem:[%s6838 + $0x3e8] sm:$0xff] %v5908
      %6965 = vst [vmem:[%s6838 + $0x3f0] sm:$0xff] %v5910
      %6966 = vst [vmem:[%s6838 + $0x3f8] sm:$0xff] %v6309
      %6967 = vst [vmem:[%s6838 + $0x400] sm:$0xff] %v6311
      %6968 = vst [vmem:[%s6838 + $0x408] sm:$0xff] %v6685
      %6969 = vst [vmem:[%s6838 + $0x410] sm:$0xff] %v5914
      %6970 = vst [vmem:[%s6838 + $0x418] sm:$0xff] %v5916
      %6971 = vst [vmem:[%s6838 + $0x420] sm:$0xff] %v6315
      %6972 = vst [vmem:[%s6838 + $0x428] sm:$0xff] %v6317
      %6973 = vst [vmem:[%s6838 + $0x430] sm:$0xff] %v6690
      %6974 = vst [vmem:[%s6838 + $0x438] sm:$0xff] %v5920
      %6975 = vst [vmem:[%s6838 + $0x440] sm:$0xff] %v5922
      %6976 = vst [vmem:[%s6838 + $0x448] sm:$0xff] %v6321
      %6977 = vst [vmem:[%s6838 + $0x450] sm:$0xff] %v6323
      %6978 = vst [vmem:[%s6838 + $0x458] sm:$0xff] %v6695
      %6979 = vst [vmem:[%s6838 + $0x460] sm:$0xff] %v5926
      %6980 = vst [vmem:[%s6838 + $0x468] sm:$0xff] %v5928
      %6981 = vst [vmem:[%s6838 + $0x470] sm:$0xff] %v6327
      %6982 = vst [vmem:[%s6838 + $0x478] sm:$0xff] %v6329
      %6983 = vst [vmem:[%s6838 + $0x480] sm:$0xff] %v6700
      %6984 = vst [vmem:[%s6838 + $0x488] sm:$0xff] %v5932
      %6985 = vst [vmem:[%s6838 + $0x490] sm:$0xff] %v5934
      %6986 = vst [vmem:[%s6838 + $0x498] sm:$0xff] %v6333
      %6987 = vst [vmem:[%s6838 + $0x4a0] sm:$0xff] %v6335
      %6988 = vst [vmem:[%s6838 + $0x4a8] sm:$0xff] %v6705
      %6989 = vst [vmem:[%s6838 + $0x4b0] sm:$0xff] %v5938
      %6990 = vst [vmem:[%s6838 + $0x4b8] sm:$0xff] %v5940
      %6991 = vst [vmem:[%s6838 + $0x4c0] sm:$0xff] %v6339
      %6992 = vst [vmem:[%s6838 + $0x4c8] sm:$0xff] %v6341
      %6993 = vst [vmem:[%s6838 + $0x4d0] sm:$0xff] %v6710
      %6994 = vst [vmem:[%s6838 + $0x4d8] sm:$0xff] %v5944
      %6995 = vst [vmem:[%s6838 + $0x4e0] sm:$0xff] %v5946
      %6996 = vst [vmem:[%s6838 + $0x4e8] sm:$0xff] %v6345
      %6997 = vst [vmem:[%s6838 + $0x4f0] sm:$0xff] %v6347
      %6998 = vst [vmem:[%s6838 + $0x4f8] sm:$0xff] %v6715
      %6999 = vst [vmem:[%s6838 + $0x500] sm:$0xff] %v5950
      %7000 = vst [vmem:[%s6838 + $0x508] sm:$0xff] %v5952
      %7001 = vst [vmem:[%s6838 + $0x510] sm:$0xff] %v6351
      %7002 = vst [vmem:[%s6838 + $0x518] sm:$0xff] %v6353
      %7003 = vst [vmem:[%s6838 + $0x520] sm:$0xff] %v6720
      %7004 = vst [vmem:[%s6838 + $0x528] sm:$0xff] %v5956
      %7005 = vst [vmem:[%s6838 + $0x530] sm:$0xff] %v5958
      %7006 = vst [vmem:[%s6838 + $0x538] sm:$0xff] %v6357
      %7007 = vst [vmem:[%s6838 + $0x540] sm:$0xff] %v6359
      %7008 = vst [vmem:[%s6838 + $0x548] sm:$0xff] %v6725
      %7009 = vst [vmem:[%s6838 + $0x550] sm:$0xff] %v5962
      %7010 = vst [vmem:[%s6838 + $0x558] sm:$0xff] %v5964
      %7011 = vst [vmem:[%s6838 + $0x560] sm:$0xff] %v6363
      %7012 = vst [vmem:[%s6838 + $0x568] sm:$0xff] %v6365
      %7013 = vst [vmem:[%s6838 + $0x570] sm:$0xff] %v6730
      %7014 = vst [vmem:[%s6838 + $0x578] sm:$0xff] %v5968
      %7015 = vst [vmem:[%s6838 + $0x580] sm:$0xff] %v5970
      %7016 = vst [vmem:[%s6838 + $0x588] sm:$0xff] %v6369
      %7017 = vst [vmem:[%s6838 + $0x590] sm:$0xff] %v6371
      %7018 = vst [vmem:[%s6838 + $0x598] sm:$0xff] %v6735
      %7019 = vst [vmem:[%s6838 + $0x5a0] sm:$0xff] %v5974
      %7020 = vst [vmem:[%s6838 + $0x5a8] sm:$0xff] %v5976
      %7021 = vst [vmem:[%s6838 + $0x5b0] sm:$0xff] %v6375
      %7022 = vst [vmem:[%s6838 + $0x5b8] sm:$0xff] %v6377
      %7023 = vst [vmem:[%s6838 + $0x5c0] sm:$0xff] %v6740
      %7024 = vst [vmem:[%s6838 + $0x5c8] sm:$0xff] %v5980
      %7025 = vst [vmem:[%s6838 + $0x5d0] sm:$0xff] %v5982
      %7026 = vst [vmem:[%s6838 + $0x5d8] sm:$0xff] %v6381
      %7027 = vst [vmem:[%s6838 + $0x5e0] sm:$0xff] %v6383
      %7028 = vst [vmem:[%s6838 + $0x5e8] sm:$0xff] %v6745
      %7029 = vst [vmem:[%s6838 + $0x5f0] sm:$0xff] %v5986
      %7030 = vst [vmem:[%s6838 + $0x5f8] sm:$0xff] %v5988
      %7031 = vst [vmem:[%s6838 + $0x600] sm:$0xff] %v6387
      %7032 = vst [vmem:[%s6838 + $0x608] sm:$0xff] %v6389
      %7033 = vst [vmem:[%s6838 + $0x610] sm:$0xff] %v6750
      %7034 = vst [vmem:[%s6838 + $0x618] sm:$0xff] %v5992
      %7035 = vst [vmem:[%s6838 + $0x620] sm:$0xff] %v5994
      %7036 = vst [vmem:[%s6838 + $0x628] sm:$0xff] %v6393
      %7037 = vst [vmem:[%s6838 + $0x630] sm:$0xff] %v6395
      %7038 = vst [vmem:[%s6838 + $0x638] sm:$0xff] %v6755
      %7039 = vst [vmem:[%s6838 + $0x640] sm:$0xff] %v5998
      %7040 = vst [vmem:[%s6838 + $0x648] sm:$0xff] %v6000
      %7041 = vst [vmem:[%s6838 + $0x650] sm:$0xff] %v6399
      %7042 = vst [vmem:[%s6838 + $0x658] sm:$0xff] %v6401
      %7043 = vst [vmem:[%s6838 + $0x660] sm:$0xff] %v6760
      %7044 = vst [vmem:[%s6838 + $0x668] sm:$0xff] %v6004
      %7045 = vst [vmem:[%s6838 + $0x670] sm:$0xff] %v6006
      %7046 = vst [vmem:[%s6838 + $0x678] sm:$0xff] %v6405
      %7047 = vst [vmem:[%s6838 + $0x680] sm:$0xff] %v6407
      %7048 = vst [vmem:[%s6838 + $0x688] sm:$0xff] %v6765
      %7049 = vst [vmem:[%s6838 + $0x690] sm:$0xff] %v6010
      %7050 = vst [vmem:[%s6838 + $0x698] sm:$0xff] %v6012
      %7051 = vst [vmem:[%s6838 + $0x6a0] sm:$0xff] %v6411
      %7052 = vst [vmem:[%s6838 + $0x6a8] sm:$0xff] %v6413
      %7053 = vst [vmem:[%s6838 + $0x6b0] sm:$0xff] %v6770
      %7054 = vst [vmem:[%s6838 + $0x6b8] sm:$0xff] %v6016
      %7055 = vst [vmem:[%s6838 + $0x6c0] sm:$0xff] %v6018
      %7056 = vst [vmem:[%s6838 + $0x6c8] sm:$0xff] %v6417
      %7057 = vst [vmem:[%s6838 + $0x6d0] sm:$0xff] %v6419
      %7058 = vst [vmem:[%s6838 + $0x6d8] sm:$0xff] %v6775
      %7059 = vst [vmem:[%s6838 + $0x6e0] sm:$0xff] %v6022
      %7060 = vst [vmem:[%s6838 + $0x6e8] sm:$0xff] %v6024
      %7061 = vst [vmem:[%s6838 + $0x6f0] sm:$0xff] %v6423
      %7062 = vst [vmem:[%s6838 + $0x6f8] sm:$0xff] %v6425
      %7063 = vst [vmem:[%s6838 + $0x700] sm:$0xff] %v6780
      %7064 = vst [vmem:[%s6838 + $0x708] sm:$0xff] %v6028
      %7065 = vst [vmem:[%s6838 + $0x710] sm:$0xff] %v6030
      %7066 = vst [vmem:[%s6838 + $0x718] sm:$0xff] %v6429
      %7067 = vst [vmem:[%s6838 + $0x720] sm:$0xff] %v6431
      %7068 = vst [vmem:[%s6838 + $0x728] sm:$0xff] %v6785
      %7069 = vst [vmem:[%s6838 + $0x730] sm:$0xff] %v6034
      %7070 = vst [vmem:[%s6838 + $0x738] sm:$0xff] %v6036
      %7071 = vst [vmem:[%s6838 + $0x740] sm:$0xff] %v6435
      %7072 = vst [vmem:[%s6838 + $0x748] sm:$0xff] %v6437
      %7073 = vst [vmem:[%s6838 + $0x750] sm:$0xff] %v6790
      %7074 = vst [vmem:[%s6838 + $0x758] sm:$0xff] %v6040
      %7075 = vst [vmem:[%s6838 + $0x760] sm:$0xff] %v6042
      %7076 = vst [vmem:[%s6838 + $0x768] sm:$0xff] %v6441
      %7077 = vst [vmem:[%s6838 + $0x770] sm:$0xff] %v6443
      %7078 = vst [vmem:[%s6838 + $0x778] sm:$0xff] %v6795
      %7079 = vst [vmem:[%s6838 + $0x780] sm:$0xff] %v6046
      %7080 = vst [vmem:[%s6838 + $0x788] sm:$0xff] %v6048
      %7081 = vst [vmem:[%s6838 + $0x790] sm:$0xff] %v6447
      %7082 = vst [vmem:[%s6838 + $0x798] sm:$0xff] %v6449
      %7083 = vst [vmem:[%s6838 + $0x7a0] sm:$0xff] %v6800
      %7084 = vst [vmem:[%s6838 + $0x7a8] sm:$0xff] %v6052
      %7085 = vst [vmem:[%s6838 + $0x7b0] sm:$0xff] %v6054
      %7086 = vst [vmem:[%s6838 + $0x7b8] sm:$0xff] %v6453
      %7087 = vst [vmem:[%s6838 + $0x7c0] sm:$0xff] %v6455
      %7088 = vst [vmem:[%s6838 + $0x7c8] sm:$0xff] %v6805
      %7089 = vst [vmem:[%s6838 + $0x7d0] sm:$0xff] %v6058
      %7090 = vst [vmem:[%s6838 + $0x7d8] sm:$0xff] %v6060
      %7091 = vst [vmem:[%s6838 + $0x7e0] sm:$0xff] %v6459
      %7092 = vst [vmem:[%s6838 + $0x7e8] sm:$0xff] %v6461
      %7093 = vst [vmem:[%s6838 + $0x7f0] sm:$0xff] %v6810
      %7094 = vst [vmem:[%s6838 + $0x7f8] sm:$0xff] %v6064
      %7095 = vst [vmem:[%s6838 + $0x800] sm:$0xff] %v6066
      %7096 = vst [vmem:[%s6838 + $0x808] sm:$0xff] %v6465
      %7097 = vst [vmem:[%s6838 + $0x810] sm:$0xff] %v6467
      %7098 = vst [vmem:[%s6838 + $0x818] sm:$0xff] %v6815
      %7099 = vst [vmem:[%s6838 + $0x820] sm:$0xff] %v6070
      %7100 = vst [vmem:[%s6838 + $0x828] sm:$0xff] %v6072
      %7101 = vst [vmem:[%s6838 + $0x830] sm:$0xff] %v6471
      %7102 = vst [vmem:[%s6838 + $0x838] sm:$0xff] %v6473
      %7103 = vst [vmem:[%s6838 + $0x840] sm:$0xff] %v6820
      %7104 = vst [vmem:[%s6838 + $0x848] sm:$0xff] %v6076
      %7105 = vst [vmem:[%s6838 + $0x850] sm:$0xff] %v6078
      %7106 = vst [vmem:[%s6838 + $0x858] sm:$0xff] %v6477
      %7107 = vst [vmem:[%s6838 + $0x860] sm:$0xff] %v6479
      %7108 = vst [vmem:[%s6838 + $0x868] sm:$0xff] %v6825
      %7109 = vst [vmem:[%s6838 + $0x870] sm:$0xff] %v6082
      %7110 = vst [vmem:[%s6838 + $0x878] sm:$0xff] %v6084
      %7111 = vst [vmem:[%s6838 + $0x880] sm:$0xff] %v6483
      %7112 = vst [vmem:[%s6838 + $0x888] sm:$0xff] %v6485
      %7113 = vst [vmem:[%s6838 + $0x890] sm:$0xff] %v6830
      %7114 = vst [vmem:[%s6838 + $0x898] sm:$0xff] %v6088
      %7115 = vst [vmem:[%s6838 + $0x8a0] sm:$0xff] %v6090
      %7116 = vst [vmem:[%s6838 + $0x8a8] sm:$0xff] %v6489
      %7117 = vst [vmem:[%s6838 + $0x8b0] sm:$0xff] %v6491
      %7118 = vst [vmem:[%s6838 + $0x8b8] sm:$0xff] %v6835
      %s7119 = smul.addr %s2080, 128
      %s7120 = scalar_lea.hbm %s6, %s7119
      %s7121 = scalar_lea.sflag [#allocation4], 5
      // Predicated region
      $region57: #{tpu_custom_call.1} parent=35 // pred_check
        _
      $region58: #{tpu_custom_call.1} parent=35 // pred_check_branch
        %7123 = sbr.rel target = $region60
      $region59: #{tpu_custom_call.1} parent=35 // pred_region
        %7124 = sst [smem:[#allocation7]] [#allocation18]
        %7125 = sst [smem:[#allocation8]] [#allocation17]
      $region60: #{tpu_custom_call.1} parent=35 // pred_fallthru
        _
      %7127 = shalt.err (0)
      %s7129 = sshll.u32 %s6838, 4
      %s7130 = int_to_ptr.vmem [resolvable:$true] %s7129
      %7132 = dma.vmem_to_hbm [thread:$0]  %s7130, 35840, %s7120, %s7121
      %s7133 = smul.u32 8, 56
      %s7134 = smul.u32 %s7133, 5
      %s7135 = sshll.u32 %s7134, 4
      %7136 = dma.done [#allocation4], %s7135
      %s7137 = sshll.u32 %s7134, 4
      %7138 = dma.done %s2068, %s7137
      %s7139 = sshll.u32 %s7134, 4
      %7140 = dma.done %s2083, %s7139
      %s7141 = sshll.u32 %s7134, 4
      %7142 = dma.done %s3762, %s7141
      %s7143 = sshll.u32 %s7134, 4
      %7144 = dma.done %s5442, %s7143
      %s7145 = sshll.u32 %s7134, 4
      %7146 = dma.done %s7121, %s7145
    $region36: #{tpu_custom_call.1} parent=5 // pred_fallthru
      _
  $region6: #{tpu_custom_call.1} parent=0 // loop_footer
    %s18 = sadd.s32 1, %s14
  $region7: #{tpu_custom_call.1} parent=0 // loop_footer_branch
    %13 = sbr.rel target = $region3
  $region8: #{tpu_custom_call.1} parent=0 // loop_exit
    _
  %7147 = vsyncmov [#allocation4]
  %s7148 = vpop.sfrf %7147
  %p7149 = scmp.eq.s32.totalorder %s7148, 0
  %p7150 = pneg %p7149
  %7152 = shalt.err (%p7150)
  %s7153 = scalar_lea.sflag [#allocation4], 1
  %7154 = vsyncmov %s7153
  %s7155 = vpop.sfrf %7154
  %p7156 = scmp.eq.s32.totalorder %s7155, 0
  %p7157 = pneg %p7156
  %7159 = shalt.err (%p7157)
  %s7160 = scalar_lea.sflag [#allocation4], 2
  %7161 = vsyncmov %s7160
  %s7162 = vpop.sfrf %7161
  %p7163 = scmp.eq.s32.totalorder %s7162, 0
  %p7164 = pneg %p7163
  %7166 = shalt.err (%p7164)
  %s7167 = scalar_lea.sflag [#allocation4], 3
  %7168 = vsyncmov %s7167
  %s7169 = vpop.sfrf %7168
  %p7170 = scmp.eq.s32.totalorder %s7169, 0
  %p7171 = pneg %p7170
  %7173 = shalt.err (%p7171)
  %s7174 = scalar_lea.sflag [#allocation4], 4
  %7175 = vsyncmov %s7174
  %s7176 = vpop.sfrf %7175
  %p7177 = scmp.eq.s32.totalorder %s7176, 0
  %p7178 = pneg %p7177
  %7180 = shalt.err (%p7178)
  %s7181 = scalar_lea.sflag [#allocation4], 5
  %7182 = vsyncmov %s7181
  %s7183 = vpop.sfrf %7182
  %p7184 = scmp.eq.s32.totalorder %s7183, 0
  %p7185 = pneg %p7184
  %7187 = shalt.err (%p7185)

</llo_original>
